<compile_context>
chip_gen: v7x
topology: tpu7x:2x2x1
jax: 0.10.0
libtpu: 0.0.40
codegen_flags: <defaults>
</compile_context>

<pallas_src>
import functools
import math

import jax
import jax.numpy as jnp
from jax.experimental import pallas as pl
from jax.experimental.pallas import tpu as pltpu


def _decoder_kernel(n_layers, kernel_sz, emb, bb, t_len, s_real, pad_val,
                    x0_ref, yproj_ref, ect_ref, ez_ref,
                    wa_ref, ba_ref, wg_ref, bg_ref,
                    wee_ref, wfc_ref, bfc_ref,
                    out_ref, attn_ref):
    f32 = jnp.float32
    bf16 = jnp.bfloat16
    scale = jnp.float32(math.sqrt(0.5))
    rows = bb * t_len
    s_pad = attn_ref.shape[-1]

    x = x0_ref[...]            # [rows, emb]       f32  (Linear1 output)
    y_proj = yproj_ref[...]    # [rows, emb]       f32  (scale*y@wo2e + fused bias)
    enc_ct = ect_ref[...]      # [bb, emb, s_pad]  bf16 (pre-transposed enc_conved)
    enc_z = ez_ref[...]        # [bb, s_pad, emb]  bf16
    w_ee = wee_ref[...]        # [emb, emb]        bf16 (we2o @ wo2e)

    # Hoisted loop-invariant masks (JAX does not CSE broadcast_in_dim).
    tpos = jax.lax.broadcasted_iota(jnp.int32, (rows, emb), 0) % t_len
    shift_valid = [tpos >= d for d in range(1, kernel_sz)]
    pad_fill = jnp.full((rows, emb), pad_val, f32)
    if s_real < s_pad:
        s_pos = jax.lax.broadcasted_iota(jnp.int32, (bb, t_len, s_pad), 2)
        energy_bias = jnp.where(s_pos < s_real, jnp.float32(0.0), jnp.float32(-1e30))
    else:
        energy_bias = None

    attn = jnp.zeros((bb, t_len, s_pad), f32)
    # TODO(synk): for large n_layers move the layer loop onto an "arbitrary" grid
    # axis (stream per-layer conv weights via index_map) to bound VMEM / vreg
    # pressure; static unroll with resident weights is fine at these sizes.
    for i in range(n_layers):
        # TODO(synk): nn.Dropout is stochastic in training; identity here (eval mode).
        # Causal conv (pre-split GLU halves) as K accumulated matmuls: tap d uses
        # x shifted down by d rows; rows whose (t mod T) < d are the causal left
        # padding and are replaced with trg_pad_idx (this also removes cross-batch
        # contamination from the flattened-row roll).
        a = jnp.dot(x.astype(bf16), wa_ref[i, 0], preferred_element_type=f32)
        g = jnp.dot(x.astype(bf16), wg_ref[i, 0], preferred_element_type=f32)
        for d in range(1, kernel_sz):
            xd = pltpu.roll(x, d, axis=0)
            xd = jnp.where(shift_valid[d - 1], xd, pad_fill).astype(bf16)
            a = a + jnp.dot(xd, wa_ref[i, d], preferred_element_type=f32)
            g = g + jnp.dot(xd, wg_ref[i, d], preferred_element_type=f32)
        conved = (a + ba_ref[i]) * jax.nn.sigmoid(g + bg_ref[i])       # [rows, emb]

        # Attention with fused projections:
        #   combined = ((conved@we2o + be2o) + y)*scale @ wo2e + bo2e
        #            = scale*(conved @ W_ee) + y_proj
        combined = scale * jnp.dot(conved.astype(bf16), w_ee,
                                   preferred_element_type=f32) + y_proj
        comb3 = combined.reshape(bb, t_len, emb).astype(bf16)
        # TODO(synk): T(=8)-row LHS tiles underfill the MXU M-dim here; a
        # transposed energy layout (M=s_pad) would raise fill but moves the
        # softmax reduction onto sublanes (XLU) - not taken.
        energy = jnp.einsum('bte,bes->bts', comb3, enc_ct,
                            preferred_element_type=f32)                # [bb, T, s_pad]
        if energy_bias is not None:
            energy = energy + energy_bias
        m = jnp.max(energy, axis=-1, keepdims=True)
        e = jnp.exp(energy - m)
        attn = e * pl.reciprocal(jnp.sum(e, axis=-1, keepdims=True), approx=True)
        attended = jnp.einsum('bts,bse->bte', attn.astype(bf16), enc_z,
                              preferred_element_type=f32)              # [bb, T, emb]

        conved = (conved + attended.reshape(rows, emb)) * scale
        x = (conved + x) * scale

    out_ref[...] = jnp.dot(x.astype(bf16), wfc_ref[...],
                           preferred_element_type=f32) + bfc_ref[...]
    attn_ref[...] = attn


def _round_up(n, m):
    return ((n + m - 1) // m) * m


def decoder_forward(y, enc_conved, enc_combined, params, *,
                    n_layers, kernel_sz, trg_pad_idx, block_b=None):
    f32, bf16 = jnp.float32, jnp.bfloat16
    B, T, out_dim = y.shape
    S, emb = enc_conved.shape[1], enc_conved.shape[2]
    (w1, b1, cw, cb, we2o, be2o, wo2e, bo2e, wfc, bfc) = params

    # v5e/v6e have one TensorCore: a single grid step (bb = B) maximizes MXU row
    # fill and avoids per-step overhead.  On v7x pick block_b so the grid has an
    # even number of steps with bb*T >= 256 rows each (core-parallel sharding).
    bb = B if block_b is None else block_b
    assert B % bb == 0, "block_b must divide batch"

    out_pad = _round_up(out_dim, 128)
    s_pad = _round_up(S, 128)
    scale = math.sqrt(0.5)

    y2 = y.reshape(B * T, out_dim).astype(f32)
    # Linear1 and the loop-invariant half of the fused attention projection are
    # cheap [., out_dim] matmuls -> do them in XLA so the kernel only sees
    # [B*T, emb] activations (no out_dim->128 input padding).
    x0 = y2 @ w1 + b1                                    # [B*T, emb]
    b_e = scale * (be2o @ wo2e) + bo2e                   # [1, emb]
    y_proj = scale * (y2 @ wo2e) + b_e                   # [B*T, emb]
    w_ee = (we2o @ wo2e).astype(bf16)                    # [emb, emb]

    # Conv taps: shift-by-d uses cw[:, K-1-d]; pre-split GLU a/g halves.
    w_taps = jnp.stack([cw[:, kernel_sz - 1 - d] for d in range(kernel_sz)],
                       axis=1)                           # [L, K, emb, 2*emb]
    wa = w_taps[..., :emb].astype(bf16)                  # [L, K, emb, emb]
    wg = w_taps[..., emb:].astype(bf16)
    ba = cb[:, :, :emb].astype(f32)                      # [L, 1, emb]
    bg = cb[:, :, emb:].astype(f32)

    def pad_last(a, n):
        return jnp.pad(a, [(0, 0)] * (a.ndim - 1) + [(0, n - a.shape[-1])])

    wfc_p = pad_last(wfc, out_pad).astype(bf16)          # [emb, out_pad]
    bfc_p = pad_last(bfc, out_pad).astype(f32)           # [1, out_pad]

    # Encoder tensors: bf16, source length padded to a lane multiple; enc_conved
    # pre-transposed so the per-layer energy matmul needs no in-kernel transpose.
    enc_ct = jnp.pad(jnp.swapaxes(enc_conved, 1, 2).astype(bf16),
                     ((0, 0), (0, 0), (0, s_pad - S)))   # [B, emb, s_pad]
    enc_zp = jnp.pad(enc_combined.astype(bf16),
                     ((0, 0), (0, s_pad - S), (0, 0)))   # [B, s_pad, emb]

    kernel = functools.partial(_decoder_kernel, n_layers, kernel_sz, emb,
                               bb, T, S, float(trg_pad_idx))

    def full(a):
        shp = a.shape
        # TODO(synk): on v7x (64 MiB VMEM) give these loop-invariant weight specs
        # pipeline_mode=pl.Buffered(1) to single-buffer them when sizes grow.
        return pl.BlockSpec(shp, lambda b, _s=shp: (0,) * len(_s))

    rows = bb * T

    def nbytes(shape, dtype):
        return math.prod(shape) * jnp.dtype(dtype).itemsize

    def arr_bytes(a):
        return int(a.size) * a.dtype.itemsize

    stream_bytes = (2 * nbytes((rows, emb), f32)            # x0, y_proj
                    + nbytes((bb, emb, s_pad), bf16)        # enc_conved^T
                    + nbytes((bb, s_pad, emb), bf16)        # enc_combined
                    + nbytes((rows, out_pad), f32)          # out
                    + nbytes((bb, T, s_pad), f32))          # attn
    weight_bytes = sum(arr_bytes(a) for a in (wa, ba, wg, bg, w_ee, wfc_p, bfc_p))
    footprint = 2 * (stream_bytes + weight_bytes)           # double-buffered specs
    vmem_limit = int(min(100 * 2**20, max(32 * 2**20, 4 * footprint)))

    grid = (B // bb,)
    out_flat, attn_p = pl.pallas_call(
        kernel,
        out_shape=(jax.ShapeDtypeStruct((B * T, out_pad), f32),
                   jax.ShapeDtypeStruct((B, T, s_pad), f32)),
        grid_spec=pltpu.PrefetchScalarGridSpec(
            num_scalar_prefetch=0,
            grid=grid,
            in_specs=[
                pl.BlockSpec((rows, emb), lambda b: (b, 0)),           # x0
                pl.BlockSpec((rows, emb), lambda b: (b, 0)),           # y_proj
                pl.BlockSpec((bb, emb, s_pad), lambda b: (b, 0, 0)),   # enc_conved^T
                pl.BlockSpec((bb, s_pad, emb), lambda b: (b, 0, 0)),   # enc_combined
                full(wa), full(ba), full(wg), full(bg),
                full(w_ee), full(wfc_p), full(bfc_p),
            ],
            out_specs=[pl.BlockSpec((rows, out_pad), lambda b: (b, 0)),
                       pl.BlockSpec((bb, T, s_pad), lambda b: (b, 0, 0))],
        ),
        compiler_params=pltpu.CompilerParams(
            dimension_semantics=("parallel",),
            vmem_limit_bytes=vmem_limit),
    )(x0, y_proj, enc_ct, enc_zp, wa, ba, wg, bg, w_ee, wfc_p, bfc_p)

    out = out_flat.reshape(B, T, out_pad)[:, :, :out_dim]
    attn = attn_p[:, :, :S]
    return out, attn


def decoder_ref(y, enc_c, enc_z, params, *, n_layers, kernel_sz, trg_pad_idx):
    """Pure-JAX reference (same math as the PyTorch forward, eval mode)."""
    (w1, b1, cw, cb, we2o, be2o, wo2e, bo2e, wfc, bfc) = params
    scale = jnp.sqrt(jnp.float32(0.5))
    B, T, _ = y.shape
    emb = w1.shape[1]
    x = y @ w1 + b1[0]
    attn = None
    for i in range(n_layers):
        pad = jnp.full((B, kernel_sz - 1, emb), float(trg_pad_idx), jnp.float32)
        padded = jnp.concatenate([pad, x], axis=1)
        acc = jnp.zeros((B, T, 2 * emb), jnp.float32) + cb[i, 0]
        for k in range(kernel_sz):
            acc = acc + jnp.einsum('bte,eo->bto', padded[:, k:k + T], cw[i, k])
        a, g = acc[..., :emb], acc[..., emb:]
        conved = a * jax.nn.sigmoid(g)
        conved_emb = conved @ we2o + be2o[0]
        combined = (conved_emb + y) * scale
        combined = combined @ wo2e + bo2e[0]
        energy = jnp.einsum('bte,bse->bts', combined, enc_c)
        attn = jax.nn.softmax(energy, axis=-1)
        attended = jnp.einsum('bts,bse->bte', attn, enc_z)
        conved = (conved + attended) * scale
        conved = (conved + x) * scale
        x = conved
    out = x @ wfc + bfc[0]
    return out, attn


if __name__ == "__main__":
    # small shapes consistent with the module
    B, T, S = 16, 8, 12           # batch, trg_len, src_len
    OUT, EMB = 6, 32              # output_dim, emb_dim
    N_LAYERS, KSZ = 2, 3
    TRG_PAD_IDX = 1

    key = jax.random.PRNGKey(0)
    ks = jax.random.split(key, 16)

    y = jax.random.normal(ks[0], (B, T, OUT), jnp.float32)
    enc_conved = jax.random.normal(ks[1], (B, S, EMB), jnp.float32)
    enc_combined = jax.random.normal(ks[2], (B, S, EMB), jnp.float32)

    s = 0.1
    params = (
        s * jax.random.normal(ks[3], (OUT, EMB), jnp.float32),              # Linear1.W^T
        s * jax.random.normal(ks[4], (1, EMB), jnp.float32),                # Linear1.b
        s * jax.random.normal(ks[5], (N_LAYERS, KSZ, EMB, 2 * EMB), jnp.float32),  # conv weights
        s * jax.random.normal(ks[6], (N_LAYERS, 1, 2 * EMB), jnp.float32),  # conv biases
        s * jax.random.normal(ks[7], (EMB, OUT), jnp.float32),              # attn_emb2out.W^T
        s * jax.random.normal(ks[8], (1, OUT), jnp.float32),                # attn_emb2out.b
        s * jax.random.normal(ks[9], (OUT, EMB), jnp.float32),              # attn_out2emb.W^T
        s * jax.random.normal(ks[10], (1, EMB), jnp.float32),               # attn_out2emb.b
        s * jax.random.normal(ks[11], (EMB, OUT), jnp.float32),             # fc_out.W^T
        s * jax.random.normal(ks[12], (1, OUT), jnp.float32),               # fc_out.b
    )

    # block_b=None -> single grid step (bb=B): best fill on 1-TC v5e/v6e.
    out, attn = decoder_forward(y, enc_conved, enc_combined, params,
                                n_layers=N_LAYERS, kernel_sz=KSZ,
                                trg_pad_idx=TRG_PAD_IDX, block_b=None)
    out = jax.block_until_ready(out)
    attn = jax.block_until_ready(attn)

    out_ref, attn_ref = decoder_ref(y, enc_conved, enc_combined, params,
                                    n_layers=N_LAYERS, kernel_sz=KSZ,
                                    trg_pad_idx=TRG_PAD_IDX)
    err_o = float(jnp.max(jnp.abs(out - out_ref)))
    err_a = float(jnp.max(jnp.abs(attn - attn_ref)))
    assert err_o < 1e-2 and err_a < 1e-2, (err_o, err_a)
    assert out.shape == (B, T, OUT) and attn.shape == (B, T, S)
    print("KERNEL_OK")
</pallas_src>

<mosaic_0001>
module attributes {stable_mosaic.version = 11 : i64} {
  func.func @_decoder_kernel(%arg0: i32, %arg1: memref<128x32xf32, #tpu.memory_space<vmem>>, %arg2: memref<128x32xf32, #tpu.memory_space<vmem>>, %arg3: memref<16x32x128xbf16, #tpu.memory_space<vmem>>, %arg4: memref<16x128x32xbf16, #tpu.memory_space<vmem>>, %arg5: memref<2x3x32x32xbf16, #tpu.memory_space<vmem>>, %arg6: memref<2x1x32xf32, #tpu.memory_space<vmem>>, %arg7: memref<2x3x32x32xbf16, #tpu.memory_space<vmem>>, %arg8: memref<2x1x32xf32, #tpu.memory_space<vmem>>, %arg9: memref<32x32xbf16, #tpu.memory_space<vmem>>, %arg10: memref<32x128xbf16, #tpu.memory_space<vmem>>, %arg11: memref<1x128xf32, #tpu.memory_space<vmem>>, %arg12: memref<128x128xf32, #tpu.memory_space<vmem>>, %arg13: memref<16x8x128xf32, #tpu.memory_space<vmem>>) attributes {dimension_semantics = [#tpu.dimension_semantics<parallel>], iteration_bounds = array<i64: 1>, scalar_prefetch = 0 : i64, scratch_operands = 0 : i64, tpu.core_type = #tpu.core_type<tc>, window_params = [{transform_indices = @transform_0, window_bounds = array<i64: 128, 32>}, {transform_indices = @transform_1, window_bounds = array<i64: 128, 32>}, {transform_indices = @transform_2, window_bounds = array<i64: 16, 32, 128>}, {transform_indices = @transform_3, window_bounds = array<i64: 16, 128, 32>}, {pipeline_mode = #tpu.pipeline_mode<synchronous>, transform_indices = @transform_4, window_bounds = array<i64: 2, 3, 32, 32>}, {pipeline_mode = #tpu.pipeline_mode<synchronous>, transform_indices = @transform_5, window_bounds = array<i64: 2, 1, 32>}, {pipeline_mode = #tpu.pipeline_mode<synchronous>, transform_indices = @transform_6, window_bounds = array<i64: 2, 3, 32, 32>}, {pipeline_mode = #tpu.pipeline_mode<synchronous>, transform_indices = @transform_7, window_bounds = array<i64: 2, 1, 32>}, {pipeline_mode = #tpu.pipeline_mode<synchronous>, transform_indices = @transform_8, window_bounds = array<i64: 32, 32>}, {pipeline_mode = #tpu.pipeline_mode<synchronous>, transform_indices = @transform_9, window_bounds = array<i64: 32, 128>}, {pipeline_mode = #tpu.pipeline_mode<synchronous>, transform_indices = @transform_10, window_bounds = array<i64: 1, 128>}, {transform_indices = @transform_11, window_bounds = array<i64: 128, 128>}, {transform_indices = @transform_12, window_bounds = array<i64: 16, 8, 128>}]} {
    %c0 = arith.constant 0 : index
    %c0_0 = arith.constant 0 : index
    %0 = vector.load %arg1[%c0, %c0_0] : memref<128x32xf32, #tpu.memory_space<vmem>>, vector<128x32xf32>
    %c0_1 = arith.constant 0 : index
    %c0_2 = arith.constant 0 : index
    %1 = vector.load %arg2[%c0_1, %c0_2] : memref<128x32xf32, #tpu.memory_space<vmem>>, vector<128x32xf32>
    %c0_3 = arith.constant 0 : index
    %c0_4 = arith.constant 0 : index
    %c0_5 = arith.constant 0 : index
    %2 = vector.load %arg3[%c0_3, %c0_4, %c0_5] : memref<16x32x128xbf16, #tpu.memory_space<vmem>>, vector<16x32x128xbf16>
    %c0_6 = arith.constant 0 : index
    %c0_7 = arith.constant 0 : index
    %c0_8 = arith.constant 0 : index
    %3 = vector.load %arg4[%c0_6, %c0_7, %c0_8] : memref<16x128x32xbf16, #tpu.memory_space<vmem>>, vector<16x128x32xbf16>
    %c0_9 = arith.constant 0 : index
    %c0_10 = arith.constant 0 : index
    %4 = vector.load %arg9[%c0_9, %c0_10] : memref<32x32xbf16, #tpu.memory_space<vmem>>, vector<32x32xbf16>
    %5 = tpu.iota {dimensions = array<i32: 0>} : vector<128x32xi32>
    %c8_i32 = arith.constant 8 : i32
    %c0_i32 = arith.constant 0 : i32
    %6 = arith.cmpi eq, %c8_i32, %c0_i32 : i32
    %c1_i32 = arith.constant 1 : i32
    %7 = arith.select %6, %c1_i32, %c8_i32 : i32
    %8 = vector.broadcast %7 : i32 to vector<128x32xi32>
    %9 = arith.remsi %5, %8 : vector<128x32xi32>
    %c0_i32_11 = arith.constant 0 : i32
    %10 = vector.broadcast %c0_i32_11 : i32 to vector<128x32xi32>
    %11 = arith.cmpi ne, %9, %10 : vector<128x32xi32>
    %c0_i32_12 = arith.constant 0 : i32
    %12 = vector.broadcast %c0_i32_12 : i32 to vector<128x32xi32>
    %13 = arith.cmpi slt, %9, %12 : vector<128x32xi32>
    %c0_i32_13 = arith.constant 0 : i32
    %14 = arith.cmpi slt, %7, %c0_i32_13 : i32
    %15 = vector.broadcast %14 : i1 to vector<128x32xi1>
    %16 = vector.broadcast %15 : vector<128x32xi1> to vector<128x32xi1>
    %17 = arith.xori %13, %16 : vector<128x32xi1>
    %18 = arith.andi %17, %11 : vector<128x32xi1>
    %19 = vector.broadcast %7 : i32 to vector<128x32xi32>
    %20 = arith.addi %9, %19 : vector<128x32xi32>
    %21 = arith.select %18, %20, %9 : vector<128x32xi1>, vector<128x32xi32>
    %c1_i32_14 = arith.constant 1 : i32
    %22 = vector.broadcast %c1_i32_14 : i32 to vector<128x32xi32>
    %23 = arith.cmpi sge, %21, %22 : vector<128x32xi32>
    %c2_i32 = arith.constant 2 : i32
    %24 = vector.broadcast %c2_i32 : i32 to vector<128x32xi32>
    %25 = arith.cmpi sge, %21, %24 : vector<128x32xi32>
    %cst = arith.constant 1.000000e+00 : f32
    %26 = vector.broadcast %cst : f32 to vector<128x32xf32>
    %27 = tpu.iota {dimensions = array<i32: 2>} : vector<16x8x128xi32>
    %c12_i32 = arith.constant 12 : i32
    %28 = vector.broadcast %c12_i32 : i32 to vector<16x8x128xi32>
    %29 = arith.cmpi slt, %27, %28 : vector<16x8x128xi32>
    %cst_15 = arith.constant 0.000000e+00 : f32
    %cst_16 = arith.constant -1.000000e+30 : f32
    %30 = vector.broadcast %cst_15 : f32 to vector<16x8x128xf32>
    %31 = vector.broadcast %cst_16 : f32 to vector<16x8x128xf32>
    %32 = arith.select %29, %30, %31 : vector<16x8x128xi1>, vector<16x8x128xf32>
    %33 = arith.truncf %0 : vector<128x32xf32> to vector<128x32xbf16>
    %c0_17 = arith.constant 0 : index
    %c0_18 = arith.constant 0 : index
    %c0_19 = arith.constant 0 : index
    %c0_20 = arith.constant 0 : index
    %34 = vector.load %arg5[%c0_17, %c0_18, %c0_19, %c0_20] : memref<2x3x32x32xbf16, #tpu.memory_space<vmem>>, vector<1x1x32x32xbf16>
    %35 = vector.shape_cast %34 : vector<1x1x32x32xbf16> to vector<32x32xbf16>
    %cst_21 = arith.constant dense<0.000000e+00> : vector<128x32xf32>
    %36 = tpu.matmul %33, %35, %cst_21 {dimension_numbers = #tpu.dot_dimension_numbers<[1], [0], [0], [1], [0, 0, 1, 1], [], []>} : vector<128x32xbf16>, vector<32x32xbf16>, vector<128x32xf32> -> vector<128x32xf32>
    %37 = arith.truncf %0 : vector<128x32xf32> to vector<128x32xbf16>
    %c0_22 = arith.constant 0 : index
    %c0_23 = arith.constant 0 : index
    %c0_24 = arith.constant 0 : index
    %c0_25 = arith.constant 0 : index
    %38 = vector.load %arg7[%c0_22, %c0_23, %c0_24, %c0_25] : memref<2x3x32x32xbf16, #tpu.memory_space<vmem>>, vector<1x1x32x32xbf16>
    %39 = vector.shape_cast %38 : vector<1x1x32x32xbf16> to vector<32x32xbf16>
    %cst_26 = arith.constant dense<0.000000e+00> : vector<128x32xf32>
    %40 = tpu.matmul %37, %39, %cst_26 {dimension_numbers = #tpu.dot_dimension_numbers<[1], [0], [0], [1], [0, 0, 1, 1], [], []>} : vector<128x32xbf16>, vector<32x32xbf16>, vector<128x32xf32> -> vector<128x32xf32>
    %c1_i32_27 = arith.constant 1 : i32
    %41 = tpu.dynamic_rotate %0 by %c1_i32_27 dim 0 : vector<128x32xf32>, i32 -> vector<128x32xf32>
    %42 = arith.select %23, %41, %26 : vector<128x32xi1>, vector<128x32xf32>
    %43 = arith.truncf %42 : vector<128x32xf32> to vector<128x32xbf16>
    %c0_28 = arith.constant 0 : index
    %c1 = arith.constant 1 : index
    %c0_29 = arith.constant 0 : index
    %c0_30 = arith.constant 0 : index
    %44 = vector.load %arg5[%c0_28, %c1, %c0_29, %c0_30] : memref<2x3x32x32xbf16, #tpu.memory_space<vmem>>, vector<1x1x32x32xbf16>
    %45 = vector.shape_cast %44 : vector<1x1x32x32xbf16> to vector<32x32xbf16>
    %cst_31 = arith.constant dense<0.000000e+00> : vector<128x32xf32>
    %46 = tpu.matmul %43, %45, %cst_31 {dimension_numbers = #tpu.dot_dimension_numbers<[1], [0], [0], [1], [0, 0, 1, 1], [], []>} : vector<128x32xbf16>, vector<32x32xbf16>, vector<128x32xf32> -> vector<128x32xf32>
    %47 = arith.addf %36, %46 : vector<128x32xf32>
    %c0_32 = arith.constant 0 : index
    %c1_33 = arith.constant 1 : index
    %c0_34 = arith.constant 0 : index
    %c0_35 = arith.constant 0 : index
    %48 = vector.load %arg7[%c0_32, %c1_33, %c0_34, %c0_35] : memref<2x3x32x32xbf16, #tpu.memory_space<vmem>>, vector<1x1x32x32xbf16>
    %49 = vector.shape_cast %48 : vector<1x1x32x32xbf16> to vector<32x32xbf16>
    %cst_36 = arith.constant dense<0.000000e+00> : vector<128x32xf32>
    %50 = tpu.matmul %43, %49, %cst_36 {dimension_numbers = #tpu.dot_dimension_numbers<[1], [0], [0], [1], [0, 0, 1, 1], [], []>} : vector<128x32xbf16>, vector<32x32xbf16>, vector<128x32xf32> -> vector<128x32xf32>
    %51 = arith.addf %40, %50 : vector<128x32xf32>
    %c2_i32_37 = arith.constant 2 : i32
    %52 = tpu.dynamic_rotate %0 by %c2_i32_37 dim 0 : vector<128x32xf32>, i32 -> vector<128x32xf32>
    %53 = arith.select %25, %52, %26 : vector<128x32xi1>, vector<128x32xf32>
    %54 = arith.truncf %53 : vector<128x32xf32> to vector<128x32xbf16>
    %c0_38 = arith.constant 0 : index
    %c2 = arith.constant 2 : index
    %c0_39 = arith.constant 0 : index
    %c0_40 = arith.constant 0 : index
    %55 = vector.load %arg5[%c0_38, %c2, %c0_39, %c0_40] : memref<2x3x32x32xbf16, #tpu.memory_space<vmem>>, vector<1x1x32x32xbf16>
    %56 = vector.shape_cast %55 : vector<1x1x32x32xbf16> to vector<32x32xbf16>
    %cst_41 = arith.constant dense<0.000000e+00> : vector<128x32xf32>
    %57 = tpu.matmul %54, %56, %cst_41 {dimension_numbers = #tpu.dot_dimension_numbers<[1], [0], [0], [1], [0, 0, 1, 1], [], []>} : vector<128x32xbf16>, vector<32x32xbf16>, vector<128x32xf32> -> vector<128x32xf32>
    %58 = arith.addf %47, %57 : vector<128x32xf32>
    %c0_42 = arith.constant 0 : index
    %c2_43 = arith.constant 2 : index
    %c0_44 = arith.constant 0 : index
    %c0_45 = arith.constant 0 : index
    %59 = vector.load %arg7[%c0_42, %c2_43, %c0_44, %c0_45] : memref<2x3x32x32xbf16, #tpu.memory_space<vmem>>, vector<1x1x32x32xbf16>
    %60 = vector.shape_cast %59 : vector<1x1x32x32xbf16> to vector<32x32xbf16>
    %cst_46 = arith.constant dense<0.000000e+00> : vector<128x32xf32>
    %61 = tpu.matmul %54, %60, %cst_46 {dimension_numbers = #tpu.dot_dimension_numbers<[1], [0], [0], [1], [0, 0, 1, 1], [], []>} : vector<128x32xbf16>, vector<32x32xbf16>, vector<128x32xf32> -> vector<128x32xf32>
    %62 = arith.addf %51, %61 : vector<128x32xf32>
    %c0_47 = arith.constant 0 : index
    %c0_48 = arith.constant 0 : index
    %c0_49 = arith.constant 0 : index
    %63 = vector.load %arg6[%c0_47, %c0_48, %c0_49] : memref<2x1x32xf32, #tpu.memory_space<vmem>>, vector<1x1x32xf32>
    %64 = vector.shape_cast %63 : vector<1x1x32xf32> to vector<1x32xf32>
    %65 = vector.broadcast %64 : vector<1x32xf32> to vector<128x32xf32>
    %66 = arith.addf %58, %65 : vector<128x32xf32>
    %c0_50 = arith.constant 0 : index
    %c0_51 = arith.constant 0 : index
    %c0_52 = arith.constant 0 : index
    %67 = vector.load %arg8[%c0_50, %c0_51, %c0_52] : memref<2x1x32xf32, #tpu.memory_space<vmem>>, vector<1x1x32xf32>
    %68 = vector.shape_cast %67 : vector<1x1x32xf32> to vector<1x32xf32>
    %69 = vector.broadcast %68 : vector<1x32xf32> to vector<128x32xf32>
    %70 = arith.addf %62, %69 : vector<128x32xf32>
    %71 = arith.negf %70 : vector<128x32xf32>
    %72 = math.exp %71 : vector<128x32xf32>
    %cst_53 = arith.constant 1.000000e+00 : f32
    %73 = vector.broadcast %cst_53 : f32 to vector<128x32xf32>
    %74 = arith.addf %73, %72 : vector<128x32xf32>
    %75 = arith.divf %73, %74 : vector<128x32xf32>
    %76 = arith.mulf %66, %75 : vector<128x32xf32>
    %77 = arith.truncf %76 : vector<128x32xf32> to vector<128x32xbf16>
    %cst_54 = arith.constant dense<0.000000e+00> : vector<128x32xf32>
    %78 = tpu.matmul %77, %4, %cst_54 {dimension_numbers = #tpu.dot_dimension_numbers<[1], [0], [0], [1], [0, 0, 1, 1], [], []>} : vector<128x32xbf16>, vector<32x32xbf16>, vector<128x32xf32> -> vector<128x32xf32>
    %cst_55 = arith.constant 0.707106769 : f32
    %79 = vector.broadcast %cst_55 : f32 to vector<128x32xf32>
    %80 = arith.mulf %79, %78 : vector<128x32xf32>
    %81 = arith.addf %80, %1 : vector<128x32xf32>
    %82 = vector.shape_cast %81 : vector<128x32xf32> to vector<16x8x32xf32>
    %83 = arith.truncf %82 : vector<16x8x32xf32> to vector<16x8x32xbf16>
    "tpu.trace_start"() <{level = 10 : i32, message = "bte,bes->bts"}> : () -> ()
    %cst_56 = arith.constant dense<0.000000e+00> : vector<16x8x128xf32>
    %84 = tpu.matmul %83, %2, %cst_56 {dimension_numbers = #tpu.dot_dimension_numbers<[2], [1], [1], [2], [0, 0, 0, 1, 1, 2], [0], [0]>} : vector<16x8x32xbf16>, vector<16x32x128xbf16>, vector<16x8x128xf32> -> vector<16x8x128xf32>
    "tpu.trace_stop"() : () -> ()
    %85 = arith.addf %84, %32 : vector<16x8x128xf32>
    %cst_57 = arith.constant dense<0xFF800000> : vector<16x8xf32>
    %86 = vector.multi_reduction <maximumf>, %85, %cst_57 [2] : vector<16x8x128xf32> to vector<16x8xf32>
    %87 = vector.shape_cast %86 : vector<16x8xf32> to vector<16x8x1xf32>
    %88 = vector.broadcast %87 : vector<16x8x1xf32> to vector<16x8x128xf32>
    %89 = arith.subf %85, %88 : vector<16x8x128xf32>
    %90 = math.exp %89 : vector<16x8x128xf32>
    %cst_58 = arith.constant dense<0.000000e+00> : vector<16x8xf32>
    %91 = vector.multi_reduction <add>, %90, %cst_58 [2] : vector<16x8x128xf32> to vector<16x8xf32>
    %92 = vector.shape_cast %91 : vector<16x8xf32> to vector<16x8x1xf32>
    %93 = tpu.reciprocal %92 {approx = true} : vector<16x8x1xf32> -> vector<16x8x1xf32>
    %94 = vector.broadcast %93 : vector<16x8x1xf32> to vector<16x8x128xf32>
    %95 = arith.mulf %90, %94 : vector<16x8x128xf32>
    %96 = arith.truncf %95 : vector<16x8x128xf32> to vector<16x8x128xbf16>
    "tpu.trace_start"() <{level = 10 : i32, message = "bts,bse->bte"}> : () -> ()
    %cst_59 = arith.constant dense<0.000000e+00> : vector<16x8x32xf32>
    %97 = tpu.matmul %96, %3, %cst_59 {dimension_numbers = #tpu.dot_dimension_numbers<[2], [1], [1], [2], [0, 0, 0, 1, 1, 2], [0], [0]>} : vector<16x8x128xbf16>, vector<16x128x32xbf16>, vector<16x8x32xf32> -> vector<16x8x32xf32>
    "tpu.trace_stop"() : () -> ()
    %98 = vector.shape_cast %97 : vector<16x8x32xf32> to vector<128x32xf32>
    %99 = arith.addf %76, %98 : vector<128x32xf32>
    %cst_60 = arith.constant 0.707106769 : f32
    %100 = vector.broadcast %cst_60 : f32 to vector<128x32xf32>
    %101 = arith.mulf %99, %100 : vector<128x32xf32>
    %102 = arith.addf %101, %0 : vector<128x32xf32>
    %cst_61 = arith.constant 0.707106769 : f32
    %103 = vector.broadcast %cst_61 : f32 to vector<128x32xf32>
    %104 = arith.mulf %102, %103 : vector<128x32xf32>
    %105 = arith.truncf %104 : vector<128x32xf32> to vector<128x32xbf16>
    %c1_62 = arith.constant 1 : index
    %c0_63 = arith.constant 0 : index
    %c0_64 = arith.constant 0 : index
    %c0_65 = arith.constant 0 : index
    %106 = vector.load %arg5[%c1_62, %c0_63, %c0_64, %c0_65] : memref<2x3x32x32xbf16, #tpu.memory_space<vmem>>, vector<1x1x32x32xbf16>
    %107 = vector.shape_cast %106 : vector<1x1x32x32xbf16> to vector<32x32xbf16>
    %cst_66 = arith.constant dense<0.000000e+00> : vector<128x32xf32>
    %108 = tpu.matmul %105, %107, %cst_66 {dimension_numbers = #tpu.dot_dimension_numbers<[1], [0], [0], [1], [0, 0, 1, 1], [], []>} : vector<128x32xbf16>, vector<32x32xbf16>, vector<128x32xf32> -> vector<128x32xf32>
    %109 = arith.truncf %104 : vector<128x32xf32> to vector<128x32xbf16>
    %c1_67 = arith.constant 1 : index
    %c0_68 = arith.constant 0 : index
    %c0_69 = arith.constant 0 : index
    %c0_70 = arith.constant 0 : index
    %110 = vector.load %arg7[%c1_67, %c0_68, %c0_69, %c0_70] : memref<2x3x32x32xbf16, #tpu.memory_space<vmem>>, vector<1x1x32x32xbf16>
    %111 = vector.shape_cast %110 : vector<1x1x32x32xbf16> to vector<32x32xbf16>
    %cst_71 = arith.constant dense<0.000000e+00> : vector<128x32xf32>
    %112 = tpu.matmul %109, %111, %cst_71 {dimension_numbers = #tpu.dot_dimension_numbers<[1], [0], [0], [1], [0, 0, 1, 1], [], []>} : vector<128x32xbf16>, vector<32x32xbf16>, vector<128x32xf32> -> vector<128x32xf32>
    %c1_i32_72 = arith.constant 1 : i32
    %113 = tpu.dynamic_rotate %104 by %c1_i32_72 dim 0 : vector<128x32xf32>, i32 -> vector<128x32xf32>
    %114 = arith.select %23, %113, %26 : vector<128x32xi1>, vector<128x32xf32>
    %115 = arith.truncf %114 : vector<128x32xf32> to vector<128x32xbf16>
    %c1_73 = arith.constant 1 : index
    %c1_74 = arith.constant 1 : index
    %c0_75 = arith.constant 0 : index
    %c0_76 = arith.constant 0 : index
    %116 = vector.load %arg5[%c1_73, %c1_74, %c0_75, %c0_76] : memref<2x3x32x32xbf16, #tpu.memory_space<vmem>>, vector<1x1x32x32xbf16>
    %117 = vector.shape_cast %116 : vector<1x1x32x32xbf16> to vector<32x32xbf16>
    %cst_77 = arith.constant dense<0.000000e+00> : vector<128x32xf32>
    %118 = tpu.matmul %115, %117, %cst_77 {dimension_numbers = #tpu.dot_dimension_numbers<[1], [0], [0], [1], [0, 0, 1, 1], [], []>} : vector<128x32xbf16>, vector<32x32xbf16>, vector<128x32xf32> -> vector<128x32xf32>
    %119 = arith.addf %108, %118 : vector<128x32xf32>
    %c1_78 = arith.constant 1 : index
    %c1_79 = arith.constant 1 : index
    %c0_80 = arith.constant 0 : index
    %c0_81 = arith.constant 0 : index
    %120 = vector.load %arg7[%c1_78, %c1_79, %c0_80, %c0_81] : memref<2x3x32x32xbf16, #tpu.memory_space<vmem>>, vector<1x1x32x32xbf16>
    %121 = vector.shape_cast %120 : vector<1x1x32x32xbf16> to vector<32x32xbf16>
    %cst_82 = arith.constant dense<0.000000e+00> : vector<128x32xf32>
    %122 = tpu.matmul %115, %121, %cst_82 {dimension_numbers = #tpu.dot_dimension_numbers<[1], [0], [0], [1], [0, 0, 1, 1], [], []>} : vector<128x32xbf16>, vector<32x32xbf16>, vector<128x32xf32> -> vector<128x32xf32>
    %123 = arith.addf %112, %122 : vector<128x32xf32>
    %c2_i32_83 = arith.constant 2 : i32
    %124 = tpu.dynamic_rotate %104 by %c2_i32_83 dim 0 : vector<128x32xf32>, i32 -> vector<128x32xf32>
    %125 = arith.select %25, %124, %26 : vector<128x32xi1>, vector<128x32xf32>
    %126 = arith.truncf %125 : vector<128x32xf32> to vector<128x32xbf16>
    %c1_84 = arith.constant 1 : index
    %c2_85 = arith.constant 2 : index
    %c0_86 = arith.constant 0 : index
    %c0_87 = arith.constant 0 : index
    %127 = vector.load %arg5[%c1_84, %c2_85, %c0_86, %c0_87] : memref<2x3x32x32xbf16, #tpu.memory_space<vmem>>, vector<1x1x32x32xbf16>
    %128 = vector.shape_cast %127 : vector<1x1x32x32xbf16> to vector<32x32xbf16>
    %cst_88 = arith.constant dense<0.000000e+00> : vector<128x32xf32>
    %129 = tpu.matmul %126, %128, %cst_88 {dimension_numbers = #tpu.dot_dimension_numbers<[1], [0], [0], [1], [0, 0, 1, 1], [], []>} : vector<128x32xbf16>, vector<32x32xbf16>, vector<128x32xf32> -> vector<128x32xf32>
    %130 = arith.addf %119, %129 : vector<128x32xf32>
    %c1_89 = arith.constant 1 : index
    %c2_90 = arith.constant 2 : index
    %c0_91 = arith.constant 0 : index
    %c0_92 = arith.constant 0 : index
    %131 = vector.load %arg7[%c1_89, %c2_90, %c0_91, %c0_92] : memref<2x3x32x32xbf16, #tpu.memory_space<vmem>>, vector<1x1x32x32xbf16>
    %132 = vector.shape_cast %131 : vector<1x1x32x32xbf16> to vector<32x32xbf16>
    %cst_93 = arith.constant dense<0.000000e+00> : vector<128x32xf32>
    %133 = tpu.matmul %126, %132, %cst_93 {dimension_numbers = #tpu.dot_dimension_numbers<[1], [0], [0], [1], [0, 0, 1, 1], [], []>} : vector<128x32xbf16>, vector<32x32xbf16>, vector<128x32xf32> -> vector<128x32xf32>
    %134 = arith.addf %123, %133 : vector<128x32xf32>
    %c1_94 = arith.constant 1 : index
    %c0_95 = arith.constant 0 : index
    %c0_96 = arith.constant 0 : index
    %135 = vector.load %arg6[%c1_94, %c0_95, %c0_96] : memref<2x1x32xf32, #tpu.memory_space<vmem>>, vector<1x1x32xf32>
    %136 = vector.shape_cast %135 : vector<1x1x32xf32> to vector<1x32xf32>
    %137 = vector.broadcast %136 : vector<1x32xf32> to vector<128x32xf32>
    %138 = arith.addf %130, %137 : vector<128x32xf32>
    %c1_97 = arith.constant 1 : index
    %c0_98 = arith.constant 0 : index
    %c0_99 = arith.constant 0 : index
    %139 = vector.load %arg8[%c1_97, %c0_98, %c0_99] : memref<2x1x32xf32, #tpu.memory_space<vmem>>, vector<1x1x32xf32>
    %140 = vector.shape_cast %139 : vector<1x1x32xf32> to vector<1x32xf32>
    %141 = vector.broadcast %140 : vector<1x32xf32> to vector<128x32xf32>
    %142 = arith.addf %134, %141 : vector<128x32xf32>
    %143 = arith.negf %142 : vector<128x32xf32>
    %144 = math.exp %143 : vector<128x32xf32>
    %cst_100 = arith.constant 1.000000e+00 : f32
    %145 = vector.broadcast %cst_100 : f32 to vector<128x32xf32>
    %146 = arith.addf %145, %144 : vector<128x32xf32>
    %147 = arith.divf %145, %146 : vector<128x32xf32>
    %148 = arith.mulf %138, %147 : vector<128x32xf32>
    %149 = arith.truncf %148 : vector<128x32xf32> to vector<128x32xbf16>
    %cst_101 = arith.constant dense<0.000000e+00> : vector<128x32xf32>
    %150 = tpu.matmul %149, %4, %cst_101 {dimension_numbers = #tpu.dot_dimension_numbers<[1], [0], [0], [1], [0, 0, 1, 1], [], []>} : vector<128x32xbf16>, vector<32x32xbf16>, vector<128x32xf32> -> vector<128x32xf32>
    %cst_102 = arith.constant 0.707106769 : f32
    %151 = vector.broadcast %cst_102 : f32 to vector<128x32xf32>
    %152 = arith.mulf %151, %150 : vector<128x32xf32>
    %153 = arith.addf %152, %1 : vector<128x32xf32>
    %154 = vector.shape_cast %153 : vector<128x32xf32> to vector<16x8x32xf32>
    %155 = arith.truncf %154 : vector<16x8x32xf32> to vector<16x8x32xbf16>
    "tpu.trace_start"() <{level = 10 : i32, message = "bte,bes->bts"}> : () -> ()
    %cst_103 = arith.constant dense<0.000000e+00> : vector<16x8x128xf32>
    %156 = tpu.matmul %155, %2, %cst_103 {dimension_numbers = #tpu.dot_dimension_numbers<[2], [1], [1], [2], [0, 0, 0, 1, 1, 2], [0], [0]>} : vector<16x8x32xbf16>, vector<16x32x128xbf16>, vector<16x8x128xf32> -> vector<16x8x128xf32>
    "tpu.trace_stop"() : () -> ()
    %157 = arith.addf %156, %32 : vector<16x8x128xf32>
    %cst_104 = arith.constant dense<0xFF800000> : vector<16x8xf32>
    %158 = vector.multi_reduction <maximumf>, %157, %cst_104 [2] : vector<16x8x128xf32> to vector<16x8xf32>
    %159 = vector.shape_cast %158 : vector<16x8xf32> to vector<16x8x1xf32>
    %160 = vector.broadcast %159 : vector<16x8x1xf32> to vector<16x8x128xf32>
    %161 = arith.subf %157, %160 : vector<16x8x128xf32>
    %162 = math.exp %161 : vector<16x8x128xf32>
    %cst_105 = arith.constant dense<0.000000e+00> : vector<16x8xf32>
    %163 = vector.multi_reduction <add>, %162, %cst_105 [2] : vector<16x8x128xf32> to vector<16x8xf32>
    %164 = vector.shape_cast %163 : vector<16x8xf32> to vector<16x8x1xf32>
    %165 = tpu.reciprocal %164 {approx = true} : vector<16x8x1xf32> -> vector<16x8x1xf32>
    %166 = vector.broadcast %165 : vector<16x8x1xf32> to vector<16x8x128xf32>
    %167 = arith.mulf %162, %166 : vector<16x8x128xf32>
    %168 = arith.truncf %167 : vector<16x8x128xf32> to vector<16x8x128xbf16>
    "tpu.trace_start"() <{level = 10 : i32, message = "bts,bse->bte"}> : () -> ()
    %cst_106 = arith.constant dense<0.000000e+00> : vector<16x8x32xf32>
    %169 = tpu.matmul %168, %3, %cst_106 {dimension_numbers = #tpu.dot_dimension_numbers<[2], [1], [1], [2], [0, 0, 0, 1, 1, 2], [0], [0]>} : vector<16x8x128xbf16>, vector<16x128x32xbf16>, vector<16x8x32xf32> -> vector<16x8x32xf32>
    "tpu.trace_stop"() : () -> ()
    %170 = vector.shape_cast %169 : vector<16x8x32xf32> to vector<128x32xf32>
    %171 = arith.addf %148, %170 : vector<128x32xf32>
    %cst_107 = arith.constant 0.707106769 : f32
    %172 = vector.broadcast %cst_107 : f32 to vector<128x32xf32>
    %173 = arith.mulf %171, %172 : vector<128x32xf32>
    %174 = arith.addf %173, %104 : vector<128x32xf32>
    %cst_108 = arith.constant 0.707106769 : f32
    %175 = vector.broadcast %cst_108 : f32 to vector<128x32xf32>
    %176 = arith.mulf %174, %175 : vector<128x32xf32>
    %177 = arith.truncf %176 : vector<128x32xf32> to vector<128x32xbf16>
    %c0_109 = arith.constant 0 : index
    %c0_110 = arith.constant 0 : index
    %178 = vector.load %arg10[%c0_109, %c0_110] : memref<32x128xbf16, #tpu.memory_space<vmem>>, vector<32x128xbf16>
    %cst_111 = arith.constant dense<0.000000e+00> : vector<128x128xf32>
    %179 = tpu.matmul %177, %178, %cst_111 {dimension_numbers = #tpu.dot_dimension_numbers<[1], [0], [0], [1], [0, 0, 1, 1], [], []>} : vector<128x32xbf16>, vector<32x128xbf16>, vector<128x128xf32> -> vector<128x128xf32>
    %c0_112 = arith.constant 0 : index
    %c0_113 = arith.constant 0 : index
    %180 = vector.load %arg11[%c0_112, %c0_113] : memref<1x128xf32, #tpu.memory_space<vmem>>, vector<1x128xf32>
    %181 = vector.broadcast %180 : vector<1x128xf32> to vector<128x128xf32>
    %182 = arith.addf %179, %181 : vector<128x128xf32>
    %c0_114 = arith.constant 0 : index
    %c0_115 = arith.constant 0 : index
    %183 = vector.load %arg12[%c0_114, %c0_115] : memref<128x128xf32, #tpu.memory_space<vmem>>, vector<128x128xf32>
    tpu.vector_store %arg12[%c0_114, %c0_115], %182 {strides = array<i32>} : memref<128x128xf32, #tpu.memory_space<vmem>>, vector<128x128xf32>,
    %c0_116 = arith.constant 0 : index
    %c0_117 = arith.constant 0 : index
    %c0_118 = arith.constant 0 : index
    %184 = vector.load %arg13[%c0_116, %c0_117, %c0_118] : memref<16x8x128xf32, #tpu.memory_space<vmem>>, vector<16x8x128xf32>
    tpu.vector_store %arg13[%c0_116, %c0_117, %c0_118], %167 {strides = array<i32>} : memref<16x8x128xf32, #tpu.memory_space<vmem>>, vector<16x8x128xf32>,
    return
  }
  func.func @transform_0(%arg0: i32) -> (i32, i32) {
    %c0_i32 = arith.constant 0 : i32
    %c0_i32_0 = arith.constant 0 : i32
    return %arg0, %c0_i32 : i32, i32
  }
  func.func @transform_1(%arg0: i32) -> (i32, i32) {
    %c0_i32 = arith.constant 0 : i32
    %c0_i32_0 = arith.constant 0 : i32
    return %arg0, %c0_i32 : i32, i32
  }
  func.func @transform_2(%arg0: i32) -> (i32, i32, i32) {
    %c0_i32 = arith.constant 0 : i32
    %c0_i32_0 = arith.constant 0 : i32
    %c0_i32_1 = arith.constant 0 : i32
    return %arg0, %c0_i32, %c0_i32_0 : i32, i32, i32
  }
  func.func @transform_3(%arg0: i32) -> (i32, i32, i32) {
    %c0_i32 = arith.constant 0 : i32
    %c0_i32_0 = arith.constant 0 : i32
    %c0_i32_1 = arith.constant 0 : i32
    return %arg0, %c0_i32, %c0_i32_0 : i32, i32, i32
  }
  func.func @transform_4(%arg0: i32) -> (i32, i32, i32, i32) {
    %c0_i32 = arith.constant 0 : i32
    %c0_i32_0 = arith.constant 0 : i32
    %c0_i32_1 = arith.constant 0 : i32
    %c0_i32_2 = arith.constant 0 : i32
    %c0_i32_3 = arith.constant 0 : i32
    return %c0_i32, %c0_i32_0, %c0_i32_1, %c0_i32_2 : i32, i32, i32, i32
  }
  func.func @transform_5(%arg0: i32) -> (i32, i32, i32) {
    %c0_i32 = arith.constant 0 : i32
    %c0_i32_0 = arith.constant 0 : i32
    %c0_i32_1 = arith.constant 0 : i32
    %c0_i32_2 = arith.constant 0 : i32
    return %c0_i32, %c0_i32_0, %c0_i32_1 : i32, i32, i32
  }
  func.func @transform_6(%arg0: i32) -> (i32, i32, i32, i32) {
    %c0_i32 = arith.constant 0 : i32
    %c0_i32_0 = arith.constant 0 : i32
    %c0_i32_1 = arith.constant 0 : i32
    %c0_i32_2 = arith.constant 0 : i32
    %c0_i32_3 = arith.constant 0 : i32
    return %c0_i32, %c0_i32_0, %c0_i32_1, %c0_i32_2 : i32, i32, i32, i32
  }
  func.func @transform_7(%arg0: i32) -> (i32, i32, i32) {
    %c0_i32 = arith.constant 0 : i32
    %c0_i32_0 = arith.constant 0 : i32
    %c0_i32_1 = arith.constant 0 : i32
    %c0_i32_2 = arith.constant 0 : i32
    return %c0_i32, %c0_i32_0, %c0_i32_1 : i32, i32, i32
  }
  func.func @transform_8(%arg0: i32) -> (i32, i32) {
    %c0_i32 = arith.constant 0 : i32
    %c0_i32_0 = arith.constant 0 : i32
    %c0_i32_1 = arith.constant 0 : i32
    return %c0_i32, %c0_i32_0 : i32, i32
  }
  func.func @transform_9(%arg0: i32) -> (i32, i32) {
    %c0_i32 = arith.constant 0 : i32
    %c0_i32_0 = arith.constant 0 : i32
    %c0_i32_1 = arith.constant 0 : i32
    return %c0_i32, %c0_i32_0 : i32, i32
  }
  func.func @transform_10(%arg0: i32) -> (i32, i32) {
    %c0_i32 = arith.constant 0 : i32
    %c0_i32_0 = arith.constant 0 : i32
    %c0_i32_1 = arith.constant 0 : i32
    return %c0_i32, %c0_i32_0 : i32, i32
  }
  func.func @transform_11(%arg0: i32) -> (i32, i32) {
    %c0_i32 = arith.constant 0 : i32
    %c0_i32_0 = arith.constant 0 : i32
    return %arg0, %c0_i32 : i32, i32
  }
  func.func @transform_12(%arg0: i32) -> (i32, i32, i32) {
    %c0_i32 = arith.constant 0 : i32
    %c0_i32_0 = arith.constant 0 : i32
    %c0_i32_1 = arith.constant 0 : i32
    return %arg0, %c0_i32, %c0_i32_0 : i32, i32, i32
  }
}

</mosaic_0001>

<llo_original>
// kernel: tpu_custom_call.1
$region0: #{tpu_custom_call.1}
  #allocation0 [shape = 'u32[]', space=smem, size = 0x4, offset = 0x4, fixed_abs, tag = 'smem constant byte address 0x4 - core index']
  #allocation1 [shape = 'u32[144,128]{1,0:T(1,128)}', space=vmem, size = 0x12000, scoped, tag = 'internal scratch']
  %s0 = inlined_call_operand.vmem [shape: f32[128,32], index: 0, kind: input, shape index: {}]
  %s1 = inlined_call_operand.vmem [shape: f32[128,32], index: 1, kind: input, shape index: {}]
  %s2 = inlined_call_operand.vmem [shape: bf16[16,32,128], index: 2, kind: input, shape index: {}]
  %s3 = inlined_call_operand.vmem [shape: bf16[16,128,32], index: 3, kind: input, shape index: {}]
  %s4 = inlined_call_operand.vmem [shape: bf16[2,3,32,32], index: 4, kind: input, shape index: {}]
  %s5 = inlined_call_operand.vmem [shape: f32[2,1,32], index: 5, kind: input, shape index: {}]
  %s6 = inlined_call_operand.vmem [shape: bf16[2,3,32,32], index: 6, kind: input, shape index: {}]
  %s7 = inlined_call_operand.vmem [shape: f32[2,1,32], index: 7, kind: input, shape index: {}]
  %s8 = inlined_call_operand.vmem [shape: bf16[32,32], index: 8, kind: input, shape index: {}]
  %s9 = inlined_call_operand.vmem [shape: bf16[32,128], index: 9, kind: input, shape index: {}]
  %s10 = inlined_call_operand.vmem [shape: f32[1,128], index: 10, kind: input, shape index: {}]
  %s11 = inlined_call_operand.hbm [shape: f32[128,128], index: 11, kind: output, shape index: {0}]
  %s12 = inlined_call_operand.hbm [shape: f32[16,8,128], index: 12, kind: output, shape index: {1}]
  %13 = xla_tuple %s11, %s12
  %s14 = sld [smem:[#allocation0]]
  $region62: #{tpu_custom_call.1} parent=0
    _
  %s16 = ssub.s32 1, %s14
  %s17 = scalar_select 0, %s16, %s14
  $region1: #{tpu_custom_call.1} parent=0
    #allocation2 [shape = 'u8[65536]{0}', space=vmem, size = 0x10000, scoped, tag = 'output window, operand 0, single buffered']
    #allocation3 [shape = 's32[1]{0}', space=sflag, size = 0x4, scoped, tag = 'scoped memory for tpu_custom_call.1']
    #allocation4 [shape = 'u8[65536]{0}', space=vmem, size = 0x10000, scoped, tag = 'output window, operand 1, single buffered']
    #allocation5 [shape = 's32[1]{0}', space=sflag, size = 0x4, scoped, tag = 'scoped memory for tpu_custom_call.1']
    %18 = vsyncpa [#allocation3], 0
    %19 = vsyncpa [#allocation5], 0
    // Predicated region
    $region2: #{tpu_custom_call.1} parent=1 // pred_check
      _
    $region3: #{tpu_custom_call.1} parent=1 // pred_check_branch
      %21 = sbr.rel (0) target = $region5
    $region4: #{tpu_custom_call.1} parent=1 // pred_region
      _
    $region5: #{tpu_custom_call.1} parent=1 // pred_fallthru
      _
    // Predicated region
    $region6: #{tpu_custom_call.1} parent=1 // pred_check
      _
    $region7: #{tpu_custom_call.1} parent=1 // pred_check_branch
      %23 = sbr.rel (0) target = $region9
    $region8: #{tpu_custom_call.1} parent=1 // pred_region
      _
    $region9: #{tpu_custom_call.1} parent=1 // pred_fallthru
      _
    // Predicated region
    $region10: #{tpu_custom_call.1} parent=1 // pred_check
      _
    $region11: #{tpu_custom_call.1} parent=1 // pred_check_branch
      %25 = sbr.rel (0) target = $region13
    $region12: #{tpu_custom_call.1} parent=1 // pred_region
      _
    $region13: #{tpu_custom_call.1} parent=1 // pred_fallthru
      _
    // Predicated region
    $region14: #{tpu_custom_call.1} parent=1 // pred_check
      _
    $region15: #{tpu_custom_call.1} parent=1 // pred_check_branch
      %27 = sbr.rel (0) target = $region17
    $region16: #{tpu_custom_call.1} parent=1 // pred_region
      _
    $region17: #{tpu_custom_call.1} parent=1 // pred_fallthru
      _
    // Predicated region
    $region18: #{tpu_custom_call.1} parent=1 // pred_check
      _
    $region19: #{tpu_custom_call.1} parent=1 // pred_check_branch
      %29 = sbr.rel (0) target = $region21
    $region20: #{tpu_custom_call.1} parent=1 // pred_region
      _
    $region21: #{tpu_custom_call.1} parent=1 // pred_fallthru
      _
    // Predicated region
    $region22: #{tpu_custom_call.1} parent=1 // pred_check
      _
    $region23: #{tpu_custom_call.1} parent=1 // pred_check_branch
      %31 = sbr.rel (0) target = $region25
    $region24: #{tpu_custom_call.1} parent=1 // pred_region
      _
    $region25: #{tpu_custom_call.1} parent=1 // pred_fallthru
      _
    // Predicated region
    $region26: #{tpu_custom_call.1} parent=1 // pred_check
      _
    $region27: #{tpu_custom_call.1} parent=1 // pred_check_branch
      %33 = sbr.rel (0) target = $region29
    $region28: #{tpu_custom_call.1} parent=1 // pred_region
      _
    $region29: #{tpu_custom_call.1} parent=1 // pred_fallthru
      _
    // Predicated region
    $region30: #{tpu_custom_call.1} parent=1 // pred_check
      _
    $region31: #{tpu_custom_call.1} parent=1 // pred_check_branch
      %35 = sbr.rel (0) target = $region33
    $region32: #{tpu_custom_call.1} parent=1 // pred_region
      _
    $region33: #{tpu_custom_call.1} parent=1 // pred_fallthru
      _
    // Predicated region
    $region34: #{tpu_custom_call.1} parent=1 // pred_check
      _
    $region35: #{tpu_custom_call.1} parent=1 // pred_check_branch
      %37 = sbr.rel (0) target = $region37
    $region36: #{tpu_custom_call.1} parent=1 // pred_region
      _
    $region37: #{tpu_custom_call.1} parent=1 // pred_fallthru
      _
    // Predicated region
    $region38: #{tpu_custom_call.1} parent=1 // pred_check
      _
    $region39: #{tpu_custom_call.1} parent=1 // pred_check_branch
      %39 = sbr.rel (0) target = $region41
    $region40: #{tpu_custom_call.1} parent=1 // pred_region
      _
    $region41: #{tpu_custom_call.1} parent=1 // pred_fallthru
      _
    // Predicated region
    $region42: #{tpu_custom_call.1} parent=1 // pred_check
      _
    $region43: #{tpu_custom_call.1} parent=1 // pred_check_branch
      %41 = sbr.rel (0) target = $region45
    $region44: #{tpu_custom_call.1} parent=1 // pred_region
      _
    $region45: #{tpu_custom_call.1} parent=1 // pred_fallthru
      _
    %v43 = vld [vmem:[%s0] sm:$0xff]
    %v44 = vld [vmem:[%s0 + $0x8] sm:$0xff]
    %v45 = vld [vmem:[%s0 + $0x10] sm:$0xff]
    %v46 = vld [vmem:[%s0 + $0x18] sm:$0xff]
    %v47 = vld [vmem:[%s0 + $0x20] sm:$0xff]
    %v48 = vld [vmem:[%s0 + $0x28] sm:$0xff]
    %v49 = vld [vmem:[%s0 + $0x30] sm:$0xff]
    %v50 = vld [vmem:[%s0 + $0x38] sm:$0xff]
    %v51 = vld [vmem:[%s0 + $0x40] sm:$0xff]
    %v52 = vld [vmem:[%s0 + $0x48] sm:$0xff]
    %v53 = vld [vmem:[%s0 + $0x50] sm:$0xff]
    %v54 = vld [vmem:[%s0 + $0x58] sm:$0xff]
    %v55 = vld [vmem:[%s0 + $0x60] sm:$0xff]
    %v56 = vld [vmem:[%s0 + $0x68] sm:$0xff]
    %v57 = vld [vmem:[%s0 + $0x70] sm:$0xff]
    %v58 = vld [vmem:[%s0 + $0x78] sm:$0xff]
    %v59 = vld [vmem:[%s1] sm:$0xff]
    %v60 = vld [vmem:[%s1 + $0x8] sm:$0xff]
    %v61 = vld [vmem:[%s1 + $0x10] sm:$0xff]
    %v62 = vld [vmem:[%s1 + $0x18] sm:$0xff]
    %v63 = vld [vmem:[%s1 + $0x20] sm:$0xff]
    %v64 = vld [vmem:[%s1 + $0x28] sm:$0xff]
    %v65 = vld [vmem:[%s1 + $0x30] sm:$0xff]
    %v66 = vld [vmem:[%s1 + $0x38] sm:$0xff]
    %v67 = vld [vmem:[%s1 + $0x40] sm:$0xff]
    %v68 = vld [vmem:[%s1 + $0x48] sm:$0xff]
    %v69 = vld [vmem:[%s1 + $0x50] sm:$0xff]
    %v70 = vld [vmem:[%s1 + $0x58] sm:$0xff]
    %v71 = vld [vmem:[%s1 + $0x60] sm:$0xff]
    %v72 = vld [vmem:[%s1 + $0x68] sm:$0xff]
    %v73 = vld [vmem:[%s1 + $0x70] sm:$0xff]
    %v74 = vld [vmem:[%s1 + $0x78] sm:$0xff]
    %v75 = vld [vmem:[%s2] sm:$0xf]
    %v76 = vld [vmem:[%s2 + $0x4] sm:$0xf]
    %v77 = vld [vmem:[%s2 + $0x8] sm:$0xf]
    %v78 = vld [vmem:[%s2 + $0xc] sm:$0xf]
    %v79 = vld [vmem:[%s2 + $0x10] sm:$0xf]
    %v80 = vld [vmem:[%s2 + $0x14] sm:$0xf]
    %v81 = vld [vmem:[%s2 + $0x18] sm:$0xf]
    %v82 = vld [vmem:[%s2 + $0x1c] sm:$0xf]
    %v83 = vld [vmem:[%s2 + $0x20] sm:$0xf]
    %v84 = vld [vmem:[%s2 + $0x24] sm:$0xf]
    %v85 = vld [vmem:[%s2 + $0x28] sm:$0xf]
    %v86 = vld [vmem:[%s2 + $0x2c] sm:$0xf]
    %v87 = vld [vmem:[%s2 + $0x30] sm:$0xf]
    %v88 = vld [vmem:[%s2 + $0x34] sm:$0xf]
    %v89 = vld [vmem:[%s2 + $0x38] sm:$0xf]
    %v90 = vld [vmem:[%s2 + $0x3c] sm:$0xf]
    %v91 = vld [vmem:[%s2 + $0x40] sm:$0xf]
    %v92 = vld [vmem:[%s2 + $0x44] sm:$0xf]
    %v93 = vld [vmem:[%s2 + $0x48] sm:$0xf]
    %v94 = vld [vmem:[%s2 + $0x4c] sm:$0xf]
    %v95 = vld [vmem:[%s2 + $0x50] sm:$0xf]
    %v96 = vld [vmem:[%s2 + $0x54] sm:$0xf]
    %v97 = vld [vmem:[%s2 + $0x58] sm:$0xf]
    %v98 = vld [vmem:[%s2 + $0x5c] sm:$0xf]
    %v99 = vld [vmem:[%s2 + $0x60] sm:$0xf]
    %v100 = vld [vmem:[%s2 + $0x64] sm:$0xf]
    %v101 = vld [vmem:[%s2 + $0x68] sm:$0xf]
    %v102 = vld [vmem:[%s2 + $0x6c] sm:$0xf]
    %v103 = vld [vmem:[%s2 + $0x70] sm:$0xf]
    %v104 = vld [vmem:[%s2 + $0x74] sm:$0xf]
    %v105 = vld [vmem:[%s2 + $0x78] sm:$0xf]
    %v106 = vld [vmem:[%s2 + $0x7c] sm:$0xf]
    %v107 = vld [vmem:[%s2 + $0x80] sm:$0xf]
    %v108 = vld [vmem:[%s2 + $0x84] sm:$0xf]
    %v109 = vld [vmem:[%s2 + $0x88] sm:$0xf]
    %v110 = vld [vmem:[%s2 + $0x8c] sm:$0xf]
    %v111 = vld [vmem:[%s2 + $0x90] sm:$0xf]
    %v112 = vld [vmem:[%s2 + $0x94] sm:$0xf]
    %v113 = vld [vmem:[%s2 + $0x98] sm:$0xf]
    %v114 = vld [vmem:[%s2 + $0x9c] sm:$0xf]
    %v115 = vld [vmem:[%s2 + $0xa0] sm:$0xf]
    %v116 = vld [vmem:[%s2 + $0xa4] sm:$0xf]
    %v117 = vld [vmem:[%s2 + $0xa8] sm:$0xf]
    %v118 = vld [vmem:[%s2 + $0xac] sm:$0xf]
    %v119 = vld [vmem:[%s2 + $0xb0] sm:$0xf]
    %v120 = vld [vmem:[%s2 + $0xb4] sm:$0xf]
    %v121 = vld [vmem:[%s2 + $0xb8] sm:$0xf]
    %v122 = vld [vmem:[%s2 + $0xbc] sm:$0xf]
    %v123 = vld [vmem:[%s2 + $0xc0] sm:$0xf]
    %v124 = vld [vmem:[%s2 + $0xc4] sm:$0xf]
    %v125 = vld [vmem:[%s2 + $0xc8] sm:$0xf]
    %v126 = vld [vmem:[%s2 + $0xcc] sm:$0xf]
    %v127 = vld [vmem:[%s2 + $0xd0] sm:$0xf]
    %v128 = vld [vmem:[%s2 + $0xd4] sm:$0xf]
    %v129 = vld [vmem:[%s2 + $0xd8] sm:$0xf]
    %v130 = vld [vmem:[%s2 + $0xdc] sm:$0xf]
    %v131 = vld [vmem:[%s2 + $0xe0] sm:$0xf]
    %v132 = vld [vmem:[%s2 + $0xe4] sm:$0xf]
    %v133 = vld [vmem:[%s2 + $0xe8] sm:$0xf]
    %v134 = vld [vmem:[%s2 + $0xec] sm:$0xf]
    %v135 = vld [vmem:[%s2 + $0xf0] sm:$0xf]
    %v136 = vld [vmem:[%s2 + $0xf4] sm:$0xf]
    %v137 = vld [vmem:[%s2 + $0xf8] sm:$0xf]
    %v138 = vld [vmem:[%s2 + $0xfc] sm:$0xf]
    %v139 = vld [vmem:[%s3] sm:$0xf]
    %v140 = vld [vmem:[%s3 + $0x4] sm:$0xf]
    %v141 = vld [vmem:[%s3 + $0x8] sm:$0xf]
    %v142 = vld [vmem:[%s3 + $0xc] sm:$0xf]
    %v143 = vld [vmem:[%s3 + $0x10] sm:$0xf]
    %v144 = vld [vmem:[%s3 + $0x14] sm:$0xf]
    %v145 = vld [vmem:[%s3 + $0x18] sm:$0xf]
    %v146 = vld [vmem:[%s3 + $0x1c] sm:$0xf]
    %v147 = vld [vmem:[%s3 + $0x20] sm:$0xf]
    %v148 = vld [vmem:[%s3 + $0x24] sm:$0xf]
    %v149 = vld [vmem:[%s3 + $0x28] sm:$0xf]
    %v150 = vld [vmem:[%s3 + $0x2c] sm:$0xf]
    %v151 = vld [vmem:[%s3 + $0x30] sm:$0xf]
    %v152 = vld [vmem:[%s3 + $0x34] sm:$0xf]
    %v153 = vld [vmem:[%s3 + $0x38] sm:$0xf]
    %v154 = vld [vmem:[%s3 + $0x3c] sm:$0xf]
    %v155 = vld [vmem:[%s3 + $0x40] sm:$0xf]
    %v156 = vld [vmem:[%s3 + $0x44] sm:$0xf]
    %v157 = vld [vmem:[%s3 + $0x48] sm:$0xf]
    %v158 = vld [vmem:[%s3 + $0x4c] sm:$0xf]
    %v159 = vld [vmem:[%s3 + $0x50] sm:$0xf]
    %v160 = vld [vmem:[%s3 + $0x54] sm:$0xf]
    %v161 = vld [vmem:[%s3 + $0x58] sm:$0xf]
    %v162 = vld [vmem:[%s3 + $0x5c] sm:$0xf]
    %v163 = vld [vmem:[%s3 + $0x60] sm:$0xf]
    %v164 = vld [vmem:[%s3 + $0x64] sm:$0xf]
    %v165 = vld [vmem:[%s3 + $0x68] sm:$0xf]
    %v166 = vld [vmem:[%s3 + $0x6c] sm:$0xf]
    %v167 = vld [vmem:[%s3 + $0x70] sm:$0xf]
    %v168 = vld [vmem:[%s3 + $0x74] sm:$0xf]
    %v169 = vld [vmem:[%s3 + $0x78] sm:$0xf]
    %v170 = vld [vmem:[%s3 + $0x7c] sm:$0xf]
    %v171 = vld [vmem:[%s3 + $0x80] sm:$0xf]
    %v172 = vld [vmem:[%s3 + $0x84] sm:$0xf]
    %v173 = vld [vmem:[%s3 + $0x88] sm:$0xf]
    %v174 = vld [vmem:[%s3 + $0x8c] sm:$0xf]
    %v175 = vld [vmem:[%s3 + $0x90] sm:$0xf]
    %v176 = vld [vmem:[%s3 + $0x94] sm:$0xf]
    %v177 = vld [vmem:[%s3 + $0x98] sm:$0xf]
    %v178 = vld [vmem:[%s3 + $0x9c] sm:$0xf]
    %v179 = vld [vmem:[%s3 + $0xa0] sm:$0xf]
    %v180 = vld [vmem:[%s3 + $0xa4] sm:$0xf]
    %v181 = vld [vmem:[%s3 + $0xa8] sm:$0xf]
    %v182 = vld [vmem:[%s3 + $0xac] sm:$0xf]
    %v183 = vld [vmem:[%s3 + $0xb0] sm:$0xf]
    %v184 = vld [vmem:[%s3 + $0xb4] sm:$0xf]
    %v185 = vld [vmem:[%s3 + $0xb8] sm:$0xf]
    %v186 = vld [vmem:[%s3 + $0xbc] sm:$0xf]
    %v187 = vld [vmem:[%s3 + $0xc0] sm:$0xf]
    %v188 = vld [vmem:[%s3 + $0xc4] sm:$0xf]
    %v189 = vld [vmem:[%s3 + $0xc8] sm:$0xf]
    %v190 = vld [vmem:[%s3 + $0xcc] sm:$0xf]
    %v191 = vld [vmem:[%s3 + $0xd0] sm:$0xf]
    %v192 = vld [vmem:[%s3 + $0xd4] sm:$0xf]
    %v193 = vld [vmem:[%s3 + $0xd8] sm:$0xf]
    %v194 = vld [vmem:[%s3 + $0xdc] sm:$0xf]
    %v195 = vld [vmem:[%s3 + $0xe0] sm:$0xf]
    %v196 = vld [vmem:[%s3 + $0xe4] sm:$0xf]
    %v197 = vld [vmem:[%s3 + $0xe8] sm:$0xf]
    %v198 = vld [vmem:[%s3 + $0xec] sm:$0xf]
    %v199 = vld [vmem:[%s3 + $0xf0] sm:$0xf]
    %v200 = vld [vmem:[%s3 + $0xf4] sm:$0xf]
    %v201 = vld [vmem:[%s3 + $0xf8] sm:$0xf]
    %v202 = vld [vmem:[%s3 + $0xfc] sm:$0xf]
    %v203 = vld [vmem:[%s3 + $0x100] sm:$0xf]
    %v204 = vld [vmem:[%s3 + $0x104] sm:$0xf]
    %v205 = vld [vmem:[%s3 + $0x108] sm:$0xf]
    %v206 = vld [vmem:[%s3 + $0x10c] sm:$0xf]
    %v207 = vld [vmem:[%s3 + $0x110] sm:$0xf]
    %v208 = vld [vmem:[%s3 + $0x114] sm:$0xf]
    %v209 = vld [vmem:[%s3 + $0x118] sm:$0xf]
    %v210 = vld [vmem:[%s3 + $0x11c] sm:$0xf]
    %v211 = vld [vmem:[%s3 + $0x120] sm:$0xf]
    %v212 = vld [vmem:[%s3 + $0x124] sm:$0xf]
    %v213 = vld [vmem:[%s3 + $0x128] sm:$0xf]
    %v214 = vld [vmem:[%s3 + $0x12c] sm:$0xf]
    %v215 = vld [vmem:[%s3 + $0x130] sm:$0xf]
    %v216 = vld [vmem:[%s3 + $0x134] sm:$0xf]
    %v217 = vld [vmem:[%s3 + $0x138] sm:$0xf]
    %v218 = vld [vmem:[%s3 + $0x13c] sm:$0xf]
    %v219 = vld [vmem:[%s3 + $0x140] sm:$0xf]
    %v220 = vld [vmem:[%s3 + $0x144] sm:$0xf]
    %v221 = vld [vmem:[%s3 + $0x148] sm:$0xf]
    %v222 = vld [vmem:[%s3 + $0x14c] sm:$0xf]
    %v223 = vld [vmem:[%s3 + $0x150] sm:$0xf]
    %v224 = vld [vmem:[%s3 + $0x154] sm:$0xf]
    %v225 = vld [vmem:[%s3 + $0x158] sm:$0xf]
    %v226 = vld [vmem:[%s3 + $0x15c] sm:$0xf]
    %v227 = vld [vmem:[%s3 + $0x160] sm:$0xf]
    %v228 = vld [vmem:[%s3 + $0x164] sm:$0xf]
    %v229 = vld [vmem:[%s3 + $0x168] sm:$0xf]
    %v230 = vld [vmem:[%s3 + $0x16c] sm:$0xf]
    %v231 = vld [vmem:[%s3 + $0x170] sm:$0xf]
    %v232 = vld [vmem:[%s3 + $0x174] sm:$0xf]
    %v233 = vld [vmem:[%s3 + $0x178] sm:$0xf]
    %v234 = vld [vmem:[%s3 + $0x17c] sm:$0xf]
    %v235 = vld [vmem:[%s3 + $0x180] sm:$0xf]
    %v236 = vld [vmem:[%s3 + $0x184] sm:$0xf]
    %v237 = vld [vmem:[%s3 + $0x188] sm:$0xf]
    %v238 = vld [vmem:[%s3 + $0x18c] sm:$0xf]
    %v239 = vld [vmem:[%s3 + $0x190] sm:$0xf]
    %v240 = vld [vmem:[%s3 + $0x194] sm:$0xf]
    %v241 = vld [vmem:[%s3 + $0x198] sm:$0xf]
    %v242 = vld [vmem:[%s3 + $0x19c] sm:$0xf]
    %v243 = vld [vmem:[%s3 + $0x1a0] sm:$0xf]
    %v244 = vld [vmem:[%s3 + $0x1a4] sm:$0xf]
    %v245 = vld [vmem:[%s3 + $0x1a8] sm:$0xf]
    %v246 = vld [vmem:[%s3 + $0x1ac] sm:$0xf]
    %v247 = vld [vmem:[%s3 + $0x1b0] sm:$0xf]
    %v248 = vld [vmem:[%s3 + $0x1b4] sm:$0xf]
    %v249 = vld [vmem:[%s3 + $0x1b8] sm:$0xf]
    %v250 = vld [vmem:[%s3 + $0x1bc] sm:$0xf]
    %v251 = vld [vmem:[%s3 + $0x1c0] sm:$0xf]
    %v252 = vld [vmem:[%s3 + $0x1c4] sm:$0xf]
    %v253 = vld [vmem:[%s3 + $0x1c8] sm:$0xf]
    %v254 = vld [vmem:[%s3 + $0x1cc] sm:$0xf]
    %v255 = vld [vmem:[%s3 + $0x1d0] sm:$0xf]
    %v256 = vld [vmem:[%s3 + $0x1d4] sm:$0xf]
    %v257 = vld [vmem:[%s3 + $0x1d8] sm:$0xf]
    %v258 = vld [vmem:[%s3 + $0x1dc] sm:$0xf]
    %v259 = vld [vmem:[%s3 + $0x1e0] sm:$0xf]
    %v260 = vld [vmem:[%s3 + $0x1e4] sm:$0xf]
    %v261 = vld [vmem:[%s3 + $0x1e8] sm:$0xf]
    %v262 = vld [vmem:[%s3 + $0x1ec] sm:$0xf]
    %v263 = vld [vmem:[%s3 + $0x1f0] sm:$0xf]
    %v264 = vld [vmem:[%s3 + $0x1f4] sm:$0xf]
    %v265 = vld [vmem:[%s3 + $0x1f8] sm:$0xf]
    %v266 = vld [vmem:[%s3 + $0x1fc] sm:$0xf]
    %v267 = vld [vmem:[%s3 + $0x200] sm:$0xf]
    %v268 = vld [vmem:[%s3 + $0x204] sm:$0xf]
    %v269 = vld [vmem:[%s3 + $0x208] sm:$0xf]
    %v270 = vld [vmem:[%s3 + $0x20c] sm:$0xf]
    %v271 = vld [vmem:[%s3 + $0x210] sm:$0xf]
    %v272 = vld [vmem:[%s3 + $0x214] sm:$0xf]
    %v273 = vld [vmem:[%s3 + $0x218] sm:$0xf]
    %v274 = vld [vmem:[%s3 + $0x21c] sm:$0xf]
    %v275 = vld [vmem:[%s3 + $0x220] sm:$0xf]
    %v276 = vld [vmem:[%s3 + $0x224] sm:$0xf]
    %v277 = vld [vmem:[%s3 + $0x228] sm:$0xf]
    %v278 = vld [vmem:[%s3 + $0x22c] sm:$0xf]
    %v279 = vld [vmem:[%s3 + $0x230] sm:$0xf]
    %v280 = vld [vmem:[%s3 + $0x234] sm:$0xf]
    %v281 = vld [vmem:[%s3 + $0x238] sm:$0xf]
    %v282 = vld [vmem:[%s3 + $0x23c] sm:$0xf]
    %v283 = vld [vmem:[%s3 + $0x240] sm:$0xf]
    %v284 = vld [vmem:[%s3 + $0x244] sm:$0xf]
    %v285 = vld [vmem:[%s3 + $0x248] sm:$0xf]
    %v286 = vld [vmem:[%s3 + $0x24c] sm:$0xf]
    %v287 = vld [vmem:[%s3 + $0x250] sm:$0xf]
    %v288 = vld [vmem:[%s3 + $0x254] sm:$0xf]
    %v289 = vld [vmem:[%s3 + $0x258] sm:$0xf]
    %v290 = vld [vmem:[%s3 + $0x25c] sm:$0xf]
    %v291 = vld [vmem:[%s3 + $0x260] sm:$0xf]
    %v292 = vld [vmem:[%s3 + $0x264] sm:$0xf]
    %v293 = vld [vmem:[%s3 + $0x268] sm:$0xf]
    %v294 = vld [vmem:[%s3 + $0x26c] sm:$0xf]
    %v295 = vld [vmem:[%s3 + $0x270] sm:$0xf]
    %v296 = vld [vmem:[%s3 + $0x274] sm:$0xf]
    %v297 = vld [vmem:[%s3 + $0x278] sm:$0xf]
    %v298 = vld [vmem:[%s3 + $0x27c] sm:$0xf]
    %v299 = vld [vmem:[%s3 + $0x280] sm:$0xf]
    %v300 = vld [vmem:[%s3 + $0x284] sm:$0xf]
    %v301 = vld [vmem:[%s3 + $0x288] sm:$0xf]
    %v302 = vld [vmem:[%s3 + $0x28c] sm:$0xf]
    %v303 = vld [vmem:[%s3 + $0x290] sm:$0xf]
    %v304 = vld [vmem:[%s3 + $0x294] sm:$0xf]
    %v305 = vld [vmem:[%s3 + $0x298] sm:$0xf]
    %v306 = vld [vmem:[%s3 + $0x29c] sm:$0xf]
    %v307 = vld [vmem:[%s3 + $0x2a0] sm:$0xf]
    %v308 = vld [vmem:[%s3 + $0x2a4] sm:$0xf]
    %v309 = vld [vmem:[%s3 + $0x2a8] sm:$0xf]
    %v310 = vld [vmem:[%s3 + $0x2ac] sm:$0xf]
    %v311 = vld [vmem:[%s3 + $0x2b0] sm:$0xf]
    %v312 = vld [vmem:[%s3 + $0x2b4] sm:$0xf]
    %v313 = vld [vmem:[%s3 + $0x2b8] sm:$0xf]
    %v314 = vld [vmem:[%s3 + $0x2bc] sm:$0xf]
    %v315 = vld [vmem:[%s3 + $0x2c0] sm:$0xf]
    %v316 = vld [vmem:[%s3 + $0x2c4] sm:$0xf]
    %v317 = vld [vmem:[%s3 + $0x2c8] sm:$0xf]
    %v318 = vld [vmem:[%s3 + $0x2cc] sm:$0xf]
    %v319 = vld [vmem:[%s3 + $0x2d0] sm:$0xf]
    %v320 = vld [vmem:[%s3 + $0x2d4] sm:$0xf]
    %v321 = vld [vmem:[%s3 + $0x2d8] sm:$0xf]
    %v322 = vld [vmem:[%s3 + $0x2dc] sm:$0xf]
    %v323 = vld [vmem:[%s3 + $0x2e0] sm:$0xf]
    %v324 = vld [vmem:[%s3 + $0x2e4] sm:$0xf]
    %v325 = vld [vmem:[%s3 + $0x2e8] sm:$0xf]
    %v326 = vld [vmem:[%s3 + $0x2ec] sm:$0xf]
    %v327 = vld [vmem:[%s3 + $0x2f0] sm:$0xf]
    %v328 = vld [vmem:[%s3 + $0x2f4] sm:$0xf]
    %v329 = vld [vmem:[%s3 + $0x2f8] sm:$0xf]
    %v330 = vld [vmem:[%s3 + $0x2fc] sm:$0xf]
    %v331 = vld [vmem:[%s3 + $0x300] sm:$0xf]
    %v332 = vld [vmem:[%s3 + $0x304] sm:$0xf]
    %v333 = vld [vmem:[%s3 + $0x308] sm:$0xf]
    %v334 = vld [vmem:[%s3 + $0x30c] sm:$0xf]
    %v335 = vld [vmem:[%s3 + $0x310] sm:$0xf]
    %v336 = vld [vmem:[%s3 + $0x314] sm:$0xf]
    %v337 = vld [vmem:[%s3 + $0x318] sm:$0xf]
    %v338 = vld [vmem:[%s3 + $0x31c] sm:$0xf]
    %v339 = vld [vmem:[%s3 + $0x320] sm:$0xf]
    %v340 = vld [vmem:[%s3 + $0x324] sm:$0xf]
    %v341 = vld [vmem:[%s3 + $0x328] sm:$0xf]
    %v342 = vld [vmem:[%s3 + $0x32c] sm:$0xf]
    %v343 = vld [vmem:[%s3 + $0x330] sm:$0xf]
    %v344 = vld [vmem:[%s3 + $0x334] sm:$0xf]
    %v345 = vld [vmem:[%s3 + $0x338] sm:$0xf]
    %v346 = vld [vmem:[%s3 + $0x33c] sm:$0xf]
    %v347 = vld [vmem:[%s3 + $0x340] sm:$0xf]
    %v348 = vld [vmem:[%s3 + $0x344] sm:$0xf]
    %v349 = vld [vmem:[%s3 + $0x348] sm:$0xf]
    %v350 = vld [vmem:[%s3 + $0x34c] sm:$0xf]
    %v351 = vld [vmem:[%s3 + $0x350] sm:$0xf]
    %v352 = vld [vmem:[%s3 + $0x354] sm:$0xf]
    %v353 = vld [vmem:[%s3 + $0x358] sm:$0xf]
    %v354 = vld [vmem:[%s3 + $0x35c] sm:$0xf]
    %v355 = vld [vmem:[%s3 + $0x360] sm:$0xf]
    %v356 = vld [vmem:[%s3 + $0x364] sm:$0xf]
    %v357 = vld [vmem:[%s3 + $0x368] sm:$0xf]
    %v358 = vld [vmem:[%s3 + $0x36c] sm:$0xf]
    %v359 = vld [vmem:[%s3 + $0x370] sm:$0xf]
    %v360 = vld [vmem:[%s3 + $0x374] sm:$0xf]
    %v361 = vld [vmem:[%s3 + $0x378] sm:$0xf]
    %v362 = vld [vmem:[%s3 + $0x37c] sm:$0xf]
    %v363 = vld [vmem:[%s3 + $0x380] sm:$0xf]
    %v364 = vld [vmem:[%s3 + $0x384] sm:$0xf]
    %v365 = vld [vmem:[%s3 + $0x388] sm:$0xf]
    %v366 = vld [vmem:[%s3 + $0x38c] sm:$0xf]
    %v367 = vld [vmem:[%s3 + $0x390] sm:$0xf]
    %v368 = vld [vmem:[%s3 + $0x394] sm:$0xf]
    %v369 = vld [vmem:[%s3 + $0x398] sm:$0xf]
    %v370 = vld [vmem:[%s3 + $0x39c] sm:$0xf]
    %v371 = vld [vmem:[%s3 + $0x3a0] sm:$0xf]
    %v372 = vld [vmem:[%s3 + $0x3a4] sm:$0xf]
    %v373 = vld [vmem:[%s3 + $0x3a8] sm:$0xf]
    %v374 = vld [vmem:[%s3 + $0x3ac] sm:$0xf]
    %v375 = vld [vmem:[%s3 + $0x3b0] sm:$0xf]
    %v376 = vld [vmem:[%s3 + $0x3b4] sm:$0xf]
    %v377 = vld [vmem:[%s3 + $0x3b8] sm:$0xf]
    %v378 = vld [vmem:[%s3 + $0x3bc] sm:$0xf]
    %v379 = vld [vmem:[%s3 + $0x3c0] sm:$0xf]
    %v380 = vld [vmem:[%s3 + $0x3c4] sm:$0xf]
    %v381 = vld [vmem:[%s3 + $0x3c8] sm:$0xf]
    %v382 = vld [vmem:[%s3 + $0x3cc] sm:$0xf]
    %v383 = vld [vmem:[%s3 + $0x3d0] sm:$0xf]
    %v384 = vld [vmem:[%s3 + $0x3d4] sm:$0xf]
    %v385 = vld [vmem:[%s3 + $0x3d8] sm:$0xf]
    %v386 = vld [vmem:[%s3 + $0x3dc] sm:$0xf]
    %v387 = vld [vmem:[%s3 + $0x3e0] sm:$0xf]
    %v388 = vld [vmem:[%s3 + $0x3e4] sm:$0xf]
    %v389 = vld [vmem:[%s3 + $0x3e8] sm:$0xf]
    %v390 = vld [vmem:[%s3 + $0x3ec] sm:$0xf]
    %v391 = vld [vmem:[%s3 + $0x3f0] sm:$0xf]
    %v392 = vld [vmem:[%s3 + $0x3f4] sm:$0xf]
    %v393 = vld [vmem:[%s3 + $0x3f8] sm:$0xf]
    %v394 = vld [vmem:[%s3 + $0x3fc] sm:$0xf]
    %v395 = vld [vmem:[%s8] sm:$0xf]
    %v396 = vld [vmem:[%s8 + $0x4] sm:$0xf]
    %v397 = vld [vmem:[%s8 + $0x8] sm:$0xf]
    %v398 = vld [vmem:[%s8 + $0xc] sm:$0xf]
    %v399 = vlaneseq
    %v400 = vshrl.u32 %v399, 7
    %v401 = vadd.s32 %v400, 8
    %v402 = vadd.s32 %v400, 16
    %v403 = vadd.s32 %v400, 24
    %v404 = vadd.s32 %v400, 32
    %v405 = vadd.s32 %v400, 40
    %v406 = vadd.s32 %v400, 48
    %v407 = vadd.s32 %v400, 56
    %v408 = vadd.s32 %v400, 64
    %v409 = vadd.s32 %v400, 72
    %v410 = vadd.s32 %v400, 80
    %v411 = vadd.s32 %v400, 88
    %v412 = vadd.s32 %v400, 96
    %v413 = vadd.s32 %v400, 104
    %v414 = vadd.s32 %v400, 112
    %v415 = vadd.s32 %v400, 120
    %vm416 = vcmp.lt.s32.totalorder %v400, 0
    %v417 = vsub.s32 0, %v400
    %v418 = vsel %vm416, %v417, %v400
    %v419 = vshrl.u32 %v418, 3
    %v420 = vand.u32 %v418, 7
    %v421 = vsub.s32 0, %v420
    %v422 = vsel %vm416, %v421, %v420
    %vm423 = vcmp.lt.s32.totalorder %v401, 0
    %v424 = vsub.s32 0, %v401
    %v425 = vsel %vm423, %v424, %v401
    %v426 = vshrl.u32 %v425, 3
    %v427 = vand.u32 %v425, 7
    %v428 = vsub.s32 0, %v427
    %v429 = vsel %vm423, %v428, %v427
    %vm430 = vcmp.lt.s32.totalorder %v402, 0
    %v431 = vsub.s32 0, %v402
    %v432 = vsel %vm430, %v431, %v402
    %v433 = vshrl.u32 %v432, 3
    %v434 = vand.u32 %v432, 7
    %v435 = vsub.s32 0, %v434
    %v436 = vsel %vm430, %v435, %v434
    %vm437 = vcmp.lt.s32.totalorder %v403, 0
    %v438 = vsub.s32 0, %v403
    %v439 = vsel %vm437, %v438, %v403
    %v440 = vshrl.u32 %v439, 3
    %v441 = vand.u32 %v439, 7
    %v442 = vsub.s32 0, %v441
    %v443 = vsel %vm437, %v442, %v441
    %vm444 = vcmp.lt.s32.totalorder %v404, 0
    %v445 = vsub.s32 0, %v404
    %v446 = vsel %vm444, %v445, %v404
    %v447 = vshrl.u32 %v446, 3
    %v448 = vand.u32 %v446, 7
    %v449 = vsub.s32 0, %v448
    %v450 = vsel %vm444, %v449, %v448
    %vm451 = vcmp.lt.s32.totalorder %v405, 0
    %v452 = vsub.s32 0, %v405
    %v453 = vsel %vm451, %v452, %v405
    %v454 = vshrl.u32 %v453, 3
    %v455 = vand.u32 %v453, 7
    %v456 = vsub.s32 0, %v455
    %v457 = vsel %vm451, %v456, %v455
    %vm458 = vcmp.lt.s32.totalorder %v406, 0
    %v459 = vsub.s32 0, %v406
    %v460 = vsel %vm458, %v459, %v406
    %v461 = vshrl.u32 %v460, 3
    %v462 = vand.u32 %v460, 7
    %v463 = vsub.s32 0, %v462
    %v464 = vsel %vm458, %v463, %v462
    %vm465 = vcmp.lt.s32.totalorder %v407, 0
    %v466 = vsub.s32 0, %v407
    %v467 = vsel %vm465, %v466, %v407
    %v468 = vshrl.u32 %v467, 3
    %v469 = vand.u32 %v467, 7
    %v470 = vsub.s32 0, %v469
    %v471 = vsel %vm465, %v470, %v469
    %vm472 = vcmp.lt.s32.totalorder %v408, 0
    %v473 = vsub.s32 0, %v408
    %v474 = vsel %vm472, %v473, %v408
    %v475 = vshrl.u32 %v474, 3
    %v476 = vand.u32 %v474, 7
    %v477 = vsub.s32 0, %v476
    %v478 = vsel %vm472, %v477, %v476
    %vm479 = vcmp.lt.s32.totalorder %v409, 0
    %v480 = vsub.s32 0, %v409
    %v481 = vsel %vm479, %v480, %v409
    %v482 = vshrl.u32 %v481, 3
    %v483 = vand.u32 %v481, 7
    %v484 = vsub.s32 0, %v483
    %v485 = vsel %vm479, %v484, %v483
    %vm486 = vcmp.lt.s32.totalorder %v410, 0
    %v487 = vsub.s32 0, %v410
    %v488 = vsel %vm486, %v487, %v410
    %v489 = vshrl.u32 %v488, 3
    %v490 = vand.u32 %v488, 7
    %v491 = vsub.s32 0, %v490
    %v492 = vsel %vm486, %v491, %v490
    %vm493 = vcmp.lt.s32.totalorder %v411, 0
    %v494 = vsub.s32 0, %v411
    %v495 = vsel %vm493, %v494, %v411
    %v496 = vshrl.u32 %v495, 3
    %v497 = vand.u32 %v495, 7
    %v498 = vsub.s32 0, %v497
    %v499 = vsel %vm493, %v498, %v497
    %vm500 = vcmp.lt.s32.totalorder %v412, 0
    %v501 = vsub.s32 0, %v412
    %v502 = vsel %vm500, %v501, %v412
    %v503 = vshrl.u32 %v502, 3
    %v504 = vand.u32 %v502, 7
    %v505 = vsub.s32 0, %v504
    %v506 = vsel %vm500, %v505, %v504
    %vm507 = vcmp.lt.s32.totalorder %v413, 0
    %v508 = vsub.s32 0, %v413
    %v509 = vsel %vm507, %v508, %v413
    %v510 = vshrl.u32 %v509, 3
    %v511 = vand.u32 %v509, 7
    %v512 = vsub.s32 0, %v511
    %v513 = vsel %vm507, %v512, %v511
    %vm514 = vcmp.lt.s32.totalorder %v414, 0
    %v515 = vsub.s32 0, %v414
    %v516 = vsel %vm514, %v515, %v414
    %v517 = vshrl.u32 %v516, 3
    %v518 = vand.u32 %v516, 7
    %v519 = vsub.s32 0, %v518
    %v520 = vsel %vm514, %v519, %v518
    %vm521 = vcmp.lt.s32.totalorder %v415, 0
    %v522 = vsub.s32 0, %v415
    %v523 = vsel %vm521, %v522, %v415
    %v524 = vshrl.u32 %v523, 3
    %v525 = vand.u32 %v523, 7
    %v526 = vsub.s32 0, %v525
    %v527 = vsel %vm521, %v526, %v525
    %vm528 = vcmp.ne.s32.totalorder %v422, 0
    %vm529 = vcmp.ne.s32.totalorder %v429, 0
    %vm530 = vcmp.ne.s32.totalorder %v436, 0
    %vm531 = vcmp.ne.s32.totalorder %v443, 0
    %vm532 = vcmp.ne.s32.totalorder %v450, 0
    %vm533 = vcmp.ne.s32.totalorder %v457, 0
    %vm534 = vcmp.ne.s32.totalorder %v464, 0
    %vm535 = vcmp.ne.s32.totalorder %v471, 0
    %vm536 = vcmp.ne.s32.totalorder %v478, 0
    %vm537 = vcmp.ne.s32.totalorder %v485, 0
    %vm538 = vcmp.ne.s32.totalorder %v492, 0
    %vm539 = vcmp.ne.s32.totalorder %v499, 0
    %vm540 = vcmp.ne.s32.totalorder %v506, 0
    %vm541 = vcmp.ne.s32.totalorder %v513, 0
    %vm542 = vcmp.ne.s32.totalorder %v520, 0
    %vm543 = vcmp.ne.s32.totalorder %v527, 0
    %vm544 = vcmp.lt.s32.totalorder %v422, 0
    %vm545 = vcmp.lt.s32.totalorder %v429, 0
    %vm546 = vcmp.lt.s32.totalorder %v436, 0
    %vm547 = vcmp.lt.s32.totalorder %v443, 0
    %vm548 = vcmp.lt.s32.totalorder %v450, 0
    %vm549 = vcmp.lt.s32.totalorder %v457, 0
    %vm550 = vcmp.lt.s32.totalorder %v464, 0
    %vm551 = vcmp.lt.s32.totalorder %v471, 0
    %vm552 = vcmp.lt.s32.totalorder %v478, 0
    %vm553 = vcmp.lt.s32.totalorder %v485, 0
    %vm554 = vcmp.lt.s32.totalorder %v492, 0
    %vm555 = vcmp.lt.s32.totalorder %v499, 0
    %vm556 = vcmp.lt.s32.totalorder %v506, 0
    %vm557 = vcmp.lt.s32.totalorder %v513, 0
    %vm558 = vcmp.lt.s32.totalorder %v520, 0
    %vm559 = vcmp.lt.s32.totalorder %v527, 0
    %vm560 = vmand %vm544, %vm528
    %vm561 = vmand %vm545, %vm529
    %vm562 = vmand %vm546, %vm530
    %vm563 = vmand %vm547, %vm531
    %vm564 = vmand %vm548, %vm532
    %vm565 = vmand %vm549, %vm533
    %vm566 = vmand %vm550, %vm534
    %vm567 = vmand %vm551, %vm535
    %vm568 = vmand %vm552, %vm536
    %vm569 = vmand %vm553, %vm537
    %vm570 = vmand %vm554, %vm538
    %vm571 = vmand %vm555, %vm539
    %vm572 = vmand %vm556, %vm540
    %vm573 = vmand %vm557, %vm541
    %vm574 = vmand %vm558, %vm542
    %vm575 = vmand %vm559, %vm543
    %v576 = vadd.s32 %v422, 8
    %v577 = vadd.s32 %v429, 8
    %v578 = vadd.s32 %v436, 8
    %v579 = vadd.s32 %v443, 8
    %v580 = vadd.s32 %v450, 8
    %v581 = vadd.s32 %v457, 8
    %v582 = vadd.s32 %v464, 8
    %v583 = vadd.s32 %v471, 8
    %v584 = vadd.s32 %v478, 8
    %v585 = vadd.s32 %v485, 8
    %v586 = vadd.s32 %v492, 8
    %v587 = vadd.s32 %v499, 8
    %v588 = vadd.s32 %v506, 8
    %v589 = vadd.s32 %v513, 8
    %v590 = vadd.s32 %v520, 8
    %v591 = vadd.s32 %v527, 8
    %v592 = vsel %vm560, %v576, %v422
    %v593 = vsel %vm561, %v577, %v429
    %v594 = vsel %vm562, %v578, %v436
    %v595 = vsel %vm563, %v579, %v443
    %v596 = vsel %vm564, %v580, %v450
    %v597 = vsel %vm565, %v581, %v457
    %v598 = vsel %vm566, %v582, %v464
    %v599 = vsel %vm567, %v583, %v471
    %v600 = vsel %vm568, %v584, %v478
    %v601 = vsel %vm569, %v585, %v485
    %v602 = vsel %vm570, %v586, %v492
    %v603 = vsel %vm571, %v587, %v499
    %v604 = vsel %vm572, %v588, %v506
    %v605 = vsel %vm573, %v589, %v513
    %v606 = vsel %vm574, %v590, %v520
    %v607 = vsel %vm575, %v591, %v527
    %vm608 = vcmp.ge.s32.totalorder %v592, 1
    %vm609 = vcmp.ge.s32.totalorder %v593, 1
    %vm610 = vcmp.ge.s32.totalorder %v594, 1
    %vm611 = vcmp.ge.s32.totalorder %v595, 1
    %vm612 = vcmp.ge.s32.totalorder %v596, 1
    %vm613 = vcmp.ge.s32.totalorder %v597, 1
    %vm614 = vcmp.ge.s32.totalorder %v598, 1
    %vm615 = vcmp.ge.s32.totalorder %v599, 1
    %vm616 = vcmp.ge.s32.totalorder %v600, 1
    %vm617 = vcmp.ge.s32.totalorder %v601, 1
    %vm618 = vcmp.ge.s32.totalorder %v602, 1
    %vm619 = vcmp.ge.s32.totalorder %v603, 1
    %vm620 = vcmp.ge.s32.totalorder %v604, 1
    %vm621 = vcmp.ge.s32.totalorder %v605, 1
    %vm622 = vcmp.ge.s32.totalorder %v606, 1
    %vm623 = vcmp.ge.s32.totalorder %v607, 1
    %vm624 = vcmp.ge.s32.totalorder %v592, 2
    %vm625 = vcmp.ge.s32.totalorder %v593, 2
    %vm626 = vcmp.ge.s32.totalorder %v594, 2
    %vm627 = vcmp.ge.s32.totalorder %v595, 2
    %vm628 = vcmp.ge.s32.totalorder %v596, 2
    %vm629 = vcmp.ge.s32.totalorder %v597, 2
    %vm630 = vcmp.ge.s32.totalorder %v598, 2
    %vm631 = vcmp.ge.s32.totalorder %v599, 2
    %vm632 = vcmp.ge.s32.totalorder %v600, 2
    %vm633 = vcmp.ge.s32.totalorder %v601, 2
    %vm634 = vcmp.ge.s32.totalorder %v602, 2
    %vm635 = vcmp.ge.s32.totalorder %v603, 2
    %vm636 = vcmp.ge.s32.totalorder %v604, 2
    %vm637 = vcmp.ge.s32.totalorder %v605, 2
    %vm638 = vcmp.ge.s32.totalorder %v606, 2
    %vm639 = vcmp.ge.s32.totalorder %v607, 2
    %v640 = vlaneseq
    %v641 = vand.u32 %v640, 127
    %vm642 = vcmp.lt.s32.totalorder %v641, 12
    %v643 = vsel %vm642, 0.0, -1e+30
    %v644 = vpack.c.bf16 %v44, %v43
    %v645 = vpack.c.bf16 %v46, %v45
    %v646 = vpack.c.bf16 %v48, %v47
    %v647 = vpack.c.bf16 %v50, %v49
    %v648 = vpack.c.bf16 %v52, %v51
    %v649 = vpack.c.bf16 %v54, %v53
    %v650 = vpack.c.bf16 %v56, %v55
    %v651 = vpack.c.bf16 %v58, %v57
    %v652 = vld [vmem:[%s4] sm:$0xf]
    %v653 = vld [vmem:[%s4 + $0x4] sm:$0xf]
    %v654 = vld [vmem:[%s4 + $0x8] sm:$0xf]
    %v655 = vld [vmem:[%s4 + $0xc] sm:$0xf]
    %v656 = vld [vmem:[%s6] sm:$0xf]
    %v657 = vld [vmem:[%s6 + $0x4] sm:$0xf]
    %v658 = vld [vmem:[%s6 + $0x8] sm:$0xf]
    %v659 = vld [vmem:[%s6 + $0xc] sm:$0xf]
    %v660 = vrot.slane %v43, 7
    %v661 = vrot.slane %v44, 7
    %v662 = vrot.slane %v45, 7
    %v663 = vrot.slane %v46, 7
    %v664 = vrot.slane %v47, 7
    %v665 = vrot.slane %v48, 7
    %v666 = vrot.slane %v49, 7
    %v667 = vrot.slane %v50, 7
    %v668 = vrot.slane %v51, 7
    %v669 = vrot.slane %v52, 7
    %v670 = vrot.slane %v53, 7
    %v671 = vrot.slane %v54, 7
    %v672 = vrot.slane %v55, 7
    %v673 = vrot.slane %v56, 7
    %v674 = vrot.slane %v57, 7
    %v675 = vrot.slane %v58, 7
    %vm676 = vcmp.lt.s32.totalorder %v400, 1
    %v677 = vsel %vm676, %v674, %v675
    %v678 = vsel %vm676, %v673, %v674
    %v679 = vsel %vm676, %v672, %v673
    %v680 = vsel %vm676, %v671, %v672
    %v681 = vsel %vm676, %v670, %v671
    %v682 = vsel %vm676, %v669, %v670
    %v683 = vsel %vm676, %v668, %v669
    %v684 = vsel %vm676, %v667, %v668
    %v685 = vsel %vm676, %v666, %v667
    %v686 = vsel %vm676, %v665, %v666
    %v687 = vsel %vm676, %v664, %v665
    %v688 = vsel %vm676, %v663, %v664
    %v689 = vsel %vm676, %v662, %v663
    %v690 = vsel %vm676, %v661, %v662
    %v691 = vsel %vm676, %v660, %v661
    %v692 = vsel %vm676, %v675, %v660
    %v693 = vsel %vm608, %v692, 1.0
    %v694 = vsel %vm609, %v691, 1.0
    %v695 = vsel %vm610, %v690, 1.0
    %v696 = vsel %vm611, %v689, 1.0
    %v697 = vsel %vm612, %v688, 1.0
    %v698 = vsel %vm613, %v687, 1.0
    %v699 = vsel %vm614, %v686, 1.0
    %v700 = vsel %vm615, %v685, 1.0
    %v701 = vsel %vm616, %v684, 1.0
    %v702 = vsel %vm617, %v683, 1.0
    %v703 = vsel %vm618, %v682, 1.0
    %v704 = vsel %vm619, %v681, 1.0
    %v705 = vsel %vm620, %v680, 1.0
    %v706 = vsel %vm621, %v679, 1.0
    %v707 = vsel %vm622, %v678, 1.0
    %v708 = vsel %vm623, %v677, 1.0
    %v709 = vpack.c.bf16 %v694, %v693
    %v710 = vpack.c.bf16 %v696, %v695
    %v711 = vpack.c.bf16 %v698, %v697
    %v712 = vpack.c.bf16 %v700, %v699
    %v713 = vpack.c.bf16 %v702, %v701
    %v714 = vpack.c.bf16 %v704, %v703
    %v715 = vpack.c.bf16 %v706, %v705
    %v716 = vpack.c.bf16 %v708, %v707
    %s717 = scalar_lea.vmem %s4, 16
    %v718 = vld [vmem:[%s717] sm:$0xf]
    %v719 = vld [vmem:[%s717 + $0x4] sm:$0xf]
    %v720 = vld [vmem:[%s717 + $0x8] sm:$0xf]
    %v721 = vld [vmem:[%s717 + $0xc] sm:$0xf]
    %v726 = vunpack.c.l.b16 %v718
    %v727 = vunpack.c.l.b16 %v719
    %v728 = vunpack.c.l.b16 %v720
    %v729 = vunpack.c.l.b16 %v721
    %v730 = vpack.c.b16 %v727, %v726
    %v731 = vpack.c.b16 %v729, %v728
    %vm734 = vcmask 261120
    %v736 = vsel %vm734, %v709, 0
    %v739 = vsel %vm734, %v710, 0
    %v742 = vsel %vm734, %v711, 0
    %v745 = vsel %vm734, %v712, 0
    %v748 = vsel %vm734, %v713, 0
    %v751 = vsel %vm734, %v714, 0
    %v754 = vsel %vm734, %v715, 0
    %v757 = vsel %vm734, %v716, 0
    %759 = vmatprep.subr.bf16.mxu0 0
    %760 = vmatpush1.bf16.msra.mxu0 %v730
    %761 = vmatprep.subr.bf16.mxu0 0
    %762 = vmatpush1.bf16.msra.mxu0 %v731
    %763 = vmatprep.subr.bf16.mxu0 0
    %764 = vmatpush1.bf16.msra.mxu0 0
    %765 = vmatprep.subr.bf16.mxu0 0
    %766 = vmatpush1.bf16.msra.mxu0 0
    %767 = vmatprep.subr.bf16.mxu0 0
    %768 = vmatpush1.bf16.msra.mxu0 0
    %769 = vmatprep.subr.bf16.mxu0 0
    %770 = vmatpush1.bf16.msra.mxu0 0
    %771 = vmatprep.subr.bf16.mxu0 0
    %772 = vmatpush1.bf16.msra.mxu0 0
    %773 = vmatprep.subr.bf16.mxu0 0
    %774 = vmatpush1.bf16.msra.mxu0 0
    %775 = vmatprep.subr.bf16.mxu0 0
    %776 = vmatpush1.bf16.msra.mxu0 0
    %777 = vmatprep.subr.bf16.mxu0 0
    %778 = vmatpush1.bf16.msra.mxu0 0
    %779 = vmatprep.subr.bf16.mxu0 0
    %780 = vmatpush1.bf16.msra.mxu0 0
    %781 = vmatprep.subr.bf16.mxu0 0
    %782 = vmatpush1.bf16.msra.mxu0 0
    %783 = vmatprep.subr.bf16.mxu0 0
    %784 = vmatpush1.bf16.msra.mxu0 0
    %785 = vmatprep.subr.bf16.mxu0 0
    %786 = vmatpush1.bf16.msra.mxu0 0
    %787 = vmatprep.subr.bf16.mxu0 0
    %788 = vmatpush1.bf16.msra.mxu0 0
    %789 = vmatprep.subr.bf16.mxu0 0
    %790 = vmatpush1.bf16.msra.mxu0 0
    %791 = vmatprep.mubr.bf16.mxu0 0
    %792 = vmatmul.mubr.bf16.gmra.mrb[0].mxu0 %v736
    %v793 = vpop.f32.mrb[0].mxu0
    %v794 = vadd.f32 0.0, %v793
    %v795 = vpop.f32.mrb[0].mxu0
    %v796 = vpop.f32.mrb[0].mxu0
    %v797 = vadd.f32 0.0, %v796
    %v798 = vpop.f32.mrb[0].mxu0
    %799 = vmatprep.mubr.bf16.mxu0 0
    %800 = vmatmul.mubr.bf16.gmra.mrb[0].mxu0 %v739
    %v801 = vpop.f32.mrb[0].mxu0
    %v802 = vadd.f32 0.0, %v801
    %v803 = vpop.f32.mrb[0].mxu0
    %v804 = vpop.f32.mrb[0].mxu0
    %v805 = vadd.f32 0.0, %v804
    %v806 = vpop.f32.mrb[0].mxu0
    %807 = vmatprep.mubr.bf16.mxu0 0
    %808 = vmatmul.mubr.bf16.gmra.mrb[0].mxu0 %v742
    %v809 = vpop.f32.mrb[0].mxu0
    %v810 = vadd.f32 0.0, %v809
    %v811 = vpop.f32.mrb[0].mxu0
    %v812 = vpop.f32.mrb[0].mxu0
    %v813 = vadd.f32 0.0, %v812
    %v814 = vpop.f32.mrb[0].mxu0
    %815 = vmatprep.mubr.bf16.mxu0 0
    %816 = vmatmul.mubr.bf16.gmra.mrb[0].mxu0 %v745
    %v817 = vpop.f32.mrb[0].mxu0
    %v818 = vadd.f32 0.0, %v817
    %v819 = vpop.f32.mrb[0].mxu0
    %v820 = vpop.f32.mrb[0].mxu0
    %v821 = vadd.f32 0.0, %v820
    %v822 = vpop.f32.mrb[0].mxu0
    %823 = vmatprep.mubr.bf16.mxu0 0
    %824 = vmatmul.mubr.bf16.gmra.mrb[0].mxu0 %v748
    %v825 = vpop.f32.mrb[0].mxu0
    %v826 = vadd.f32 0.0, %v825
    %v827 = vpop.f32.mrb[0].mxu0
    %v828 = vpop.f32.mrb[0].mxu0
    %v829 = vadd.f32 0.0, %v828
    %v830 = vpop.f32.mrb[0].mxu0
    %831 = vmatprep.mubr.bf16.mxu0 0
    %832 = vmatmul.mubr.bf16.gmra.mrb[0].mxu0 %v751
    %v833 = vpop.f32.mrb[0].mxu0
    %v834 = vadd.f32 0.0, %v833
    %v835 = vpop.f32.mrb[0].mxu0
    %v836 = vpop.f32.mrb[0].mxu0
    %v837 = vadd.f32 0.0, %v836
    %v838 = vpop.f32.mrb[0].mxu0
    %839 = vmatprep.mubr.bf16.mxu0 0
    %840 = vmatmul.mubr.bf16.gmra.mrb[0].mxu0 %v754
    %v841 = vpop.f32.mrb[0].mxu0
    %v842 = vadd.f32 0.0, %v841
    %v843 = vpop.f32.mrb[0].mxu0
    %v844 = vpop.f32.mrb[0].mxu0
    %v845 = vadd.f32 0.0, %v844
    %v846 = vpop.f32.mrb[0].mxu0
    %847 = vmatprep.mubr.bf16.mxu0 0
    %848 = vmatmul.mubr.bf16.gmra.mrb[0].mxu0 %v757
    %v849 = vpop.f32.mrb[0].mxu0
    %v850 = vadd.f32 0.0, %v849
    %v851 = vpop.f32.mrb[0].mxu0
    %v852 = vpop.f32.mrb[0].mxu0
    %v853 = vadd.f32 0.0, %v852
    %v854 = vpop.f32.mrb[0].mxu0
    %855 = vdwg.mxu0
    %v860 = vunpack.c.l.b16 %v652
    %v861 = vunpack.c.l.b16 %v653
    %v862 = vunpack.c.l.b16 %v654
    %v863 = vunpack.c.l.b16 %v655
    %v864 = vpack.c.b16 %v861, %v860
    %v865 = vpack.c.b16 %v863, %v862
    %v869 = vsel %vm734, %v644, 0
    %v872 = vsel %vm734, %v645, 0
    %v875 = vsel %vm734, %v646, 0
    %v878 = vsel %vm734, %v647, 0
    %v881 = vsel %vm734, %v648, 0
    %v884 = vsel %vm734, %v649, 0
    %v887 = vsel %vm734, %v650, 0
    %v890 = vsel %vm734, %v651, 0
    %892 = vmatprep.subr.bf16.mxu0 0
    %893 = vmatpush1.bf16.msra.mxu0 %v864
    %894 = vmatprep.subr.bf16.mxu0 0
    %895 = vmatpush1.bf16.msra.mxu0 %v865
    %896 = vmatprep.subr.bf16.mxu0 0
    %897 = vmatpush1.bf16.msra.mxu0 0
    %898 = vmatprep.subr.bf16.mxu0 0
    %899 = vmatpush1.bf16.msra.mxu0 0
    %900 = vmatprep.subr.bf16.mxu0 0
    %901 = vmatpush1.bf16.msra.mxu0 0
    %902 = vmatprep.subr.bf16.mxu0 0
    %903 = vmatpush1.bf16.msra.mxu0 0
    %904 = vmatprep.subr.bf16.mxu0 0
    %905 = vmatpush1.bf16.msra.mxu0 0
    %906 = vmatprep.subr.bf16.mxu0 0
    %907 = vmatpush1.bf16.msra.mxu0 0
    %908 = vmatprep.subr.bf16.mxu0 0
    %909 = vmatpush1.bf16.msra.mxu0 0
    %910 = vmatprep.subr.bf16.mxu0 0
    %911 = vmatpush1.bf16.msra.mxu0 0
    %912 = vmatprep.subr.bf16.mxu0 0
    %913 = vmatpush1.bf16.msra.mxu0 0
    %914 = vmatprep.subr.bf16.mxu0 0
    %915 = vmatpush1.bf16.msra.mxu0 0
    %916 = vmatprep.subr.bf16.mxu0 0
    %917 = vmatpush1.bf16.msra.mxu0 0
    %918 = vmatprep.subr.bf16.mxu0 0
    %919 = vmatpush1.bf16.msra.mxu0 0
    %920 = vmatprep.subr.bf16.mxu0 0
    %921 = vmatpush1.bf16.msra.mxu0 0
    %922 = vmatprep.subr.bf16.mxu0 0
    %923 = vmatpush1.bf16.msra.mxu0 0
    %924 = vmatprep.mubr.bf16.mxu0 0
    %925 = vmatmul.mubr.bf16.gmra.mrb[0].mxu0 %v869
    %v926 = vpop.f32.mrb[0].mxu0
    %v927 = vadd.f32 %v794, %v926
    %v928 = vpop.f32.mrb[0].mxu0
    %v929 = vpop.f32.mrb[0].mxu0
    %v930 = vadd.f32 %v797, %v929
    %v931 = vpop.f32.mrb[0].mxu0
    %932 = vmatprep.mubr.bf16.mxu0 0
    %933 = vmatmul.mubr.bf16.gmra.mrb[0].mxu0 %v872
    %v934 = vpop.f32.mrb[0].mxu0
    %v935 = vadd.f32 %v802, %v934
    %v936 = vpop.f32.mrb[0].mxu0
    %v937 = vpop.f32.mrb[0].mxu0
    %v938 = vadd.f32 %v805, %v937
    %v939 = vpop.f32.mrb[0].mxu0
    %940 = vmatprep.mubr.bf16.mxu0 0
    %941 = vmatmul.mubr.bf16.gmra.mrb[0].mxu0 %v875
    %v942 = vpop.f32.mrb[0].mxu0
    %v943 = vadd.f32 %v810, %v942
    %v944 = vpop.f32.mrb[0].mxu0
    %v945 = vpop.f32.mrb[0].mxu0
    %v946 = vadd.f32 %v813, %v945
    %v947 = vpop.f32.mrb[0].mxu0
    %948 = vmatprep.mubr.bf16.mxu0 0
    %949 = vmatmul.mubr.bf16.gmra.mrb[0].mxu0 %v878
    %v950 = vpop.f32.mrb[0].mxu0
    %v951 = vadd.f32 %v818, %v950
    %v952 = vpop.f32.mrb[0].mxu0
    %v953 = vpop.f32.mrb[0].mxu0
    %v954 = vadd.f32 %v821, %v953
    %v955 = vpop.f32.mrb[0].mxu0
    %956 = vmatprep.mubr.bf16.mxu0 0
    %957 = vmatmul.mubr.bf16.gmra.mrb[0].mxu0 %v881
    %v958 = vpop.f32.mrb[0].mxu0
    %v959 = vadd.f32 %v826, %v958
    %v960 = vpop.f32.mrb[0].mxu0
    %v961 = vpop.f32.mrb[0].mxu0
    %v962 = vadd.f32 %v829, %v961
    %v963 = vpop.f32.mrb[0].mxu0
    %964 = vmatprep.mubr.bf16.mxu0 0
    %965 = vmatmul.mubr.bf16.gmra.mrb[0].mxu0 %v884
    %v966 = vpop.f32.mrb[0].mxu0
    %v967 = vadd.f32 %v834, %v966
    %v968 = vpop.f32.mrb[0].mxu0
    %v969 = vpop.f32.mrb[0].mxu0
    %v970 = vadd.f32 %v837, %v969
    %v971 = vpop.f32.mrb[0].mxu0
    %972 = vmatprep.mubr.bf16.mxu0 0
    %973 = vmatmul.mubr.bf16.gmra.mrb[0].mxu0 %v887
    %v974 = vpop.f32.mrb[0].mxu0
    %v975 = vadd.f32 %v842, %v974
    %v976 = vpop.f32.mrb[0].mxu0
    %v977 = vpop.f32.mrb[0].mxu0
    %v978 = vadd.f32 %v845, %v977
    %v979 = vpop.f32.mrb[0].mxu0
    %980 = vmatprep.mubr.bf16.mxu0 0
    %981 = vmatmul.mubr.bf16.gmra.mrb[0].mxu0 %v890
    %v982 = vpop.f32.mrb[0].mxu0
    %v983 = vadd.f32 %v850, %v982
    %v984 = vpop.f32.mrb[0].mxu0
    %v985 = vpop.f32.mrb[0].mxu0
    %v986 = vadd.f32 %v853, %v985
    %v987 = vpop.f32.mrb[0].mxu0
    %988 = vdwg.mxu0
    %s989 = scalar_lea.vmem %s6, 16
    %v990 = vld [vmem:[%s989] sm:$0xf]
    %v991 = vld [vmem:[%s989 + $0x4] sm:$0xf]
    %v992 = vld [vmem:[%s989 + $0x8] sm:$0xf]
    %v993 = vld [vmem:[%s989 + $0xc] sm:$0xf]
    %v998 = vunpack.c.l.b16 %v990
    %v999 = vunpack.c.l.b16 %v991
    %v1000 = vunpack.c.l.b16 %v992
    %v1001 = vunpack.c.l.b16 %v993
    %v1002 = vpack.c.b16 %v999, %v998
    %v1003 = vpack.c.b16 %v1001, %v1000
    %1006 = vmatprep.subr.bf16.mxu0 0
    %1007 = vmatpush1.bf16.msra.mxu0 %v1002
    %1008 = vmatprep.subr.bf16.mxu0 0
    %1009 = vmatpush1.bf16.msra.mxu0 %v1003
    %1010 = vmatprep.subr.bf16.mxu0 0
    %1011 = vmatpush1.bf16.msra.mxu0 0
    %1012 = vmatprep.subr.bf16.mxu0 0
    %1013 = vmatpush1.bf16.msra.mxu0 0
    %1014 = vmatprep.subr.bf16.mxu0 0
    %1015 = vmatpush1.bf16.msra.mxu0 0
    %1016 = vmatprep.subr.bf16.mxu0 0
    %1017 = vmatpush1.bf16.msra.mxu0 0
    %1018 = vmatprep.subr.bf16.mxu0 0
    %1019 = vmatpush1.bf16.msra.mxu0 0
    %1020 = vmatprep.subr.bf16.mxu0 0
    %1021 = vmatpush1.bf16.msra.mxu0 0
    %1022 = vmatprep.subr.bf16.mxu0 0
    %1023 = vmatpush1.bf16.msra.mxu0 0
    %1024 = vmatprep.subr.bf16.mxu0 0
    %1025 = vmatpush1.bf16.msra.mxu0 0
    %1026 = vmatprep.subr.bf16.mxu0 0
    %1027 = vmatpush1.bf16.msra.mxu0 0
    %1028 = vmatprep.subr.bf16.mxu0 0
    %1029 = vmatpush1.bf16.msra.mxu0 0
    %1030 = vmatprep.subr.bf16.mxu0 0
    %1031 = vmatpush1.bf16.msra.mxu0 0
    %1032 = vmatprep.subr.bf16.mxu0 0
    %1033 = vmatpush1.bf16.msra.mxu0 0
    %1034 = vmatprep.subr.bf16.mxu0 0
    %1035 = vmatpush1.bf16.msra.mxu0 0
    %1036 = vmatprep.subr.bf16.mxu0 0
    %1037 = vmatpush1.bf16.msra.mxu0 0
    %1038 = vmatprep.mubr.bf16.mxu0 0
    %1039 = vmatmul.mubr.bf16.gmra.mrb[0].mxu0 %v736
    %v1040 = vpop.f32.mrb[0].mxu0
    %v1041 = vadd.f32 0.0, %v1040
    %v1042 = vpop.f32.mrb[0].mxu0
    %v1043 = vpop.f32.mrb[0].mxu0
    %v1044 = vadd.f32 0.0, %v1043
    %v1045 = vpop.f32.mrb[0].mxu0
    %1046 = vmatprep.mubr.bf16.mxu0 0
    %1047 = vmatmul.mubr.bf16.gmra.mrb[0].mxu0 %v739
    %v1048 = vpop.f32.mrb[0].mxu0
    %v1049 = vadd.f32 0.0, %v1048
    %v1050 = vpop.f32.mrb[0].mxu0
    %v1051 = vpop.f32.mrb[0].mxu0
    %v1052 = vadd.f32 0.0, %v1051
    %v1053 = vpop.f32.mrb[0].mxu0
    %1054 = vmatprep.mubr.bf16.mxu0 0
    %1055 = vmatmul.mubr.bf16.gmra.mrb[0].mxu0 %v742
    %v1056 = vpop.f32.mrb[0].mxu0
    %v1057 = vadd.f32 0.0, %v1056
    %v1058 = vpop.f32.mrb[0].mxu0
    %v1059 = vpop.f32.mrb[0].mxu0
    %v1060 = vadd.f32 0.0, %v1059
    %v1061 = vpop.f32.mrb[0].mxu0
    %1062 = vmatprep.mubr.bf16.mxu0 0
    %1063 = vmatmul.mubr.bf16.gmra.mrb[0].mxu0 %v745
    %v1064 = vpop.f32.mrb[0].mxu0
    %v1065 = vadd.f32 0.0, %v1064
    %v1066 = vpop.f32.mrb[0].mxu0
    %v1067 = vpop.f32.mrb[0].mxu0
    %v1068 = vadd.f32 0.0, %v1067
    %v1069 = vpop.f32.mrb[0].mxu0
    %1070 = vmatprep.mubr.bf16.mxu0 0
    %1071 = vmatmul.mubr.bf16.gmra.mrb[0].mxu0 %v748
    %v1072 = vpop.f32.mrb[0].mxu0
    %v1073 = vadd.f32 0.0, %v1072
    %v1074 = vpop.f32.mrb[0].mxu0
    %v1075 = vpop.f32.mrb[0].mxu0
    %v1076 = vadd.f32 0.0, %v1075
    %v1077 = vpop.f32.mrb[0].mxu0
    %1078 = vmatprep.mubr.bf16.mxu0 0
    %1079 = vmatmul.mubr.bf16.gmra.mrb[0].mxu0 %v751
    %v1080 = vpop.f32.mrb[0].mxu0
    %v1081 = vadd.f32 0.0, %v1080
    %v1082 = vpop.f32.mrb[0].mxu0
    %v1083 = vpop.f32.mrb[0].mxu0
    %v1084 = vadd.f32 0.0, %v1083
    %v1085 = vpop.f32.mrb[0].mxu0
    %1086 = vmatprep.mubr.bf16.mxu0 0
    %1087 = vmatmul.mubr.bf16.gmra.mrb[0].mxu0 %v754
    %v1088 = vpop.f32.mrb[0].mxu0
    %v1089 = vadd.f32 0.0, %v1088
    %v1090 = vpop.f32.mrb[0].mxu0
    %v1091 = vpop.f32.mrb[0].mxu0
    %v1092 = vadd.f32 0.0, %v1091
    %v1093 = vpop.f32.mrb[0].mxu0
    %1094 = vmatprep.mubr.bf16.mxu0 0
    %1095 = vmatmul.mubr.bf16.gmra.mrb[0].mxu0 %v757
    %v1096 = vpop.f32.mrb[0].mxu0
    %v1097 = vadd.f32 0.0, %v1096
    %v1098 = vpop.f32.mrb[0].mxu0
    %v1099 = vpop.f32.mrb[0].mxu0
    %v1100 = vadd.f32 0.0, %v1099
    %v1101 = vpop.f32.mrb[0].mxu0
    %1102 = vdwg.mxu0
    %v1107 = vunpack.c.l.b16 %v656
    %v1108 = vunpack.c.l.b16 %v657
    %v1109 = vunpack.c.l.b16 %v658
    %v1110 = vunpack.c.l.b16 %v659
    %v1111 = vpack.c.b16 %v1108, %v1107
    %v1112 = vpack.c.b16 %v1110, %v1109
    %1115 = vmatprep.subr.bf16.mxu0 0
    %1116 = vmatpush1.bf16.msra.mxu0 %v1111
    %1117 = vmatprep.subr.bf16.mxu0 0
    %1118 = vmatpush1.bf16.msra.mxu0 %v1112
    %1119 = vmatprep.subr.bf16.mxu0 0
    %1120 = vmatpush1.bf16.msra.mxu0 0
    %1121 = vmatprep.subr.bf16.mxu0 0
    %1122 = vmatpush1.bf16.msra.mxu0 0
    %1123 = vmatprep.subr.bf16.mxu0 0
    %1124 = vmatpush1.bf16.msra.mxu0 0
    %1125 = vmatprep.subr.bf16.mxu0 0
    %1126 = vmatpush1.bf16.msra.mxu0 0
    %1127 = vmatprep.subr.bf16.mxu0 0
    %1128 = vmatpush1.bf16.msra.mxu0 0
    %1129 = vmatprep.subr.bf16.mxu0 0
    %1130 = vmatpush1.bf16.msra.mxu0 0
    %1131 = vmatprep.subr.bf16.mxu0 0
    %1132 = vmatpush1.bf16.msra.mxu0 0
    %1133 = vmatprep.subr.bf16.mxu0 0
    %1134 = vmatpush1.bf16.msra.mxu0 0
    %1135 = vmatprep.subr.bf16.mxu0 0
    %1136 = vmatpush1.bf16.msra.mxu0 0
    %1137 = vmatprep.subr.bf16.mxu0 0
    %1138 = vmatpush1.bf16.msra.mxu0 0
    %1139 = vmatprep.subr.bf16.mxu0 0
    %1140 = vmatpush1.bf16.msra.mxu0 0
    %1141 = vmatprep.subr.bf16.mxu0 0
    %1142 = vmatpush1.bf16.msra.mxu0 0
    %1143 = vmatprep.subr.bf16.mxu0 0
    %1144 = vmatpush1.bf16.msra.mxu0 0
    %1145 = vmatprep.subr.bf16.mxu0 0
    %1146 = vmatpush1.bf16.msra.mxu0 0
    %1147 = vmatprep.mubr.bf16.mxu0 0
    %1148 = vmatmul.mubr.bf16.gmra.mrb[0].mxu0 %v869
    %v1149 = vpop.f32.mrb[0].mxu0
    %v1150 = vadd.f32 %v1041, %v1149
    %v1151 = vpop.f32.mrb[0].mxu0
    %v1152 = vpop.f32.mrb[0].mxu0
    %v1153 = vadd.f32 %v1044, %v1152
    %v1154 = vpop.f32.mrb[0].mxu0
    %1155 = vmatprep.mubr.bf16.mxu0 0
    %1156 = vmatmul.mubr.bf16.gmra.mrb[0].mxu0 %v872
    %v1157 = vpop.f32.mrb[0].mxu0
    %v1158 = vadd.f32 %v1049, %v1157
    %v1159 = vpop.f32.mrb[0].mxu0
    %v1160 = vpop.f32.mrb[0].mxu0
    %v1161 = vadd.f32 %v1052, %v1160
    %v1162 = vpop.f32.mrb[0].mxu0
    %1163 = vmatprep.mubr.bf16.mxu0 0
    %1164 = vmatmul.mubr.bf16.gmra.mrb[0].mxu0 %v875
    %v1165 = vpop.f32.mrb[0].mxu0
    %v1166 = vadd.f32 %v1057, %v1165
    %v1167 = vpop.f32.mrb[0].mxu0
    %v1168 = vpop.f32.mrb[0].mxu0
    %v1169 = vadd.f32 %v1060, %v1168
    %v1170 = vpop.f32.mrb[0].mxu0
    %1171 = vmatprep.mubr.bf16.mxu0 0
    %1172 = vmatmul.mubr.bf16.gmra.mrb[0].mxu0 %v878
    %v1173 = vpop.f32.mrb[0].mxu0
    %v1174 = vadd.f32 %v1065, %v1173
    %v1175 = vpop.f32.mrb[0].mxu0
    %v1176 = vpop.f32.mrb[0].mxu0
    %v1177 = vadd.f32 %v1068, %v1176
    %v1178 = vpop.f32.mrb[0].mxu0
    %1179 = vmatprep.mubr.bf16.mxu0 0
    %1180 = vmatmul.mubr.bf16.gmra.mrb[0].mxu0 %v881
    %v1181 = vpop.f32.mrb[0].mxu0
    %v1182 = vadd.f32 %v1073, %v1181
    %v1183 = vpop.f32.mrb[0].mxu0
    %v1184 = vpop.f32.mrb[0].mxu0
    %v1185 = vadd.f32 %v1076, %v1184
    %v1186 = vpop.f32.mrb[0].mxu0
    %1187 = vmatprep.mubr.bf16.mxu0 0
    %1188 = vmatmul.mubr.bf16.gmra.mrb[0].mxu0 %v884
    %v1189 = vpop.f32.mrb[0].mxu0
    %v1190 = vadd.f32 %v1081, %v1189
    %v1191 = vpop.f32.mrb[0].mxu0
    %v1192 = vpop.f32.mrb[0].mxu0
    %v1193 = vadd.f32 %v1084, %v1192
    %v1194 = vpop.f32.mrb[0].mxu0
    %1195 = vmatprep.mubr.bf16.mxu0 0
    %1196 = vmatmul.mubr.bf16.gmra.mrb[0].mxu0 %v887
    %v1197 = vpop.f32.mrb[0].mxu0
    %v1198 = vadd.f32 %v1089, %v1197
    %v1199 = vpop.f32.mrb[0].mxu0
    %v1200 = vpop.f32.mrb[0].mxu0
    %v1201 = vadd.f32 %v1092, %v1200
    %v1202 = vpop.f32.mrb[0].mxu0
    %1203 = vmatprep.mubr.bf16.mxu0 0
    %1204 = vmatmul.mubr.bf16.gmra.mrb[0].mxu0 %v890
    %v1205 = vpop.f32.mrb[0].mxu0
    %v1206 = vadd.f32 %v1097, %v1205
    %v1207 = vpop.f32.mrb[0].mxu0
    %v1208 = vpop.f32.mrb[0].mxu0
    %v1209 = vadd.f32 %v1100, %v1208
    %v1210 = vpop.f32.mrb[0].mxu0
    %1211 = vdwg.mxu0
    %v1212 = vrot.slane %v43, 6
    %v1213 = vrot.slane %v44, 6
    %v1214 = vrot.slane %v45, 6
    %v1215 = vrot.slane %v46, 6
    %v1216 = vrot.slane %v47, 6
    %v1217 = vrot.slane %v48, 6
    %v1218 = vrot.slane %v49, 6
    %v1219 = vrot.slane %v50, 6
    %v1220 = vrot.slane %v51, 6
    %v1221 = vrot.slane %v52, 6
    %v1222 = vrot.slane %v53, 6
    %v1223 = vrot.slane %v54, 6
    %v1224 = vrot.slane %v55, 6
    %v1225 = vrot.slane %v56, 6
    %v1226 = vrot.slane %v57, 6
    %v1227 = vrot.slane %v58, 6
    %vm1228 = vcmp.lt.s32.totalorder %v400, 2
    %v1229 = vsel %vm1228, %v1226, %v1227
    %v1230 = vsel %vm1228, %v1225, %v1226
    %v1231 = vsel %vm1228, %v1224, %v1225
    %v1232 = vsel %vm1228, %v1223, %v1224
    %v1233 = vsel %vm1228, %v1222, %v1223
    %v1234 = vsel %vm1228, %v1221, %v1222
    %v1235 = vsel %vm1228, %v1220, %v1221
    %v1236 = vsel %vm1228, %v1219, %v1220
    %v1237 = vsel %vm1228, %v1218, %v1219
    %v1238 = vsel %vm1228, %v1217, %v1218
    %v1239 = vsel %vm1228, %v1216, %v1217
    %v1240 = vsel %vm1228, %v1215, %v1216
    %v1241 = vsel %vm1228, %v1214, %v1215
    %v1242 = vsel %vm1228, %v1213, %v1214
    %v1243 = vsel %vm1228, %v1212, %v1213
    %v1244 = vsel %vm1228, %v1227, %v1212
    %v1245 = vsel %vm624, %v1244, 1.0
    %v1246 = vsel %vm625, %v1243, 1.0
    %v1247 = vsel %vm626, %v1242, 1.0
    %v1248 = vsel %vm627, %v1241, 1.0
    %v1249 = vsel %vm628, %v1240, 1.0
    %v1250 = vsel %vm629, %v1239, 1.0
    %v1251 = vsel %vm630, %v1238, 1.0
    %v1252 = vsel %vm631, %v1237, 1.0
    %v1253 = vsel %vm632, %v1236, 1.0
    %v1254 = vsel %vm633, %v1235, 1.0
    %v1255 = vsel %vm634, %v1234, 1.0
    %v1256 = vsel %vm635, %v1233, 1.0
    %v1257 = vsel %vm636, %v1232, 1.0
    %v1258 = vsel %vm637, %v1231, 1.0
    %v1259 = vsel %vm638, %v1230, 1.0
    %v1260 = vsel %vm639, %v1229, 1.0
    %v1261 = vpack.c.bf16 %v1246, %v1245
    %v1262 = vpack.c.bf16 %v1248, %v1247
    %v1263 = vpack.c.bf16 %v1250, %v1249
    %v1264 = vpack.c.bf16 %v1252, %v1251
    %v1265 = vpack.c.bf16 %v1254, %v1253
    %v1266 = vpack.c.bf16 %v1256, %v1255
    %v1267 = vpack.c.bf16 %v1258, %v1257
    %v1268 = vpack.c.bf16 %v1260, %v1259
    %s1269 = scalar_lea.vmem %s4, 32
    %v1270 = vld [vmem:[%s1269] sm:$0xf]
    %v1271 = vld [vmem:[%s1269 + $0x4] sm:$0xf]
    %v1272 = vld [vmem:[%s1269 + $0x8] sm:$0xf]
    %v1273 = vld [vmem:[%s1269 + $0xc] sm:$0xf]
    %v1278 = vunpack.c.l.b16 %v1270
    %v1279 = vunpack.c.l.b16 %v1271
    %v1280 = vunpack.c.l.b16 %v1272
    %v1281 = vunpack.c.l.b16 %v1273
    %v1282 = vpack.c.b16 %v1279, %v1278
    %v1283 = vpack.c.b16 %v1281, %v1280
    %v1287 = vsel %vm734, %v1261, 0
    %v1290 = vsel %vm734, %v1262, 0
    %v1293 = vsel %vm734, %v1263, 0
    %v1296 = vsel %vm734, %v1264, 0
    %v1299 = vsel %vm734, %v1265, 0
    %v1302 = vsel %vm734, %v1266, 0
    %v1305 = vsel %vm734, %v1267, 0
    %v1308 = vsel %vm734, %v1268, 0
    %1310 = vmatprep.subr.bf16.mxu0 0
    %1311 = vmatpush1.bf16.msra.mxu0 %v1282
    %1312 = vmatprep.subr.bf16.mxu0 0
    %1313 = vmatpush1.bf16.msra.mxu0 %v1283
    %1314 = vmatprep.subr.bf16.mxu0 0
    %1315 = vmatpush1.bf16.msra.mxu0 0
    %1316 = vmatprep.subr.bf16.mxu0 0
    %1317 = vmatpush1.bf16.msra.mxu0 0
    %1318 = vmatprep.subr.bf16.mxu0 0
    %1319 = vmatpush1.bf16.msra.mxu0 0
    %1320 = vmatprep.subr.bf16.mxu0 0
    %1321 = vmatpush1.bf16.msra.mxu0 0
    %1322 = vmatprep.subr.bf16.mxu0 0
    %1323 = vmatpush1.bf16.msra.mxu0 0
    %1324 = vmatprep.subr.bf16.mxu0 0
    %1325 = vmatpush1.bf16.msra.mxu0 0
    %1326 = vmatprep.subr.bf16.mxu0 0
    %1327 = vmatpush1.bf16.msra.mxu0 0
    %1328 = vmatprep.subr.bf16.mxu0 0
    %1329 = vmatpush1.bf16.msra.mxu0 0
    %1330 = vmatprep.subr.bf16.mxu0 0
    %1331 = vmatpush1.bf16.msra.mxu0 0
    %1332 = vmatprep.subr.bf16.mxu0 0
    %1333 = vmatpush1.bf16.msra.mxu0 0
    %1334 = vmatprep.subr.bf16.mxu0 0
    %1335 = vmatpush1.bf16.msra.mxu0 0
    %1336 = vmatprep.subr.bf16.mxu0 0
    %1337 = vmatpush1.bf16.msra.mxu0 0
    %1338 = vmatprep.subr.bf16.mxu0 0
    %1339 = vmatpush1.bf16.msra.mxu0 0
    %1340 = vmatprep.subr.bf16.mxu0 0
    %1341 = vmatpush1.bf16.msra.mxu0 0
    %1342 = vmatprep.mubr.bf16.mxu0 0
    %1343 = vmatmul.mubr.bf16.gmra.mrb[0].mxu0 %v1287
    %v1344 = vpop.f32.mrb[0].mxu0
    %v1345 = vadd.f32 0.0, %v1344
    %v1346 = vpop.f32.mrb[0].mxu0
    %v1347 = vpop.f32.mrb[0].mxu0
    %v1348 = vadd.f32 0.0, %v1347
    %v1349 = vpop.f32.mrb[0].mxu0
    %1350 = vmatprep.mubr.bf16.mxu0 0
    %1351 = vmatmul.mubr.bf16.gmra.mrb[0].mxu0 %v1290
    %v1352 = vpop.f32.mrb[0].mxu0
    %v1353 = vadd.f32 0.0, %v1352
    %v1354 = vpop.f32.mrb[0].mxu0
    %v1355 = vpop.f32.mrb[0].mxu0
    %v1356 = vadd.f32 0.0, %v1355
    %v1357 = vpop.f32.mrb[0].mxu0
    %1358 = vmatprep.mubr.bf16.mxu0 0
    %1359 = vmatmul.mubr.bf16.gmra.mrb[0].mxu0 %v1293
    %v1360 = vpop.f32.mrb[0].mxu0
    %v1361 = vadd.f32 0.0, %v1360
    %v1362 = vpop.f32.mrb[0].mxu0
    %v1363 = vpop.f32.mrb[0].mxu0
    %v1364 = vadd.f32 0.0, %v1363
    %v1365 = vpop.f32.mrb[0].mxu0
    %1366 = vmatprep.mubr.bf16.mxu0 0
    %1367 = vmatmul.mubr.bf16.gmra.mrb[0].mxu0 %v1296
    %v1368 = vpop.f32.mrb[0].mxu0
    %v1369 = vadd.f32 0.0, %v1368
    %v1370 = vpop.f32.mrb[0].mxu0
    %v1371 = vpop.f32.mrb[0].mxu0
    %v1372 = vadd.f32 0.0, %v1371
    %v1373 = vpop.f32.mrb[0].mxu0
    %1374 = vmatprep.mubr.bf16.mxu0 0
    %1375 = vmatmul.mubr.bf16.gmra.mrb[0].mxu0 %v1299
    %v1376 = vpop.f32.mrb[0].mxu0
    %v1377 = vadd.f32 0.0, %v1376
    %v1378 = vpop.f32.mrb[0].mxu0
    %v1379 = vpop.f32.mrb[0].mxu0
    %v1380 = vadd.f32 0.0, %v1379
    %v1381 = vpop.f32.mrb[0].mxu0
    %1382 = vmatprep.mubr.bf16.mxu0 0
    %1383 = vmatmul.mubr.bf16.gmra.mrb[0].mxu0 %v1302
    %v1384 = vpop.f32.mrb[0].mxu0
    %v1385 = vadd.f32 0.0, %v1384
    %v1386 = vpop.f32.mrb[0].mxu0
    %v1387 = vpop.f32.mrb[0].mxu0
    %v1388 = vadd.f32 0.0, %v1387
    %v1389 = vpop.f32.mrb[0].mxu0
    %1390 = vmatprep.mubr.bf16.mxu0 0
    %1391 = vmatmul.mubr.bf16.gmra.mrb[0].mxu0 %v1305
    %v1392 = vpop.f32.mrb[0].mxu0
    %v1393 = vadd.f32 0.0, %v1392
    %v1394 = vpop.f32.mrb[0].mxu0
    %v1395 = vpop.f32.mrb[0].mxu0
    %v1396 = vadd.f32 0.0, %v1395
    %v1397 = vpop.f32.mrb[0].mxu0
    %1398 = vmatprep.mubr.bf16.mxu0 0
    %1399 = vmatmul.mubr.bf16.gmra.mrb[0].mxu0 %v1308
    %v1400 = vpop.f32.mrb[0].mxu0
    %v1401 = vadd.f32 0.0, %v1400
    %v1402 = vpop.f32.mrb[0].mxu0
    %v1403 = vpop.f32.mrb[0].mxu0
    %v1404 = vadd.f32 0.0, %v1403
    %v1405 = vpop.f32.mrb[0].mxu0
    %1406 = vdwg.mxu0
    %v1407 = vadd.f32 %v927, %v1345
    %v1408 = vadd.f32 %v930, %v1348
    %v1409 = vadd.f32 %v935, %v1353
    %v1410 = vadd.f32 %v938, %v1356
    %v1411 = vadd.f32 %v943, %v1361
    %v1412 = vadd.f32 %v946, %v1364
    %v1413 = vadd.f32 %v951, %v1369
    %v1414 = vadd.f32 %v954, %v1372
    %v1415 = vadd.f32 %v959, %v1377
    %v1416 = vadd.f32 %v962, %v1380
    %v1417 = vadd.f32 %v967, %v1385
    %v1418 = vadd.f32 %v970, %v1388
    %v1419 = vadd.f32 %v975, %v1393
    %v1420 = vadd.f32 %v978, %v1396
    %v1421 = vadd.f32 %v983, %v1401
    %v1422 = vadd.f32 %v986, %v1404
    %s1423 = scalar_lea.vmem %s6, 32
    %v1424 = vld [vmem:[%s1423] sm:$0xf]
    %v1425 = vld [vmem:[%s1423 + $0x4] sm:$0xf]
    %v1426 = vld [vmem:[%s1423 + $0x8] sm:$0xf]
    %v1427 = vld [vmem:[%s1423 + $0xc] sm:$0xf]
    %v1432 = vunpack.c.l.b16 %v1424
    %v1433 = vunpack.c.l.b16 %v1425
    %v1434 = vunpack.c.l.b16 %v1426
    %v1435 = vunpack.c.l.b16 %v1427
    %v1436 = vpack.c.b16 %v1433, %v1432
    %v1437 = vpack.c.b16 %v1435, %v1434
    %1440 = vmatprep.subr.bf16.mxu0 0
    %1441 = vmatpush1.bf16.msra.mxu0 %v1436
    %1442 = vmatprep.subr.bf16.mxu0 0
    %1443 = vmatpush1.bf16.msra.mxu0 %v1437
    %1444 = vmatprep.subr.bf16.mxu0 0
    %1445 = vmatpush1.bf16.msra.mxu0 0
    %1446 = vmatprep.subr.bf16.mxu0 0
    %1447 = vmatpush1.bf16.msra.mxu0 0
    %1448 = vmatprep.subr.bf16.mxu0 0
    %1449 = vmatpush1.bf16.msra.mxu0 0
    %1450 = vmatprep.subr.bf16.mxu0 0
    %1451 = vmatpush1.bf16.msra.mxu0 0
    %1452 = vmatprep.subr.bf16.mxu0 0
    %1453 = vmatpush1.bf16.msra.mxu0 0
    %1454 = vmatprep.subr.bf16.mxu0 0
    %1455 = vmatpush1.bf16.msra.mxu0 0
    %1456 = vmatprep.subr.bf16.mxu0 0
    %1457 = vmatpush1.bf16.msra.mxu0 0
    %1458 = vmatprep.subr.bf16.mxu0 0
    %1459 = vmatpush1.bf16.msra.mxu0 0
    %1460 = vmatprep.subr.bf16.mxu0 0
    %1461 = vmatpush1.bf16.msra.mxu0 0
    %1462 = vmatprep.subr.bf16.mxu0 0
    %1463 = vmatpush1.bf16.msra.mxu0 0
    %1464 = vmatprep.subr.bf16.mxu0 0
    %1465 = vmatpush1.bf16.msra.mxu0 0
    %1466 = vmatprep.subr.bf16.mxu0 0
    %1467 = vmatpush1.bf16.msra.mxu0 0
    %1468 = vmatprep.subr.bf16.mxu0 0
    %1469 = vmatpush1.bf16.msra.mxu0 0
    %1470 = vmatprep.subr.bf16.mxu0 0
    %1471 = vmatpush1.bf16.msra.mxu0 0
    %1472 = vmatprep.mubr.bf16.mxu0 0
    %1473 = vmatmul.mubr.bf16.gmra.mrb[0].mxu0 %v1287
    %v1474 = vpop.f32.mrb[0].mxu0
    %v1475 = vadd.f32 0.0, %v1474
    %v1476 = vpop.f32.mrb[0].mxu0
    %v1477 = vpop.f32.mrb[0].mxu0
    %v1478 = vadd.f32 0.0, %v1477
    %v1479 = vpop.f32.mrb[0].mxu0
    %1480 = vmatprep.mubr.bf16.mxu0 0
    %1481 = vmatmul.mubr.bf16.gmra.mrb[0].mxu0 %v1290
    %v1482 = vpop.f32.mrb[0].mxu0
    %v1483 = vadd.f32 0.0, %v1482
    %v1484 = vpop.f32.mrb[0].mxu0
    %v1485 = vpop.f32.mrb[0].mxu0
    %v1486 = vadd.f32 0.0, %v1485
    %v1487 = vpop.f32.mrb[0].mxu0
    %1488 = vmatprep.mubr.bf16.mxu0 0
    %1489 = vmatmul.mubr.bf16.gmra.mrb[0].mxu0 %v1293
    %v1490 = vpop.f32.mrb[0].mxu0
    %v1491 = vadd.f32 0.0, %v1490
    %v1492 = vpop.f32.mrb[0].mxu0
    %v1493 = vpop.f32.mrb[0].mxu0
    %v1494 = vadd.f32 0.0, %v1493
    %v1495 = vpop.f32.mrb[0].mxu0
    %1496 = vmatprep.mubr.bf16.mxu0 0
    %1497 = vmatmul.mubr.bf16.gmra.mrb[0].mxu0 %v1296
    %v1498 = vpop.f32.mrb[0].mxu0
    %v1499 = vadd.f32 0.0, %v1498
    %v1500 = vpop.f32.mrb[0].mxu0
    %v1501 = vpop.f32.mrb[0].mxu0
    %v1502 = vadd.f32 0.0, %v1501
    %v1503 = vpop.f32.mrb[0].mxu0
    %1504 = vmatprep.mubr.bf16.mxu0 0
    %1505 = vmatmul.mubr.bf16.gmra.mrb[0].mxu0 %v1299
    %v1506 = vpop.f32.mrb[0].mxu0
    %v1507 = vadd.f32 0.0, %v1506
    %v1508 = vpop.f32.mrb[0].mxu0
    %v1509 = vpop.f32.mrb[0].mxu0
    %v1510 = vadd.f32 0.0, %v1509
    %v1511 = vpop.f32.mrb[0].mxu0
    %1512 = vmatprep.mubr.bf16.mxu0 0
    %1513 = vmatmul.mubr.bf16.gmra.mrb[0].mxu0 %v1302
    %v1514 = vpop.f32.mrb[0].mxu0
    %v1515 = vadd.f32 0.0, %v1514
    %v1516 = vpop.f32.mrb[0].mxu0
    %v1517 = vpop.f32.mrb[0].mxu0
    %v1518 = vadd.f32 0.0, %v1517
    %v1519 = vpop.f32.mrb[0].mxu0
    %1520 = vmatprep.mubr.bf16.mxu0 0
    %1521 = vmatmul.mubr.bf16.gmra.mrb[0].mxu0 %v1305
    %v1522 = vpop.f32.mrb[0].mxu0
    %v1523 = vadd.f32 0.0, %v1522
    %v1524 = vpop.f32.mrb[0].mxu0
    %v1525 = vpop.f32.mrb[0].mxu0
    %v1526 = vadd.f32 0.0, %v1525
    %v1527 = vpop.f32.mrb[0].mxu0
    %1528 = vmatprep.mubr.bf16.mxu0 0
    %1529 = vmatmul.mubr.bf16.gmra.mrb[0].mxu0 %v1308
    %v1530 = vpop.f32.mrb[0].mxu0
    %v1531 = vadd.f32 0.0, %v1530
    %v1532 = vpop.f32.mrb[0].mxu0
    %v1533 = vpop.f32.mrb[0].mxu0
    %v1534 = vadd.f32 0.0, %v1533
    %v1535 = vpop.f32.mrb[0].mxu0
    %1536 = vdwg.mxu0
    %v1537 = vadd.f32 %v1150, %v1475
    %v1538 = vadd.f32 %v1153, %v1478
    %v1539 = vadd.f32 %v1158, %v1483
    %v1540 = vadd.f32 %v1161, %v1486
    %v1541 = vadd.f32 %v1166, %v1491
    %v1542 = vadd.f32 %v1169, %v1494
    %v1543 = vadd.f32 %v1174, %v1499
    %v1544 = vadd.f32 %v1177, %v1502
    %v1545 = vadd.f32 %v1182, %v1507
    %v1546 = vadd.f32 %v1185, %v1510
    %v1547 = vadd.f32 %v1190, %v1515
    %v1548 = vadd.f32 %v1193, %v1518
    %v1549 = vadd.f32 %v1198, %v1523
    %v1550 = vadd.f32 %v1201, %v1526
    %v1551 = vadd.f32 %v1206, %v1531
    %v1552 = vadd.f32 %v1209, %v1534
    %v1553 = vld [vmem:[%s5] sm:$0x1]
    %v1555 = vlaneseq
    %v1556 = vshrl.u32 %v1555, 7
    %v1557 = vsub.s32 0, %v1556
    %v1558 = vrot.slane %v1553, %v1557
    %v1560 = vadd.f32 %v1407, %v1558
    %v1561 = vadd.f32 %v1408, %v1558
    %v1562 = vadd.f32 %v1409, %v1558
    %v1563 = vadd.f32 %v1410, %v1558
    %v1564 = vadd.f32 %v1411, %v1558
    %v1565 = vadd.f32 %v1412, %v1558
    %v1566 = vadd.f32 %v1413, %v1558
    %v1567 = vadd.f32 %v1414, %v1558
    %v1568 = vadd.f32 %v1415, %v1558
    %v1569 = vadd.f32 %v1416, %v1558
    %v1570 = vadd.f32 %v1417, %v1558
    %v1571 = vadd.f32 %v1418, %v1558
    %v1572 = vadd.f32 %v1419, %v1558
    %v1573 = vadd.f32 %v1420, %v1558
    %v1574 = vadd.f32 %v1421, %v1558
    %v1575 = vadd.f32 %v1422, %v1558
    %v1576 = vld [vmem:[%s7] sm:$0x1]
    %v1578 = vlaneseq
    %v1579 = vshrl.u32 %v1578, 7
    %v1580 = vsub.s32 0, %v1579
    %v1581 = vrot.slane %v1576, %v1580
    %v1583 = vadd.f32 %v1537, %v1581
    %v1584 = vadd.f32 %v1538, %v1581
    %v1585 = vadd.f32 %v1539, %v1581
    %v1586 = vadd.f32 %v1540, %v1581
    %v1587 = vadd.f32 %v1541, %v1581
    %v1588 = vadd.f32 %v1542, %v1581
    %v1589 = vadd.f32 %v1543, %v1581
    %v1590 = vadd.f32 %v1544, %v1581
    %v1591 = vadd.f32 %v1545, %v1581
    %v1592 = vadd.f32 %v1546, %v1581
    %v1593 = vadd.f32 %v1547, %v1581
    %v1594 = vadd.f32 %v1548, %v1581
    %v1595 = vadd.f32 %v1549, %v1581
    %v1596 = vadd.f32 %v1550, %v1581
    %v1597 = vadd.f32 %v1551, %v1581
    %v1598 = vadd.f32 %v1552, %v1581
    %v1599 = vxor.u32 %v1583, 2147483648
    %v1600 = vxor.u32 %v1584, 2147483648
    %v1601 = vxor.u32 %v1585, 2147483648
    %v1602 = vxor.u32 %v1586, 2147483648
    %v1603 = vxor.u32 %v1587, 2147483648
    %v1604 = vxor.u32 %v1588, 2147483648
    %v1605 = vxor.u32 %v1589, 2147483648
    %v1606 = vxor.u32 %v1590, 2147483648
    %v1607 = vxor.u32 %v1591, 2147483648
    %v1608 = vxor.u32 %v1592, 2147483648
    %v1609 = vxor.u32 %v1593, 2147483648
    %v1610 = vxor.u32 %v1594, 2147483648
    %v1611 = vxor.u32 %v1595, 2147483648
    %v1612 = vxor.u32 %v1596, 2147483648
    %v1613 = vxor.u32 %v1597, 2147483648
    %v1614 = vxor.u32 %v1598, 2147483648
    %v1615 = vmul.f32 %v1599, 1.442695
    %v1616 = vpow.pop %v1615
    %v1617 = vmul.f32 %v1600, 1.442695
    %v1618 = vpow.pop %v1617
    %v1619 = vmul.f32 %v1601, 1.442695
    %v1620 = vpow.pop %v1619
    %v1621 = vmul.f32 %v1602, 1.442695
    %v1622 = vpow.pop %v1621
    %v1623 = vmul.f32 %v1603, 1.442695
    %v1624 = vpow.pop %v1623
    %v1625 = vmul.f32 %v1604, 1.442695
    %v1626 = vpow.pop %v1625
    %v1627 = vmul.f32 %v1605, 1.442695
    %v1628 = vpow.pop %v1627
    %v1629 = vmul.f32 %v1606, 1.442695
    %v1630 = vpow.pop %v1629
    %v1631 = vmul.f32 %v1607, 1.442695
    %v1632 = vpow.pop %v1631
    %v1633 = vmul.f32 %v1608, 1.442695
    %v1634 = vpow.pop %v1633
    %v1635 = vmul.f32 %v1609, 1.442695
    %v1636 = vpow.pop %v1635
    %v1637 = vmul.f32 %v1610, 1.442695
    %v1638 = vpow.pop %v1637
    %v1639 = vmul.f32 %v1611, 1.442695
    %v1640 = vpow.pop %v1639
    %v1641 = vmul.f32 %v1612, 1.442695
    %v1642 = vpow.pop %v1641
    %v1643 = vmul.f32 %v1613, 1.442695
    %v1644 = vpow.pop %v1643
    %v1645 = vmul.f32 %v1614, 1.442695
    %v1646 = vpow.pop %v1645
    %v1647 = vadd.f32 %v1616, 1.0
    %v1648 = vadd.f32 %v1618, 1.0
    %v1649 = vadd.f32 %v1620, 1.0
    %v1650 = vadd.f32 %v1622, 1.0
    %v1651 = vadd.f32 %v1624, 1.0
    %v1652 = vadd.f32 %v1626, 1.0
    %v1653 = vadd.f32 %v1628, 1.0
    %v1654 = vadd.f32 %v1630, 1.0
    %v1655 = vadd.f32 %v1632, 1.0
    %v1656 = vadd.f32 %v1634, 1.0
    %v1657 = vadd.f32 %v1636, 1.0
    %v1658 = vadd.f32 %v1638, 1.0
    %v1659 = vadd.f32 %v1640, 1.0
    %v1660 = vadd.f32 %v1642, 1.0
    %v1661 = vadd.f32 %v1644, 1.0
    %v1662 = vadd.f32 %v1646, 1.0
    %v1663 = vrcp.pop %v1647
    %v1664 = vmul.f32 1.0, %v1663
    %v1665 = vrcp.pop %v1648
    %v1666 = vmul.f32 1.0, %v1665
    %v1667 = vrcp.pop %v1649
    %v1668 = vmul.f32 1.0, %v1667
    %v1669 = vrcp.pop %v1650
    %v1670 = vmul.f32 1.0, %v1669
    %v1671 = vrcp.pop %v1651
    %v1672 = vmul.f32 1.0, %v1671
    %v1673 = vrcp.pop %v1652
    %v1674 = vmul.f32 1.0, %v1673
    %v1675 = vrcp.pop %v1653
    %v1676 = vmul.f32 1.0, %v1675
    %v1677 = vrcp.pop %v1654
    %v1678 = vmul.f32 1.0, %v1677
    %v1679 = vrcp.pop %v1655
    %v1680 = vmul.f32 1.0, %v1679
    %v1681 = vrcp.pop %v1656
    %v1682 = vmul.f32 1.0, %v1681
    %v1683 = vrcp.pop %v1657
    %v1684 = vmul.f32 1.0, %v1683
    %v1685 = vrcp.pop %v1658
    %v1686 = vmul.f32 1.0, %v1685
    %v1687 = vrcp.pop %v1659
    %v1688 = vmul.f32 1.0, %v1687
    %v1689 = vrcp.pop %v1660
    %v1690 = vmul.f32 1.0, %v1689
    %v1691 = vrcp.pop %v1661
    %v1692 = vmul.f32 1.0, %v1691
    %v1693 = vrcp.pop %v1662
    %v1694 = vmul.f32 1.0, %v1693
    %v1695 = vmul.f32 %v1560, %v1664
    %v1696 = vmul.f32 %v1561, %v1666
    %v1697 = vmul.f32 %v1562, %v1668
    %v1698 = vmul.f32 %v1563, %v1670
    %v1699 = vmul.f32 %v1564, %v1672
    %v1700 = vmul.f32 %v1565, %v1674
    %v1701 = vmul.f32 %v1566, %v1676
    %v1702 = vmul.f32 %v1567, %v1678
    %v1703 = vmul.f32 %v1568, %v1680
    %v1704 = vmul.f32 %v1569, %v1682
    %v1705 = vmul.f32 %v1570, %v1684
    %v1706 = vmul.f32 %v1571, %v1686
    %v1707 = vmul.f32 %v1572, %v1688
    %v1708 = vmul.f32 %v1573, %v1690
    %v1709 = vmul.f32 %v1574, %v1692
    %v1710 = vmul.f32 %v1575, %v1694
    %v1711 = vpack.c.bf16 %v1696, %v1695
    %v1712 = vpack.c.bf16 %v1698, %v1697
    %v1713 = vpack.c.bf16 %v1700, %v1699
    %v1714 = vpack.c.bf16 %v1702, %v1701
    %v1715 = vpack.c.bf16 %v1704, %v1703
    %v1716 = vpack.c.bf16 %v1706, %v1705
    %v1717 = vpack.c.bf16 %v1708, %v1707
    %v1718 = vpack.c.bf16 %v1710, %v1709
    %v1723 = vunpack.c.l.b16 %v395
    %v1724 = vunpack.c.l.b16 %v396
    %v1725 = vunpack.c.l.b16 %v397
    %v1726 = vunpack.c.l.b16 %v398
    %v1727 = vpack.c.b16 %v1724, %v1723
    %v1728 = vpack.c.b16 %v1726, %v1725
    %v1732 = vsel %vm734, %v1711, 0
    %v1735 = vsel %vm734, %v1712, 0
    %v1738 = vsel %vm734, %v1713, 0
    %v1741 = vsel %vm734, %v1714, 0
    %v1744 = vsel %vm734, %v1715, 0
    %v1747 = vsel %vm734, %v1716, 0
    %v1750 = vsel %vm734, %v1717, 0
    %v1753 = vsel %vm734, %v1718, 0
    %1755 = vmatprep.subr.bf16.mxu0 0
    %1756 = vmatpush1.bf16.msra.mxu0 %v1727
    %1757 = vmatprep.subr.bf16.mxu0 0
    %1758 = vmatpush1.bf16.msra.mxu0 %v1728
    %1759 = vmatprep.subr.bf16.mxu0 0
    %1760 = vmatpush1.bf16.msra.mxu0 0
    %1761 = vmatprep.subr.bf16.mxu0 0
    %1762 = vmatpush1.bf16.msra.mxu0 0
    %1763 = vmatprep.subr.bf16.mxu0 0
    %1764 = vmatpush1.bf16.msra.mxu0 0
    %1765 = vmatprep.subr.bf16.mxu0 0
    %1766 = vmatpush1.bf16.msra.mxu0 0
    %1767 = vmatprep.subr.bf16.mxu0 0
    %1768 = vmatpush1.bf16.msra.mxu0 0
    %1769 = vmatprep.subr.bf16.mxu0 0
    %1770 = vmatpush1.bf16.msra.mxu0 0
    %1771 = vmatprep.subr.bf16.mxu0 0
    %1772 = vmatpush1.bf16.msra.mxu0 0
    %1773 = vmatprep.subr.bf16.mxu0 0
    %1774 = vmatpush1.bf16.msra.mxu0 0
    %1775 = vmatprep.subr.bf16.mxu0 0
    %1776 = vmatpush1.bf16.msra.mxu0 0
    %1777 = vmatprep.subr.bf16.mxu0 0
    %1778 = vmatpush1.bf16.msra.mxu0 0
    %1779 = vmatprep.subr.bf16.mxu0 0
    %1780 = vmatpush1.bf16.msra.mxu0 0
    %1781 = vmatprep.subr.bf16.mxu0 0
    %1782 = vmatpush1.bf16.msra.mxu0 0
    %1783 = vmatprep.subr.bf16.mxu0 0
    %1784 = vmatpush1.bf16.msra.mxu0 0
    %1785 = vmatprep.subr.bf16.mxu0 0
    %1786 = vmatpush1.bf16.msra.mxu0 0
    %1787 = vmatprep.mubr.bf16.mxu0 0
    %1788 = vmatmul.mubr.bf16.gmra.mrb[0].mxu0 %v1732
    %v1789 = vpop.f32.mrb[0].mxu0
    %v1790 = vadd.f32 0.0, %v1789
    %v1791 = vpop.f32.mrb[0].mxu0
    %v1792 = vpop.f32.mrb[0].mxu0
    %v1793 = vadd.f32 0.0, %v1792
    %v1794 = vpop.f32.mrb[0].mxu0
    %1795 = vmatprep.mubr.bf16.mxu0 0
    %1796 = vmatmul.mubr.bf16.gmra.mrb[0].mxu0 %v1735
    %v1797 = vpop.f32.mrb[0].mxu0
    %v1798 = vadd.f32 0.0, %v1797
    %v1799 = vpop.f32.mrb[0].mxu0
    %v1800 = vpop.f32.mrb[0].mxu0
    %v1801 = vadd.f32 0.0, %v1800
    %v1802 = vpop.f32.mrb[0].mxu0
    %1803 = vmatprep.mubr.bf16.mxu0 0
    %1804 = vmatmul.mubr.bf16.gmra.mrb[0].mxu0 %v1738
    %v1805 = vpop.f32.mrb[0].mxu0
    %v1806 = vadd.f32 0.0, %v1805
    %v1807 = vpop.f32.mrb[0].mxu0
    %v1808 = vpop.f32.mrb[0].mxu0
    %v1809 = vadd.f32 0.0, %v1808
    %v1810 = vpop.f32.mrb[0].mxu0
    %1811 = vmatprep.mubr.bf16.mxu0 0
    %1812 = vmatmul.mubr.bf16.gmra.mrb[0].mxu0 %v1741
    %v1813 = vpop.f32.mrb[0].mxu0
    %v1814 = vadd.f32 0.0, %v1813
    %v1815 = vpop.f32.mrb[0].mxu0
    %v1816 = vpop.f32.mrb[0].mxu0
    %v1817 = vadd.f32 0.0, %v1816
    %v1818 = vpop.f32.mrb[0].mxu0
    %1819 = vmatprep.mubr.bf16.mxu0 0
    %1820 = vmatmul.mubr.bf16.gmra.mrb[0].mxu0 %v1744
    %v1821 = vpop.f32.mrb[0].mxu0
    %v1822 = vadd.f32 0.0, %v1821
    %v1823 = vpop.f32.mrb[0].mxu0
    %v1824 = vpop.f32.mrb[0].mxu0
    %v1825 = vadd.f32 0.0, %v1824
    %v1826 = vpop.f32.mrb[0].mxu0
    %1827 = vmatprep.mubr.bf16.mxu0 0
    %1828 = vmatmul.mubr.bf16.gmra.mrb[0].mxu0 %v1747
    %v1829 = vpop.f32.mrb[0].mxu0
    %v1830 = vadd.f32 0.0, %v1829
    %v1831 = vpop.f32.mrb[0].mxu0
    %v1832 = vpop.f32.mrb[0].mxu0
    %v1833 = vadd.f32 0.0, %v1832
    %v1834 = vpop.f32.mrb[0].mxu0
    %1835 = vmatprep.mubr.bf16.mxu0 0
    %1836 = vmatmul.mubr.bf16.gmra.mrb[0].mxu0 %v1750
    %v1837 = vpop.f32.mrb[0].mxu0
    %v1838 = vadd.f32 0.0, %v1837
    %v1839 = vpop.f32.mrb[0].mxu0
    %v1840 = vpop.f32.mrb[0].mxu0
    %v1841 = vadd.f32 0.0, %v1840
    %v1842 = vpop.f32.mrb[0].mxu0
    %1843 = vmatprep.mubr.bf16.mxu0 0
    %1844 = vmatmul.mubr.bf16.gmra.mrb[0].mxu0 %v1753
    %v1845 = vpop.f32.mrb[0].mxu0
    %v1846 = vadd.f32 0.0, %v1845
    %v1847 = vpop.f32.mrb[0].mxu0
    %v1848 = vpop.f32.mrb[0].mxu0
    %v1849 = vadd.f32 0.0, %v1848
    %v1850 = vpop.f32.mrb[0].mxu0
    %1851 = vdwg.mxu0
    %v1852 = vmul.f32 %v1790, 0.70710677
    %v1853 = vmul.f32 %v1793, 0.70710677
    %v1854 = vmul.f32 %v1798, 0.70710677
    %v1855 = vmul.f32 %v1801, 0.70710677
    %v1856 = vmul.f32 %v1806, 0.70710677
    %v1857 = vmul.f32 %v1809, 0.70710677
    %v1858 = vmul.f32 %v1814, 0.70710677
    %v1859 = vmul.f32 %v1817, 0.70710677
    %v1860 = vmul.f32 %v1822, 0.70710677
    %v1861 = vmul.f32 %v1825, 0.70710677
    %v1862 = vmul.f32 %v1830, 0.70710677
    %v1863 = vmul.f32 %v1833, 0.70710677
    %v1864 = vmul.f32 %v1838, 0.70710677
    %v1865 = vmul.f32 %v1841, 0.70710677
    %v1866 = vmul.f32 %v1846, 0.70710677
    %v1867 = vmul.f32 %v1849, 0.70710677
    %v1868 = vadd.f32 %v1852, %v59
    %v1869 = vadd.f32 %v1853, %v60
    %v1870 = vadd.f32 %v1854, %v61
    %v1871 = vadd.f32 %v1855, %v62
    %v1872 = vadd.f32 %v1856, %v63
    %v1873 = vadd.f32 %v1857, %v64
    %v1874 = vadd.f32 %v1858, %v65
    %v1875 = vadd.f32 %v1859, %v66
    %v1876 = vadd.f32 %v1860, %v67
    %v1877 = vadd.f32 %v1861, %v68
    %v1878 = vadd.f32 %v1862, %v69
    %v1879 = vadd.f32 %v1863, %v70
    %v1880 = vadd.f32 %v1864, %v71
    %v1881 = vadd.f32 %v1865, %v72
    %v1882 = vadd.f32 %v1866, %v73
    %v1883 = vadd.f32 %v1867, %v74
    %v1884 = vpack.c.bf16 %v1868, %v1868
    %v1885 = vpack.c.bf16 %v1869, %v1869
    %v1886 = vpack.c.bf16 %v1870, %v1870
    %v1887 = vpack.c.bf16 %v1871, %v1871
    %v1888 = vpack.c.bf16 %v1872, %v1872
    %v1889 = vpack.c.bf16 %v1873, %v1873
    %v1890 = vpack.c.bf16 %v1874, %v1874
    %v1891 = vpack.c.bf16 %v1875, %v1875
    %v1892 = vpack.c.bf16 %v1876, %v1876
    %v1893 = vpack.c.bf16 %v1877, %v1877
    %v1894 = vpack.c.bf16 %v1878, %v1878
    %v1895 = vpack.c.bf16 %v1879, %v1879
    %v1896 = vpack.c.bf16 %v1880, %v1880
    %v1897 = vpack.c.bf16 %v1881, %v1881
    %v1898 = vpack.c.bf16 %v1882, %v1882
    %v1899 = vpack.c.bf16 %v1883, %v1883
    %v1904 = vunpack.c.l.b16 %v75
    %v1905 = vunpack.c.l.b16 %v76
    %v1906 = vunpack.c.l.b16 %v77
    %v1907 = vunpack.c.l.b16 %v78
    %v1908 = vpack.c.b16 %v1905, %v1904
    %v1909 = vpack.c.b16 %v1907, %v1906
    %v1913 = vsel %vm734, %v1884, 0
    %1915 = vmatprep.subr.bf16.mxu0 0
    %1916 = vmatpush1.bf16.msra.mxu0 %v1908
    %1917 = vmatprep.subr.bf16.mxu0 0
    %1918 = vmatpush1.bf16.msra.mxu0 %v1909
    %1919 = vmatprep.subr.bf16.mxu0 0
    %1920 = vmatpush1.bf16.msra.mxu0 0
    %1921 = vmatprep.subr.bf16.mxu0 0
    %1922 = vmatpush1.bf16.msra.mxu0 0
    %1923 = vmatprep.subr.bf16.mxu0 0
    %1924 = vmatpush1.bf16.msra.mxu0 0
    %1925 = vmatprep.subr.bf16.mxu0 0
    %1926 = vmatpush1.bf16.msra.mxu0 0
    %1927 = vmatprep.subr.bf16.mxu0 0
    %1928 = vmatpush1.bf16.msra.mxu0 0
    %1929 = vmatprep.subr.bf16.mxu0 0
    %1930 = vmatpush1.bf16.msra.mxu0 0
    %1931 = vmatprep.subr.bf16.mxu0 0
    %1932 = vmatpush1.bf16.msra.mxu0 0
    %1933 = vmatprep.subr.bf16.mxu0 0
    %1934 = vmatpush1.bf16.msra.mxu0 0
    %1935 = vmatprep.subr.bf16.mxu0 0
    %1936 = vmatpush1.bf16.msra.mxu0 0
    %1937 = vmatprep.subr.bf16.mxu0 0
    %1938 = vmatpush1.bf16.msra.mxu0 0
    %1939 = vmatprep.subr.bf16.mxu0 0
    %1940 = vmatpush1.bf16.msra.mxu0 0
    %1941 = vmatprep.subr.bf16.mxu0 0
    %1942 = vmatpush1.bf16.msra.mxu0 0
    %1943 = vmatprep.subr.bf16.mxu0 0
    %1944 = vmatpush1.bf16.msra.mxu0 0
    %1945 = vmatprep.subr.bf16.mxu0 0
    %1946 = vmatpush1.bf16.msra.mxu0 0
    %1947 = vmatprep.mubr.bf16.mxu0 0
    %1948 = vmatmul.mubr.bf16.gmra.mrb[0].mxu0 %v1913
    %v1949 = vpop.f32.mrb[0].mxu0
    %v1950 = vadd.f32 %v643, %v1949
    %v1951 = vpop.f32.mrb[0].mxu0
    %v1952 = vpop.f32.mrb[0].mxu0
    %v1953 = vpop.f32.mrb[0].mxu0
    %1954 = vdwg.mxu0
    %v1959 = vunpack.c.l.b16 %v79
    %v1960 = vunpack.c.l.b16 %v80
    %v1961 = vunpack.c.l.b16 %v81
    %v1962 = vunpack.c.l.b16 %v82
    %v1963 = vpack.c.b16 %v1960, %v1959
    %v1964 = vpack.c.b16 %v1962, %v1961
    %v1968 = vsel %vm734, %v1885, 0
    %1970 = vmatprep.subr.bf16.mxu0 0
    %1971 = vmatpush1.bf16.msra.mxu0 %v1963
    %1972 = vmatprep.subr.bf16.mxu0 0
    %1973 = vmatpush1.bf16.msra.mxu0 %v1964
    %1974 = vmatprep.subr.bf16.mxu0 0
    %1975 = vmatpush1.bf16.msra.mxu0 0
    %1976 = vmatprep.subr.bf16.mxu0 0
    %1977 = vmatpush1.bf16.msra.mxu0 0
    %1978 = vmatprep.subr.bf16.mxu0 0
    %1979 = vmatpush1.bf16.msra.mxu0 0
    %1980 = vmatprep.subr.bf16.mxu0 0
    %1981 = vmatpush1.bf16.msra.mxu0 0
    %1982 = vmatprep.subr.bf16.mxu0 0
    %1983 = vmatpush1.bf16.msra.mxu0 0
    %1984 = vmatprep.subr.bf16.mxu0 0
    %1985 = vmatpush1.bf16.msra.mxu0 0
    %1986 = vmatprep.subr.bf16.mxu0 0
    %1987 = vmatpush1.bf16.msra.mxu0 0
    %1988 = vmatprep.subr.bf16.mxu0 0
    %1989 = vmatpush1.bf16.msra.mxu0 0
    %1990 = vmatprep.subr.bf16.mxu0 0
    %1991 = vmatpush1.bf16.msra.mxu0 0
    %1992 = vmatprep.subr.bf16.mxu0 0
    %1993 = vmatpush1.bf16.msra.mxu0 0
    %1994 = vmatprep.subr.bf16.mxu0 0
    %1995 = vmatpush1.bf16.msra.mxu0 0
    %1996 = vmatprep.subr.bf16.mxu0 0
    %1997 = vmatpush1.bf16.msra.mxu0 0
    %1998 = vmatprep.subr.bf16.mxu0 0
    %1999 = vmatpush1.bf16.msra.mxu0 0
    %2000 = vmatprep.subr.bf16.mxu0 0
    %2001 = vmatpush1.bf16.msra.mxu0 0
    %2002 = vmatprep.mubr.bf16.mxu0 0
    %2003 = vmatmul.mubr.bf16.gmra.mrb[0].mxu0 %v1968
    %v2004 = vpop.f32.mrb[0].mxu0
    %v2005 = vadd.f32 %v643, %v2004
    %v2006 = vpop.f32.mrb[0].mxu0
    %v2007 = vpop.f32.mrb[0].mxu0
    %v2008 = vpop.f32.mrb[0].mxu0
    %2009 = vdwg.mxu0
    %v2014 = vunpack.c.l.b16 %v83
    %v2015 = vunpack.c.l.b16 %v84
    %v2016 = vunpack.c.l.b16 %v85
    %v2017 = vunpack.c.l.b16 %v86
    %v2018 = vpack.c.b16 %v2015, %v2014
    %v2019 = vpack.c.b16 %v2017, %v2016
    %v2023 = vsel %vm734, %v1886, 0
    %2025 = vmatprep.subr.bf16.mxu0 0
    %2026 = vmatpush1.bf16.msra.mxu0 %v2018
    %2027 = vmatprep.subr.bf16.mxu0 0
    %2028 = vmatpush1.bf16.msra.mxu0 %v2019
    %2029 = vmatprep.subr.bf16.mxu0 0
    %2030 = vmatpush1.bf16.msra.mxu0 0
    %2031 = vmatprep.subr.bf16.mxu0 0
    %2032 = vmatpush1.bf16.msra.mxu0 0
    %2033 = vmatprep.subr.bf16.mxu0 0
    %2034 = vmatpush1.bf16.msra.mxu0 0
    %2035 = vmatprep.subr.bf16.mxu0 0
    %2036 = vmatpush1.bf16.msra.mxu0 0
    %2037 = vmatprep.subr.bf16.mxu0 0
    %2038 = vmatpush1.bf16.msra.mxu0 0
    %2039 = vmatprep.subr.bf16.mxu0 0
    %2040 = vmatpush1.bf16.msra.mxu0 0
    %2041 = vmatprep.subr.bf16.mxu0 0
    %2042 = vmatpush1.bf16.msra.mxu0 0
    %2043 = vmatprep.subr.bf16.mxu0 0
    %2044 = vmatpush1.bf16.msra.mxu0 0
    %2045 = vmatprep.subr.bf16.mxu0 0
    %2046 = vmatpush1.bf16.msra.mxu0 0
    %2047 = vmatprep.subr.bf16.mxu0 0
    %2048 = vmatpush1.bf16.msra.mxu0 0
    %2049 = vmatprep.subr.bf16.mxu0 0
    %2050 = vmatpush1.bf16.msra.mxu0 0
    %2051 = vmatprep.subr.bf16.mxu0 0
    %2052 = vmatpush1.bf16.msra.mxu0 0
    %2053 = vmatprep.subr.bf16.mxu0 0
    %2054 = vmatpush1.bf16.msra.mxu0 0
    %2055 = vmatprep.subr.bf16.mxu0 0
    %2056 = vmatpush1.bf16.msra.mxu0 0
    %2057 = vmatprep.mubr.bf16.mxu0 0
    %2058 = vmatmul.mubr.bf16.gmra.mrb[0].mxu0 %v2023
    %v2059 = vpop.f32.mrb[0].mxu0
    %v2060 = vadd.f32 %v643, %v2059
    %v2061 = vpop.f32.mrb[0].mxu0
    %v2062 = vpop.f32.mrb[0].mxu0
    %v2063 = vpop.f32.mrb[0].mxu0
    %2064 = vdwg.mxu0
    %v2069 = vunpack.c.l.b16 %v87
    %v2070 = vunpack.c.l.b16 %v88
    %v2071 = vunpack.c.l.b16 %v89
    %v2072 = vunpack.c.l.b16 %v90
    %v2073 = vpack.c.b16 %v2070, %v2069
    %v2074 = vpack.c.b16 %v2072, %v2071
    %v2078 = vsel %vm734, %v1887, 0
    %2080 = vmatprep.subr.bf16.mxu0 0
    %2081 = vmatpush1.bf16.msra.mxu0 %v2073
    %2082 = vmatprep.subr.bf16.mxu0 0
    %2083 = vmatpush1.bf16.msra.mxu0 %v2074
    %2084 = vmatprep.subr.bf16.mxu0 0
    %2085 = vmatpush1.bf16.msra.mxu0 0
    %2086 = vmatprep.subr.bf16.mxu0 0
    %2087 = vmatpush1.bf16.msra.mxu0 0
    %2088 = vmatprep.subr.bf16.mxu0 0
    %2089 = vmatpush1.bf16.msra.mxu0 0
    %2090 = vmatprep.subr.bf16.mxu0 0
    %2091 = vmatpush1.bf16.msra.mxu0 0
    %2092 = vmatprep.subr.bf16.mxu0 0
    %2093 = vmatpush1.bf16.msra.mxu0 0
    %2094 = vmatprep.subr.bf16.mxu0 0
    %2095 = vmatpush1.bf16.msra.mxu0 0
    %2096 = vmatprep.subr.bf16.mxu0 0
    %2097 = vmatpush1.bf16.msra.mxu0 0
    %2098 = vmatprep.subr.bf16.mxu0 0
    %2099 = vmatpush1.bf16.msra.mxu0 0
    %2100 = vmatprep.subr.bf16.mxu0 0
    %2101 = vmatpush1.bf16.msra.mxu0 0
    %2102 = vmatprep.subr.bf16.mxu0 0
    %2103 = vmatpush1.bf16.msra.mxu0 0
    %2104 = vmatprep.subr.bf16.mxu0 0
    %2105 = vmatpush1.bf16.msra.mxu0 0
    %2106 = vmatprep.subr.bf16.mxu0 0
    %2107 = vmatpush1.bf16.msra.mxu0 0
    %2108 = vmatprep.subr.bf16.mxu0 0
    %2109 = vmatpush1.bf16.msra.mxu0 0
    %2110 = vmatprep.subr.bf16.mxu0 0
    %2111 = vmatpush1.bf16.msra.mxu0 0
    %2112 = vmatprep.mubr.bf16.mxu0 0
    %2113 = vmatmul.mubr.bf16.gmra.mrb[0].mxu0 %v2078
    %v2114 = vpop.f32.mrb[0].mxu0
    %v2115 = vadd.f32 %v643, %v2114
    %v2116 = vpop.f32.mrb[0].mxu0
    %v2117 = vpop.f32.mrb[0].mxu0
    %v2118 = vpop.f32.mrb[0].mxu0
    %2119 = vdwg.mxu0
    %v2124 = vunpack.c.l.b16 %v91
    %v2125 = vunpack.c.l.b16 %v92
    %v2126 = vunpack.c.l.b16 %v93
    %v2127 = vunpack.c.l.b16 %v94
    %v2128 = vpack.c.b16 %v2125, %v2124
    %v2129 = vpack.c.b16 %v2127, %v2126
    %v2133 = vsel %vm734, %v1888, 0
    %2135 = vmatprep.subr.bf16.mxu0 0
    %2136 = vmatpush1.bf16.msra.mxu0 %v2128
    %2137 = vmatprep.subr.bf16.mxu0 0
    %2138 = vmatpush1.bf16.msra.mxu0 %v2129
    %2139 = vmatprep.subr.bf16.mxu0 0
    %2140 = vmatpush1.bf16.msra.mxu0 0
    %2141 = vmatprep.subr.bf16.mxu0 0
    %2142 = vmatpush1.bf16.msra.mxu0 0
    %2143 = vmatprep.subr.bf16.mxu0 0
    %2144 = vmatpush1.bf16.msra.mxu0 0
    %2145 = vmatprep.subr.bf16.mxu0 0
    %2146 = vmatpush1.bf16.msra.mxu0 0
    %2147 = vmatprep.subr.bf16.mxu0 0
    %2148 = vmatpush1.bf16.msra.mxu0 0
    %2149 = vmatprep.subr.bf16.mxu0 0
    %2150 = vmatpush1.bf16.msra.mxu0 0
    %2151 = vmatprep.subr.bf16.mxu0 0
    %2152 = vmatpush1.bf16.msra.mxu0 0
    %2153 = vmatprep.subr.bf16.mxu0 0
    %2154 = vmatpush1.bf16.msra.mxu0 0
    %2155 = vmatprep.subr.bf16.mxu0 0
    %2156 = vmatpush1.bf16.msra.mxu0 0
    %2157 = vmatprep.subr.bf16.mxu0 0
    %2158 = vmatpush1.bf16.msra.mxu0 0
    %2159 = vmatprep.subr.bf16.mxu0 0
    %2160 = vmatpush1.bf16.msra.mxu0 0
    %2161 = vmatprep.subr.bf16.mxu0 0
    %2162 = vmatpush1.bf16.msra.mxu0 0
    %2163 = vmatprep.subr.bf16.mxu0 0
    %2164 = vmatpush1.bf16.msra.mxu0 0
    %2165 = vmatprep.subr.bf16.mxu0 0
    %2166 = vmatpush1.bf16.msra.mxu0 0
    %2167 = vmatprep.mubr.bf16.mxu0 0
    %2168 = vmatmul.mubr.bf16.gmra.mrb[0].mxu0 %v2133
    %v2169 = vpop.f32.mrb[0].mxu0
    %v2170 = vadd.f32 %v643, %v2169
    %v2171 = vpop.f32.mrb[0].mxu0
    %v2172 = vpop.f32.mrb[0].mxu0
    %v2173 = vpop.f32.mrb[0].mxu0
    %2174 = vdwg.mxu0
    %v2179 = vunpack.c.l.b16 %v95
    %v2180 = vunpack.c.l.b16 %v96
    %v2181 = vunpack.c.l.b16 %v97
    %v2182 = vunpack.c.l.b16 %v98
    %v2183 = vpack.c.b16 %v2180, %v2179
    %v2184 = vpack.c.b16 %v2182, %v2181
    %v2188 = vsel %vm734, %v1889, 0
    %2190 = vmatprep.subr.bf16.mxu0 0
    %2191 = vmatpush1.bf16.msra.mxu0 %v2183
    %2192 = vmatprep.subr.bf16.mxu0 0
    %2193 = vmatpush1.bf16.msra.mxu0 %v2184
    %2194 = vmatprep.subr.bf16.mxu0 0
    %2195 = vmatpush1.bf16.msra.mxu0 0
    %2196 = vmatprep.subr.bf16.mxu0 0
    %2197 = vmatpush1.bf16.msra.mxu0 0
    %2198 = vmatprep.subr.bf16.mxu0 0
    %2199 = vmatpush1.bf16.msra.mxu0 0
    %2200 = vmatprep.subr.bf16.mxu0 0
    %2201 = vmatpush1.bf16.msra.mxu0 0
    %2202 = vmatprep.subr.bf16.mxu0 0
    %2203 = vmatpush1.bf16.msra.mxu0 0
    %2204 = vmatprep.subr.bf16.mxu0 0
    %2205 = vmatpush1.bf16.msra.mxu0 0
    %2206 = vmatprep.subr.bf16.mxu0 0
    %2207 = vmatpush1.bf16.msra.mxu0 0
    %2208 = vmatprep.subr.bf16.mxu0 0
    %2209 = vmatpush1.bf16.msra.mxu0 0
    %2210 = vmatprep.subr.bf16.mxu0 0
    %2211 = vmatpush1.bf16.msra.mxu0 0
    %2212 = vmatprep.subr.bf16.mxu0 0
    %2213 = vmatpush1.bf16.msra.mxu0 0
    %2214 = vmatprep.subr.bf16.mxu0 0
    %2215 = vmatpush1.bf16.msra.mxu0 0
    %2216 = vmatprep.subr.bf16.mxu0 0
    %2217 = vmatpush1.bf16.msra.mxu0 0
    %2218 = vmatprep.subr.bf16.mxu0 0
    %2219 = vmatpush1.bf16.msra.mxu0 0
    %2220 = vmatprep.subr.bf16.mxu0 0
    %2221 = vmatpush1.bf16.msra.mxu0 0
    %2222 = vmatprep.mubr.bf16.mxu0 0
    %2223 = vmatmul.mubr.bf16.gmra.mrb[0].mxu0 %v2188
    %v2224 = vpop.f32.mrb[0].mxu0
    %v2225 = vadd.f32 %v643, %v2224
    %v2226 = vpop.f32.mrb[0].mxu0
    %v2227 = vpop.f32.mrb[0].mxu0
    %v2228 = vpop.f32.mrb[0].mxu0
    %2229 = vdwg.mxu0
    %v2234 = vunpack.c.l.b16 %v99
    %v2235 = vunpack.c.l.b16 %v100
    %v2236 = vunpack.c.l.b16 %v101
    %v2237 = vunpack.c.l.b16 %v102
    %v2238 = vpack.c.b16 %v2235, %v2234
    %v2239 = vpack.c.b16 %v2237, %v2236
    %v2243 = vsel %vm734, %v1890, 0
    %2245 = vmatprep.subr.bf16.mxu0 0
    %2246 = vmatpush1.bf16.msra.mxu0 %v2238
    %2247 = vmatprep.subr.bf16.mxu0 0
    %2248 = vmatpush1.bf16.msra.mxu0 %v2239
    %2249 = vmatprep.subr.bf16.mxu0 0
    %2250 = vmatpush1.bf16.msra.mxu0 0
    %2251 = vmatprep.subr.bf16.mxu0 0
    %2252 = vmatpush1.bf16.msra.mxu0 0
    %2253 = vmatprep.subr.bf16.mxu0 0
    %2254 = vmatpush1.bf16.msra.mxu0 0
    %2255 = vmatprep.subr.bf16.mxu0 0
    %2256 = vmatpush1.bf16.msra.mxu0 0
    %2257 = vmatprep.subr.bf16.mxu0 0
    %2258 = vmatpush1.bf16.msra.mxu0 0
    %2259 = vmatprep.subr.bf16.mxu0 0
    %2260 = vmatpush1.bf16.msra.mxu0 0
    %2261 = vmatprep.subr.bf16.mxu0 0
    %2262 = vmatpush1.bf16.msra.mxu0 0
    %2263 = vmatprep.subr.bf16.mxu0 0
    %2264 = vmatpush1.bf16.msra.mxu0 0
    %2265 = vmatprep.subr.bf16.mxu0 0
    %2266 = vmatpush1.bf16.msra.mxu0 0
    %2267 = vmatprep.subr.bf16.mxu0 0
    %2268 = vmatpush1.bf16.msra.mxu0 0
    %2269 = vmatprep.subr.bf16.mxu0 0
    %2270 = vmatpush1.bf16.msra.mxu0 0
    %2271 = vmatprep.subr.bf16.mxu0 0
    %2272 = vmatpush1.bf16.msra.mxu0 0
    %2273 = vmatprep.subr.bf16.mxu0 0
    %2274 = vmatpush1.bf16.msra.mxu0 0
    %2275 = vmatprep.subr.bf16.mxu0 0
    %2276 = vmatpush1.bf16.msra.mxu0 0
    %2277 = vmatprep.mubr.bf16.mxu0 0
    %2278 = vmatmul.mubr.bf16.gmra.mrb[0].mxu0 %v2243
    %v2279 = vpop.f32.mrb[0].mxu0
    %v2280 = vadd.f32 %v643, %v2279
    %v2281 = vpop.f32.mrb[0].mxu0
    %v2282 = vpop.f32.mrb[0].mxu0
    %v2283 = vpop.f32.mrb[0].mxu0
    %2284 = vdwg.mxu0
    %v2289 = vunpack.c.l.b16 %v103
    %v2290 = vunpack.c.l.b16 %v104
    %v2291 = vunpack.c.l.b16 %v105
    %v2292 = vunpack.c.l.b16 %v106
    %v2293 = vpack.c.b16 %v2290, %v2289
    %v2294 = vpack.c.b16 %v2292, %v2291
    %v2298 = vsel %vm734, %v1891, 0
    %2300 = vmatprep.subr.bf16.mxu0 0
    %2301 = vmatpush1.bf16.msra.mxu0 %v2293
    %2302 = vmatprep.subr.bf16.mxu0 0
    %2303 = vmatpush1.bf16.msra.mxu0 %v2294
    %2304 = vmatprep.subr.bf16.mxu0 0
    %2305 = vmatpush1.bf16.msra.mxu0 0
    %2306 = vmatprep.subr.bf16.mxu0 0
    %2307 = vmatpush1.bf16.msra.mxu0 0
    %2308 = vmatprep.subr.bf16.mxu0 0
    %2309 = vmatpush1.bf16.msra.mxu0 0
    %2310 = vmatprep.subr.bf16.mxu0 0
    %2311 = vmatpush1.bf16.msra.mxu0 0
    %2312 = vmatprep.subr.bf16.mxu0 0
    %2313 = vmatpush1.bf16.msra.mxu0 0
    %2314 = vmatprep.subr.bf16.mxu0 0
    %2315 = vmatpush1.bf16.msra.mxu0 0
    %2316 = vmatprep.subr.bf16.mxu0 0
    %2317 = vmatpush1.bf16.msra.mxu0 0
    %2318 = vmatprep.subr.bf16.mxu0 0
    %2319 = vmatpush1.bf16.msra.mxu0 0
    %2320 = vmatprep.subr.bf16.mxu0 0
    %2321 = vmatpush1.bf16.msra.mxu0 0
    %2322 = vmatprep.subr.bf16.mxu0 0
    %2323 = vmatpush1.bf16.msra.mxu0 0
    %2324 = vmatprep.subr.bf16.mxu0 0
    %2325 = vmatpush1.bf16.msra.mxu0 0
    %2326 = vmatprep.subr.bf16.mxu0 0
    %2327 = vmatpush1.bf16.msra.mxu0 0
    %2328 = vmatprep.subr.bf16.mxu0 0
    %2329 = vmatpush1.bf16.msra.mxu0 0
    %2330 = vmatprep.subr.bf16.mxu0 0
    %2331 = vmatpush1.bf16.msra.mxu0 0
    %2332 = vmatprep.mubr.bf16.mxu0 0
    %2333 = vmatmul.mubr.bf16.gmra.mrb[0].mxu0 %v2298
    %v2334 = vpop.f32.mrb[0].mxu0
    %v2335 = vadd.f32 %v643, %v2334
    %v2336 = vpop.f32.mrb[0].mxu0
    %v2337 = vpop.f32.mrb[0].mxu0
    %v2338 = vpop.f32.mrb[0].mxu0
    %2339 = vdwg.mxu0
    %v2344 = vunpack.c.l.b16 %v107
    %v2345 = vunpack.c.l.b16 %v108
    %v2346 = vunpack.c.l.b16 %v109
    %v2347 = vunpack.c.l.b16 %v110
    %v2348 = vpack.c.b16 %v2345, %v2344
    %v2349 = vpack.c.b16 %v2347, %v2346
    %v2353 = vsel %vm734, %v1892, 0
    %2355 = vmatprep.subr.bf16.mxu0 0
    %2356 = vmatpush1.bf16.msra.mxu0 %v2348
    %2357 = vmatprep.subr.bf16.mxu0 0
    %2358 = vmatpush1.bf16.msra.mxu0 %v2349
    %2359 = vmatprep.subr.bf16.mxu0 0
    %2360 = vmatpush1.bf16.msra.mxu0 0
    %2361 = vmatprep.subr.bf16.mxu0 0
    %2362 = vmatpush1.bf16.msra.mxu0 0
    %2363 = vmatprep.subr.bf16.mxu0 0
    %2364 = vmatpush1.bf16.msra.mxu0 0
    %2365 = vmatprep.subr.bf16.mxu0 0
    %2366 = vmatpush1.bf16.msra.mxu0 0
    %2367 = vmatprep.subr.bf16.mxu0 0
    %2368 = vmatpush1.bf16.msra.mxu0 0
    %2369 = vmatprep.subr.bf16.mxu0 0
    %2370 = vmatpush1.bf16.msra.mxu0 0
    %2371 = vmatprep.subr.bf16.mxu0 0
    %2372 = vmatpush1.bf16.msra.mxu0 0
    %2373 = vmatprep.subr.bf16.mxu0 0
    %2374 = vmatpush1.bf16.msra.mxu0 0
    %2375 = vmatprep.subr.bf16.mxu0 0
    %2376 = vmatpush1.bf16.msra.mxu0 0
    %2377 = vmatprep.subr.bf16.mxu0 0
    %2378 = vmatpush1.bf16.msra.mxu0 0
    %2379 = vmatprep.subr.bf16.mxu0 0
    %2380 = vmatpush1.bf16.msra.mxu0 0
    %2381 = vmatprep.subr.bf16.mxu0 0
    %2382 = vmatpush1.bf16.msra.mxu0 0
    %2383 = vmatprep.subr.bf16.mxu0 0
    %2384 = vmatpush1.bf16.msra.mxu0 0
    %2385 = vmatprep.subr.bf16.mxu0 0
    %2386 = vmatpush1.bf16.msra.mxu0 0
    %2387 = vmatprep.mubr.bf16.mxu0 0
    %2388 = vmatmul.mubr.bf16.gmra.mrb[0].mxu0 %v2353
    %v2389 = vpop.f32.mrb[0].mxu0
    %v2390 = vadd.f32 %v643, %v2389
    %v2391 = vpop.f32.mrb[0].mxu0
    %v2392 = vpop.f32.mrb[0].mxu0
    %v2393 = vpop.f32.mrb[0].mxu0
    %2394 = vdwg.mxu0
    %v2399 = vunpack.c.l.b16 %v111
    %v2400 = vunpack.c.l.b16 %v112
    %v2401 = vunpack.c.l.b16 %v113
    %v2402 = vunpack.c.l.b16 %v114
    %v2403 = vpack.c.b16 %v2400, %v2399
    %v2404 = vpack.c.b16 %v2402, %v2401
    %v2408 = vsel %vm734, %v1893, 0
    %2410 = vmatprep.subr.bf16.mxu0 0
    %2411 = vmatpush1.bf16.msra.mxu0 %v2403
    %2412 = vmatprep.subr.bf16.mxu0 0
    %2413 = vmatpush1.bf16.msra.mxu0 %v2404
    %2414 = vmatprep.subr.bf16.mxu0 0
    %2415 = vmatpush1.bf16.msra.mxu0 0
    %2416 = vmatprep.subr.bf16.mxu0 0
    %2417 = vmatpush1.bf16.msra.mxu0 0
    %2418 = vmatprep.subr.bf16.mxu0 0
    %2419 = vmatpush1.bf16.msra.mxu0 0
    %2420 = vmatprep.subr.bf16.mxu0 0
    %2421 = vmatpush1.bf16.msra.mxu0 0
    %2422 = vmatprep.subr.bf16.mxu0 0
    %2423 = vmatpush1.bf16.msra.mxu0 0
    %2424 = vmatprep.subr.bf16.mxu0 0
    %2425 = vmatpush1.bf16.msra.mxu0 0
    %2426 = vmatprep.subr.bf16.mxu0 0
    %2427 = vmatpush1.bf16.msra.mxu0 0
    %2428 = vmatprep.subr.bf16.mxu0 0
    %2429 = vmatpush1.bf16.msra.mxu0 0
    %2430 = vmatprep.subr.bf16.mxu0 0
    %2431 = vmatpush1.bf16.msra.mxu0 0
    %2432 = vmatprep.subr.bf16.mxu0 0
    %2433 = vmatpush1.bf16.msra.mxu0 0
    %2434 = vmatprep.subr.bf16.mxu0 0
    %2435 = vmatpush1.bf16.msra.mxu0 0
    %2436 = vmatprep.subr.bf16.mxu0 0
    %2437 = vmatpush1.bf16.msra.mxu0 0
    %2438 = vmatprep.subr.bf16.mxu0 0
    %2439 = vmatpush1.bf16.msra.mxu0 0
    %2440 = vmatprep.subr.bf16.mxu0 0
    %2441 = vmatpush1.bf16.msra.mxu0 0
    %2442 = vmatprep.mubr.bf16.mxu0 0
    %2443 = vmatmul.mubr.bf16.gmra.mrb[0].mxu0 %v2408
    %v2444 = vpop.f32.mrb[0].mxu0
    %v2445 = vadd.f32 %v643, %v2444
    %v2446 = vpop.f32.mrb[0].mxu0
    %v2447 = vpop.f32.mrb[0].mxu0
    %v2448 = vpop.f32.mrb[0].mxu0
    %2449 = vdwg.mxu0
    %v2454 = vunpack.c.l.b16 %v115
    %v2455 = vunpack.c.l.b16 %v116
    %v2456 = vunpack.c.l.b16 %v117
    %v2457 = vunpack.c.l.b16 %v118
    %v2458 = vpack.c.b16 %v2455, %v2454
    %v2459 = vpack.c.b16 %v2457, %v2456
    %v2463 = vsel %vm734, %v1894, 0
    %2465 = vmatprep.subr.bf16.mxu0 0
    %2466 = vmatpush1.bf16.msra.mxu0 %v2458
    %2467 = vmatprep.subr.bf16.mxu0 0
    %2468 = vmatpush1.bf16.msra.mxu0 %v2459
    %2469 = vmatprep.subr.bf16.mxu0 0
    %2470 = vmatpush1.bf16.msra.mxu0 0
    %2471 = vmatprep.subr.bf16.mxu0 0
    %2472 = vmatpush1.bf16.msra.mxu0 0
    %2473 = vmatprep.subr.bf16.mxu0 0
    %2474 = vmatpush1.bf16.msra.mxu0 0
    %2475 = vmatprep.subr.bf16.mxu0 0
    %2476 = vmatpush1.bf16.msra.mxu0 0
    %2477 = vmatprep.subr.bf16.mxu0 0
    %2478 = vmatpush1.bf16.msra.mxu0 0
    %2479 = vmatprep.subr.bf16.mxu0 0
    %2480 = vmatpush1.bf16.msra.mxu0 0
    %2481 = vmatprep.subr.bf16.mxu0 0
    %2482 = vmatpush1.bf16.msra.mxu0 0
    %2483 = vmatprep.subr.bf16.mxu0 0
    %2484 = vmatpush1.bf16.msra.mxu0 0
    %2485 = vmatprep.subr.bf16.mxu0 0
    %2486 = vmatpush1.bf16.msra.mxu0 0
    %2487 = vmatprep.subr.bf16.mxu0 0
    %2488 = vmatpush1.bf16.msra.mxu0 0
    %2489 = vmatprep.subr.bf16.mxu0 0
    %2490 = vmatpush1.bf16.msra.mxu0 0
    %2491 = vmatprep.subr.bf16.mxu0 0
    %2492 = vmatpush1.bf16.msra.mxu0 0
    %2493 = vmatprep.subr.bf16.mxu0 0
    %2494 = vmatpush1.bf16.msra.mxu0 0
    %2495 = vmatprep.subr.bf16.mxu0 0
    %2496 = vmatpush1.bf16.msra.mxu0 0
    %2497 = vmatprep.mubr.bf16.mxu0 0
    %2498 = vmatmul.mubr.bf16.gmra.mrb[0].mxu0 %v2463
    %v2499 = vpop.f32.mrb[0].mxu0
    %v2500 = vadd.f32 %v643, %v2499
    %v2501 = vpop.f32.mrb[0].mxu0
    %v2502 = vpop.f32.mrb[0].mxu0
    %v2503 = vpop.f32.mrb[0].mxu0
    %2504 = vdwg.mxu0
    %v2509 = vunpack.c.l.b16 %v119
    %v2510 = vunpack.c.l.b16 %v120
    %v2511 = vunpack.c.l.b16 %v121
    %v2512 = vunpack.c.l.b16 %v122
    %v2513 = vpack.c.b16 %v2510, %v2509
    %v2514 = vpack.c.b16 %v2512, %v2511
    %v2518 = vsel %vm734, %v1895, 0
    %2520 = vmatprep.subr.bf16.mxu0 0
    %2521 = vmatpush1.bf16.msra.mxu0 %v2513
    %2522 = vmatprep.subr.bf16.mxu0 0
    %2523 = vmatpush1.bf16.msra.mxu0 %v2514
    %2524 = vmatprep.subr.bf16.mxu0 0
    %2525 = vmatpush1.bf16.msra.mxu0 0
    %2526 = vmatprep.subr.bf16.mxu0 0
    %2527 = vmatpush1.bf16.msra.mxu0 0
    %2528 = vmatprep.subr.bf16.mxu0 0
    %2529 = vmatpush1.bf16.msra.mxu0 0
    %2530 = vmatprep.subr.bf16.mxu0 0
    %2531 = vmatpush1.bf16.msra.mxu0 0
    %2532 = vmatprep.subr.bf16.mxu0 0
    %2533 = vmatpush1.bf16.msra.mxu0 0
    %2534 = vmatprep.subr.bf16.mxu0 0
    %2535 = vmatpush1.bf16.msra.mxu0 0
    %2536 = vmatprep.subr.bf16.mxu0 0
    %2537 = vmatpush1.bf16.msra.mxu0 0
    %2538 = vmatprep.subr.bf16.mxu0 0
    %2539 = vmatpush1.bf16.msra.mxu0 0
    %2540 = vmatprep.subr.bf16.mxu0 0
    %2541 = vmatpush1.bf16.msra.mxu0 0
    %2542 = vmatprep.subr.bf16.mxu0 0
    %2543 = vmatpush1.bf16.msra.mxu0 0
    %2544 = vmatprep.subr.bf16.mxu0 0
    %2545 = vmatpush1.bf16.msra.mxu0 0
    %2546 = vmatprep.subr.bf16.mxu0 0
    %2547 = vmatpush1.bf16.msra.mxu0 0
    %2548 = vmatprep.subr.bf16.mxu0 0
    %2549 = vmatpush1.bf16.msra.mxu0 0
    %2550 = vmatprep.subr.bf16.mxu0 0
    %2551 = vmatpush1.bf16.msra.mxu0 0
    %2552 = vmatprep.mubr.bf16.mxu0 0
    %2553 = vmatmul.mubr.bf16.gmra.mrb[0].mxu0 %v2518
    %v2554 = vpop.f32.mrb[0].mxu0
    %v2555 = vadd.f32 %v643, %v2554
    %v2556 = vpop.f32.mrb[0].mxu0
    %v2557 = vpop.f32.mrb[0].mxu0
    %v2558 = vpop.f32.mrb[0].mxu0
    %2559 = vdwg.mxu0
    %v2564 = vunpack.c.l.b16 %v123
    %v2565 = vunpack.c.l.b16 %v124
    %v2566 = vunpack.c.l.b16 %v125
    %v2567 = vunpack.c.l.b16 %v126
    %v2568 = vpack.c.b16 %v2565, %v2564
    %v2569 = vpack.c.b16 %v2567, %v2566
    %v2573 = vsel %vm734, %v1896, 0
    %2575 = vmatprep.subr.bf16.mxu0 0
    %2576 = vmatpush1.bf16.msra.mxu0 %v2568
    %2577 = vmatprep.subr.bf16.mxu0 0
    %2578 = vmatpush1.bf16.msra.mxu0 %v2569
    %2579 = vmatprep.subr.bf16.mxu0 0
    %2580 = vmatpush1.bf16.msra.mxu0 0
    %2581 = vmatprep.subr.bf16.mxu0 0
    %2582 = vmatpush1.bf16.msra.mxu0 0
    %2583 = vmatprep.subr.bf16.mxu0 0
    %2584 = vmatpush1.bf16.msra.mxu0 0
    %2585 = vmatprep.subr.bf16.mxu0 0
    %2586 = vmatpush1.bf16.msra.mxu0 0
    %2587 = vmatprep.subr.bf16.mxu0 0
    %2588 = vmatpush1.bf16.msra.mxu0 0
    %2589 = vmatprep.subr.bf16.mxu0 0
    %2590 = vmatpush1.bf16.msra.mxu0 0
    %2591 = vmatprep.subr.bf16.mxu0 0
    %2592 = vmatpush1.bf16.msra.mxu0 0
    %2593 = vmatprep.subr.bf16.mxu0 0
    %2594 = vmatpush1.bf16.msra.mxu0 0
    %2595 = vmatprep.subr.bf16.mxu0 0
    %2596 = vmatpush1.bf16.msra.mxu0 0
    %2597 = vmatprep.subr.bf16.mxu0 0
    %2598 = vmatpush1.bf16.msra.mxu0 0
    %2599 = vmatprep.subr.bf16.mxu0 0
    %2600 = vmatpush1.bf16.msra.mxu0 0
    %2601 = vmatprep.subr.bf16.mxu0 0
    %2602 = vmatpush1.bf16.msra.mxu0 0
    %2603 = vmatprep.subr.bf16.mxu0 0
    %2604 = vmatpush1.bf16.msra.mxu0 0
    %2605 = vmatprep.subr.bf16.mxu0 0
    %2606 = vmatpush1.bf16.msra.mxu0 0
    %2607 = vmatprep.mubr.bf16.mxu0 0
    %2608 = vmatmul.mubr.bf16.gmra.mrb[0].mxu0 %v2573
    %v2609 = vpop.f32.mrb[0].mxu0
    %v2610 = vadd.f32 %v643, %v2609
    %v2611 = vpop.f32.mrb[0].mxu0
    %v2612 = vpop.f32.mrb[0].mxu0
    %v2613 = vpop.f32.mrb[0].mxu0
    %2614 = vdwg.mxu0
    %v2619 = vunpack.c.l.b16 %v127
    %v2620 = vunpack.c.l.b16 %v128
    %v2621 = vunpack.c.l.b16 %v129
    %v2622 = vunpack.c.l.b16 %v130
    %v2623 = vpack.c.b16 %v2620, %v2619
    %v2624 = vpack.c.b16 %v2622, %v2621
    %v2628 = vsel %vm734, %v1897, 0
    %2630 = vmatprep.subr.bf16.mxu0 0
    %2631 = vmatpush1.bf16.msra.mxu0 %v2623
    %2632 = vmatprep.subr.bf16.mxu0 0
    %2633 = vmatpush1.bf16.msra.mxu0 %v2624
    %2634 = vmatprep.subr.bf16.mxu0 0
    %2635 = vmatpush1.bf16.msra.mxu0 0
    %2636 = vmatprep.subr.bf16.mxu0 0
    %2637 = vmatpush1.bf16.msra.mxu0 0
    %2638 = vmatprep.subr.bf16.mxu0 0
    %2639 = vmatpush1.bf16.msra.mxu0 0
    %2640 = vmatprep.subr.bf16.mxu0 0
    %2641 = vmatpush1.bf16.msra.mxu0 0
    %2642 = vmatprep.subr.bf16.mxu0 0
    %2643 = vmatpush1.bf16.msra.mxu0 0
    %2644 = vmatprep.subr.bf16.mxu0 0
    %2645 = vmatpush1.bf16.msra.mxu0 0
    %2646 = vmatprep.subr.bf16.mxu0 0
    %2647 = vmatpush1.bf16.msra.mxu0 0
    %2648 = vmatprep.subr.bf16.mxu0 0
    %2649 = vmatpush1.bf16.msra.mxu0 0
    %2650 = vmatprep.subr.bf16.mxu0 0
    %2651 = vmatpush1.bf16.msra.mxu0 0
    %2652 = vmatprep.subr.bf16.mxu0 0
    %2653 = vmatpush1.bf16.msra.mxu0 0
    %2654 = vmatprep.subr.bf16.mxu0 0
    %2655 = vmatpush1.bf16.msra.mxu0 0
    %2656 = vmatprep.subr.bf16.mxu0 0
    %2657 = vmatpush1.bf16.msra.mxu0 0
    %2658 = vmatprep.subr.bf16.mxu0 0
    %2659 = vmatpush1.bf16.msra.mxu0 0
    %2660 = vmatprep.subr.bf16.mxu0 0
    %2661 = vmatpush1.bf16.msra.mxu0 0
    %2662 = vmatprep.mubr.bf16.mxu0 0
    %2663 = vmatmul.mubr.bf16.gmra.mrb[0].mxu0 %v2628
    %v2664 = vpop.f32.mrb[0].mxu0
    %v2665 = vadd.f32 %v643, %v2664
    %v2666 = vpop.f32.mrb[0].mxu0
    %v2667 = vpop.f32.mrb[0].mxu0
    %v2668 = vpop.f32.mrb[0].mxu0
    %2669 = vdwg.mxu0
    %v2674 = vunpack.c.l.b16 %v131
    %v2675 = vunpack.c.l.b16 %v132
    %v2676 = vunpack.c.l.b16 %v133
    %v2677 = vunpack.c.l.b16 %v134
    %v2678 = vpack.c.b16 %v2675, %v2674
    %v2679 = vpack.c.b16 %v2677, %v2676
    %v2683 = vsel %vm734, %v1898, 0
    %2685 = vmatprep.subr.bf16.mxu0 0
    %2686 = vmatpush1.bf16.msra.mxu0 %v2678
    %2687 = vmatprep.subr.bf16.mxu0 0
    %2688 = vmatpush1.bf16.msra.mxu0 %v2679
    %2689 = vmatprep.subr.bf16.mxu0 0
    %2690 = vmatpush1.bf16.msra.mxu0 0
    %2691 = vmatprep.subr.bf16.mxu0 0
    %2692 = vmatpush1.bf16.msra.mxu0 0
    %2693 = vmatprep.subr.bf16.mxu0 0
    %2694 = vmatpush1.bf16.msra.mxu0 0
    %2695 = vmatprep.subr.bf16.mxu0 0
    %2696 = vmatpush1.bf16.msra.mxu0 0
    %2697 = vmatprep.subr.bf16.mxu0 0
    %2698 = vmatpush1.bf16.msra.mxu0 0
    %2699 = vmatprep.subr.bf16.mxu0 0
    %2700 = vmatpush1.bf16.msra.mxu0 0
    %2701 = vmatprep.subr.bf16.mxu0 0
    %2702 = vmatpush1.bf16.msra.mxu0 0
    %2703 = vmatprep.subr.bf16.mxu0 0
    %2704 = vmatpush1.bf16.msra.mxu0 0
    %2705 = vmatprep.subr.bf16.mxu0 0
    %2706 = vmatpush1.bf16.msra.mxu0 0
    %2707 = vmatprep.subr.bf16.mxu0 0
    %2708 = vmatpush1.bf16.msra.mxu0 0
    %2709 = vmatprep.subr.bf16.mxu0 0
    %2710 = vmatpush1.bf16.msra.mxu0 0
    %2711 = vmatprep.subr.bf16.mxu0 0
    %2712 = vmatpush1.bf16.msra.mxu0 0
    %2713 = vmatprep.subr.bf16.mxu0 0
    %2714 = vmatpush1.bf16.msra.mxu0 0
    %2715 = vmatprep.subr.bf16.mxu0 0
    %2716 = vmatpush1.bf16.msra.mxu0 0
    %2717 = vmatprep.mubr.bf16.mxu0 0
    %2718 = vmatmul.mubr.bf16.gmra.mrb[0].mxu0 %v2683
    %v2719 = vpop.f32.mrb[0].mxu0
    %v2720 = vadd.f32 %v643, %v2719
    %v2721 = vpop.f32.mrb[0].mxu0
    %v2722 = vpop.f32.mrb[0].mxu0
    %v2723 = vpop.f32.mrb[0].mxu0
    %2724 = vdwg.mxu0
    %v2729 = vunpack.c.l.b16 %v135
    %v2730 = vunpack.c.l.b16 %v136
    %v2731 = vunpack.c.l.b16 %v137
    %v2732 = vunpack.c.l.b16 %v138
    %v2733 = vpack.c.b16 %v2730, %v2729
    %v2734 = vpack.c.b16 %v2732, %v2731
    %v2738 = vsel %vm734, %v1899, 0
    %2740 = vmatprep.subr.bf16.mxu0 0
    %2741 = vmatpush1.bf16.msra.mxu0 %v2733
    %2742 = vmatprep.subr.bf16.mxu0 0
    %2743 = vmatpush1.bf16.msra.mxu0 %v2734
    %2744 = vmatprep.subr.bf16.mxu0 0
    %2745 = vmatpush1.bf16.msra.mxu0 0
    %2746 = vmatprep.subr.bf16.mxu0 0
    %2747 = vmatpush1.bf16.msra.mxu0 0
    %2748 = vmatprep.subr.bf16.mxu0 0
    %2749 = vmatpush1.bf16.msra.mxu0 0
    %2750 = vmatprep.subr.bf16.mxu0 0
    %2751 = vmatpush1.bf16.msra.mxu0 0
    %2752 = vmatprep.subr.bf16.mxu0 0
    %2753 = vmatpush1.bf16.msra.mxu0 0
    %2754 = vmatprep.subr.bf16.mxu0 0
    %2755 = vmatpush1.bf16.msra.mxu0 0
    %2756 = vmatprep.subr.bf16.mxu0 0
    %2757 = vmatpush1.bf16.msra.mxu0 0
    %2758 = vmatprep.subr.bf16.mxu0 0
    %2759 = vmatpush1.bf16.msra.mxu0 0
    %2760 = vmatprep.subr.bf16.mxu0 0
    %2761 = vmatpush1.bf16.msra.mxu0 0
    %2762 = vmatprep.subr.bf16.mxu0 0
    %2763 = vmatpush1.bf16.msra.mxu0 0
    %2764 = vmatprep.subr.bf16.mxu0 0
    %2765 = vmatpush1.bf16.msra.mxu0 0
    %2766 = vmatprep.subr.bf16.mxu0 0
    %2767 = vmatpush1.bf16.msra.mxu0 0
    %2768 = vmatprep.subr.bf16.mxu0 0
    %2769 = vmatpush1.bf16.msra.mxu0 0
    %2770 = vmatprep.subr.bf16.mxu0 0
    %2771 = vmatpush1.bf16.msra.mxu0 0
    %2772 = vmatprep.mubr.bf16.mxu0 0
    %2773 = vmatmul.mubr.bf16.gmra.mrb[0].mxu0 %v2738
    %v2774 = vpop.f32.mrb[0].mxu0
    %v2775 = vadd.f32 %v643, %v2774
    %v2776 = vpop.f32.mrb[0].mxu0
    %v2777 = vpop.f32.mrb[0].mxu0
    %v2778 = vpop.f32.mrb[0].mxu0
    %2779 = vdwg.mxu0
    %2780 = vmax.xlane.f32.xlu0 %v1950
    %v2781 = vpop.xlane.xlu0 %2780
    %2782 = vmax.xlane.f32.xlu0 %v2005
    %v2783 = vpop.xlane.xlu0 %2782
    %2784 = vmax.xlane.f32.xlu0 %v2060
    %v2785 = vpop.xlane.xlu0 %2784
    %2786 = vmax.xlane.f32.xlu0 %v2115
    %v2787 = vpop.xlane.xlu0 %2786
    %2788 = vmax.xlane.f32.xlu0 %v2170
    %v2789 = vpop.xlane.xlu0 %2788
    %2790 = vmax.xlane.f32.xlu0 %v2225
    %v2791 = vpop.xlane.xlu0 %2790
    %2792 = vmax.xlane.f32.xlu0 %v2280
    %v2793 = vpop.xlane.xlu0 %2792
    %2794 = vmax.xlane.f32.xlu0 %v2335
    %v2795 = vpop.xlane.xlu0 %2794
    %2796 = vmax.xlane.f32.xlu0 %v2390
    %v2797 = vpop.xlane.xlu0 %2796
    %2798 = vmax.xlane.f32.xlu0 %v2445
    %v2799 = vpop.xlane.xlu0 %2798
    %2800 = vmax.xlane.f32.xlu0 %v2500
    %v2801 = vpop.xlane.xlu0 %2800
    %2802 = vmax.xlane.f32.xlu0 %v2555
    %v2803 = vpop.xlane.xlu0 %2802
    %2804 = vmax.xlane.f32.xlu0 %v2610
    %v2805 = vpop.xlane.xlu0 %2804
    %2806 = vmax.xlane.f32.xlu0 %v2665
    %v2807 = vpop.xlane.xlu0 %2806
    %2808 = vmax.xlane.f32.xlu0 %v2720
    %v2809 = vpop.xlane.xlu0 %2808
    %2810 = vmax.xlane.f32.xlu0 %v2775
    %v2811 = vpop.xlane.xlu0 %2810
    %v2812 = vsub.f32 %v1950, %v2781
    %v2813 = vsub.f32 %v2005, %v2783
    %v2814 = vsub.f32 %v2060, %v2785
    %v2815 = vsub.f32 %v2115, %v2787
    %v2816 = vsub.f32 %v2170, %v2789
    %v2817 = vsub.f32 %v2225, %v2791
    %v2818 = vsub.f32 %v2280, %v2793
    %v2819 = vsub.f32 %v2335, %v2795
    %v2820 = vsub.f32 %v2390, %v2797
    %v2821 = vsub.f32 %v2445, %v2799
    %v2822 = vsub.f32 %v2500, %v2801
    %v2823 = vsub.f32 %v2555, %v2803
    %v2824 = vsub.f32 %v2610, %v2805
    %v2825 = vsub.f32 %v2665, %v2807
    %v2826 = vsub.f32 %v2720, %v2809
    %v2827 = vsub.f32 %v2775, %v2811
    %v2828 = vmul.f32 %v2812, 1.442695
    %v2829 = vpow.pop %v2828
    %v2830 = vmul.f32 %v2813, 1.442695
    %v2831 = vpow.pop %v2830
    %v2832 = vmul.f32 %v2814, 1.442695
    %v2833 = vpow.pop %v2832
    %v2834 = vmul.f32 %v2815, 1.442695
    %v2835 = vpow.pop %v2834
    %v2836 = vmul.f32 %v2816, 1.442695
    %v2837 = vpow.pop %v2836
    %v2838 = vmul.f32 %v2817, 1.442695
    %v2839 = vpow.pop %v2838
    %v2840 = vmul.f32 %v2818, 1.442695
    %v2841 = vpow.pop %v2840
    %v2842 = vmul.f32 %v2819, 1.442695
    %v2843 = vpow.pop %v2842
    %v2844 = vmul.f32 %v2820, 1.442695
    %v2845 = vpow.pop %v2844
    %v2846 = vmul.f32 %v2821, 1.442695
    %v2847 = vpow.pop %v2846
    %v2848 = vmul.f32 %v2822, 1.442695
    %v2849 = vpow.pop %v2848
    %v2850 = vmul.f32 %v2823, 1.442695
    %v2851 = vpow.pop %v2850
    %v2852 = vmul.f32 %v2824, 1.442695
    %v2853 = vpow.pop %v2852
    %v2854 = vmul.f32 %v2825, 1.442695
    %v2855 = vpow.pop %v2854
    %v2856 = vmul.f32 %v2826, 1.442695
    %v2857 = vpow.pop %v2856
    %v2858 = vmul.f32 %v2827, 1.442695
    %v2859 = vpow.pop %v2858
    %2860 = vadd.xlane.f32.xlu0 %v2829
    %v2861 = vpop.xlane.xlu0 %2860
    %2862 = vadd.xlane.f32.xlu0 %v2831
    %v2863 = vpop.xlane.xlu0 %2862
    %2864 = vadd.xlane.f32.xlu0 %v2833
    %v2865 = vpop.xlane.xlu0 %2864
    %2866 = vadd.xlane.f32.xlu0 %v2835
    %v2867 = vpop.xlane.xlu0 %2866
    %2868 = vadd.xlane.f32.xlu0 %v2837
    %v2869 = vpop.xlane.xlu0 %2868
    %2870 = vadd.xlane.f32.xlu0 %v2839
    %v2871 = vpop.xlane.xlu0 %2870
    %2872 = vadd.xlane.f32.xlu0 %v2841
    %v2873 = vpop.xlane.xlu0 %2872
    %2874 = vadd.xlane.f32.xlu0 %v2843
    %v2875 = vpop.xlane.xlu0 %2874
    %2876 = vadd.xlane.f32.xlu0 %v2845
    %v2877 = vpop.xlane.xlu0 %2876
    %2878 = vadd.xlane.f32.xlu0 %v2847
    %v2879 = vpop.xlane.xlu0 %2878
    %2880 = vadd.xlane.f32.xlu0 %v2849
    %v2881 = vpop.xlane.xlu0 %2880
    %2882 = vadd.xlane.f32.xlu0 %v2851
    %v2883 = vpop.xlane.xlu0 %2882
    %2884 = vadd.xlane.f32.xlu0 %v2853
    %v2885 = vpop.xlane.xlu0 %2884
    %2886 = vadd.xlane.f32.xlu0 %v2855
    %v2887 = vpop.xlane.xlu0 %2886
    %2888 = vadd.xlane.f32.xlu0 %v2857
    %v2889 = vpop.xlane.xlu0 %2888
    %2890 = vadd.xlane.f32.xlu0 %v2859
    %v2891 = vpop.xlane.xlu0 %2890
    %v2892 = vrcp.pop %v2861
    %v2893 = vrcp.pop %v2863
    %v2894 = vrcp.pop %v2865
    %v2895 = vrcp.pop %v2867
    %v2896 = vrcp.pop %v2869
    %v2897 = vrcp.pop %v2871
    %v2898 = vrcp.pop %v2873
    %v2899 = vrcp.pop %v2875
    %v2900 = vrcp.pop %v2877
    %v2901 = vrcp.pop %v2879
    %v2902 = vrcp.pop %v2881
    %v2903 = vrcp.pop %v2883
    %v2904 = vrcp.pop %v2885
    %v2905 = vrcp.pop %v2887
    %v2906 = vrcp.pop %v2889
    %v2907 = vrcp.pop %v2891
    %v2908 = vmul.f32 %v2829, %v2892
    %v2909 = vmul.f32 %v2831, %v2893
    %v2910 = vmul.f32 %v2833, %v2894
    %v2911 = vmul.f32 %v2835, %v2895
    %v2912 = vmul.f32 %v2837, %v2896
    %v2913 = vmul.f32 %v2839, %v2897
    %v2914 = vmul.f32 %v2841, %v2898
    %v2915 = vmul.f32 %v2843, %v2899
    %v2916 = vmul.f32 %v2845, %v2900
    %v2917 = vmul.f32 %v2847, %v2901
    %v2918 = vmul.f32 %v2849, %v2902
    %v2919 = vmul.f32 %v2851, %v2903
    %v2920 = vmul.f32 %v2853, %v2904
    %v2921 = vmul.f32 %v2855, %v2905
    %v2922 = vmul.f32 %v2857, %v2906
    %v2923 = vmul.f32 %v2859, %v2907
    %v2924 = vpack.c.bf16 %v2908, %v2908
    %v2925 = vpack.c.bf16 %v2909, %v2909
    %v2926 = vpack.c.bf16 %v2910, %v2910
    %v2927 = vpack.c.bf16 %v2911, %v2911
    %v2928 = vpack.c.bf16 %v2912, %v2912
    %v2929 = vpack.c.bf16 %v2913, %v2913
    %v2930 = vpack.c.bf16 %v2914, %v2914
    %v2931 = vpack.c.bf16 %v2915, %v2915
    %v2932 = vpack.c.bf16 %v2916, %v2916
    %v2933 = vpack.c.bf16 %v2917, %v2917
    %v2934 = vpack.c.bf16 %v2918, %v2918
    %v2935 = vpack.c.bf16 %v2919, %v2919
    %v2936 = vpack.c.bf16 %v2920, %v2920
    %v2937 = vpack.c.bf16 %v2921, %v2921
    %v2938 = vpack.c.bf16 %v2922, %v2922
    %v2939 = vpack.c.bf16 %v2923, %v2923
    %v2956 = vunpack.c.l.b16 %v139
    %v2957 = vunpack.c.l.b16 %v140
    %v2958 = vunpack.c.l.b16 %v141
    %v2959 = vunpack.c.l.b16 %v142
    %v2960 = vunpack.c.l.b16 %v143
    %v2961 = vunpack.c.l.b16 %v144
    %v2962 = vunpack.c.l.b16 %v145
    %v2963 = vunpack.c.l.b16 %v146
    %v2964 = vunpack.c.l.b16 %v147
    %v2965 = vunpack.c.l.b16 %v148
    %v2966 = vunpack.c.l.b16 %v149
    %v2967 = vunpack.c.l.b16 %v150
    %v2968 = vunpack.c.l.b16 %v151
    %v2969 = vunpack.c.l.b16 %v152
    %v2970 = vunpack.c.l.b16 %v153
    %v2971 = vunpack.c.l.b16 %v154
    %v2972 = vpack.c.b16 %v2957, %v2956
    %v2973 = vpack.c.b16 %v2959, %v2958
    %v2974 = vpack.c.b16 %v2961, %v2960
    %v2975 = vpack.c.b16 %v2963, %v2962
    %v2976 = vpack.c.b16 %v2965, %v2964
    %v2977 = vpack.c.b16 %v2967, %v2966
    %v2978 = vpack.c.b16 %v2969, %v2968
    %v2979 = vpack.c.b16 %v2971, %v2970
    %2988 = vmatprep.subr.bf16.mxu0 0
    %2989 = vmatpush1.bf16.msra.mxu0 %v2972
    %2990 = vmatprep.subr.bf16.mxu0 0
    %2991 = vmatpush1.bf16.msra.mxu0 %v2973
    %2992 = vmatprep.subr.bf16.mxu0 0
    %2993 = vmatpush1.bf16.msra.mxu0 %v2974
    %2994 = vmatprep.subr.bf16.mxu0 0
    %2995 = vmatpush1.bf16.msra.mxu0 %v2975
    %2996 = vmatprep.subr.bf16.mxu0 0
    %2997 = vmatpush1.bf16.msra.mxu0 %v2976
    %2998 = vmatprep.subr.bf16.mxu0 0
    %2999 = vmatpush1.bf16.msra.mxu0 %v2977
    %3000 = vmatprep.subr.bf16.mxu0 0
    %3001 = vmatpush1.bf16.msra.mxu0 %v2978
    %3002 = vmatprep.subr.bf16.mxu0 0
    %3003 = vmatpush1.bf16.msra.mxu0 %v2979
    %3004 = vmatprep.subr.bf16.mxu0 0
    %3005 = vmatpush1.bf16.msra.mxu0 0
    %3006 = vmatprep.subr.bf16.mxu0 0
    %3007 = vmatpush1.bf16.msra.mxu0 0
    %3008 = vmatprep.subr.bf16.mxu0 0
    %3009 = vmatpush1.bf16.msra.mxu0 0
    %3010 = vmatprep.subr.bf16.mxu0 0
    %3011 = vmatpush1.bf16.msra.mxu0 0
    %3012 = vmatprep.subr.bf16.mxu0 0
    %3013 = vmatpush1.bf16.msra.mxu0 0
    %3014 = vmatprep.subr.bf16.mxu0 0
    %3015 = vmatpush1.bf16.msra.mxu0 0
    %3016 = vmatprep.subr.bf16.mxu0 0
    %3017 = vmatpush1.bf16.msra.mxu0 0
    %3018 = vmatprep.subr.bf16.mxu0 0
    %3019 = vmatpush1.bf16.msra.mxu0 0
    %3020 = vmatprep.mubr.bf16.mxu0 0
    %3021 = vmatmul.mubr.bf16.gmra.mrb[0].mxu0 %v2924
    %v3022 = vpop.f32.mrb[0].mxu0
    %v3023 = vadd.f32 0.0, %v3022
    %v3024 = vpop.f32.mrb[0].mxu0
    %v3025 = vpop.f32.mrb[0].mxu0
    %v3026 = vpop.f32.mrb[0].mxu0
    %3027 = vdwg.mxu0
    %v3044 = vunpack.c.l.b16 %v155
    %v3045 = vunpack.c.l.b16 %v156
    %v3046 = vunpack.c.l.b16 %v157
    %v3047 = vunpack.c.l.b16 %v158
    %v3048 = vunpack.c.l.b16 %v159
    %v3049 = vunpack.c.l.b16 %v160
    %v3050 = vunpack.c.l.b16 %v161
    %v3051 = vunpack.c.l.b16 %v162
    %v3052 = vunpack.c.l.b16 %v163
    %v3053 = vunpack.c.l.b16 %v164
    %v3054 = vunpack.c.l.b16 %v165
    %v3055 = vunpack.c.l.b16 %v166
    %v3056 = vunpack.c.l.b16 %v167
    %v3057 = vunpack.c.l.b16 %v168
    %v3058 = vunpack.c.l.b16 %v169
    %v3059 = vunpack.c.l.b16 %v170
    %v3060 = vpack.c.b16 %v3045, %v3044
    %v3061 = vpack.c.b16 %v3047, %v3046
    %v3062 = vpack.c.b16 %v3049, %v3048
    %v3063 = vpack.c.b16 %v3051, %v3050
    %v3064 = vpack.c.b16 %v3053, %v3052
    %v3065 = vpack.c.b16 %v3055, %v3054
    %v3066 = vpack.c.b16 %v3057, %v3056
    %v3067 = vpack.c.b16 %v3059, %v3058
    %3076 = vmatprep.subr.bf16.mxu0 0
    %3077 = vmatpush1.bf16.msra.mxu0 %v3060
    %3078 = vmatprep.subr.bf16.mxu0 0
    %3079 = vmatpush1.bf16.msra.mxu0 %v3061
    %3080 = vmatprep.subr.bf16.mxu0 0
    %3081 = vmatpush1.bf16.msra.mxu0 %v3062
    %3082 = vmatprep.subr.bf16.mxu0 0
    %3083 = vmatpush1.bf16.msra.mxu0 %v3063
    %3084 = vmatprep.subr.bf16.mxu0 0
    %3085 = vmatpush1.bf16.msra.mxu0 %v3064
    %3086 = vmatprep.subr.bf16.mxu0 0
    %3087 = vmatpush1.bf16.msra.mxu0 %v3065
    %3088 = vmatprep.subr.bf16.mxu0 0
    %3089 = vmatpush1.bf16.msra.mxu0 %v3066
    %3090 = vmatprep.subr.bf16.mxu0 0
    %3091 = vmatpush1.bf16.msra.mxu0 %v3067
    %3092 = vmatprep.subr.bf16.mxu0 0
    %3093 = vmatpush1.bf16.msra.mxu0 0
    %3094 = vmatprep.subr.bf16.mxu0 0
    %3095 = vmatpush1.bf16.msra.mxu0 0
    %3096 = vmatprep.subr.bf16.mxu0 0
    %3097 = vmatpush1.bf16.msra.mxu0 0
    %3098 = vmatprep.subr.bf16.mxu0 0
    %3099 = vmatpush1.bf16.msra.mxu0 0
    %3100 = vmatprep.subr.bf16.mxu0 0
    %3101 = vmatpush1.bf16.msra.mxu0 0
    %3102 = vmatprep.subr.bf16.mxu0 0
    %3103 = vmatpush1.bf16.msra.mxu0 0
    %3104 = vmatprep.subr.bf16.mxu0 0
    %3105 = vmatpush1.bf16.msra.mxu0 0
    %3106 = vmatprep.subr.bf16.mxu0 0
    %3107 = vmatpush1.bf16.msra.mxu0 0
    %3108 = vmatprep.mubr.bf16.mxu0 0
    %3109 = vmatmul.mubr.bf16.gmra.mrb[0].mxu0 %v2925
    %v3110 = vpop.f32.mrb[0].mxu0
    %v3111 = vadd.f32 0.0, %v3110
    %v3112 = vpop.f32.mrb[0].mxu0
    %v3113 = vpop.f32.mrb[0].mxu0
    %v3114 = vpop.f32.mrb[0].mxu0
    %3115 = vdwg.mxu0
    %v3132 = vunpack.c.l.b16 %v171
    %v3133 = vunpack.c.l.b16 %v172
    %v3134 = vunpack.c.l.b16 %v173
    %v3135 = vunpack.c.l.b16 %v174
    %v3136 = vunpack.c.l.b16 %v175
    %v3137 = vunpack.c.l.b16 %v176
    %v3138 = vunpack.c.l.b16 %v177
    %v3139 = vunpack.c.l.b16 %v178
    %v3140 = vunpack.c.l.b16 %v179
    %v3141 = vunpack.c.l.b16 %v180
    %v3142 = vunpack.c.l.b16 %v181
    %v3143 = vunpack.c.l.b16 %v182
    %v3144 = vunpack.c.l.b16 %v183
    %v3145 = vunpack.c.l.b16 %v184
    %v3146 = vunpack.c.l.b16 %v185
    %v3147 = vunpack.c.l.b16 %v186
    %v3148 = vpack.c.b16 %v3133, %v3132
    %v3149 = vpack.c.b16 %v3135, %v3134
    %v3150 = vpack.c.b16 %v3137, %v3136
    %v3151 = vpack.c.b16 %v3139, %v3138
    %v3152 = vpack.c.b16 %v3141, %v3140
    %v3153 = vpack.c.b16 %v3143, %v3142
    %v3154 = vpack.c.b16 %v3145, %v3144
    %v3155 = vpack.c.b16 %v3147, %v3146
    %3164 = vmatprep.subr.bf16.mxu0 0
    %3165 = vmatpush1.bf16.msra.mxu0 %v3148
    %3166 = vmatprep.subr.bf16.mxu0 0
    %3167 = vmatpush1.bf16.msra.mxu0 %v3149
    %3168 = vmatprep.subr.bf16.mxu0 0
    %3169 = vmatpush1.bf16.msra.mxu0 %v3150
    %3170 = vmatprep.subr.bf16.mxu0 0
    %3171 = vmatpush1.bf16.msra.mxu0 %v3151
    %3172 = vmatprep.subr.bf16.mxu0 0
    %3173 = vmatpush1.bf16.msra.mxu0 %v3152
    %3174 = vmatprep.subr.bf16.mxu0 0
    %3175 = vmatpush1.bf16.msra.mxu0 %v3153
    %3176 = vmatprep.subr.bf16.mxu0 0
    %3177 = vmatpush1.bf16.msra.mxu0 %v3154
    %3178 = vmatprep.subr.bf16.mxu0 0
    %3179 = vmatpush1.bf16.msra.mxu0 %v3155
    %3180 = vmatprep.subr.bf16.mxu0 0
    %3181 = vmatpush1.bf16.msra.mxu0 0
    %3182 = vmatprep.subr.bf16.mxu0 0
    %3183 = vmatpush1.bf16.msra.mxu0 0
    %3184 = vmatprep.subr.bf16.mxu0 0
    %3185 = vmatpush1.bf16.msra.mxu0 0
    %3186 = vmatprep.subr.bf16.mxu0 0
    %3187 = vmatpush1.bf16.msra.mxu0 0
    %3188 = vmatprep.subr.bf16.mxu0 0
    %3189 = vmatpush1.bf16.msra.mxu0 0
    %3190 = vmatprep.subr.bf16.mxu0 0
    %3191 = vmatpush1.bf16.msra.mxu0 0
    %3192 = vmatprep.subr.bf16.mxu0 0
    %3193 = vmatpush1.bf16.msra.mxu0 0
    %3194 = vmatprep.subr.bf16.mxu0 0
    %3195 = vmatpush1.bf16.msra.mxu0 0
    %3196 = vmatprep.mubr.bf16.mxu0 0
    %3197 = vmatmul.mubr.bf16.gmra.mrb[0].mxu0 %v2926
    %v3198 = vpop.f32.mrb[0].mxu0
    %v3199 = vadd.f32 0.0, %v3198
    %v3200 = vpop.f32.mrb[0].mxu0
    %v3201 = vpop.f32.mrb[0].mxu0
    %v3202 = vpop.f32.mrb[0].mxu0
    %3203 = vdwg.mxu0
    %v3220 = vunpack.c.l.b16 %v187
    %v3221 = vunpack.c.l.b16 %v188
    %v3222 = vunpack.c.l.b16 %v189
    %v3223 = vunpack.c.l.b16 %v190
    %v3224 = vunpack.c.l.b16 %v191
    %v3225 = vunpack.c.l.b16 %v192
    %v3226 = vunpack.c.l.b16 %v193
    %v3227 = vunpack.c.l.b16 %v194
    %v3228 = vunpack.c.l.b16 %v195
    %v3229 = vunpack.c.l.b16 %v196
    %v3230 = vunpack.c.l.b16 %v197
    %v3231 = vunpack.c.l.b16 %v198
    %v3232 = vunpack.c.l.b16 %v199
    %v3233 = vunpack.c.l.b16 %v200
    %v3234 = vunpack.c.l.b16 %v201
    %v3235 = vunpack.c.l.b16 %v202
    %v3236 = vpack.c.b16 %v3221, %v3220
    %v3237 = vpack.c.b16 %v3223, %v3222
    %v3238 = vpack.c.b16 %v3225, %v3224
    %v3239 = vpack.c.b16 %v3227, %v3226
    %v3240 = vpack.c.b16 %v3229, %v3228
    %v3241 = vpack.c.b16 %v3231, %v3230
    %v3242 = vpack.c.b16 %v3233, %v3232
    %v3243 = vpack.c.b16 %v3235, %v3234
    %3252 = vmatprep.subr.bf16.mxu0 0
    %3253 = vmatpush1.bf16.msra.mxu0 %v3236
    %3254 = vmatprep.subr.bf16.mxu0 0
    %3255 = vmatpush1.bf16.msra.mxu0 %v3237
    %3256 = vmatprep.subr.bf16.mxu0 0
    %3257 = vmatpush1.bf16.msra.mxu0 %v3238
    %3258 = vmatprep.subr.bf16.mxu0 0
    %3259 = vmatpush1.bf16.msra.mxu0 %v3239
    %3260 = vmatprep.subr.bf16.mxu0 0
    %3261 = vmatpush1.bf16.msra.mxu0 %v3240
    %3262 = vmatprep.subr.bf16.mxu0 0
    %3263 = vmatpush1.bf16.msra.mxu0 %v3241
    %3264 = vmatprep.subr.bf16.mxu0 0
    %3265 = vmatpush1.bf16.msra.mxu0 %v3242
    %3266 = vmatprep.subr.bf16.mxu0 0
    %3267 = vmatpush1.bf16.msra.mxu0 %v3243
    %3268 = vmatprep.subr.bf16.mxu0 0
    %3269 = vmatpush1.bf16.msra.mxu0 0
    %3270 = vmatprep.subr.bf16.mxu0 0
    %3271 = vmatpush1.bf16.msra.mxu0 0
    %3272 = vmatprep.subr.bf16.mxu0 0
    %3273 = vmatpush1.bf16.msra.mxu0 0
    %3274 = vmatprep.subr.bf16.mxu0 0
    %3275 = vmatpush1.bf16.msra.mxu0 0
    %3276 = vmatprep.subr.bf16.mxu0 0
    %3277 = vmatpush1.bf16.msra.mxu0 0
    %3278 = vmatprep.subr.bf16.mxu0 0
    %3279 = vmatpush1.bf16.msra.mxu0 0
    %3280 = vmatprep.subr.bf16.mxu0 0
    %3281 = vmatpush1.bf16.msra.mxu0 0
    %3282 = vmatprep.subr.bf16.mxu0 0
    %3283 = vmatpush1.bf16.msra.mxu0 0
    %3284 = vmatprep.mubr.bf16.mxu0 0
    %3285 = vmatmul.mubr.bf16.gmra.mrb[0].mxu0 %v2927
    %v3286 = vpop.f32.mrb[0].mxu0
    %v3287 = vadd.f32 0.0, %v3286
    %v3288 = vpop.f32.mrb[0].mxu0
    %v3289 = vpop.f32.mrb[0].mxu0
    %v3290 = vpop.f32.mrb[0].mxu0
    %3291 = vdwg.mxu0
    %v3308 = vunpack.c.l.b16 %v203
    %v3309 = vunpack.c.l.b16 %v204
    %v3310 = vunpack.c.l.b16 %v205
    %v3311 = vunpack.c.l.b16 %v206
    %v3312 = vunpack.c.l.b16 %v207
    %v3313 = vunpack.c.l.b16 %v208
    %v3314 = vunpack.c.l.b16 %v209
    %v3315 = vunpack.c.l.b16 %v210
    %v3316 = vunpack.c.l.b16 %v211
    %v3317 = vunpack.c.l.b16 %v212
    %v3318 = vunpack.c.l.b16 %v213
    %v3319 = vunpack.c.l.b16 %v214
    %v3320 = vunpack.c.l.b16 %v215
    %v3321 = vunpack.c.l.b16 %v216
    %v3322 = vunpack.c.l.b16 %v217
    %v3323 = vunpack.c.l.b16 %v218
    %v3324 = vpack.c.b16 %v3309, %v3308
    %v3325 = vpack.c.b16 %v3311, %v3310
    %v3326 = vpack.c.b16 %v3313, %v3312
    %v3327 = vpack.c.b16 %v3315, %v3314
    %v3328 = vpack.c.b16 %v3317, %v3316
    %v3329 = vpack.c.b16 %v3319, %v3318
    %v3330 = vpack.c.b16 %v3321, %v3320
    %v3331 = vpack.c.b16 %v3323, %v3322
    %3340 = vmatprep.subr.bf16.mxu0 0
    %3341 = vmatpush1.bf16.msra.mxu0 %v3324
    %3342 = vmatprep.subr.bf16.mxu0 0
    %3343 = vmatpush1.bf16.msra.mxu0 %v3325
    %3344 = vmatprep.subr.bf16.mxu0 0
    %3345 = vmatpush1.bf16.msra.mxu0 %v3326
    %3346 = vmatprep.subr.bf16.mxu0 0
    %3347 = vmatpush1.bf16.msra.mxu0 %v3327
    %3348 = vmatprep.subr.bf16.mxu0 0
    %3349 = vmatpush1.bf16.msra.mxu0 %v3328
    %3350 = vmatprep.subr.bf16.mxu0 0
    %3351 = vmatpush1.bf16.msra.mxu0 %v3329
    %3352 = vmatprep.subr.bf16.mxu0 0
    %3353 = vmatpush1.bf16.msra.mxu0 %v3330
    %3354 = vmatprep.subr.bf16.mxu0 0
    %3355 = vmatpush1.bf16.msra.mxu0 %v3331
    %3356 = vmatprep.subr.bf16.mxu0 0
    %3357 = vmatpush1.bf16.msra.mxu0 0
    %3358 = vmatprep.subr.bf16.mxu0 0
    %3359 = vmatpush1.bf16.msra.mxu0 0
    %3360 = vmatprep.subr.bf16.mxu0 0
    %3361 = vmatpush1.bf16.msra.mxu0 0
    %3362 = vmatprep.subr.bf16.mxu0 0
    %3363 = vmatpush1.bf16.msra.mxu0 0
    %3364 = vmatprep.subr.bf16.mxu0 0
    %3365 = vmatpush1.bf16.msra.mxu0 0
    %3366 = vmatprep.subr.bf16.mxu0 0
    %3367 = vmatpush1.bf16.msra.mxu0 0
    %3368 = vmatprep.subr.bf16.mxu0 0
    %3369 = vmatpush1.bf16.msra.mxu0 0
    %3370 = vmatprep.subr.bf16.mxu0 0
    %3371 = vmatpush1.bf16.msra.mxu0 0
    %3372 = vmatprep.mubr.bf16.mxu0 0
    %3373 = vmatmul.mubr.bf16.gmra.mrb[0].mxu0 %v2928
    %v3374 = vpop.f32.mrb[0].mxu0
    %v3375 = vadd.f32 0.0, %v3374
    %v3376 = vpop.f32.mrb[0].mxu0
    %v3377 = vpop.f32.mrb[0].mxu0
    %v3378 = vpop.f32.mrb[0].mxu0
    %3379 = vdwg.mxu0
    %v3396 = vunpack.c.l.b16 %v219
    %v3397 = vunpack.c.l.b16 %v220
    %v3398 = vunpack.c.l.b16 %v221
    %v3399 = vunpack.c.l.b16 %v222
    %v3400 = vunpack.c.l.b16 %v223
    %v3401 = vunpack.c.l.b16 %v224
    %v3402 = vunpack.c.l.b16 %v225
    %v3403 = vunpack.c.l.b16 %v226
    %v3404 = vunpack.c.l.b16 %v227
    %v3405 = vunpack.c.l.b16 %v228
    %v3406 = vunpack.c.l.b16 %v229
    %v3407 = vunpack.c.l.b16 %v230
    %v3408 = vunpack.c.l.b16 %v231
    %v3409 = vunpack.c.l.b16 %v232
    %v3410 = vunpack.c.l.b16 %v233
    %v3411 = vunpack.c.l.b16 %v234
    %v3412 = vpack.c.b16 %v3397, %v3396
    %v3413 = vpack.c.b16 %v3399, %v3398
    %v3414 = vpack.c.b16 %v3401, %v3400
    %v3415 = vpack.c.b16 %v3403, %v3402
    %v3416 = vpack.c.b16 %v3405, %v3404
    %v3417 = vpack.c.b16 %v3407, %v3406
    %v3418 = vpack.c.b16 %v3409, %v3408
    %v3419 = vpack.c.b16 %v3411, %v3410
    %3428 = vmatprep.subr.bf16.mxu0 0
    %3429 = vmatpush1.bf16.msra.mxu0 %v3412
    %3430 = vmatprep.subr.bf16.mxu0 0
    %3431 = vmatpush1.bf16.msra.mxu0 %v3413
    %3432 = vmatprep.subr.bf16.mxu0 0
    %3433 = vmatpush1.bf16.msra.mxu0 %v3414
    %3434 = vmatprep.subr.bf16.mxu0 0
    %3435 = vmatpush1.bf16.msra.mxu0 %v3415
    %3436 = vmatprep.subr.bf16.mxu0 0
    %3437 = vmatpush1.bf16.msra.mxu0 %v3416
    %3438 = vmatprep.subr.bf16.mxu0 0
    %3439 = vmatpush1.bf16.msra.mxu0 %v3417
    %3440 = vmatprep.subr.bf16.mxu0 0
    %3441 = vmatpush1.bf16.msra.mxu0 %v3418
    %3442 = vmatprep.subr.bf16.mxu0 0
    %3443 = vmatpush1.bf16.msra.mxu0 %v3419
    %3444 = vmatprep.subr.bf16.mxu0 0
    %3445 = vmatpush1.bf16.msra.mxu0 0
    %3446 = vmatprep.subr.bf16.mxu0 0
    %3447 = vmatpush1.bf16.msra.mxu0 0
    %3448 = vmatprep.subr.bf16.mxu0 0
    %3449 = vmatpush1.bf16.msra.mxu0 0
    %3450 = vmatprep.subr.bf16.mxu0 0
    %3451 = vmatpush1.bf16.msra.mxu0 0
    %3452 = vmatprep.subr.bf16.mxu0 0
    %3453 = vmatpush1.bf16.msra.mxu0 0
    %3454 = vmatprep.subr.bf16.mxu0 0
    %3455 = vmatpush1.bf16.msra.mxu0 0
    %3456 = vmatprep.subr.bf16.mxu0 0
    %3457 = vmatpush1.bf16.msra.mxu0 0
    %3458 = vmatprep.subr.bf16.mxu0 0
    %3459 = vmatpush1.bf16.msra.mxu0 0
    %3460 = vmatprep.mubr.bf16.mxu0 0
    %3461 = vmatmul.mubr.bf16.gmra.mrb[0].mxu0 %v2929
    %v3462 = vpop.f32.mrb[0].mxu0
    %v3463 = vadd.f32 0.0, %v3462
    %v3464 = vpop.f32.mrb[0].mxu0
    %v3465 = vpop.f32.mrb[0].mxu0
    %v3466 = vpop.f32.mrb[0].mxu0
    %3467 = vdwg.mxu0
    %v3484 = vunpack.c.l.b16 %v235
    %v3485 = vunpack.c.l.b16 %v236
    %v3486 = vunpack.c.l.b16 %v237
    %v3487 = vunpack.c.l.b16 %v238
    %v3488 = vunpack.c.l.b16 %v239
    %v3489 = vunpack.c.l.b16 %v240
    %v3490 = vunpack.c.l.b16 %v241
    %v3491 = vunpack.c.l.b16 %v242
    %v3492 = vunpack.c.l.b16 %v243
    %v3493 = vunpack.c.l.b16 %v244
    %v3494 = vunpack.c.l.b16 %v245
    %v3495 = vunpack.c.l.b16 %v246
    %v3496 = vunpack.c.l.b16 %v247
    %v3497 = vunpack.c.l.b16 %v248
    %v3498 = vunpack.c.l.b16 %v249
    %v3499 = vunpack.c.l.b16 %v250
    %v3500 = vpack.c.b16 %v3485, %v3484
    %v3501 = vpack.c.b16 %v3487, %v3486
    %v3502 = vpack.c.b16 %v3489, %v3488
    %v3503 = vpack.c.b16 %v3491, %v3490
    %v3504 = vpack.c.b16 %v3493, %v3492
    %v3505 = vpack.c.b16 %v3495, %v3494
    %v3506 = vpack.c.b16 %v3497, %v3496
    %v3507 = vpack.c.b16 %v3499, %v3498
    %3516 = vmatprep.subr.bf16.mxu0 0
    %3517 = vmatpush1.bf16.msra.mxu0 %v3500
    %3518 = vmatprep.subr.bf16.mxu0 0
    %3519 = vmatpush1.bf16.msra.mxu0 %v3501
    %3520 = vmatprep.subr.bf16.mxu0 0
    %3521 = vmatpush1.bf16.msra.mxu0 %v3502
    %3522 = vmatprep.subr.bf16.mxu0 0
    %3523 = vmatpush1.bf16.msra.mxu0 %v3503
    %3524 = vmatprep.subr.bf16.mxu0 0
    %3525 = vmatpush1.bf16.msra.mxu0 %v3504
    %3526 = vmatprep.subr.bf16.mxu0 0
    %3527 = vmatpush1.bf16.msra.mxu0 %v3505
    %3528 = vmatprep.subr.bf16.mxu0 0
    %3529 = vmatpush1.bf16.msra.mxu0 %v3506
    %3530 = vmatprep.subr.bf16.mxu0 0
    %3531 = vmatpush1.bf16.msra.mxu0 %v3507
    %3532 = vmatprep.subr.bf16.mxu0 0
    %3533 = vmatpush1.bf16.msra.mxu0 0
    %3534 = vmatprep.subr.bf16.mxu0 0
    %3535 = vmatpush1.bf16.msra.mxu0 0
    %3536 = vmatprep.subr.bf16.mxu0 0
    %3537 = vmatpush1.bf16.msra.mxu0 0
    %3538 = vmatprep.subr.bf16.mxu0 0
    %3539 = vmatpush1.bf16.msra.mxu0 0
    %3540 = vmatprep.subr.bf16.mxu0 0
    %3541 = vmatpush1.bf16.msra.mxu0 0
    %3542 = vmatprep.subr.bf16.mxu0 0
    %3543 = vmatpush1.bf16.msra.mxu0 0
    %3544 = vmatprep.subr.bf16.mxu0 0
    %3545 = vmatpush1.bf16.msra.mxu0 0
    %3546 = vmatprep.subr.bf16.mxu0 0
    %3547 = vmatpush1.bf16.msra.mxu0 0
    %3548 = vmatprep.mubr.bf16.mxu0 0
    %3549 = vmatmul.mubr.bf16.gmra.mrb[0].mxu0 %v2930
    %v3550 = vpop.f32.mrb[0].mxu0
    %v3551 = vadd.f32 0.0, %v3550
    %v3552 = vpop.f32.mrb[0].mxu0
    %v3553 = vpop.f32.mrb[0].mxu0
    %v3554 = vpop.f32.mrb[0].mxu0
    %3555 = vdwg.mxu0
    %v3572 = vunpack.c.l.b16 %v251
    %v3573 = vunpack.c.l.b16 %v252
    %v3574 = vunpack.c.l.b16 %v253
    %v3575 = vunpack.c.l.b16 %v254
    %v3576 = vunpack.c.l.b16 %v255
    %v3577 = vunpack.c.l.b16 %v256
    %v3578 = vunpack.c.l.b16 %v257
    %v3579 = vunpack.c.l.b16 %v258
    %v3580 = vunpack.c.l.b16 %v259
    %v3581 = vunpack.c.l.b16 %v260
    %v3582 = vunpack.c.l.b16 %v261
    %v3583 = vunpack.c.l.b16 %v262
    %v3584 = vunpack.c.l.b16 %v263
    %v3585 = vunpack.c.l.b16 %v264
    %v3586 = vunpack.c.l.b16 %v265
    %v3587 = vunpack.c.l.b16 %v266
    %v3588 = vpack.c.b16 %v3573, %v3572
    %v3589 = vpack.c.b16 %v3575, %v3574
    %v3590 = vpack.c.b16 %v3577, %v3576
    %v3591 = vpack.c.b16 %v3579, %v3578
    %v3592 = vpack.c.b16 %v3581, %v3580
    %v3593 = vpack.c.b16 %v3583, %v3582
    %v3594 = vpack.c.b16 %v3585, %v3584
    %v3595 = vpack.c.b16 %v3587, %v3586
    %3604 = vmatprep.subr.bf16.mxu0 0
    %3605 = vmatpush1.bf16.msra.mxu0 %v3588
    %3606 = vmatprep.subr.bf16.mxu0 0
    %3607 = vmatpush1.bf16.msra.mxu0 %v3589
    %3608 = vmatprep.subr.bf16.mxu0 0
    %3609 = vmatpush1.bf16.msra.mxu0 %v3590
    %3610 = vmatprep.subr.bf16.mxu0 0
    %3611 = vmatpush1.bf16.msra.mxu0 %v3591
    %3612 = vmatprep.subr.bf16.mxu0 0
    %3613 = vmatpush1.bf16.msra.mxu0 %v3592
    %3614 = vmatprep.subr.bf16.mxu0 0
    %3615 = vmatpush1.bf16.msra.mxu0 %v3593
    %3616 = vmatprep.subr.bf16.mxu0 0
    %3617 = vmatpush1.bf16.msra.mxu0 %v3594
    %3618 = vmatprep.subr.bf16.mxu0 0
    %3619 = vmatpush1.bf16.msra.mxu0 %v3595
    %3620 = vmatprep.subr.bf16.mxu0 0
    %3621 = vmatpush1.bf16.msra.mxu0 0
    %3622 = vmatprep.subr.bf16.mxu0 0
    %3623 = vmatpush1.bf16.msra.mxu0 0
    %3624 = vmatprep.subr.bf16.mxu0 0
    %3625 = vmatpush1.bf16.msra.mxu0 0
    %3626 = vmatprep.subr.bf16.mxu0 0
    %3627 = vmatpush1.bf16.msra.mxu0 0
    %3628 = vmatprep.subr.bf16.mxu0 0
    %3629 = vmatpush1.bf16.msra.mxu0 0
    %3630 = vmatprep.subr.bf16.mxu0 0
    %3631 = vmatpush1.bf16.msra.mxu0 0
    %3632 = vmatprep.subr.bf16.mxu0 0
    %3633 = vmatpush1.bf16.msra.mxu0 0
    %3634 = vmatprep.subr.bf16.mxu0 0
    %3635 = vmatpush1.bf16.msra.mxu0 0
    %3636 = vmatprep.mubr.bf16.mxu0 0
    %3637 = vmatmul.mubr.bf16.gmra.mrb[0].mxu0 %v2931
    %v3638 = vpop.f32.mrb[0].mxu0
    %v3639 = vadd.f32 0.0, %v3638
    %v3640 = vpop.f32.mrb[0].mxu0
    %v3641 = vpop.f32.mrb[0].mxu0
    %v3642 = vpop.f32.mrb[0].mxu0
    %3643 = vdwg.mxu0
    %v3660 = vunpack.c.l.b16 %v267
    %v3661 = vunpack.c.l.b16 %v268
    %v3662 = vunpack.c.l.b16 %v269
    %v3663 = vunpack.c.l.b16 %v270
    %v3664 = vunpack.c.l.b16 %v271
    %v3665 = vunpack.c.l.b16 %v272
    %v3666 = vunpack.c.l.b16 %v273
    %v3667 = vunpack.c.l.b16 %v274
    %v3668 = vunpack.c.l.b16 %v275
    %v3669 = vunpack.c.l.b16 %v276
    %v3670 = vunpack.c.l.b16 %v277
    %v3671 = vunpack.c.l.b16 %v278
    %v3672 = vunpack.c.l.b16 %v279
    %v3673 = vunpack.c.l.b16 %v280
    %v3674 = vunpack.c.l.b16 %v281
    %v3675 = vunpack.c.l.b16 %v282
    %v3676 = vpack.c.b16 %v3661, %v3660
    %v3677 = vpack.c.b16 %v3663, %v3662
    %v3678 = vpack.c.b16 %v3665, %v3664
    %v3679 = vpack.c.b16 %v3667, %v3666
    %v3680 = vpack.c.b16 %v3669, %v3668
    %v3681 = vpack.c.b16 %v3671, %v3670
    %v3682 = vpack.c.b16 %v3673, %v3672
    %v3683 = vpack.c.b16 %v3675, %v3674
    %3692 = vmatprep.subr.bf16.mxu0 0
    %3693 = vmatpush1.bf16.msra.mxu0 %v3676
    %3694 = vmatprep.subr.bf16.mxu0 0
    %3695 = vmatpush1.bf16.msra.mxu0 %v3677
    %3696 = vmatprep.subr.bf16.mxu0 0
    %3697 = vmatpush1.bf16.msra.mxu0 %v3678
    %3698 = vmatprep.subr.bf16.mxu0 0
    %3699 = vmatpush1.bf16.msra.mxu0 %v3679
    %3700 = vmatprep.subr.bf16.mxu0 0
    %3701 = vmatpush1.bf16.msra.mxu0 %v3680
    %3702 = vmatprep.subr.bf16.mxu0 0
    %3703 = vmatpush1.bf16.msra.mxu0 %v3681
    %3704 = vmatprep.subr.bf16.mxu0 0
    %3705 = vmatpush1.bf16.msra.mxu0 %v3682
    %3706 = vmatprep.subr.bf16.mxu0 0
    %3707 = vmatpush1.bf16.msra.mxu0 %v3683
    %3708 = vmatprep.subr.bf16.mxu0 0
    %3709 = vmatpush1.bf16.msra.mxu0 0
    %3710 = vmatprep.subr.bf16.mxu0 0
    %3711 = vmatpush1.bf16.msra.mxu0 0
    %3712 = vmatprep.subr.bf16.mxu0 0
    %3713 = vmatpush1.bf16.msra.mxu0 0
    %3714 = vmatprep.subr.bf16.mxu0 0
    %3715 = vmatpush1.bf16.msra.mxu0 0
    %3716 = vmatprep.subr.bf16.mxu0 0
    %3717 = vmatpush1.bf16.msra.mxu0 0
    %3718 = vmatprep.subr.bf16.mxu0 0
    %3719 = vmatpush1.bf16.msra.mxu0 0
    %3720 = vmatprep.subr.bf16.mxu0 0
    %3721 = vmatpush1.bf16.msra.mxu0 0
    %3722 = vmatprep.subr.bf16.mxu0 0
    %3723 = vmatpush1.bf16.msra.mxu0 0
    %3724 = vmatprep.mubr.bf16.mxu0 0
    %3725 = vmatmul.mubr.bf16.gmra.mrb[0].mxu0 %v2932
    %v3726 = vpop.f32.mrb[0].mxu0
    %v3727 = vadd.f32 0.0, %v3726
    %v3728 = vpop.f32.mrb[0].mxu0
    %v3729 = vpop.f32.mrb[0].mxu0
    %v3730 = vpop.f32.mrb[0].mxu0
    %3731 = vdwg.mxu0
    %v3748 = vunpack.c.l.b16 %v283
    %v3749 = vunpack.c.l.b16 %v284
    %v3750 = vunpack.c.l.b16 %v285
    %v3751 = vunpack.c.l.b16 %v286
    %v3752 = vunpack.c.l.b16 %v287
    %v3753 = vunpack.c.l.b16 %v288
    %v3754 = vunpack.c.l.b16 %v289
    %v3755 = vunpack.c.l.b16 %v290
    %v3756 = vunpack.c.l.b16 %v291
    %v3757 = vunpack.c.l.b16 %v292
    %v3758 = vunpack.c.l.b16 %v293
    %v3759 = vunpack.c.l.b16 %v294
    %v3760 = vunpack.c.l.b16 %v295
    %v3761 = vunpack.c.l.b16 %v296
    %v3762 = vunpack.c.l.b16 %v297
    %v3763 = vunpack.c.l.b16 %v298
    %v3764 = vpack.c.b16 %v3749, %v3748
    %v3765 = vpack.c.b16 %v3751, %v3750
    %v3766 = vpack.c.b16 %v3753, %v3752
    %v3767 = vpack.c.b16 %v3755, %v3754
    %v3768 = vpack.c.b16 %v3757, %v3756
    %v3769 = vpack.c.b16 %v3759, %v3758
    %v3770 = vpack.c.b16 %v3761, %v3760
    %v3771 = vpack.c.b16 %v3763, %v3762
    %3780 = vmatprep.subr.bf16.mxu0 0
    %3781 = vmatpush1.bf16.msra.mxu0 %v3764
    %3782 = vmatprep.subr.bf16.mxu0 0
    %3783 = vmatpush1.bf16.msra.mxu0 %v3765
    %3784 = vmatprep.subr.bf16.mxu0 0
    %3785 = vmatpush1.bf16.msra.mxu0 %v3766
    %3786 = vmatprep.subr.bf16.mxu0 0
    %3787 = vmatpush1.bf16.msra.mxu0 %v3767
    %3788 = vmatprep.subr.bf16.mxu0 0
    %3789 = vmatpush1.bf16.msra.mxu0 %v3768
    %3790 = vmatprep.subr.bf16.mxu0 0
    %3791 = vmatpush1.bf16.msra.mxu0 %v3769
    %3792 = vmatprep.subr.bf16.mxu0 0
    %3793 = vmatpush1.bf16.msra.mxu0 %v3770
    %3794 = vmatprep.subr.bf16.mxu0 0
    %3795 = vmatpush1.bf16.msra.mxu0 %v3771
    %3796 = vmatprep.subr.bf16.mxu0 0
    %3797 = vmatpush1.bf16.msra.mxu0 0
    %3798 = vmatprep.subr.bf16.mxu0 0
    %3799 = vmatpush1.bf16.msra.mxu0 0
    %3800 = vmatprep.subr.bf16.mxu0 0
    %3801 = vmatpush1.bf16.msra.mxu0 0
    %3802 = vmatprep.subr.bf16.mxu0 0
    %3803 = vmatpush1.bf16.msra.mxu0 0
    %3804 = vmatprep.subr.bf16.mxu0 0
    %3805 = vmatpush1.bf16.msra.mxu0 0
    %3806 = vmatprep.subr.bf16.mxu0 0
    %3807 = vmatpush1.bf16.msra.mxu0 0
    %3808 = vmatprep.subr.bf16.mxu0 0
    %3809 = vmatpush1.bf16.msra.mxu0 0
    %3810 = vmatprep.subr.bf16.mxu0 0
    %3811 = vmatpush1.bf16.msra.mxu0 0
    %3812 = vmatprep.mubr.bf16.mxu0 0
    %3813 = vmatmul.mubr.bf16.gmra.mrb[0].mxu0 %v2933
    %v3814 = vpop.f32.mrb[0].mxu0
    %v3815 = vadd.f32 0.0, %v3814
    %v3816 = vpop.f32.mrb[0].mxu0
    %v3817 = vpop.f32.mrb[0].mxu0
    %v3818 = vpop.f32.mrb[0].mxu0
    %3819 = vdwg.mxu0
    %v3836 = vunpack.c.l.b16 %v299
    %v3837 = vunpack.c.l.b16 %v300
    %v3838 = vunpack.c.l.b16 %v301
    %v3839 = vunpack.c.l.b16 %v302
    %v3840 = vunpack.c.l.b16 %v303
    %v3841 = vunpack.c.l.b16 %v304
    %v3842 = vunpack.c.l.b16 %v305
    %v3843 = vunpack.c.l.b16 %v306
    %v3844 = vunpack.c.l.b16 %v307
    %v3845 = vunpack.c.l.b16 %v308
    %v3846 = vunpack.c.l.b16 %v309
    %v3847 = vunpack.c.l.b16 %v310
    %v3848 = vunpack.c.l.b16 %v311
    %v3849 = vunpack.c.l.b16 %v312
    %v3850 = vunpack.c.l.b16 %v313
    %v3851 = vunpack.c.l.b16 %v314
    %v3852 = vpack.c.b16 %v3837, %v3836
    %v3853 = vpack.c.b16 %v3839, %v3838
    %v3854 = vpack.c.b16 %v3841, %v3840
    %v3855 = vpack.c.b16 %v3843, %v3842
    %v3856 = vpack.c.b16 %v3845, %v3844
    %v3857 = vpack.c.b16 %v3847, %v3846
    %v3858 = vpack.c.b16 %v3849, %v3848
    %v3859 = vpack.c.b16 %v3851, %v3850
    %3868 = vmatprep.subr.bf16.mxu0 0
    %3869 = vmatpush1.bf16.msra.mxu0 %v3852
    %3870 = vmatprep.subr.bf16.mxu0 0
    %3871 = vmatpush1.bf16.msra.mxu0 %v3853
    %3872 = vmatprep.subr.bf16.mxu0 0
    %3873 = vmatpush1.bf16.msra.mxu0 %v3854
    %3874 = vmatprep.subr.bf16.mxu0 0
    %3875 = vmatpush1.bf16.msra.mxu0 %v3855
    %3876 = vmatprep.subr.bf16.mxu0 0
    %3877 = vmatpush1.bf16.msra.mxu0 %v3856
    %3878 = vmatprep.subr.bf16.mxu0 0
    %3879 = vmatpush1.bf16.msra.mxu0 %v3857
    %3880 = vmatprep.subr.bf16.mxu0 0
    %3881 = vmatpush1.bf16.msra.mxu0 %v3858
    %3882 = vmatprep.subr.bf16.mxu0 0
    %3883 = vmatpush1.bf16.msra.mxu0 %v3859
    %3884 = vmatprep.subr.bf16.mxu0 0
    %3885 = vmatpush1.bf16.msra.mxu0 0
    %3886 = vmatprep.subr.bf16.mxu0 0
    %3887 = vmatpush1.bf16.msra.mxu0 0
    %3888 = vmatprep.subr.bf16.mxu0 0
    %3889 = vmatpush1.bf16.msra.mxu0 0
    %3890 = vmatprep.subr.bf16.mxu0 0
    %3891 = vmatpush1.bf16.msra.mxu0 0
    %3892 = vmatprep.subr.bf16.mxu0 0
    %3893 = vmatpush1.bf16.msra.mxu0 0
    %3894 = vmatprep.subr.bf16.mxu0 0
    %3895 = vmatpush1.bf16.msra.mxu0 0
    %3896 = vmatprep.subr.bf16.mxu0 0
    %3897 = vmatpush1.bf16.msra.mxu0 0
    %3898 = vmatprep.subr.bf16.mxu0 0
    %3899 = vmatpush1.bf16.msra.mxu0 0
    %3900 = vmatprep.mubr.bf16.mxu0 0
    %3901 = vmatmul.mubr.bf16.gmra.mrb[0].mxu0 %v2934
    %v3902 = vpop.f32.mrb[0].mxu0
    %v3903 = vadd.f32 0.0, %v3902
    %v3904 = vpop.f32.mrb[0].mxu0
    %v3905 = vpop.f32.mrb[0].mxu0
    %v3906 = vpop.f32.mrb[0].mxu0
    %3907 = vdwg.mxu0
    %v3924 = vunpack.c.l.b16 %v315
    %v3925 = vunpack.c.l.b16 %v316
    %v3926 = vunpack.c.l.b16 %v317
    %v3927 = vunpack.c.l.b16 %v318
    %v3928 = vunpack.c.l.b16 %v319
    %v3929 = vunpack.c.l.b16 %v320
    %v3930 = vunpack.c.l.b16 %v321
    %v3931 = vunpack.c.l.b16 %v322
    %v3932 = vunpack.c.l.b16 %v323
    %v3933 = vunpack.c.l.b16 %v324
    %v3934 = vunpack.c.l.b16 %v325
    %v3935 = vunpack.c.l.b16 %v326
    %v3936 = vunpack.c.l.b16 %v327
    %v3937 = vunpack.c.l.b16 %v328
    %v3938 = vunpack.c.l.b16 %v329
    %v3939 = vunpack.c.l.b16 %v330
    %v3940 = vpack.c.b16 %v3925, %v3924
    %v3941 = vpack.c.b16 %v3927, %v3926
    %v3942 = vpack.c.b16 %v3929, %v3928
    %v3943 = vpack.c.b16 %v3931, %v3930
    %v3944 = vpack.c.b16 %v3933, %v3932
    %v3945 = vpack.c.b16 %v3935, %v3934
    %v3946 = vpack.c.b16 %v3937, %v3936
    %v3947 = vpack.c.b16 %v3939, %v3938
    %3956 = vmatprep.subr.bf16.mxu0 0
    %3957 = vmatpush1.bf16.msra.mxu0 %v3940
    %3958 = vmatprep.subr.bf16.mxu0 0
    %3959 = vmatpush1.bf16.msra.mxu0 %v3941
    %3960 = vmatprep.subr.bf16.mxu0 0
    %3961 = vmatpush1.bf16.msra.mxu0 %v3942
    %3962 = vmatprep.subr.bf16.mxu0 0
    %3963 = vmatpush1.bf16.msra.mxu0 %v3943
    %3964 = vmatprep.subr.bf16.mxu0 0
    %3965 = vmatpush1.bf16.msra.mxu0 %v3944
    %3966 = vmatprep.subr.bf16.mxu0 0
    %3967 = vmatpush1.bf16.msra.mxu0 %v3945
    %3968 = vmatprep.subr.bf16.mxu0 0
    %3969 = vmatpush1.bf16.msra.mxu0 %v3946
    %3970 = vmatprep.subr.bf16.mxu0 0
    %3971 = vmatpush1.bf16.msra.mxu0 %v3947
    %3972 = vmatprep.subr.bf16.mxu0 0
    %3973 = vmatpush1.bf16.msra.mxu0 0
    %3974 = vmatprep.subr.bf16.mxu0 0
    %3975 = vmatpush1.bf16.msra.mxu0 0
    %3976 = vmatprep.subr.bf16.mxu0 0
    %3977 = vmatpush1.bf16.msra.mxu0 0
    %3978 = vmatprep.subr.bf16.mxu0 0
    %3979 = vmatpush1.bf16.msra.mxu0 0
    %3980 = vmatprep.subr.bf16.mxu0 0
    %3981 = vmatpush1.bf16.msra.mxu0 0
    %3982 = vmatprep.subr.bf16.mxu0 0
    %3983 = vmatpush1.bf16.msra.mxu0 0
    %3984 = vmatprep.subr.bf16.mxu0 0
    %3985 = vmatpush1.bf16.msra.mxu0 0
    %3986 = vmatprep.subr.bf16.mxu0 0
    %3987 = vmatpush1.bf16.msra.mxu0 0
    %3988 = vmatprep.mubr.bf16.mxu0 0
    %3989 = vmatmul.mubr.bf16.gmra.mrb[0].mxu0 %v2935
    %v3990 = vpop.f32.mrb[0].mxu0
    %v3991 = vadd.f32 0.0, %v3990
    %v3992 = vpop.f32.mrb[0].mxu0
    %v3993 = vpop.f32.mrb[0].mxu0
    %v3994 = vpop.f32.mrb[0].mxu0
    %3995 = vdwg.mxu0
    %v4012 = vunpack.c.l.b16 %v331
    %v4013 = vunpack.c.l.b16 %v332
    %v4014 = vunpack.c.l.b16 %v333
    %v4015 = vunpack.c.l.b16 %v334
    %v4016 = vunpack.c.l.b16 %v335
    %v4017 = vunpack.c.l.b16 %v336
    %v4018 = vunpack.c.l.b16 %v337
    %v4019 = vunpack.c.l.b16 %v338
    %v4020 = vunpack.c.l.b16 %v339
    %v4021 = vunpack.c.l.b16 %v340
    %v4022 = vunpack.c.l.b16 %v341
    %v4023 = vunpack.c.l.b16 %v342
    %v4024 = vunpack.c.l.b16 %v343
    %v4025 = vunpack.c.l.b16 %v344
    %v4026 = vunpack.c.l.b16 %v345
    %v4027 = vunpack.c.l.b16 %v346
    %v4028 = vpack.c.b16 %v4013, %v4012
    %v4029 = vpack.c.b16 %v4015, %v4014
    %v4030 = vpack.c.b16 %v4017, %v4016
    %v4031 = vpack.c.b16 %v4019, %v4018
    %v4032 = vpack.c.b16 %v4021, %v4020
    %v4033 = vpack.c.b16 %v4023, %v4022
    %v4034 = vpack.c.b16 %v4025, %v4024
    %v4035 = vpack.c.b16 %v4027, %v4026
    %4044 = vmatprep.subr.bf16.mxu0 0
    %4045 = vmatpush1.bf16.msra.mxu0 %v4028
    %4046 = vmatprep.subr.bf16.mxu0 0
    %4047 = vmatpush1.bf16.msra.mxu0 %v4029
    %4048 = vmatprep.subr.bf16.mxu0 0
    %4049 = vmatpush1.bf16.msra.mxu0 %v4030
    %4050 = vmatprep.subr.bf16.mxu0 0
    %4051 = vmatpush1.bf16.msra.mxu0 %v4031
    %4052 = vmatprep.subr.bf16.mxu0 0
    %4053 = vmatpush1.bf16.msra.mxu0 %v4032
    %4054 = vmatprep.subr.bf16.mxu0 0
    %4055 = vmatpush1.bf16.msra.mxu0 %v4033
    %4056 = vmatprep.subr.bf16.mxu0 0
    %4057 = vmatpush1.bf16.msra.mxu0 %v4034
    %4058 = vmatprep.subr.bf16.mxu0 0
    %4059 = vmatpush1.bf16.msra.mxu0 %v4035
    %4060 = vmatprep.subr.bf16.mxu0 0
    %4061 = vmatpush1.bf16.msra.mxu0 0
    %4062 = vmatprep.subr.bf16.mxu0 0
    %4063 = vmatpush1.bf16.msra.mxu0 0
    %4064 = vmatprep.subr.bf16.mxu0 0
    %4065 = vmatpush1.bf16.msra.mxu0 0
    %4066 = vmatprep.subr.bf16.mxu0 0
    %4067 = vmatpush1.bf16.msra.mxu0 0
    %4068 = vmatprep.subr.bf16.mxu0 0
    %4069 = vmatpush1.bf16.msra.mxu0 0
    %4070 = vmatprep.subr.bf16.mxu0 0
    %4071 = vmatpush1.bf16.msra.mxu0 0
    %4072 = vmatprep.subr.bf16.mxu0 0
    %4073 = vmatpush1.bf16.msra.mxu0 0
    %4074 = vmatprep.subr.bf16.mxu0 0
    %4075 = vmatpush1.bf16.msra.mxu0 0
    %4076 = vmatprep.mubr.bf16.mxu0 0
    %4077 = vmatmul.mubr.bf16.gmra.mrb[0].mxu0 %v2936
    %v4078 = vpop.f32.mrb[0].mxu0
    %v4079 = vadd.f32 0.0, %v4078
    %v4080 = vpop.f32.mrb[0].mxu0
    %v4081 = vpop.f32.mrb[0].mxu0
    %v4082 = vpop.f32.mrb[0].mxu0
    %4083 = vdwg.mxu0
    %v4100 = vunpack.c.l.b16 %v347
    %v4101 = vunpack.c.l.b16 %v348
    %v4102 = vunpack.c.l.b16 %v349
    %v4103 = vunpack.c.l.b16 %v350
    %v4104 = vunpack.c.l.b16 %v351
    %v4105 = vunpack.c.l.b16 %v352
    %v4106 = vunpack.c.l.b16 %v353
    %v4107 = vunpack.c.l.b16 %v354
    %v4108 = vunpack.c.l.b16 %v355
    %v4109 = vunpack.c.l.b16 %v356
    %v4110 = vunpack.c.l.b16 %v357
    %v4111 = vunpack.c.l.b16 %v358
    %v4112 = vunpack.c.l.b16 %v359
    %v4113 = vunpack.c.l.b16 %v360
    %v4114 = vunpack.c.l.b16 %v361
    %v4115 = vunpack.c.l.b16 %v362
    %v4116 = vpack.c.b16 %v4101, %v4100
    %v4117 = vpack.c.b16 %v4103, %v4102
    %v4118 = vpack.c.b16 %v4105, %v4104
    %v4119 = vpack.c.b16 %v4107, %v4106
    %v4120 = vpack.c.b16 %v4109, %v4108
    %v4121 = vpack.c.b16 %v4111, %v4110
    %v4122 = vpack.c.b16 %v4113, %v4112
    %v4123 = vpack.c.b16 %v4115, %v4114
    %4132 = vmatprep.subr.bf16.mxu0 0
    %4133 = vmatpush1.bf16.msra.mxu0 %v4116
    %4134 = vmatprep.subr.bf16.mxu0 0
    %4135 = vmatpush1.bf16.msra.mxu0 %v4117
    %4136 = vmatprep.subr.bf16.mxu0 0
    %4137 = vmatpush1.bf16.msra.mxu0 %v4118
    %4138 = vmatprep.subr.bf16.mxu0 0
    %4139 = vmatpush1.bf16.msra.mxu0 %v4119
    %4140 = vmatprep.subr.bf16.mxu0 0
    %4141 = vmatpush1.bf16.msra.mxu0 %v4120
    %4142 = vmatprep.subr.bf16.mxu0 0
    %4143 = vmatpush1.bf16.msra.mxu0 %v4121
    %4144 = vmatprep.subr.bf16.mxu0 0
    %4145 = vmatpush1.bf16.msra.mxu0 %v4122
    %4146 = vmatprep.subr.bf16.mxu0 0
    %4147 = vmatpush1.bf16.msra.mxu0 %v4123
    %4148 = vmatprep.subr.bf16.mxu0 0
    %4149 = vmatpush1.bf16.msra.mxu0 0
    %4150 = vmatprep.subr.bf16.mxu0 0
    %4151 = vmatpush1.bf16.msra.mxu0 0
    %4152 = vmatprep.subr.bf16.mxu0 0
    %4153 = vmatpush1.bf16.msra.mxu0 0
    %4154 = vmatprep.subr.bf16.mxu0 0
    %4155 = vmatpush1.bf16.msra.mxu0 0
    %4156 = vmatprep.subr.bf16.mxu0 0
    %4157 = vmatpush1.bf16.msra.mxu0 0
    %4158 = vmatprep.subr.bf16.mxu0 0
    %4159 = vmatpush1.bf16.msra.mxu0 0
    %4160 = vmatprep.subr.bf16.mxu0 0
    %4161 = vmatpush1.bf16.msra.mxu0 0
    %4162 = vmatprep.subr.bf16.mxu0 0
    %4163 = vmatpush1.bf16.msra.mxu0 0
    %4164 = vmatprep.mubr.bf16.mxu0 0
    %4165 = vmatmul.mubr.bf16.gmra.mrb[0].mxu0 %v2937
    %v4166 = vpop.f32.mrb[0].mxu0
    %v4167 = vadd.f32 0.0, %v4166
    %v4168 = vpop.f32.mrb[0].mxu0
    %v4169 = vpop.f32.mrb[0].mxu0
    %v4170 = vpop.f32.mrb[0].mxu0
    %4171 = vdwg.mxu0
    %v4188 = vunpack.c.l.b16 %v363
    %v4189 = vunpack.c.l.b16 %v364
    %v4190 = vunpack.c.l.b16 %v365
    %v4191 = vunpack.c.l.b16 %v366
    %v4192 = vunpack.c.l.b16 %v367
    %v4193 = vunpack.c.l.b16 %v368
    %v4194 = vunpack.c.l.b16 %v369
    %v4195 = vunpack.c.l.b16 %v370
    %v4196 = vunpack.c.l.b16 %v371
    %v4197 = vunpack.c.l.b16 %v372
    %v4198 = vunpack.c.l.b16 %v373
    %v4199 = vunpack.c.l.b16 %v374
    %v4200 = vunpack.c.l.b16 %v375
    %v4201 = vunpack.c.l.b16 %v376
    %v4202 = vunpack.c.l.b16 %v377
    %v4203 = vunpack.c.l.b16 %v378
    %v4204 = vpack.c.b16 %v4189, %v4188
    %v4205 = vpack.c.b16 %v4191, %v4190
    %v4206 = vpack.c.b16 %v4193, %v4192
    %v4207 = vpack.c.b16 %v4195, %v4194
    %v4208 = vpack.c.b16 %v4197, %v4196
    %v4209 = vpack.c.b16 %v4199, %v4198
    %v4210 = vpack.c.b16 %v4201, %v4200
    %v4211 = vpack.c.b16 %v4203, %v4202
    %4220 = vmatprep.subr.bf16.mxu0 0
    %4221 = vmatpush1.bf16.msra.mxu0 %v4204
    %4222 = vmatprep.subr.bf16.mxu0 0
    %4223 = vmatpush1.bf16.msra.mxu0 %v4205
    %4224 = vmatprep.subr.bf16.mxu0 0
    %4225 = vmatpush1.bf16.msra.mxu0 %v4206
    %4226 = vmatprep.subr.bf16.mxu0 0
    %4227 = vmatpush1.bf16.msra.mxu0 %v4207
    %4228 = vmatprep.subr.bf16.mxu0 0
    %4229 = vmatpush1.bf16.msra.mxu0 %v4208
    %4230 = vmatprep.subr.bf16.mxu0 0
    %4231 = vmatpush1.bf16.msra.mxu0 %v4209
    %4232 = vmatprep.subr.bf16.mxu0 0
    %4233 = vmatpush1.bf16.msra.mxu0 %v4210
    %4234 = vmatprep.subr.bf16.mxu0 0
    %4235 = vmatpush1.bf16.msra.mxu0 %v4211
    %4236 = vmatprep.subr.bf16.mxu0 0
    %4237 = vmatpush1.bf16.msra.mxu0 0
    %4238 = vmatprep.subr.bf16.mxu0 0
    %4239 = vmatpush1.bf16.msra.mxu0 0
    %4240 = vmatprep.subr.bf16.mxu0 0
    %4241 = vmatpush1.bf16.msra.mxu0 0
    %4242 = vmatprep.subr.bf16.mxu0 0
    %4243 = vmatpush1.bf16.msra.mxu0 0
    %4244 = vmatprep.subr.bf16.mxu0 0
    %4245 = vmatpush1.bf16.msra.mxu0 0
    %4246 = vmatprep.subr.bf16.mxu0 0
    %4247 = vmatpush1.bf16.msra.mxu0 0
    %4248 = vmatprep.subr.bf16.mxu0 0
    %4249 = vmatpush1.bf16.msra.mxu0 0
    %4250 = vmatprep.subr.bf16.mxu0 0
    %4251 = vmatpush1.bf16.msra.mxu0 0
    %4252 = vmatprep.mubr.bf16.mxu0 0
    %4253 = vmatmul.mubr.bf16.gmra.mrb[0].mxu0 %v2938
    %v4254 = vpop.f32.mrb[0].mxu0
    %v4255 = vadd.f32 0.0, %v4254
    %v4256 = vpop.f32.mrb[0].mxu0
    %v4257 = vpop.f32.mrb[0].mxu0
    %v4258 = vpop.f32.mrb[0].mxu0
    %4259 = vdwg.mxu0
    %v4276 = vunpack.c.l.b16 %v379
    %v4277 = vunpack.c.l.b16 %v380
    %v4278 = vunpack.c.l.b16 %v381
    %v4279 = vunpack.c.l.b16 %v382
    %v4280 = vunpack.c.l.b16 %v383
    %v4281 = vunpack.c.l.b16 %v384
    %v4282 = vunpack.c.l.b16 %v385
    %v4283 = vunpack.c.l.b16 %v386
    %v4284 = vunpack.c.l.b16 %v387
    %v4285 = vunpack.c.l.b16 %v388
    %v4286 = vunpack.c.l.b16 %v389
    %v4287 = vunpack.c.l.b16 %v390
    %v4288 = vunpack.c.l.b16 %v391
    %v4289 = vunpack.c.l.b16 %v392
    %v4290 = vunpack.c.l.b16 %v393
    %v4291 = vunpack.c.l.b16 %v394
    %v4292 = vpack.c.b16 %v4277, %v4276
    %v4293 = vpack.c.b16 %v4279, %v4278
    %v4294 = vpack.c.b16 %v4281, %v4280
    %v4295 = vpack.c.b16 %v4283, %v4282
    %v4296 = vpack.c.b16 %v4285, %v4284
    %v4297 = vpack.c.b16 %v4287, %v4286
    %v4298 = vpack.c.b16 %v4289, %v4288
    %v4299 = vpack.c.b16 %v4291, %v4290
    %4308 = vmatprep.subr.bf16.mxu0 0
    %4309 = vmatpush1.bf16.msra.mxu0 %v4292
    %4310 = vmatprep.subr.bf16.mxu0 0
    %4311 = vmatpush1.bf16.msra.mxu0 %v4293
    %4312 = vmatprep.subr.bf16.mxu0 0
    %4313 = vmatpush1.bf16.msra.mxu0 %v4294
    %4314 = vmatprep.subr.bf16.mxu0 0
    %4315 = vmatpush1.bf16.msra.mxu0 %v4295
    %4316 = vmatprep.subr.bf16.mxu0 0
    %4317 = vmatpush1.bf16.msra.mxu0 %v4296
    %4318 = vmatprep.subr.bf16.mxu0 0
    %4319 = vmatpush1.bf16.msra.mxu0 %v4297
    %4320 = vmatprep.subr.bf16.mxu0 0
    %4321 = vmatpush1.bf16.msra.mxu0 %v4298
    %4322 = vmatprep.subr.bf16.mxu0 0
    %4323 = vmatpush1.bf16.msra.mxu0 %v4299
    %4324 = vmatprep.subr.bf16.mxu0 0
    %4325 = vmatpush1.bf16.msra.mxu0 0
    %4326 = vmatprep.subr.bf16.mxu0 0
    %4327 = vmatpush1.bf16.msra.mxu0 0
    %4328 = vmatprep.subr.bf16.mxu0 0
    %4329 = vmatpush1.bf16.msra.mxu0 0
    %4330 = vmatprep.subr.bf16.mxu0 0
    %4331 = vmatpush1.bf16.msra.mxu0 0
    %4332 = vmatprep.subr.bf16.mxu0 0
    %4333 = vmatpush1.bf16.msra.mxu0 0
    %4334 = vmatprep.subr.bf16.mxu0 0
    %4335 = vmatpush1.bf16.msra.mxu0 0
    %4336 = vmatprep.subr.bf16.mxu0 0
    %4337 = vmatpush1.bf16.msra.mxu0 0
    %4338 = vmatprep.subr.bf16.mxu0 0
    %4339 = vmatpush1.bf16.msra.mxu0 0
    %4340 = vmatprep.mubr.bf16.mxu0 0
    %4341 = vmatmul.mubr.bf16.gmra.mrb[0].mxu0 %v2939
    %v4342 = vpop.f32.mrb[0].mxu0
    %v4343 = vadd.f32 0.0, %v4342
    %v4344 = vpop.f32.mrb[0].mxu0
    %v4345 = vpop.f32.mrb[0].mxu0
    %v4346 = vpop.f32.mrb[0].mxu0
    %4347 = vdwg.mxu0
    %v4348 = vadd.f32 %v1695, %v3023
    %v4349 = vadd.f32 %v1696, %v3111
    %v4350 = vadd.f32 %v1697, %v3199
    %v4351 = vadd.f32 %v1698, %v3287
    %v4352 = vadd.f32 %v1699, %v3375
    %v4353 = vadd.f32 %v1700, %v3463
    %v4354 = vadd.f32 %v1701, %v3551
    %v4355 = vadd.f32 %v1702, %v3639
    %v4356 = vadd.f32 %v1703, %v3727
    %v4357 = vadd.f32 %v1704, %v3815
    %v4358 = vadd.f32 %v1705, %v3903
    %v4359 = vadd.f32 %v1706, %v3991
    %v4360 = vadd.f32 %v1707, %v4079
    %v4361 = vadd.f32 %v1708, %v4167
    %v4362 = vadd.f32 %v1709, %v4255
    %v4363 = vadd.f32 %v1710, %v4343
    %v4364 = vmul.f32 %v4348, 0.70710677
    %v4365 = vmul.f32 %v4349, 0.70710677
    %v4366 = vmul.f32 %v4350, 0.70710677
    %v4367 = vmul.f32 %v4351, 0.70710677
    %v4368 = vmul.f32 %v4352, 0.70710677
    %v4369 = vmul.f32 %v4353, 0.70710677
    %v4370 = vmul.f32 %v4354, 0.70710677
    %v4371 = vmul.f32 %v4355, 0.70710677
    %v4372 = vmul.f32 %v4356, 0.70710677
    %v4373 = vmul.f32 %v4357, 0.70710677
    %v4374 = vmul.f32 %v4358, 0.70710677
    %v4375 = vmul.f32 %v4359, 0.70710677
    %v4376 = vmul.f32 %v4360, 0.70710677
    %v4377 = vmul.f32 %v4361, 0.70710677
    %v4378 = vmul.f32 %v4362, 0.70710677
    %v4379 = vmul.f32 %v4363, 0.70710677
    %v4380 = vadd.f32 %v4364, %v43
    %v4381 = vadd.f32 %v4365, %v44
    %v4382 = vadd.f32 %v4366, %v45
    %v4383 = vadd.f32 %v4367, %v46
    %v4384 = vadd.f32 %v4368, %v47
    %v4385 = vadd.f32 %v4369, %v48
    %v4386 = vadd.f32 %v4370, %v49
    %v4387 = vadd.f32 %v4371, %v50
    %v4388 = vadd.f32 %v4372, %v51
    %v4389 = vadd.f32 %v4373, %v52
    %v4390 = vadd.f32 %v4374, %v53
    %v4391 = vadd.f32 %v4375, %v54
    %v4392 = vadd.f32 %v4376, %v55
    %v4393 = vadd.f32 %v4377, %v56
    %v4394 = vadd.f32 %v4378, %v57
    %v4395 = vadd.f32 %v4379, %v58
    %v4396 = vmul.f32 %v4380, 0.70710677
    %v4397 = vmul.f32 %v4381, 0.70710677
    %v4398 = vmul.f32 %v4382, 0.70710677
    %v4399 = vmul.f32 %v4383, 0.70710677
    %v4400 = vmul.f32 %v4384, 0.70710677
    %v4401 = vmul.f32 %v4385, 0.70710677
    %v4402 = vmul.f32 %v4386, 0.70710677
    %v4403 = vmul.f32 %v4387, 0.70710677
    %v4404 = vmul.f32 %v4388, 0.70710677
    %v4405 = vmul.f32 %v4389, 0.70710677
    %v4406 = vmul.f32 %v4390, 0.70710677
    %v4407 = vmul.f32 %v4391, 0.70710677
    %v4408 = vmul.f32 %v4392, 0.70710677
    %v4409 = vmul.f32 %v4393, 0.70710677
    %v4410 = vmul.f32 %v4394, 0.70710677
    %v4411 = vmul.f32 %v4395, 0.70710677
    %v4412 = vpack.c.bf16 %v4397, %v4396
    %v4413 = vpack.c.bf16 %v4399, %v4398
    %v4414 = vpack.c.bf16 %v4401, %v4400
    %v4415 = vpack.c.bf16 %v4403, %v4402
    %v4416 = vpack.c.bf16 %v4405, %v4404
    %v4417 = vpack.c.bf16 %v4407, %v4406
    %v4418 = vpack.c.bf16 %v4409, %v4408
    %v4419 = vpack.c.bf16 %v4411, %v4410
    %s4420 = scalar_lea.vmem %s4, 48
    %v4421 = vld [vmem:[%s4420] sm:$0xf]
    %v4422 = vld [vmem:[%s4420 + $0x4] sm:$0xf]
    %v4423 = vld [vmem:[%s4420 + $0x8] sm:$0xf]
    %v4424 = vld [vmem:[%s4420 + $0xc] sm:$0xf]
    %s4425 = scalar_lea.vmem %s6, 48
    %v4426 = vld [vmem:[%s4425] sm:$0xf]
    %v4427 = vld [vmem:[%s4425 + $0x4] sm:$0xf]
    %v4428 = vld [vmem:[%s4425 + $0x8] sm:$0xf]
    %v4429 = vld [vmem:[%s4425 + $0xc] sm:$0xf]
    %v4430 = vrot.slane %v4396, 7
    %v4431 = vrot.slane %v4397, 7
    %v4432 = vrot.slane %v4398, 7
    %v4433 = vrot.slane %v4399, 7
    %v4434 = vrot.slane %v4400, 7
    %v4435 = vrot.slane %v4401, 7
    %v4436 = vrot.slane %v4402, 7
    %v4437 = vrot.slane %v4403, 7
    %v4438 = vrot.slane %v4404, 7
    %v4439 = vrot.slane %v4405, 7
    %v4440 = vrot.slane %v4406, 7
    %v4441 = vrot.slane %v4407, 7
    %v4442 = vrot.slane %v4408, 7
    %v4443 = vrot.slane %v4409, 7
    %v4444 = vrot.slane %v4410, 7
    %v4445 = vrot.slane %v4411, 7
    %v4446 = vsel %vm676, %v4444, %v4445
    %v4447 = vsel %vm676, %v4443, %v4444
    %v4448 = vsel %vm676, %v4442, %v4443
    %v4449 = vsel %vm676, %v4441, %v4442
    %v4450 = vsel %vm676, %v4440, %v4441
    %v4451 = vsel %vm676, %v4439, %v4440
    %v4452 = vsel %vm676, %v4438, %v4439
    %v4453 = vsel %vm676, %v4437, %v4438
    %v4454 = vsel %vm676, %v4436, %v4437
    %v4455 = vsel %vm676, %v4435, %v4436
    %v4456 = vsel %vm676, %v4434, %v4435
    %v4457 = vsel %vm676, %v4433, %v4434
    %v4458 = vsel %vm676, %v4432, %v4433
    %v4459 = vsel %vm676, %v4431, %v4432
    %v4460 = vsel %vm676, %v4430, %v4431
    %v4461 = vsel %vm676, %v4445, %v4430
    %v4462 = vsel %vm608, %v4461, 1.0
    %v4463 = vsel %vm609, %v4460, 1.0
    %v4464 = vsel %vm610, %v4459, 1.0
    %v4465 = vsel %vm611, %v4458, 1.0
    %v4466 = vsel %vm612, %v4457, 1.0
    %v4467 = vsel %vm613, %v4456, 1.0
    %v4468 = vsel %vm614, %v4455, 1.0
    %v4469 = vsel %vm615, %v4454, 1.0
    %v4470 = vsel %vm616, %v4453, 1.0
    %v4471 = vsel %vm617, %v4452, 1.0
    %v4472 = vsel %vm618, %v4451, 1.0
    %v4473 = vsel %vm619, %v4450, 1.0
    %v4474 = vsel %vm620, %v4449, 1.0
    %v4475 = vsel %vm621, %v4448, 1.0
    %v4476 = vsel %vm622, %v4447, 1.0
    %v4477 = vsel %vm623, %v4446, 1.0
    %v4478 = vpack.c.bf16 %v4463, %v4462
    %v4479 = vpack.c.bf16 %v4465, %v4464
    %v4480 = vpack.c.bf16 %v4467, %v4466
    %v4481 = vpack.c.bf16 %v4469, %v4468
    %v4482 = vpack.c.bf16 %v4471, %v4470
    %v4483 = vpack.c.bf16 %v4473, %v4472
    %v4484 = vpack.c.bf16 %v4475, %v4474
    %v4485 = vpack.c.bf16 %v4477, %v4476
    %s4486 = scalar_lea.vmem %s4, 64
    %v4487 = vld [vmem:[%s4486] sm:$0xf]
    %v4488 = vld [vmem:[%s4486 + $0x4] sm:$0xf]
    %v4489 = vld [vmem:[%s4486 + $0x8] sm:$0xf]
    %v4490 = vld [vmem:[%s4486 + $0xc] sm:$0xf]
    %v4495 = vunpack.c.l.b16 %v4487
    %v4496 = vunpack.c.l.b16 %v4488
    %v4497 = vunpack.c.l.b16 %v4489
    %v4498 = vunpack.c.l.b16 %v4490
    %v4499 = vpack.c.b16 %v4496, %v4495
    %v4500 = vpack.c.b16 %v4498, %v4497
    %v4504 = vsel %vm734, %v4478, 0
    %v4507 = vsel %vm734, %v4479, 0
    %v4510 = vsel %vm734, %v4480, 0
    %v4513 = vsel %vm734, %v4481, 0
    %v4516 = vsel %vm734, %v4482, 0
    %v4519 = vsel %vm734, %v4483, 0
    %v4522 = vsel %vm734, %v4484, 0
    %v4525 = vsel %vm734, %v4485, 0
    %4527 = vmatprep.subr.bf16.mxu0 0
    %4528 = vmatpush1.bf16.msra.mxu0 %v4499
    %4529 = vmatprep.subr.bf16.mxu0 0
    %4530 = vmatpush1.bf16.msra.mxu0 %v4500
    %4531 = vmatprep.subr.bf16.mxu0 0
    %4532 = vmatpush1.bf16.msra.mxu0 0
    %4533 = vmatprep.subr.bf16.mxu0 0
    %4534 = vmatpush1.bf16.msra.mxu0 0
    %4535 = vmatprep.subr.bf16.mxu0 0
    %4536 = vmatpush1.bf16.msra.mxu0 0
    %4537 = vmatprep.subr.bf16.mxu0 0
    %4538 = vmatpush1.bf16.msra.mxu0 0
    %4539 = vmatprep.subr.bf16.mxu0 0
    %4540 = vmatpush1.bf16.msra.mxu0 0
    %4541 = vmatprep.subr.bf16.mxu0 0
    %4542 = vmatpush1.bf16.msra.mxu0 0
    %4543 = vmatprep.subr.bf16.mxu0 0
    %4544 = vmatpush1.bf16.msra.mxu0 0
    %4545 = vmatprep.subr.bf16.mxu0 0
    %4546 = vmatpush1.bf16.msra.mxu0 0
    %4547 = vmatprep.subr.bf16.mxu0 0
    %4548 = vmatpush1.bf16.msra.mxu0 0
    %4549 = vmatprep.subr.bf16.mxu0 0
    %4550 = vmatpush1.bf16.msra.mxu0 0
    %4551 = vmatprep.subr.bf16.mxu0 0
    %4552 = vmatpush1.bf16.msra.mxu0 0
    %4553 = vmatprep.subr.bf16.mxu0 0
    %4554 = vmatpush1.bf16.msra.mxu0 0
    %4555 = vmatprep.subr.bf16.mxu0 0
    %4556 = vmatpush1.bf16.msra.mxu0 0
    %4557 = vmatprep.subr.bf16.mxu0 0
    %4558 = vmatpush1.bf16.msra.mxu0 0
    %4559 = vmatprep.mubr.bf16.mxu0 0
    %4560 = vmatmul.mubr.bf16.gmra.mrb[0].mxu0 %v4504
    %v4561 = vpop.f32.mrb[0].mxu0
    %v4562 = vadd.f32 0.0, %v4561
    %v4563 = vpop.f32.mrb[0].mxu0
    %v4564 = vpop.f32.mrb[0].mxu0
    %v4565 = vadd.f32 0.0, %v4564
    %v4566 = vpop.f32.mrb[0].mxu0
    %4567 = vmatprep.mubr.bf16.mxu0 0
    %4568 = vmatmul.mubr.bf16.gmra.mrb[0].mxu0 %v4507
    %v4569 = vpop.f32.mrb[0].mxu0
    %v4570 = vadd.f32 0.0, %v4569
    %v4571 = vpop.f32.mrb[0].mxu0
    %v4572 = vpop.f32.mrb[0].mxu0
    %v4573 = vadd.f32 0.0, %v4572
    %v4574 = vpop.f32.mrb[0].mxu0
    %4575 = vmatprep.mubr.bf16.mxu0 0
    %4576 = vmatmul.mubr.bf16.gmra.mrb[0].mxu0 %v4510
    %v4577 = vpop.f32.mrb[0].mxu0
    %v4578 = vadd.f32 0.0, %v4577
    %v4579 = vpop.f32.mrb[0].mxu0
    %v4580 = vpop.f32.mrb[0].mxu0
    %v4581 = vadd.f32 0.0, %v4580
    %v4582 = vpop.f32.mrb[0].mxu0
    %4583 = vmatprep.mubr.bf16.mxu0 0
    %4584 = vmatmul.mubr.bf16.gmra.mrb[0].mxu0 %v4513
    %v4585 = vpop.f32.mrb[0].mxu0
    %v4586 = vadd.f32 0.0, %v4585
    %v4587 = vpop.f32.mrb[0].mxu0
    %v4588 = vpop.f32.mrb[0].mxu0
    %v4589 = vadd.f32 0.0, %v4588
    %v4590 = vpop.f32.mrb[0].mxu0
    %4591 = vmatprep.mubr.bf16.mxu0 0
    %4592 = vmatmul.mubr.bf16.gmra.mrb[0].mxu0 %v4516
    %v4593 = vpop.f32.mrb[0].mxu0
    %v4594 = vadd.f32 0.0, %v4593
    %v4595 = vpop.f32.mrb[0].mxu0
    %v4596 = vpop.f32.mrb[0].mxu0
    %v4597 = vadd.f32 0.0, %v4596
    %v4598 = vpop.f32.mrb[0].mxu0
    %4599 = vmatprep.mubr.bf16.mxu0 0
    %4600 = vmatmul.mubr.bf16.gmra.mrb[0].mxu0 %v4519
    %v4601 = vpop.f32.mrb[0].mxu0
    %v4602 = vadd.f32 0.0, %v4601
    %v4603 = vpop.f32.mrb[0].mxu0
    %v4604 = vpop.f32.mrb[0].mxu0
    %v4605 = vadd.f32 0.0, %v4604
    %v4606 = vpop.f32.mrb[0].mxu0
    %4607 = vmatprep.mubr.bf16.mxu0 0
    %4608 = vmatmul.mubr.bf16.gmra.mrb[0].mxu0 %v4522
    %v4609 = vpop.f32.mrb[0].mxu0
    %v4610 = vadd.f32 0.0, %v4609
    %v4611 = vpop.f32.mrb[0].mxu0
    %v4612 = vpop.f32.mrb[0].mxu0
    %v4613 = vadd.f32 0.0, %v4612
    %v4614 = vpop.f32.mrb[0].mxu0
    %4615 = vmatprep.mubr.bf16.mxu0 0
    %4616 = vmatmul.mubr.bf16.gmra.mrb[0].mxu0 %v4525
    %v4617 = vpop.f32.mrb[0].mxu0
    %v4618 = vadd.f32 0.0, %v4617
    %v4619 = vpop.f32.mrb[0].mxu0
    %v4620 = vpop.f32.mrb[0].mxu0
    %v4621 = vadd.f32 0.0, %v4620
    %v4622 = vpop.f32.mrb[0].mxu0
    %4623 = vdwg.mxu0
    %v4628 = vunpack.c.l.b16 %v4421
    %v4629 = vunpack.c.l.b16 %v4422
    %v4630 = vunpack.c.l.b16 %v4423
    %v4631 = vunpack.c.l.b16 %v4424
    %v4632 = vpack.c.b16 %v4629, %v4628
    %v4633 = vpack.c.b16 %v4631, %v4630
    %v4637 = vsel %vm734, %v4412, 0
    %v4640 = vsel %vm734, %v4413, 0
    %v4643 = vsel %vm734, %v4414, 0
    %v4646 = vsel %vm734, %v4415, 0
    %v4649 = vsel %vm734, %v4416, 0
    %v4652 = vsel %vm734, %v4417, 0
    %v4655 = vsel %vm734, %v4418, 0
    %v4658 = vsel %vm734, %v4419, 0
    %4660 = vmatprep.subr.bf16.mxu0 0
    %4661 = vmatpush1.bf16.msra.mxu0 %v4632
    %4662 = vmatprep.subr.bf16.mxu0 0
    %4663 = vmatpush1.bf16.msra.mxu0 %v4633
    %4664 = vmatprep.subr.bf16.mxu0 0
    %4665 = vmatpush1.bf16.msra.mxu0 0
    %4666 = vmatprep.subr.bf16.mxu0 0
    %4667 = vmatpush1.bf16.msra.mxu0 0
    %4668 = vmatprep.subr.bf16.mxu0 0
    %4669 = vmatpush1.bf16.msra.mxu0 0
    %4670 = vmatprep.subr.bf16.mxu0 0
    %4671 = vmatpush1.bf16.msra.mxu0 0
    %4672 = vmatprep.subr.bf16.mxu0 0
    %4673 = vmatpush1.bf16.msra.mxu0 0
    %4674 = vmatprep.subr.bf16.mxu0 0
    %4675 = vmatpush1.bf16.msra.mxu0 0
    %4676 = vmatprep.subr.bf16.mxu0 0
    %4677 = vmatpush1.bf16.msra.mxu0 0
    %4678 = vmatprep.subr.bf16.mxu0 0
    %4679 = vmatpush1.bf16.msra.mxu0 0
    %4680 = vmatprep.subr.bf16.mxu0 0
    %4681 = vmatpush1.bf16.msra.mxu0 0
    %4682 = vmatprep.subr.bf16.mxu0 0
    %4683 = vmatpush1.bf16.msra.mxu0 0
    %4684 = vmatprep.subr.bf16.mxu0 0
    %4685 = vmatpush1.bf16.msra.mxu0 0
    %4686 = vmatprep.subr.bf16.mxu0 0
    %4687 = vmatpush1.bf16.msra.mxu0 0
    %4688 = vmatprep.subr.bf16.mxu0 0
    %4689 = vmatpush1.bf16.msra.mxu0 0
    %4690 = vmatprep.subr.bf16.mxu0 0
    %4691 = vmatpush1.bf16.msra.mxu0 0
    %4692 = vmatprep.mubr.bf16.mxu0 0
    %4693 = vmatmul.mubr.bf16.gmra.mrb[0].mxu0 %v4637
    %v4694 = vpop.f32.mrb[0].mxu0
    %v4695 = vadd.f32 %v4562, %v4694
    %v4696 = vpop.f32.mrb[0].mxu0
    %v4697 = vpop.f32.mrb[0].mxu0
    %v4698 = vadd.f32 %v4565, %v4697
    %v4699 = vpop.f32.mrb[0].mxu0
    %4700 = vmatprep.mubr.bf16.mxu0 0
    %4701 = vmatmul.mubr.bf16.gmra.mrb[0].mxu0 %v4640
    %v4702 = vpop.f32.mrb[0].mxu0
    %v4703 = vadd.f32 %v4570, %v4702
    %v4704 = vpop.f32.mrb[0].mxu0
    %v4705 = vpop.f32.mrb[0].mxu0
    %v4706 = vadd.f32 %v4573, %v4705
    %v4707 = vpop.f32.mrb[0].mxu0
    %4708 = vmatprep.mubr.bf16.mxu0 0
    %4709 = vmatmul.mubr.bf16.gmra.mrb[0].mxu0 %v4643
    %v4710 = vpop.f32.mrb[0].mxu0
    %v4711 = vadd.f32 %v4578, %v4710
    %v4712 = vpop.f32.mrb[0].mxu0
    %v4713 = vpop.f32.mrb[0].mxu0
    %v4714 = vadd.f32 %v4581, %v4713
    %v4715 = vpop.f32.mrb[0].mxu0
    %4716 = vmatprep.mubr.bf16.mxu0 0
    %4717 = vmatmul.mubr.bf16.gmra.mrb[0].mxu0 %v4646
    %v4718 = vpop.f32.mrb[0].mxu0
    %v4719 = vadd.f32 %v4586, %v4718
    %v4720 = vpop.f32.mrb[0].mxu0
    %v4721 = vpop.f32.mrb[0].mxu0
    %v4722 = vadd.f32 %v4589, %v4721
    %v4723 = vpop.f32.mrb[0].mxu0
    %4724 = vmatprep.mubr.bf16.mxu0 0
    %4725 = vmatmul.mubr.bf16.gmra.mrb[0].mxu0 %v4649
    %v4726 = vpop.f32.mrb[0].mxu0
    %v4727 = vadd.f32 %v4594, %v4726
    %v4728 = vpop.f32.mrb[0].mxu0
    %v4729 = vpop.f32.mrb[0].mxu0
    %v4730 = vadd.f32 %v4597, %v4729
    %v4731 = vpop.f32.mrb[0].mxu0
    %4732 = vmatprep.mubr.bf16.mxu0 0
    %4733 = vmatmul.mubr.bf16.gmra.mrb[0].mxu0 %v4652
    %v4734 = vpop.f32.mrb[0].mxu0
    %v4735 = vadd.f32 %v4602, %v4734
    %v4736 = vpop.f32.mrb[0].mxu0
    %v4737 = vpop.f32.mrb[0].mxu0
    %v4738 = vadd.f32 %v4605, %v4737
    %v4739 = vpop.f32.mrb[0].mxu0
    %4740 = vmatprep.mubr.bf16.mxu0 0
    %4741 = vmatmul.mubr.bf16.gmra.mrb[0].mxu0 %v4655
    %v4742 = vpop.f32.mrb[0].mxu0
    %v4743 = vadd.f32 %v4610, %v4742
    %v4744 = vpop.f32.mrb[0].mxu0
    %v4745 = vpop.f32.mrb[0].mxu0
    %v4746 = vadd.f32 %v4613, %v4745
    %v4747 = vpop.f32.mrb[0].mxu0
    %4748 = vmatprep.mubr.bf16.mxu0 0
    %4749 = vmatmul.mubr.bf16.gmra.mrb[0].mxu0 %v4658
    %v4750 = vpop.f32.mrb[0].mxu0
    %v4751 = vadd.f32 %v4618, %v4750
    %v4752 = vpop.f32.mrb[0].mxu0
    %v4753 = vpop.f32.mrb[0].mxu0
    %v4754 = vadd.f32 %v4621, %v4753
    %v4755 = vpop.f32.mrb[0].mxu0
    %4756 = vdwg.mxu0
    %s4757 = scalar_lea.vmem %s6, 64
    %v4758 = vld [vmem:[%s4757] sm:$0xf]
    %v4759 = vld [vmem:[%s4757 + $0x4] sm:$0xf]
    %v4760 = vld [vmem:[%s4757 + $0x8] sm:$0xf]
    %v4761 = vld [vmem:[%s4757 + $0xc] sm:$0xf]
    %v4766 = vunpack.c.l.b16 %v4758
    %v4767 = vunpack.c.l.b16 %v4759
    %v4768 = vunpack.c.l.b16 %v4760
    %v4769 = vunpack.c.l.b16 %v4761
    %v4770 = vpack.c.b16 %v4767, %v4766
    %v4771 = vpack.c.b16 %v4769, %v4768
    %4774 = vmatprep.subr.bf16.mxu0 0
    %4775 = vmatpush1.bf16.msra.mxu0 %v4770
    %4776 = vmatprep.subr.bf16.mxu0 0
    %4777 = vmatpush1.bf16.msra.mxu0 %v4771
    %4778 = vmatprep.subr.bf16.mxu0 0
    %4779 = vmatpush1.bf16.msra.mxu0 0
    %4780 = vmatprep.subr.bf16.mxu0 0
    %4781 = vmatpush1.bf16.msra.mxu0 0
    %4782 = vmatprep.subr.bf16.mxu0 0
    %4783 = vmatpush1.bf16.msra.mxu0 0
    %4784 = vmatprep.subr.bf16.mxu0 0
    %4785 = vmatpush1.bf16.msra.mxu0 0
    %4786 = vmatprep.subr.bf16.mxu0 0
    %4787 = vmatpush1.bf16.msra.mxu0 0
    %4788 = vmatprep.subr.bf16.mxu0 0
    %4789 = vmatpush1.bf16.msra.mxu0 0
    %4790 = vmatprep.subr.bf16.mxu0 0
    %4791 = vmatpush1.bf16.msra.mxu0 0
    %4792 = vmatprep.subr.bf16.mxu0 0
    %4793 = vmatpush1.bf16.msra.mxu0 0
    %4794 = vmatprep.subr.bf16.mxu0 0
    %4795 = vmatpush1.bf16.msra.mxu0 0
    %4796 = vmatprep.subr.bf16.mxu0 0
    %4797 = vmatpush1.bf16.msra.mxu0 0
    %4798 = vmatprep.subr.bf16.mxu0 0
    %4799 = vmatpush1.bf16.msra.mxu0 0
    %4800 = vmatprep.subr.bf16.mxu0 0
    %4801 = vmatpush1.bf16.msra.mxu0 0
    %4802 = vmatprep.subr.bf16.mxu0 0
    %4803 = vmatpush1.bf16.msra.mxu0 0
    %4804 = vmatprep.subr.bf16.mxu0 0
    %4805 = vmatpush1.bf16.msra.mxu0 0
    %4806 = vmatprep.mubr.bf16.mxu0 0
    %4807 = vmatmul.mubr.bf16.gmra.mrb[0].mxu0 %v4504
    %v4808 = vpop.f32.mrb[0].mxu0
    %v4809 = vadd.f32 0.0, %v4808
    %v4810 = vpop.f32.mrb[0].mxu0
    %v4811 = vpop.f32.mrb[0].mxu0
    %v4812 = vadd.f32 0.0, %v4811
    %v4813 = vpop.f32.mrb[0].mxu0
    %4814 = vmatprep.mubr.bf16.mxu0 0
    %4815 = vmatmul.mubr.bf16.gmra.mrb[0].mxu0 %v4507
    %v4816 = vpop.f32.mrb[0].mxu0
    %v4817 = vadd.f32 0.0, %v4816
    %v4818 = vpop.f32.mrb[0].mxu0
    %v4819 = vpop.f32.mrb[0].mxu0
    %v4820 = vadd.f32 0.0, %v4819
    %v4821 = vpop.f32.mrb[0].mxu0
    %4822 = vmatprep.mubr.bf16.mxu0 0
    %4823 = vmatmul.mubr.bf16.gmra.mrb[0].mxu0 %v4510
    %v4824 = vpop.f32.mrb[0].mxu0
    %v4825 = vadd.f32 0.0, %v4824
    %v4826 = vpop.f32.mrb[0].mxu0
    %v4827 = vpop.f32.mrb[0].mxu0
    %v4828 = vadd.f32 0.0, %v4827
    %v4829 = vpop.f32.mrb[0].mxu0
    %4830 = vmatprep.mubr.bf16.mxu0 0
    %4831 = vmatmul.mubr.bf16.gmra.mrb[0].mxu0 %v4513
    %v4832 = vpop.f32.mrb[0].mxu0
    %v4833 = vadd.f32 0.0, %v4832
    %v4834 = vpop.f32.mrb[0].mxu0
    %v4835 = vpop.f32.mrb[0].mxu0
    %v4836 = vadd.f32 0.0, %v4835
    %v4837 = vpop.f32.mrb[0].mxu0
    %4838 = vmatprep.mubr.bf16.mxu0 0
    %4839 = vmatmul.mubr.bf16.gmra.mrb[0].mxu0 %v4516
    %v4840 = vpop.f32.mrb[0].mxu0
    %v4841 = vadd.f32 0.0, %v4840
    %v4842 = vpop.f32.mrb[0].mxu0
    %v4843 = vpop.f32.mrb[0].mxu0
    %v4844 = vadd.f32 0.0, %v4843
    %v4845 = vpop.f32.mrb[0].mxu0
    %4846 = vmatprep.mubr.bf16.mxu0 0
    %4847 = vmatmul.mubr.bf16.gmra.mrb[0].mxu0 %v4519
    %v4848 = vpop.f32.mrb[0].mxu0
    %v4849 = vadd.f32 0.0, %v4848
    %v4850 = vpop.f32.mrb[0].mxu0
    %v4851 = vpop.f32.mrb[0].mxu0
    %v4852 = vadd.f32 0.0, %v4851
    %v4853 = vpop.f32.mrb[0].mxu0
    %4854 = vmatprep.mubr.bf16.mxu0 0
    %4855 = vmatmul.mubr.bf16.gmra.mrb[0].mxu0 %v4522
    %v4856 = vpop.f32.mrb[0].mxu0
    %v4857 = vadd.f32 0.0, %v4856
    %v4858 = vpop.f32.mrb[0].mxu0
    %v4859 = vpop.f32.mrb[0].mxu0
    %v4860 = vadd.f32 0.0, %v4859
    %v4861 = vpop.f32.mrb[0].mxu0
    %4862 = vmatprep.mubr.bf16.mxu0 0
    %4863 = vmatmul.mubr.bf16.gmra.mrb[0].mxu0 %v4525
    %v4864 = vpop.f32.mrb[0].mxu0
    %v4865 = vadd.f32 0.0, %v4864
    %v4866 = vpop.f32.mrb[0].mxu0
    %v4867 = vpop.f32.mrb[0].mxu0
    %v4868 = vadd.f32 0.0, %v4867
    %v4869 = vpop.f32.mrb[0].mxu0
    %4870 = vdwg.mxu0
    %v4875 = vunpack.c.l.b16 %v4426
    %v4876 = vunpack.c.l.b16 %v4427
    %v4877 = vunpack.c.l.b16 %v4428
    %v4878 = vunpack.c.l.b16 %v4429
    %v4879 = vpack.c.b16 %v4876, %v4875
    %v4880 = vpack.c.b16 %v4878, %v4877
    %4883 = vmatprep.subr.bf16.mxu0 0
    %4884 = vmatpush1.bf16.msra.mxu0 %v4879
    %4885 = vmatprep.subr.bf16.mxu0 0
    %4886 = vmatpush1.bf16.msra.mxu0 %v4880
    %4887 = vmatprep.subr.bf16.mxu0 0
    %4888 = vmatpush1.bf16.msra.mxu0 0
    %4889 = vmatprep.subr.bf16.mxu0 0
    %4890 = vmatpush1.bf16.msra.mxu0 0
    %4891 = vmatprep.subr.bf16.mxu0 0
    %4892 = vmatpush1.bf16.msra.mxu0 0
    %4893 = vmatprep.subr.bf16.mxu0 0
    %4894 = vmatpush1.bf16.msra.mxu0 0
    %4895 = vmatprep.subr.bf16.mxu0 0
    %4896 = vmatpush1.bf16.msra.mxu0 0
    %4897 = vmatprep.subr.bf16.mxu0 0
    %4898 = vmatpush1.bf16.msra.mxu0 0
    %4899 = vmatprep.subr.bf16.mxu0 0
    %4900 = vmatpush1.bf16.msra.mxu0 0
    %4901 = vmatprep.subr.bf16.mxu0 0
    %4902 = vmatpush1.bf16.msra.mxu0 0
    %4903 = vmatprep.subr.bf16.mxu0 0
    %4904 = vmatpush1.bf16.msra.mxu0 0
    %4905 = vmatprep.subr.bf16.mxu0 0
    %4906 = vmatpush1.bf16.msra.mxu0 0
    %4907 = vmatprep.subr.bf16.mxu0 0
    %4908 = vmatpush1.bf16.msra.mxu0 0
    %4909 = vmatprep.subr.bf16.mxu0 0
    %4910 = vmatpush1.bf16.msra.mxu0 0
    %4911 = vmatprep.subr.bf16.mxu0 0
    %4912 = vmatpush1.bf16.msra.mxu0 0
    %4913 = vmatprep.subr.bf16.mxu0 0
    %4914 = vmatpush1.bf16.msra.mxu0 0
    %4915 = vmatprep.mubr.bf16.mxu0 0
    %4916 = vmatmul.mubr.bf16.gmra.mrb[0].mxu0 %v4637
    %v4917 = vpop.f32.mrb[0].mxu0
    %v4918 = vadd.f32 %v4809, %v4917
    %v4919 = vpop.f32.mrb[0].mxu0
    %v4920 = vpop.f32.mrb[0].mxu0
    %v4921 = vadd.f32 %v4812, %v4920
    %v4922 = vpop.f32.mrb[0].mxu0
    %4923 = vmatprep.mubr.bf16.mxu0 0
    %4924 = vmatmul.mubr.bf16.gmra.mrb[0].mxu0 %v4640
    %v4925 = vpop.f32.mrb[0].mxu0
    %v4926 = vadd.f32 %v4817, %v4925
    %v4927 = vpop.f32.mrb[0].mxu0
    %v4928 = vpop.f32.mrb[0].mxu0
    %v4929 = vadd.f32 %v4820, %v4928
    %v4930 = vpop.f32.mrb[0].mxu0
    %4931 = vmatprep.mubr.bf16.mxu0 0
    %4932 = vmatmul.mubr.bf16.gmra.mrb[0].mxu0 %v4643
    %v4933 = vpop.f32.mrb[0].mxu0
    %v4934 = vadd.f32 %v4825, %v4933
    %v4935 = vpop.f32.mrb[0].mxu0
    %v4936 = vpop.f32.mrb[0].mxu0
    %v4937 = vadd.f32 %v4828, %v4936
    %v4938 = vpop.f32.mrb[0].mxu0
    %4939 = vmatprep.mubr.bf16.mxu0 0
    %4940 = vmatmul.mubr.bf16.gmra.mrb[0].mxu0 %v4646
    %v4941 = vpop.f32.mrb[0].mxu0
    %v4942 = vadd.f32 %v4833, %v4941
    %v4943 = vpop.f32.mrb[0].mxu0
    %v4944 = vpop.f32.mrb[0].mxu0
    %v4945 = vadd.f32 %v4836, %v4944
    %v4946 = vpop.f32.mrb[0].mxu0
    %4947 = vmatprep.mubr.bf16.mxu0 0
    %4948 = vmatmul.mubr.bf16.gmra.mrb[0].mxu0 %v4649
    %v4949 = vpop.f32.mrb[0].mxu0
    %v4950 = vadd.f32 %v4841, %v4949
    %v4951 = vpop.f32.mrb[0].mxu0
    %v4952 = vpop.f32.mrb[0].mxu0
    %v4953 = vadd.f32 %v4844, %v4952
    %v4954 = vpop.f32.mrb[0].mxu0
    %4955 = vmatprep.mubr.bf16.mxu0 0
    %4956 = vmatmul.mubr.bf16.gmra.mrb[0].mxu0 %v4652
    %v4957 = vpop.f32.mrb[0].mxu0
    %v4958 = vadd.f32 %v4849, %v4957
    %v4959 = vpop.f32.mrb[0].mxu0
    %v4960 = vpop.f32.mrb[0].mxu0
    %v4961 = vadd.f32 %v4852, %v4960
    %v4962 = vpop.f32.mrb[0].mxu0
    %4963 = vmatprep.mubr.bf16.mxu0 0
    %4964 = vmatmul.mubr.bf16.gmra.mrb[0].mxu0 %v4655
    %v4965 = vpop.f32.mrb[0].mxu0
    %v4966 = vadd.f32 %v4857, %v4965
    %v4967 = vpop.f32.mrb[0].mxu0
    %v4968 = vpop.f32.mrb[0].mxu0
    %v4969 = vadd.f32 %v4860, %v4968
    %v4970 = vpop.f32.mrb[0].mxu0
    %4971 = vmatprep.mubr.bf16.mxu0 0
    %4972 = vmatmul.mubr.bf16.gmra.mrb[0].mxu0 %v4658
    %v4973 = vpop.f32.mrb[0].mxu0
    %v4974 = vadd.f32 %v4865, %v4973
    %v4975 = vpop.f32.mrb[0].mxu0
    %v4976 = vpop.f32.mrb[0].mxu0
    %v4977 = vadd.f32 %v4868, %v4976
    %v4978 = vpop.f32.mrb[0].mxu0
    %4979 = vdwg.mxu0
    %v4980 = vrot.slane %v4396, 6
    %v4981 = vrot.slane %v4397, 6
    %v4982 = vrot.slane %v4398, 6
    %v4983 = vrot.slane %v4399, 6
    %v4984 = vrot.slane %v4400, 6
    %v4985 = vrot.slane %v4401, 6
    %v4986 = vrot.slane %v4402, 6
    %v4987 = vrot.slane %v4403, 6
    %v4988 = vrot.slane %v4404, 6
    %v4989 = vrot.slane %v4405, 6
    %v4990 = vrot.slane %v4406, 6
    %v4991 = vrot.slane %v4407, 6
    %v4992 = vrot.slane %v4408, 6
    %v4993 = vrot.slane %v4409, 6
    %v4994 = vrot.slane %v4410, 6
    %v4995 = vrot.slane %v4411, 6
    %v4996 = vsel %vm1228, %v4994, %v4995
    %v4997 = vsel %vm1228, %v4993, %v4994
    %v4998 = vsel %vm1228, %v4992, %v4993
    %v4999 = vsel %vm1228, %v4991, %v4992
    %v5000 = vsel %vm1228, %v4990, %v4991
    %v5001 = vsel %vm1228, %v4989, %v4990
    %v5002 = vsel %vm1228, %v4988, %v4989
    %v5003 = vsel %vm1228, %v4987, %v4988
    %v5004 = vsel %vm1228, %v4986, %v4987
    %v5005 = vsel %vm1228, %v4985, %v4986
    %v5006 = vsel %vm1228, %v4984, %v4985
    %v5007 = vsel %vm1228, %v4983, %v4984
    %v5008 = vsel %vm1228, %v4982, %v4983
    %v5009 = vsel %vm1228, %v4981, %v4982
    %v5010 = vsel %vm1228, %v4980, %v4981
    %v5011 = vsel %vm1228, %v4995, %v4980
    %v5012 = vsel %vm624, %v5011, 1.0
    %v5013 = vsel %vm625, %v5010, 1.0
    %v5014 = vsel %vm626, %v5009, 1.0
    %v5015 = vsel %vm627, %v5008, 1.0
    %v5016 = vsel %vm628, %v5007, 1.0
    %v5017 = vsel %vm629, %v5006, 1.0
    %v5018 = vsel %vm630, %v5005, 1.0
    %v5019 = vsel %vm631, %v5004, 1.0
    %v5020 = vsel %vm632, %v5003, 1.0
    %v5021 = vsel %vm633, %v5002, 1.0
    %v5022 = vsel %vm634, %v5001, 1.0
    %v5023 = vsel %vm635, %v5000, 1.0
    %v5024 = vsel %vm636, %v4999, 1.0
    %v5025 = vsel %vm637, %v4998, 1.0
    %v5026 = vsel %vm638, %v4997, 1.0
    %v5027 = vsel %vm639, %v4996, 1.0
    %v5028 = vpack.c.bf16 %v5013, %v5012
    %v5029 = vpack.c.bf16 %v5015, %v5014
    %v5030 = vpack.c.bf16 %v5017, %v5016
    %v5031 = vpack.c.bf16 %v5019, %v5018
    %v5032 = vpack.c.bf16 %v5021, %v5020
    %v5033 = vpack.c.bf16 %v5023, %v5022
    %v5034 = vpack.c.bf16 %v5025, %v5024
    %v5035 = vpack.c.bf16 %v5027, %v5026
    %s5036 = scalar_lea.vmem %s4, 80
    %v5037 = vld [vmem:[%s5036] sm:$0xf]
    %v5038 = vld [vmem:[%s5036 + $0x4] sm:$0xf]
    %v5039 = vld [vmem:[%s5036 + $0x8] sm:$0xf]
    %v5040 = vld [vmem:[%s5036 + $0xc] sm:$0xf]
    %v5045 = vunpack.c.l.b16 %v5037
    %v5046 = vunpack.c.l.b16 %v5038
    %v5047 = vunpack.c.l.b16 %v5039
    %v5048 = vunpack.c.l.b16 %v5040
    %v5049 = vpack.c.b16 %v5046, %v5045
    %v5050 = vpack.c.b16 %v5048, %v5047
    %v5054 = vsel %vm734, %v5028, 0
    %v5057 = vsel %vm734, %v5029, 0
    %v5060 = vsel %vm734, %v5030, 0
    %v5063 = vsel %vm734, %v5031, 0
    %v5066 = vsel %vm734, %v5032, 0
    %v5069 = vsel %vm734, %v5033, 0
    %v5072 = vsel %vm734, %v5034, 0
    %v5075 = vsel %vm734, %v5035, 0
    %5077 = vmatprep.subr.bf16.mxu0 0
    %5078 = vmatpush1.bf16.msra.mxu0 %v5049
    %5079 = vmatprep.subr.bf16.mxu0 0
    %5080 = vmatpush1.bf16.msra.mxu0 %v5050
    %5081 = vmatprep.subr.bf16.mxu0 0
    %5082 = vmatpush1.bf16.msra.mxu0 0
    %5083 = vmatprep.subr.bf16.mxu0 0
    %5084 = vmatpush1.bf16.msra.mxu0 0
    %5085 = vmatprep.subr.bf16.mxu0 0
    %5086 = vmatpush1.bf16.msra.mxu0 0
    %5087 = vmatprep.subr.bf16.mxu0 0
    %5088 = vmatpush1.bf16.msra.mxu0 0
    %5089 = vmatprep.subr.bf16.mxu0 0
    %5090 = vmatpush1.bf16.msra.mxu0 0
    %5091 = vmatprep.subr.bf16.mxu0 0
    %5092 = vmatpush1.bf16.msra.mxu0 0
    %5093 = vmatprep.subr.bf16.mxu0 0
    %5094 = vmatpush1.bf16.msra.mxu0 0
    %5095 = vmatprep.subr.bf16.mxu0 0
    %5096 = vmatpush1.bf16.msra.mxu0 0
    %5097 = vmatprep.subr.bf16.mxu0 0
    %5098 = vmatpush1.bf16.msra.mxu0 0
    %5099 = vmatprep.subr.bf16.mxu0 0
    %5100 = vmatpush1.bf16.msra.mxu0 0
    %5101 = vmatprep.subr.bf16.mxu0 0
    %5102 = vmatpush1.bf16.msra.mxu0 0
    %5103 = vmatprep.subr.bf16.mxu0 0
    %5104 = vmatpush1.bf16.msra.mxu0 0
    %5105 = vmatprep.subr.bf16.mxu0 0
    %5106 = vmatpush1.bf16.msra.mxu0 0
    %5107 = vmatprep.subr.bf16.mxu0 0
    %5108 = vmatpush1.bf16.msra.mxu0 0
    %5109 = vmatprep.mubr.bf16.mxu0 0
    %5110 = vmatmul.mubr.bf16.gmra.mrb[0].mxu0 %v5054
    %v5111 = vpop.f32.mrb[0].mxu0
    %v5112 = vadd.f32 0.0, %v5111
    %v5113 = vpop.f32.mrb[0].mxu0
    %v5114 = vpop.f32.mrb[0].mxu0
    %v5115 = vadd.f32 0.0, %v5114
    %v5116 = vpop.f32.mrb[0].mxu0
    %5117 = vmatprep.mubr.bf16.mxu0 0
    %5118 = vmatmul.mubr.bf16.gmra.mrb[0].mxu0 %v5057
    %v5119 = vpop.f32.mrb[0].mxu0
    %v5120 = vadd.f32 0.0, %v5119
    %v5121 = vpop.f32.mrb[0].mxu0
    %v5122 = vpop.f32.mrb[0].mxu0
    %v5123 = vadd.f32 0.0, %v5122
    %v5124 = vpop.f32.mrb[0].mxu0
    %5125 = vmatprep.mubr.bf16.mxu0 0
    %5126 = vmatmul.mubr.bf16.gmra.mrb[0].mxu0 %v5060
    %v5127 = vpop.f32.mrb[0].mxu0
    %v5128 = vadd.f32 0.0, %v5127
    %v5129 = vpop.f32.mrb[0].mxu0
    %v5130 = vpop.f32.mrb[0].mxu0
    %v5131 = vadd.f32 0.0, %v5130
    %v5132 = vpop.f32.mrb[0].mxu0
    %5133 = vmatprep.mubr.bf16.mxu0 0
    %5134 = vmatmul.mubr.bf16.gmra.mrb[0].mxu0 %v5063
    %v5135 = vpop.f32.mrb[0].mxu0
    %v5136 = vadd.f32 0.0, %v5135
    %v5137 = vpop.f32.mrb[0].mxu0
    %v5138 = vpop.f32.mrb[0].mxu0
    %v5139 = vadd.f32 0.0, %v5138
    %v5140 = vpop.f32.mrb[0].mxu0
    %5141 = vmatprep.mubr.bf16.mxu0 0
    %5142 = vmatmul.mubr.bf16.gmra.mrb[0].mxu0 %v5066
    %v5143 = vpop.f32.mrb[0].mxu0
    %v5144 = vadd.f32 0.0, %v5143
    %v5145 = vpop.f32.mrb[0].mxu0
    %v5146 = vpop.f32.mrb[0].mxu0
    %v5147 = vadd.f32 0.0, %v5146
    %v5148 = vpop.f32.mrb[0].mxu0
    %5149 = vmatprep.mubr.bf16.mxu0 0
    %5150 = vmatmul.mubr.bf16.gmra.mrb[0].mxu0 %v5069
    %v5151 = vpop.f32.mrb[0].mxu0
    %v5152 = vadd.f32 0.0, %v5151
    %v5153 = vpop.f32.mrb[0].mxu0
    %v5154 = vpop.f32.mrb[0].mxu0
    %v5155 = vadd.f32 0.0, %v5154
    %v5156 = vpop.f32.mrb[0].mxu0
    %5157 = vmatprep.mubr.bf16.mxu0 0
    %5158 = vmatmul.mubr.bf16.gmra.mrb[0].mxu0 %v5072
    %v5159 = vpop.f32.mrb[0].mxu0
    %v5160 = vadd.f32 0.0, %v5159
    %v5161 = vpop.f32.mrb[0].mxu0
    %v5162 = vpop.f32.mrb[0].mxu0
    %v5163 = vadd.f32 0.0, %v5162
    %v5164 = vpop.f32.mrb[0].mxu0
    %5165 = vmatprep.mubr.bf16.mxu0 0
    %5166 = vmatmul.mubr.bf16.gmra.mrb[0].mxu0 %v5075
    %v5167 = vpop.f32.mrb[0].mxu0
    %v5168 = vadd.f32 0.0, %v5167
    %v5169 = vpop.f32.mrb[0].mxu0
    %v5170 = vpop.f32.mrb[0].mxu0
    %v5171 = vadd.f32 0.0, %v5170
    %v5172 = vpop.f32.mrb[0].mxu0
    %5173 = vdwg.mxu0
    %v5174 = vadd.f32 %v4695, %v5112
    %v5175 = vadd.f32 %v4698, %v5115
    %v5176 = vadd.f32 %v4703, %v5120
    %v5177 = vadd.f32 %v4706, %v5123
    %v5178 = vadd.f32 %v4711, %v5128
    %v5179 = vadd.f32 %v4714, %v5131
    %v5180 = vadd.f32 %v4719, %v5136
    %v5181 = vadd.f32 %v4722, %v5139
    %v5182 = vadd.f32 %v4727, %v5144
    %v5183 = vadd.f32 %v4730, %v5147
    %v5184 = vadd.f32 %v4735, %v5152
    %v5185 = vadd.f32 %v4738, %v5155
    %v5186 = vadd.f32 %v4743, %v5160
    %v5187 = vadd.f32 %v4746, %v5163
    %v5188 = vadd.f32 %v4751, %v5168
    %v5189 = vadd.f32 %v4754, %v5171
    %s5190 = scalar_lea.vmem %s6, 80
    %v5191 = vld [vmem:[%s5190] sm:$0xf]
    %v5192 = vld [vmem:[%s5190 + $0x4] sm:$0xf]
    %v5193 = vld [vmem:[%s5190 + $0x8] sm:$0xf]
    %v5194 = vld [vmem:[%s5190 + $0xc] sm:$0xf]
    %v5199 = vunpack.c.l.b16 %v5191
    %v5200 = vunpack.c.l.b16 %v5192
    %v5201 = vunpack.c.l.b16 %v5193
    %v5202 = vunpack.c.l.b16 %v5194
    %v5203 = vpack.c.b16 %v5200, %v5199
    %v5204 = vpack.c.b16 %v5202, %v5201
    %5207 = vmatprep.subr.bf16.mxu0 0
    %5208 = vmatpush1.bf16.msra.mxu0 %v5203
    %5209 = vmatprep.subr.bf16.mxu0 0
    %5210 = vmatpush1.bf16.msra.mxu0 %v5204
    %5211 = vmatprep.subr.bf16.mxu0 0
    %5212 = vmatpush1.bf16.msra.mxu0 0
    %5213 = vmatprep.subr.bf16.mxu0 0
    %5214 = vmatpush1.bf16.msra.mxu0 0
    %5215 = vmatprep.subr.bf16.mxu0 0
    %5216 = vmatpush1.bf16.msra.mxu0 0
    %5217 = vmatprep.subr.bf16.mxu0 0
    %5218 = vmatpush1.bf16.msra.mxu0 0
    %5219 = vmatprep.subr.bf16.mxu0 0
    %5220 = vmatpush1.bf16.msra.mxu0 0
    %5221 = vmatprep.subr.bf16.mxu0 0
    %5222 = vmatpush1.bf16.msra.mxu0 0
    %5223 = vmatprep.subr.bf16.mxu0 0
    %5224 = vmatpush1.bf16.msra.mxu0 0
    %5225 = vmatprep.subr.bf16.mxu0 0
    %5226 = vmatpush1.bf16.msra.mxu0 0
    %5227 = vmatprep.subr.bf16.mxu0 0
    %5228 = vmatpush1.bf16.msra.mxu0 0
    %5229 = vmatprep.subr.bf16.mxu0 0
    %5230 = vmatpush1.bf16.msra.mxu0 0
    %5231 = vmatprep.subr.bf16.mxu0 0
    %5232 = vmatpush1.bf16.msra.mxu0 0
    %5233 = vmatprep.subr.bf16.mxu0 0
    %5234 = vmatpush1.bf16.msra.mxu0 0
    %5235 = vmatprep.subr.bf16.mxu0 0
    %5236 = vmatpush1.bf16.msra.mxu0 0
    %5237 = vmatprep.subr.bf16.mxu0 0
    %5238 = vmatpush1.bf16.msra.mxu0 0
    %5239 = vmatprep.mubr.bf16.mxu0 0
    %5240 = vmatmul.mubr.bf16.gmra.mrb[0].mxu0 %v5054
    %v5241 = vpop.f32.mrb[0].mxu0
    %v5242 = vadd.f32 0.0, %v5241
    %v5243 = vpop.f32.mrb[0].mxu0
    %v5244 = vpop.f32.mrb[0].mxu0
    %v5245 = vadd.f32 0.0, %v5244
    %v5246 = vpop.f32.mrb[0].mxu0
    %5247 = vmatprep.mubr.bf16.mxu0 0
    %5248 = vmatmul.mubr.bf16.gmra.mrb[0].mxu0 %v5057
    %v5249 = vpop.f32.mrb[0].mxu0
    %v5250 = vadd.f32 0.0, %v5249
    %v5251 = vpop.f32.mrb[0].mxu0
    %v5252 = vpop.f32.mrb[0].mxu0
    %v5253 = vadd.f32 0.0, %v5252
    %v5254 = vpop.f32.mrb[0].mxu0
    %5255 = vmatprep.mubr.bf16.mxu0 0
    %5256 = vmatmul.mubr.bf16.gmra.mrb[0].mxu0 %v5060
    %v5257 = vpop.f32.mrb[0].mxu0
    %v5258 = vadd.f32 0.0, %v5257
    %v5259 = vpop.f32.mrb[0].mxu0
    %v5260 = vpop.f32.mrb[0].mxu0
    %v5261 = vadd.f32 0.0, %v5260
    %v5262 = vpop.f32.mrb[0].mxu0
    %5263 = vmatprep.mubr.bf16.mxu0 0
    %5264 = vmatmul.mubr.bf16.gmra.mrb[0].mxu0 %v5063
    %v5265 = vpop.f32.mrb[0].mxu0
    %v5266 = vadd.f32 0.0, %v5265
    %v5267 = vpop.f32.mrb[0].mxu0
    %v5268 = vpop.f32.mrb[0].mxu0
    %v5269 = vadd.f32 0.0, %v5268
    %v5270 = vpop.f32.mrb[0].mxu0
    %5271 = vmatprep.mubr.bf16.mxu0 0
    %5272 = vmatmul.mubr.bf16.gmra.mrb[0].mxu0 %v5066
    %v5273 = vpop.f32.mrb[0].mxu0
    %v5274 = vadd.f32 0.0, %v5273
    %v5275 = vpop.f32.mrb[0].mxu0
    %v5276 = vpop.f32.mrb[0].mxu0
    %v5277 = vadd.f32 0.0, %v5276
    %v5278 = vpop.f32.mrb[0].mxu0
    %5279 = vmatprep.mubr.bf16.mxu0 0
    %5280 = vmatmul.mubr.bf16.gmra.mrb[0].mxu0 %v5069
    %v5281 = vpop.f32.mrb[0].mxu0
    %v5282 = vadd.f32 0.0, %v5281
    %v5283 = vpop.f32.mrb[0].mxu0
    %v5284 = vpop.f32.mrb[0].mxu0
    %v5285 = vadd.f32 0.0, %v5284
    %v5286 = vpop.f32.mrb[0].mxu0
    %5287 = vmatprep.mubr.bf16.mxu0 0
    %5288 = vmatmul.mubr.bf16.gmra.mrb[0].mxu0 %v5072
    %v5289 = vpop.f32.mrb[0].mxu0
    %v5290 = vadd.f32 0.0, %v5289
    %v5291 = vpop.f32.mrb[0].mxu0
    %v5292 = vpop.f32.mrb[0].mxu0
    %v5293 = vadd.f32 0.0, %v5292
    %v5294 = vpop.f32.mrb[0].mxu0
    %5295 = vmatprep.mubr.bf16.mxu0 0
    %5296 = vmatmul.mubr.bf16.gmra.mrb[0].mxu0 %v5075
    %v5297 = vpop.f32.mrb[0].mxu0
    %v5298 = vadd.f32 0.0, %v5297
    %v5299 = vpop.f32.mrb[0].mxu0
    %v5300 = vpop.f32.mrb[0].mxu0
    %v5301 = vadd.f32 0.0, %v5300
    %v5302 = vpop.f32.mrb[0].mxu0
    %5303 = vdwg.mxu0
    %v5304 = vadd.f32 %v4918, %v5242
    %v5305 = vadd.f32 %v4921, %v5245
    %v5306 = vadd.f32 %v4926, %v5250
    %v5307 = vadd.f32 %v4929, %v5253
    %v5308 = vadd.f32 %v4934, %v5258
    %v5309 = vadd.f32 %v4937, %v5261
    %v5310 = vadd.f32 %v4942, %v5266
    %v5311 = vadd.f32 %v4945, %v5269
    %v5312 = vadd.f32 %v4950, %v5274
    %v5313 = vadd.f32 %v4953, %v5277
    %v5314 = vadd.f32 %v4958, %v5282
    %v5315 = vadd.f32 %v4961, %v5285
    %v5316 = vadd.f32 %v4966, %v5290
    %v5317 = vadd.f32 %v4969, %v5293
    %v5318 = vadd.f32 %v4974, %v5298
    %v5319 = vadd.f32 %v4977, %v5301
    %s5320 = scalar_lea.vmem %s5, 1
    %v5321 = vld [vmem:[%s5320] sm:$0x1]
    %v5323 = vlaneseq
    %v5324 = vshrl.u32 %v5323, 7
    %v5325 = vsub.s32 0, %v5324
    %v5326 = vrot.slane %v5321, %v5325
    %v5328 = vadd.f32 %v5174, %v5326
    %v5329 = vadd.f32 %v5175, %v5326
    %v5330 = vadd.f32 %v5176, %v5326
    %v5331 = vadd.f32 %v5177, %v5326
    %v5332 = vadd.f32 %v5178, %v5326
    %v5333 = vadd.f32 %v5179, %v5326
    %v5334 = vadd.f32 %v5180, %v5326
    %v5335 = vadd.f32 %v5181, %v5326
    %v5336 = vadd.f32 %v5182, %v5326
    %v5337 = vadd.f32 %v5183, %v5326
    %v5338 = vadd.f32 %v5184, %v5326
    %v5339 = vadd.f32 %v5185, %v5326
    %v5340 = vadd.f32 %v5186, %v5326
    %v5341 = vadd.f32 %v5187, %v5326
    %v5342 = vadd.f32 %v5188, %v5326
    %v5343 = vadd.f32 %v5189, %v5326
    %s5344 = scalar_lea.vmem %s7, 1
    %v5345 = vld [vmem:[%s5344] sm:$0x1]
    %v5347 = vlaneseq
    %v5348 = vshrl.u32 %v5347, 7
    %v5349 = vsub.s32 0, %v5348
    %v5350 = vrot.slane %v5345, %v5349
    %v5352 = vadd.f32 %v5304, %v5350
    %v5353 = vadd.f32 %v5305, %v5350
    %v5354 = vadd.f32 %v5306, %v5350
    %v5355 = vadd.f32 %v5307, %v5350
    %v5356 = vadd.f32 %v5308, %v5350
    %v5357 = vadd.f32 %v5309, %v5350
    %v5358 = vadd.f32 %v5310, %v5350
    %v5359 = vadd.f32 %v5311, %v5350
    %v5360 = vadd.f32 %v5312, %v5350
    %v5361 = vadd.f32 %v5313, %v5350
    %v5362 = vadd.f32 %v5314, %v5350
    %v5363 = vadd.f32 %v5315, %v5350
    %v5364 = vadd.f32 %v5316, %v5350
    %v5365 = vadd.f32 %v5317, %v5350
    %v5366 = vadd.f32 %v5318, %v5350
    %v5367 = vadd.f32 %v5319, %v5350
    %v5368 = vxor.u32 %v5352, 2147483648
    %v5369 = vxor.u32 %v5353, 2147483648
    %v5370 = vxor.u32 %v5354, 2147483648
    %v5371 = vxor.u32 %v5355, 2147483648
    %v5372 = vxor.u32 %v5356, 2147483648
    %v5373 = vxor.u32 %v5357, 2147483648
    %v5374 = vxor.u32 %v5358, 2147483648
    %v5375 = vxor.u32 %v5359, 2147483648
    %v5376 = vxor.u32 %v5360, 2147483648
    %v5377 = vxor.u32 %v5361, 2147483648
    %v5378 = vxor.u32 %v5362, 2147483648
    %v5379 = vxor.u32 %v5363, 2147483648
    %v5380 = vxor.u32 %v5364, 2147483648
    %v5381 = vxor.u32 %v5365, 2147483648
    %v5382 = vxor.u32 %v5366, 2147483648
    %v5383 = vxor.u32 %v5367, 2147483648
    %v5384 = vmul.f32 %v5368, 1.442695
    %v5385 = vpow.pop %v5384
    %v5386 = vmul.f32 %v5369, 1.442695
    %v5387 = vpow.pop %v5386
    %v5388 = vmul.f32 %v5370, 1.442695
    %v5389 = vpow.pop %v5388
    %v5390 = vmul.f32 %v5371, 1.442695
    %v5391 = vpow.pop %v5390
    %v5392 = vmul.f32 %v5372, 1.442695
    %v5393 = vpow.pop %v5392
    %v5394 = vmul.f32 %v5373, 1.442695
    %v5395 = vpow.pop %v5394
    %v5396 = vmul.f32 %v5374, 1.442695
    %v5397 = vpow.pop %v5396
    %v5398 = vmul.f32 %v5375, 1.442695
    %v5399 = vpow.pop %v5398
    %v5400 = vmul.f32 %v5376, 1.442695
    %v5401 = vpow.pop %v5400
    %v5402 = vmul.f32 %v5377, 1.442695
    %v5403 = vpow.pop %v5402
    %v5404 = vmul.f32 %v5378, 1.442695
    %v5405 = vpow.pop %v5404
    %v5406 = vmul.f32 %v5379, 1.442695
    %v5407 = vpow.pop %v5406
    %v5408 = vmul.f32 %v5380, 1.442695
    %v5409 = vpow.pop %v5408
    %v5410 = vmul.f32 %v5381, 1.442695
    %v5411 = vpow.pop %v5410
    %v5412 = vmul.f32 %v5382, 1.442695
    %v5413 = vpow.pop %v5412
    %v5414 = vmul.f32 %v5383, 1.442695
    %v5415 = vpow.pop %v5414
    %v5416 = vadd.f32 %v5385, 1.0
    %v5417 = vadd.f32 %v5387, 1.0
    %v5418 = vadd.f32 %v5389, 1.0
    %v5419 = vadd.f32 %v5391, 1.0
    %v5420 = vadd.f32 %v5393, 1.0
    %v5421 = vadd.f32 %v5395, 1.0
    %v5422 = vadd.f32 %v5397, 1.0
    %v5423 = vadd.f32 %v5399, 1.0
    %v5424 = vadd.f32 %v5401, 1.0
    %v5425 = vadd.f32 %v5403, 1.0
    %v5426 = vadd.f32 %v5405, 1.0
    %v5427 = vadd.f32 %v5407, 1.0
    %v5428 = vadd.f32 %v5409, 1.0
    %v5429 = vadd.f32 %v5411, 1.0
    %v5430 = vadd.f32 %v5413, 1.0
    %v5431 = vadd.f32 %v5415, 1.0
    %v5432 = vrcp.pop %v5416
    %v5433 = vmul.f32 1.0, %v5432
    %v5434 = vrcp.pop %v5417
    %v5435 = vmul.f32 1.0, %v5434
    %v5436 = vrcp.pop %v5418
    %v5437 = vmul.f32 1.0, %v5436
    %v5438 = vrcp.pop %v5419
    %v5439 = vmul.f32 1.0, %v5438
    %v5440 = vrcp.pop %v5420
    %v5441 = vmul.f32 1.0, %v5440
    %v5442 = vrcp.pop %v5421
    %v5443 = vmul.f32 1.0, %v5442
    %v5444 = vrcp.pop %v5422
    %v5445 = vmul.f32 1.0, %v5444
    %v5446 = vrcp.pop %v5423
    %v5447 = vmul.f32 1.0, %v5446
    %v5448 = vrcp.pop %v5424
    %v5449 = vmul.f32 1.0, %v5448
    %v5450 = vrcp.pop %v5425
    %v5451 = vmul.f32 1.0, %v5450
    %v5452 = vrcp.pop %v5426
    %v5453 = vmul.f32 1.0, %v5452
    %v5454 = vrcp.pop %v5427
    %v5455 = vmul.f32 1.0, %v5454
    %v5456 = vrcp.pop %v5428
    %v5457 = vmul.f32 1.0, %v5456
    %v5458 = vrcp.pop %v5429
    %v5459 = vmul.f32 1.0, %v5458
    %v5460 = vrcp.pop %v5430
    %v5461 = vmul.f32 1.0, %v5460
    %v5462 = vrcp.pop %v5431
    %v5463 = vmul.f32 1.0, %v5462
    %v5464 = vmul.f32 %v5328, %v5433
    %v5465 = vmul.f32 %v5329, %v5435
    %v5466 = vmul.f32 %v5330, %v5437
    %v5467 = vmul.f32 %v5331, %v5439
    %v5468 = vmul.f32 %v5332, %v5441
    %v5469 = vmul.f32 %v5333, %v5443
    %v5470 = vmul.f32 %v5334, %v5445
    %v5471 = vmul.f32 %v5335, %v5447
    %v5472 = vmul.f32 %v5336, %v5449
    %v5473 = vmul.f32 %v5337, %v5451
    %v5474 = vmul.f32 %v5338, %v5453
    %v5475 = vmul.f32 %v5339, %v5455
    %v5476 = vmul.f32 %v5340, %v5457
    %v5477 = vmul.f32 %v5341, %v5459
    %v5478 = vmul.f32 %v5342, %v5461
    %v5479 = vmul.f32 %v5343, %v5463
    %v5480 = vpack.c.bf16 %v5465, %v5464
    %v5481 = vpack.c.bf16 %v5467, %v5466
    %v5482 = vpack.c.bf16 %v5469, %v5468
    %v5483 = vpack.c.bf16 %v5471, %v5470
    %v5484 = vpack.c.bf16 %v5473, %v5472
    %v5485 = vpack.c.bf16 %v5475, %v5474
    %v5486 = vpack.c.bf16 %v5477, %v5476
    %v5487 = vpack.c.bf16 %v5479, %v5478
    %v5489 = vsel %vm734, %v5480, 0
    %v5492 = vsel %vm734, %v5481, 0
    %v5495 = vsel %vm734, %v5482, 0
    %v5498 = vsel %vm734, %v5483, 0
    %v5501 = vsel %vm734, %v5484, 0
    %v5504 = vsel %vm734, %v5485, 0
    %v5507 = vsel %vm734, %v5486, 0
    %v5510 = vsel %vm734, %v5487, 0
    %5512 = vmatprep.subr.bf16.mxu0 0
    %5513 = vmatpush1.bf16.msra.mxu0 %v1727
    %5514 = vmatprep.subr.bf16.mxu0 0
    %5515 = vmatpush1.bf16.msra.mxu0 %v1728
    %5516 = vmatprep.subr.bf16.mxu0 0
    %5517 = vmatpush1.bf16.msra.mxu0 0
    %5518 = vmatprep.subr.bf16.mxu0 0
    %5519 = vmatpush1.bf16.msra.mxu0 0
    %5520 = vmatprep.subr.bf16.mxu0 0
    %5521 = vmatpush1.bf16.msra.mxu0 0
    %5522 = vmatprep.subr.bf16.mxu0 0
    %5523 = vmatpush1.bf16.msra.mxu0 0
    %5524 = vmatprep.subr.bf16.mxu0 0
    %5525 = vmatpush1.bf16.msra.mxu0 0
    %5526 = vmatprep.subr.bf16.mxu0 0
    %5527 = vmatpush1.bf16.msra.mxu0 0
    %5528 = vmatprep.subr.bf16.mxu0 0
    %5529 = vmatpush1.bf16.msra.mxu0 0
    %5530 = vmatprep.subr.bf16.mxu0 0
    %5531 = vmatpush1.bf16.msra.mxu0 0
    %5532 = vmatprep.subr.bf16.mxu0 0
    %5533 = vmatpush1.bf16.msra.mxu0 0
    %5534 = vmatprep.subr.bf16.mxu0 0
    %5535 = vmatpush1.bf16.msra.mxu0 0
    %5536 = vmatprep.subr.bf16.mxu0 0
    %5537 = vmatpush1.bf16.msra.mxu0 0
    %5538 = vmatprep.subr.bf16.mxu0 0
    %5539 = vmatpush1.bf16.msra.mxu0 0
    %5540 = vmatprep.subr.bf16.mxu0 0
    %5541 = vmatpush1.bf16.msra.mxu0 0
    %5542 = vmatprep.subr.bf16.mxu0 0
    %5543 = vmatpush1.bf16.msra.mxu0 0
    %5544 = vmatprep.mubr.bf16.mxu0 0
    %5545 = vmatmul.mubr.bf16.gmra.mrb[0].mxu0 %v5489
    %v5546 = vpop.f32.mrb[0].mxu0
    %v5547 = vadd.f32 0.0, %v5546
    %v5548 = vpop.f32.mrb[0].mxu0
    %v5549 = vpop.f32.mrb[0].mxu0
    %v5550 = vadd.f32 0.0, %v5549
    %v5551 = vpop.f32.mrb[0].mxu0
    %5552 = vmatprep.mubr.bf16.mxu0 0
    %5553 = vmatmul.mubr.bf16.gmra.mrb[0].mxu0 %v5492
    %v5554 = vpop.f32.mrb[0].mxu0
    %v5555 = vadd.f32 0.0, %v5554
    %v5556 = vpop.f32.mrb[0].mxu0
    %v5557 = vpop.f32.mrb[0].mxu0
    %v5558 = vadd.f32 0.0, %v5557
    %v5559 = vpop.f32.mrb[0].mxu0
    %5560 = vmatprep.mubr.bf16.mxu0 0
    %5561 = vmatmul.mubr.bf16.gmra.mrb[0].mxu0 %v5495
    %v5562 = vpop.f32.mrb[0].mxu0
    %v5563 = vadd.f32 0.0, %v5562
    %v5564 = vpop.f32.mrb[0].mxu0
    %v5565 = vpop.f32.mrb[0].mxu0
    %v5566 = vadd.f32 0.0, %v5565
    %v5567 = vpop.f32.mrb[0].mxu0
    %5568 = vmatprep.mubr.bf16.mxu0 0
    %5569 = vmatmul.mubr.bf16.gmra.mrb[0].mxu0 %v5498
    %v5570 = vpop.f32.mrb[0].mxu0
    %v5571 = vadd.f32 0.0, %v5570
    %v5572 = vpop.f32.mrb[0].mxu0
    %v5573 = vpop.f32.mrb[0].mxu0
    %v5574 = vadd.f32 0.0, %v5573
    %v5575 = vpop.f32.mrb[0].mxu0
    %5576 = vmatprep.mubr.bf16.mxu0 0
    %5577 = vmatmul.mubr.bf16.gmra.mrb[0].mxu0 %v5501
    %v5578 = vpop.f32.mrb[0].mxu0
    %v5579 = vadd.f32 0.0, %v5578
    %v5580 = vpop.f32.mrb[0].mxu0
    %v5581 = vpop.f32.mrb[0].mxu0
    %v5582 = vadd.f32 0.0, %v5581
    %v5583 = vpop.f32.mrb[0].mxu0
    %5584 = vmatprep.mubr.bf16.mxu0 0
    %5585 = vmatmul.mubr.bf16.gmra.mrb[0].mxu0 %v5504
    %v5586 = vpop.f32.mrb[0].mxu0
    %v5587 = vadd.f32 0.0, %v5586
    %v5588 = vpop.f32.mrb[0].mxu0
    %v5589 = vpop.f32.mrb[0].mxu0
    %v5590 = vadd.f32 0.0, %v5589
    %v5591 = vpop.f32.mrb[0].mxu0
    %5592 = vmatprep.mubr.bf16.mxu0 0
    %5593 = vmatmul.mubr.bf16.gmra.mrb[0].mxu0 %v5507
    %v5594 = vpop.f32.mrb[0].mxu0
    %v5595 = vadd.f32 0.0, %v5594
    %v5596 = vpop.f32.mrb[0].mxu0
    %v5597 = vpop.f32.mrb[0].mxu0
    %v5598 = vadd.f32 0.0, %v5597
    %v5599 = vpop.f32.mrb[0].mxu0
    %5600 = vmatprep.mubr.bf16.mxu0 0
    %5601 = vmatmul.mubr.bf16.gmra.mrb[0].mxu0 %v5510
    %v5602 = vpop.f32.mrb[0].mxu0
    %v5603 = vadd.f32 0.0, %v5602
    %v5604 = vpop.f32.mrb[0].mxu0
    %v5605 = vpop.f32.mrb[0].mxu0
    %v5606 = vadd.f32 0.0, %v5605
    %v5607 = vpop.f32.mrb[0].mxu0
    %5608 = vdwg.mxu0
    %v5609 = vmul.f32 %v5547, 0.70710677
    %v5610 = vmul.f32 %v5550, 0.70710677
    %v5611 = vmul.f32 %v5555, 0.70710677
    %v5612 = vmul.f32 %v5558, 0.70710677
    %v5613 = vmul.f32 %v5563, 0.70710677
    %v5614 = vmul.f32 %v5566, 0.70710677
    %v5615 = vmul.f32 %v5571, 0.70710677
    %v5616 = vmul.f32 %v5574, 0.70710677
    %v5617 = vmul.f32 %v5579, 0.70710677
    %v5618 = vmul.f32 %v5582, 0.70710677
    %v5619 = vmul.f32 %v5587, 0.70710677
    %v5620 = vmul.f32 %v5590, 0.70710677
    %v5621 = vmul.f32 %v5595, 0.70710677
    %v5622 = vmul.f32 %v5598, 0.70710677
    %v5623 = vmul.f32 %v5603, 0.70710677
    %v5624 = vmul.f32 %v5606, 0.70710677
    %v5625 = vadd.f32 %v5609, %v59
    %v5626 = vadd.f32 %v5610, %v60
    %v5627 = vadd.f32 %v5611, %v61
    %v5628 = vadd.f32 %v5612, %v62
    %v5629 = vadd.f32 %v5613, %v63
    %v5630 = vadd.f32 %v5614, %v64
    %v5631 = vadd.f32 %v5615, %v65
    %v5632 = vadd.f32 %v5616, %v66
    %v5633 = vadd.f32 %v5617, %v67
    %v5634 = vadd.f32 %v5618, %v68
    %v5635 = vadd.f32 %v5619, %v69
    %v5636 = vadd.f32 %v5620, %v70
    %v5637 = vadd.f32 %v5621, %v71
    %v5638 = vadd.f32 %v5622, %v72
    %v5639 = vadd.f32 %v5623, %v73
    %v5640 = vadd.f32 %v5624, %v74
    %v5641 = vpack.c.bf16 %v5625, %v5625
    %v5642 = vpack.c.bf16 %v5626, %v5626
    %v5643 = vpack.c.bf16 %v5627, %v5627
    %v5644 = vpack.c.bf16 %v5628, %v5628
    %v5645 = vpack.c.bf16 %v5629, %v5629
    %v5646 = vpack.c.bf16 %v5630, %v5630
    %v5647 = vpack.c.bf16 %v5631, %v5631
    %v5648 = vpack.c.bf16 %v5632, %v5632
    %v5649 = vpack.c.bf16 %v5633, %v5633
    %v5650 = vpack.c.bf16 %v5634, %v5634
    %v5651 = vpack.c.bf16 %v5635, %v5635
    %v5652 = vpack.c.bf16 %v5636, %v5636
    %v5653 = vpack.c.bf16 %v5637, %v5637
    %v5654 = vpack.c.bf16 %v5638, %v5638
    %v5655 = vpack.c.bf16 %v5639, %v5639
    %v5656 = vpack.c.bf16 %v5640, %v5640
    %v5658 = vsel %vm734, %v5641, 0
    %5660 = vmatprep.subr.bf16.mxu0 0
    %5661 = vmatpush1.bf16.msra.mxu0 %v1908
    %5662 = vmatprep.subr.bf16.mxu0 0
    %5663 = vmatpush1.bf16.msra.mxu0 %v1909
    %5664 = vmatprep.subr.bf16.mxu0 0
    %5665 = vmatpush1.bf16.msra.mxu0 0
    %5666 = vmatprep.subr.bf16.mxu0 0
    %5667 = vmatpush1.bf16.msra.mxu0 0
    %5668 = vmatprep.subr.bf16.mxu0 0
    %5669 = vmatpush1.bf16.msra.mxu0 0
    %5670 = vmatprep.subr.bf16.mxu0 0
    %5671 = vmatpush1.bf16.msra.mxu0 0
    %5672 = vmatprep.subr.bf16.mxu0 0
    %5673 = vmatpush1.bf16.msra.mxu0 0
    %5674 = vmatprep.subr.bf16.mxu0 0
    %5675 = vmatpush1.bf16.msra.mxu0 0
    %5676 = vmatprep.subr.bf16.mxu0 0
    %5677 = vmatpush1.bf16.msra.mxu0 0
    %5678 = vmatprep.subr.bf16.mxu0 0
    %5679 = vmatpush1.bf16.msra.mxu0 0
    %5680 = vmatprep.subr.bf16.mxu0 0
    %5681 = vmatpush1.bf16.msra.mxu0 0
    %5682 = vmatprep.subr.bf16.mxu0 0
    %5683 = vmatpush1.bf16.msra.mxu0 0
    %5684 = vmatprep.subr.bf16.mxu0 0
    %5685 = vmatpush1.bf16.msra.mxu0 0
    %5686 = vmatprep.subr.bf16.mxu0 0
    %5687 = vmatpush1.bf16.msra.mxu0 0
    %5688 = vmatprep.subr.bf16.mxu0 0
    %5689 = vmatpush1.bf16.msra.mxu0 0
    %5690 = vmatprep.subr.bf16.mxu0 0
    %5691 = vmatpush1.bf16.msra.mxu0 0
    %5692 = vmatprep.mubr.bf16.mxu0 0
    %5693 = vmatmul.mubr.bf16.gmra.mrb[0].mxu0 %v5658
    %v5694 = vpop.f32.mrb[0].mxu0
    %v5695 = vadd.f32 %v643, %v5694
    %v5696 = vpop.f32.mrb[0].mxu0
    %v5697 = vpop.f32.mrb[0].mxu0
    %v5698 = vpop.f32.mrb[0].mxu0
    %5699 = vdwg.mxu0
    %v5701 = vsel %vm734, %v5642, 0
    %5703 = vmatprep.subr.bf16.mxu0 0
    %5704 = vmatpush1.bf16.msra.mxu0 %v1963
    %5705 = vmatprep.subr.bf16.mxu0 0
    %5706 = vmatpush1.bf16.msra.mxu0 %v1964
    %5707 = vmatprep.subr.bf16.mxu0 0
    %5708 = vmatpush1.bf16.msra.mxu0 0
    %5709 = vmatprep.subr.bf16.mxu0 0
    %5710 = vmatpush1.bf16.msra.mxu0 0
    %5711 = vmatprep.subr.bf16.mxu0 0
    %5712 = vmatpush1.bf16.msra.mxu0 0
    %5713 = vmatprep.subr.bf16.mxu0 0
    %5714 = vmatpush1.bf16.msra.mxu0 0
    %5715 = vmatprep.subr.bf16.mxu0 0
    %5716 = vmatpush1.bf16.msra.mxu0 0
    %5717 = vmatprep.subr.bf16.mxu0 0
    %5718 = vmatpush1.bf16.msra.mxu0 0
    %5719 = vmatprep.subr.bf16.mxu0 0
    %5720 = vmatpush1.bf16.msra.mxu0 0
    %5721 = vmatprep.subr.bf16.mxu0 0
    %5722 = vmatpush1.bf16.msra.mxu0 0
    %5723 = vmatprep.subr.bf16.mxu0 0
    %5724 = vmatpush1.bf16.msra.mxu0 0
    %5725 = vmatprep.subr.bf16.mxu0 0
    %5726 = vmatpush1.bf16.msra.mxu0 0
    %5727 = vmatprep.subr.bf16.mxu0 0
    %5728 = vmatpush1.bf16.msra.mxu0 0
    %5729 = vmatprep.subr.bf16.mxu0 0
    %5730 = vmatpush1.bf16.msra.mxu0 0
    %5731 = vmatprep.subr.bf16.mxu0 0
    %5732 = vmatpush1.bf16.msra.mxu0 0
    %5733 = vmatprep.subr.bf16.mxu0 0
    %5734 = vmatpush1.bf16.msra.mxu0 0
    %5735 = vmatprep.mubr.bf16.mxu0 0
    %5736 = vmatmul.mubr.bf16.gmra.mrb[0].mxu0 %v5701
    %v5737 = vpop.f32.mrb[0].mxu0
    %v5738 = vadd.f32 %v643, %v5737
    %v5739 = vpop.f32.mrb[0].mxu0
    %v5740 = vpop.f32.mrb[0].mxu0
    %v5741 = vpop.f32.mrb[0].mxu0
    %5742 = vdwg.mxu0
    %v5744 = vsel %vm734, %v5643, 0
    %5746 = vmatprep.subr.bf16.mxu0 0
    %5747 = vmatpush1.bf16.msra.mxu0 %v2018
    %5748 = vmatprep.subr.bf16.mxu0 0
    %5749 = vmatpush1.bf16.msra.mxu0 %v2019
    %5750 = vmatprep.subr.bf16.mxu0 0
    %5751 = vmatpush1.bf16.msra.mxu0 0
    %5752 = vmatprep.subr.bf16.mxu0 0
    %5753 = vmatpush1.bf16.msra.mxu0 0
    %5754 = vmatprep.subr.bf16.mxu0 0
    %5755 = vmatpush1.bf16.msra.mxu0 0
    %5756 = vmatprep.subr.bf16.mxu0 0
    %5757 = vmatpush1.bf16.msra.mxu0 0
    %5758 = vmatprep.subr.bf16.mxu0 0
    %5759 = vmatpush1.bf16.msra.mxu0 0
    %5760 = vmatprep.subr.bf16.mxu0 0
    %5761 = vmatpush1.bf16.msra.mxu0 0
    %5762 = vmatprep.subr.bf16.mxu0 0
    %5763 = vmatpush1.bf16.msra.mxu0 0
    %5764 = vmatprep.subr.bf16.mxu0 0
    %5765 = vmatpush1.bf16.msra.mxu0 0
    %5766 = vmatprep.subr.bf16.mxu0 0
    %5767 = vmatpush1.bf16.msra.mxu0 0
    %5768 = vmatprep.subr.bf16.mxu0 0
    %5769 = vmatpush1.bf16.msra.mxu0 0
    %5770 = vmatprep.subr.bf16.mxu0 0
    %5771 = vmatpush1.bf16.msra.mxu0 0
    %5772 = vmatprep.subr.bf16.mxu0 0
    %5773 = vmatpush1.bf16.msra.mxu0 0
    %5774 = vmatprep.subr.bf16.mxu0 0
    %5775 = vmatpush1.bf16.msra.mxu0 0
    %5776 = vmatprep.subr.bf16.mxu0 0
    %5777 = vmatpush1.bf16.msra.mxu0 0
    %5778 = vmatprep.mubr.bf16.mxu0 0
    %5779 = vmatmul.mubr.bf16.gmra.mrb[0].mxu0 %v5744
    %v5780 = vpop.f32.mrb[0].mxu0
    %v5781 = vadd.f32 %v643, %v5780
    %v5782 = vpop.f32.mrb[0].mxu0
    %v5783 = vpop.f32.mrb[0].mxu0
    %v5784 = vpop.f32.mrb[0].mxu0
    %5785 = vdwg.mxu0
    %v5787 = vsel %vm734, %v5644, 0
    %5789 = vmatprep.subr.bf16.mxu0 0
    %5790 = vmatpush1.bf16.msra.mxu0 %v2073
    %5791 = vmatprep.subr.bf16.mxu0 0
    %5792 = vmatpush1.bf16.msra.mxu0 %v2074
    %5793 = vmatprep.subr.bf16.mxu0 0
    %5794 = vmatpush1.bf16.msra.mxu0 0
    %5795 = vmatprep.subr.bf16.mxu0 0
    %5796 = vmatpush1.bf16.msra.mxu0 0
    %5797 = vmatprep.subr.bf16.mxu0 0
    %5798 = vmatpush1.bf16.msra.mxu0 0
    %5799 = vmatprep.subr.bf16.mxu0 0
    %5800 = vmatpush1.bf16.msra.mxu0 0
    %5801 = vmatprep.subr.bf16.mxu0 0
    %5802 = vmatpush1.bf16.msra.mxu0 0
    %5803 = vmatprep.subr.bf16.mxu0 0
    %5804 = vmatpush1.bf16.msra.mxu0 0
    %5805 = vmatprep.subr.bf16.mxu0 0
    %5806 = vmatpush1.bf16.msra.mxu0 0
    %5807 = vmatprep.subr.bf16.mxu0 0
    %5808 = vmatpush1.bf16.msra.mxu0 0
    %5809 = vmatprep.subr.bf16.mxu0 0
    %5810 = vmatpush1.bf16.msra.mxu0 0
    %5811 = vmatprep.subr.bf16.mxu0 0
    %5812 = vmatpush1.bf16.msra.mxu0 0
    %5813 = vmatprep.subr.bf16.mxu0 0
    %5814 = vmatpush1.bf16.msra.mxu0 0
    %5815 = vmatprep.subr.bf16.mxu0 0
    %5816 = vmatpush1.bf16.msra.mxu0 0
    %5817 = vmatprep.subr.bf16.mxu0 0
    %5818 = vmatpush1.bf16.msra.mxu0 0
    %5819 = vmatprep.subr.bf16.mxu0 0
    %5820 = vmatpush1.bf16.msra.mxu0 0
    %5821 = vmatprep.mubr.bf16.mxu0 0
    %5822 = vmatmul.mubr.bf16.gmra.mrb[0].mxu0 %v5787
    %v5823 = vpop.f32.mrb[0].mxu0
    %v5824 = vadd.f32 %v643, %v5823
    %v5825 = vpop.f32.mrb[0].mxu0
    %v5826 = vpop.f32.mrb[0].mxu0
    %v5827 = vpop.f32.mrb[0].mxu0
    %5828 = vdwg.mxu0
    %v5830 = vsel %vm734, %v5645, 0
    %5832 = vmatprep.subr.bf16.mxu0 0
    %5833 = vmatpush1.bf16.msra.mxu0 %v2128
    %5834 = vmatprep.subr.bf16.mxu0 0
    %5835 = vmatpush1.bf16.msra.mxu0 %v2129
    %5836 = vmatprep.subr.bf16.mxu0 0
    %5837 = vmatpush1.bf16.msra.mxu0 0
    %5838 = vmatprep.subr.bf16.mxu0 0
    %5839 = vmatpush1.bf16.msra.mxu0 0
    %5840 = vmatprep.subr.bf16.mxu0 0
    %5841 = vmatpush1.bf16.msra.mxu0 0
    %5842 = vmatprep.subr.bf16.mxu0 0
    %5843 = vmatpush1.bf16.msra.mxu0 0
    %5844 = vmatprep.subr.bf16.mxu0 0
    %5845 = vmatpush1.bf16.msra.mxu0 0
    %5846 = vmatprep.subr.bf16.mxu0 0
    %5847 = vmatpush1.bf16.msra.mxu0 0
    %5848 = vmatprep.subr.bf16.mxu0 0
    %5849 = vmatpush1.bf16.msra.mxu0 0
    %5850 = vmatprep.subr.bf16.mxu0 0
    %5851 = vmatpush1.bf16.msra.mxu0 0
    %5852 = vmatprep.subr.bf16.mxu0 0
    %5853 = vmatpush1.bf16.msra.mxu0 0
    %5854 = vmatprep.subr.bf16.mxu0 0
    %5855 = vmatpush1.bf16.msra.mxu0 0
    %5856 = vmatprep.subr.bf16.mxu0 0
    %5857 = vmatpush1.bf16.msra.mxu0 0
    %5858 = vmatprep.subr.bf16.mxu0 0
    %5859 = vmatpush1.bf16.msra.mxu0 0
    %5860 = vmatprep.subr.bf16.mxu0 0
    %5861 = vmatpush1.bf16.msra.mxu0 0
    %5862 = vmatprep.subr.bf16.mxu0 0
    %5863 = vmatpush1.bf16.msra.mxu0 0
    %5864 = vmatprep.mubr.bf16.mxu0 0
    %5865 = vmatmul.mubr.bf16.gmra.mrb[0].mxu0 %v5830
    %v5866 = vpop.f32.mrb[0].mxu0
    %v5867 = vadd.f32 %v643, %v5866
    %v5868 = vpop.f32.mrb[0].mxu0
    %v5869 = vpop.f32.mrb[0].mxu0
    %v5870 = vpop.f32.mrb[0].mxu0
    %5871 = vdwg.mxu0
    %v5873 = vsel %vm734, %v5646, 0
    %5875 = vmatprep.subr.bf16.mxu0 0
    %5876 = vmatpush1.bf16.msra.mxu0 %v2183
    %5877 = vmatprep.subr.bf16.mxu0 0
    %5878 = vmatpush1.bf16.msra.mxu0 %v2184
    %5879 = vmatprep.subr.bf16.mxu0 0
    %5880 = vmatpush1.bf16.msra.mxu0 0
    %5881 = vmatprep.subr.bf16.mxu0 0
    %5882 = vmatpush1.bf16.msra.mxu0 0
    %5883 = vmatprep.subr.bf16.mxu0 0
    %5884 = vmatpush1.bf16.msra.mxu0 0
    %5885 = vmatprep.subr.bf16.mxu0 0
    %5886 = vmatpush1.bf16.msra.mxu0 0
    %5887 = vmatprep.subr.bf16.mxu0 0
    %5888 = vmatpush1.bf16.msra.mxu0 0
    %5889 = vmatprep.subr.bf16.mxu0 0
    %5890 = vmatpush1.bf16.msra.mxu0 0
    %5891 = vmatprep.subr.bf16.mxu0 0
    %5892 = vmatpush1.bf16.msra.mxu0 0
    %5893 = vmatprep.subr.bf16.mxu0 0
    %5894 = vmatpush1.bf16.msra.mxu0 0
    %5895 = vmatprep.subr.bf16.mxu0 0
    %5896 = vmatpush1.bf16.msra.mxu0 0
    %5897 = vmatprep.subr.bf16.mxu0 0
    %5898 = vmatpush1.bf16.msra.mxu0 0
    %5899 = vmatprep.subr.bf16.mxu0 0
    %5900 = vmatpush1.bf16.msra.mxu0 0
    %5901 = vmatprep.subr.bf16.mxu0 0
    %5902 = vmatpush1.bf16.msra.mxu0 0
    %5903 = vmatprep.subr.bf16.mxu0 0
    %5904 = vmatpush1.bf16.msra.mxu0 0
    %5905 = vmatprep.subr.bf16.mxu0 0
    %5906 = vmatpush1.bf16.msra.mxu0 0
    %5907 = vmatprep.mubr.bf16.mxu0 0
    %5908 = vmatmul.mubr.bf16.gmra.mrb[0].mxu0 %v5873
    %v5909 = vpop.f32.mrb[0].mxu0
    %v5910 = vadd.f32 %v643, %v5909
    %v5911 = vpop.f32.mrb[0].mxu0
    %v5912 = vpop.f32.mrb[0].mxu0
    %v5913 = vpop.f32.mrb[0].mxu0
    %5914 = vdwg.mxu0
    %v5916 = vsel %vm734, %v5647, 0
    %5918 = vmatprep.subr.bf16.mxu0 0
    %5919 = vmatpush1.bf16.msra.mxu0 %v2238
    %5920 = vmatprep.subr.bf16.mxu0 0
    %5921 = vmatpush1.bf16.msra.mxu0 %v2239
    %5922 = vmatprep.subr.bf16.mxu0 0
    %5923 = vmatpush1.bf16.msra.mxu0 0
    %5924 = vmatprep.subr.bf16.mxu0 0
    %5925 = vmatpush1.bf16.msra.mxu0 0
    %5926 = vmatprep.subr.bf16.mxu0 0
    %5927 = vmatpush1.bf16.msra.mxu0 0
    %5928 = vmatprep.subr.bf16.mxu0 0
    %5929 = vmatpush1.bf16.msra.mxu0 0
    %5930 = vmatprep.subr.bf16.mxu0 0
    %5931 = vmatpush1.bf16.msra.mxu0 0
    %5932 = vmatprep.subr.bf16.mxu0 0
    %5933 = vmatpush1.bf16.msra.mxu0 0
    %5934 = vmatprep.subr.bf16.mxu0 0
    %5935 = vmatpush1.bf16.msra.mxu0 0
    %5936 = vmatprep.subr.bf16.mxu0 0
    %5937 = vmatpush1.bf16.msra.mxu0 0
    %5938 = vmatprep.subr.bf16.mxu0 0
    %5939 = vmatpush1.bf16.msra.mxu0 0
    %5940 = vmatprep.subr.bf16.mxu0 0
    %5941 = vmatpush1.bf16.msra.mxu0 0
    %5942 = vmatprep.subr.bf16.mxu0 0
    %5943 = vmatpush1.bf16.msra.mxu0 0
    %5944 = vmatprep.subr.bf16.mxu0 0
    %5945 = vmatpush1.bf16.msra.mxu0 0
    %5946 = vmatprep.subr.bf16.mxu0 0
    %5947 = vmatpush1.bf16.msra.mxu0 0
    %5948 = vmatprep.subr.bf16.mxu0 0
    %5949 = vmatpush1.bf16.msra.mxu0 0
    %5950 = vmatprep.mubr.bf16.mxu0 0
    %5951 = vmatmul.mubr.bf16.gmra.mrb[0].mxu0 %v5916
    %v5952 = vpop.f32.mrb[0].mxu0
    %v5953 = vadd.f32 %v643, %v5952
    %v5954 = vpop.f32.mrb[0].mxu0
    %v5955 = vpop.f32.mrb[0].mxu0
    %v5956 = vpop.f32.mrb[0].mxu0
    %5957 = vdwg.mxu0
    %v5959 = vsel %vm734, %v5648, 0
    %5961 = vmatprep.subr.bf16.mxu0 0
    %5962 = vmatpush1.bf16.msra.mxu0 %v2293
    %5963 = vmatprep.subr.bf16.mxu0 0
    %5964 = vmatpush1.bf16.msra.mxu0 %v2294
    %5965 = vmatprep.subr.bf16.mxu0 0
    %5966 = vmatpush1.bf16.msra.mxu0 0
    %5967 = vmatprep.subr.bf16.mxu0 0
    %5968 = vmatpush1.bf16.msra.mxu0 0
    %5969 = vmatprep.subr.bf16.mxu0 0
    %5970 = vmatpush1.bf16.msra.mxu0 0
    %5971 = vmatprep.subr.bf16.mxu0 0
    %5972 = vmatpush1.bf16.msra.mxu0 0
    %5973 = vmatprep.subr.bf16.mxu0 0
    %5974 = vmatpush1.bf16.msra.mxu0 0
    %5975 = vmatprep.subr.bf16.mxu0 0
    %5976 = vmatpush1.bf16.msra.mxu0 0
    %5977 = vmatprep.subr.bf16.mxu0 0
    %5978 = vmatpush1.bf16.msra.mxu0 0
    %5979 = vmatprep.subr.bf16.mxu0 0
    %5980 = vmatpush1.bf16.msra.mxu0 0
    %5981 = vmatprep.subr.bf16.mxu0 0
    %5982 = vmatpush1.bf16.msra.mxu0 0
    %5983 = vmatprep.subr.bf16.mxu0 0
    %5984 = vmatpush1.bf16.msra.mxu0 0
    %5985 = vmatprep.subr.bf16.mxu0 0
    %5986 = vmatpush1.bf16.msra.mxu0 0
    %5987 = vmatprep.subr.bf16.mxu0 0
    %5988 = vmatpush1.bf16.msra.mxu0 0
    %5989 = vmatprep.subr.bf16.mxu0 0
    %5990 = vmatpush1.bf16.msra.mxu0 0
    %5991 = vmatprep.subr.bf16.mxu0 0
    %5992 = vmatpush1.bf16.msra.mxu0 0
    %5993 = vmatprep.mubr.bf16.mxu0 0
    %5994 = vmatmul.mubr.bf16.gmra.mrb[0].mxu0 %v5959
    %v5995 = vpop.f32.mrb[0].mxu0
    %v5996 = vadd.f32 %v643, %v5995
    %v5997 = vpop.f32.mrb[0].mxu0
    %v5998 = vpop.f32.mrb[0].mxu0
    %v5999 = vpop.f32.mrb[0].mxu0
    %6000 = vdwg.mxu0
    %v6002 = vsel %vm734, %v5649, 0
    %6004 = vmatprep.subr.bf16.mxu0 0
    %6005 = vmatpush1.bf16.msra.mxu0 %v2348
    %6006 = vmatprep.subr.bf16.mxu0 0
    %6007 = vmatpush1.bf16.msra.mxu0 %v2349
    %6008 = vmatprep.subr.bf16.mxu0 0
    %6009 = vmatpush1.bf16.msra.mxu0 0
    %6010 = vmatprep.subr.bf16.mxu0 0
    %6011 = vmatpush1.bf16.msra.mxu0 0
    %6012 = vmatprep.subr.bf16.mxu0 0
    %6013 = vmatpush1.bf16.msra.mxu0 0
    %6014 = vmatprep.subr.bf16.mxu0 0
    %6015 = vmatpush1.bf16.msra.mxu0 0
    %6016 = vmatprep.subr.bf16.mxu0 0
    %6017 = vmatpush1.bf16.msra.mxu0 0
    %6018 = vmatprep.subr.bf16.mxu0 0
    %6019 = vmatpush1.bf16.msra.mxu0 0
    %6020 = vmatprep.subr.bf16.mxu0 0
    %6021 = vmatpush1.bf16.msra.mxu0 0
    %6022 = vmatprep.subr.bf16.mxu0 0
    %6023 = vmatpush1.bf16.msra.mxu0 0
    %6024 = vmatprep.subr.bf16.mxu0 0
    %6025 = vmatpush1.bf16.msra.mxu0 0
    %6026 = vmatprep.subr.bf16.mxu0 0
    %6027 = vmatpush1.bf16.msra.mxu0 0
    %6028 = vmatprep.subr.bf16.mxu0 0
    %6029 = vmatpush1.bf16.msra.mxu0 0
    %6030 = vmatprep.subr.bf16.mxu0 0
    %6031 = vmatpush1.bf16.msra.mxu0 0
    %6032 = vmatprep.subr.bf16.mxu0 0
    %6033 = vmatpush1.bf16.msra.mxu0 0
    %6034 = vmatprep.subr.bf16.mxu0 0
    %6035 = vmatpush1.bf16.msra.mxu0 0
    %6036 = vmatprep.mubr.bf16.mxu0 0
    %6037 = vmatmul.mubr.bf16.gmra.mrb[0].mxu0 %v6002
    %v6038 = vpop.f32.mrb[0].mxu0
    %v6039 = vadd.f32 %v643, %v6038
    %v6040 = vpop.f32.mrb[0].mxu0
    %v6041 = vpop.f32.mrb[0].mxu0
    %v6042 = vpop.f32.mrb[0].mxu0
    %6043 = vdwg.mxu0
    %v6045 = vsel %vm734, %v5650, 0
    %6047 = vmatprep.subr.bf16.mxu0 0
    %6048 = vmatpush1.bf16.msra.mxu0 %v2403
    %6049 = vmatprep.subr.bf16.mxu0 0
    %6050 = vmatpush1.bf16.msra.mxu0 %v2404
    %6051 = vmatprep.subr.bf16.mxu0 0
    %6052 = vmatpush1.bf16.msra.mxu0 0
    %6053 = vmatprep.subr.bf16.mxu0 0
    %6054 = vmatpush1.bf16.msra.mxu0 0
    %6055 = vmatprep.subr.bf16.mxu0 0
    %6056 = vmatpush1.bf16.msra.mxu0 0
    %6057 = vmatprep.subr.bf16.mxu0 0
    %6058 = vmatpush1.bf16.msra.mxu0 0
    %6059 = vmatprep.subr.bf16.mxu0 0
    %6060 = vmatpush1.bf16.msra.mxu0 0
    %6061 = vmatprep.subr.bf16.mxu0 0
    %6062 = vmatpush1.bf16.msra.mxu0 0
    %6063 = vmatprep.subr.bf16.mxu0 0
    %6064 = vmatpush1.bf16.msra.mxu0 0
    %6065 = vmatprep.subr.bf16.mxu0 0
    %6066 = vmatpush1.bf16.msra.mxu0 0
    %6067 = vmatprep.subr.bf16.mxu0 0
    %6068 = vmatpush1.bf16.msra.mxu0 0
    %6069 = vmatprep.subr.bf16.mxu0 0
    %6070 = vmatpush1.bf16.msra.mxu0 0
    %6071 = vmatprep.subr.bf16.mxu0 0
    %6072 = vmatpush1.bf16.msra.mxu0 0
    %6073 = vmatprep.subr.bf16.mxu0 0
    %6074 = vmatpush1.bf16.msra.mxu0 0
    %6075 = vmatprep.subr.bf16.mxu0 0
    %6076 = vmatpush1.bf16.msra.mxu0 0
    %6077 = vmatprep.subr.bf16.mxu0 0
    %6078 = vmatpush1.bf16.msra.mxu0 0
    %6079 = vmatprep.mubr.bf16.mxu0 0
    %6080 = vmatmul.mubr.bf16.gmra.mrb[0].mxu0 %v6045
    %v6081 = vpop.f32.mrb[0].mxu0
    %v6082 = vadd.f32 %v643, %v6081
    %v6083 = vpop.f32.mrb[0].mxu0
    %v6084 = vpop.f32.mrb[0].mxu0
    %v6085 = vpop.f32.mrb[0].mxu0
    %6086 = vdwg.mxu0
    %v6088 = vsel %vm734, %v5651, 0
    %6090 = vmatprep.subr.bf16.mxu0 0
    %6091 = vmatpush1.bf16.msra.mxu0 %v2458
    %6092 = vmatprep.subr.bf16.mxu0 0
    %6093 = vmatpush1.bf16.msra.mxu0 %v2459
    %6094 = vmatprep.subr.bf16.mxu0 0
    %6095 = vmatpush1.bf16.msra.mxu0 0
    %6096 = vmatprep.subr.bf16.mxu0 0
    %6097 = vmatpush1.bf16.msra.mxu0 0
    %6098 = vmatprep.subr.bf16.mxu0 0
    %6099 = vmatpush1.bf16.msra.mxu0 0
    %6100 = vmatprep.subr.bf16.mxu0 0
    %6101 = vmatpush1.bf16.msra.mxu0 0
    %6102 = vmatprep.subr.bf16.mxu0 0
    %6103 = vmatpush1.bf16.msra.mxu0 0
    %6104 = vmatprep.subr.bf16.mxu0 0
    %6105 = vmatpush1.bf16.msra.mxu0 0
    %6106 = vmatprep.subr.bf16.mxu0 0
    %6107 = vmatpush1.bf16.msra.mxu0 0
    %6108 = vmatprep.subr.bf16.mxu0 0
    %6109 = vmatpush1.bf16.msra.mxu0 0
    %6110 = vmatprep.subr.bf16.mxu0 0
    %6111 = vmatpush1.bf16.msra.mxu0 0
    %6112 = vmatprep.subr.bf16.mxu0 0
    %6113 = vmatpush1.bf16.msra.mxu0 0
    %6114 = vmatprep.subr.bf16.mxu0 0
    %6115 = vmatpush1.bf16.msra.mxu0 0
    %6116 = vmatprep.subr.bf16.mxu0 0
    %6117 = vmatpush1.bf16.msra.mxu0 0
    %6118 = vmatprep.subr.bf16.mxu0 0
    %6119 = vmatpush1.bf16.msra.mxu0 0
    %6120 = vmatprep.subr.bf16.mxu0 0
    %6121 = vmatpush1.bf16.msra.mxu0 0
    %6122 = vmatprep.mubr.bf16.mxu0 0
    %6123 = vmatmul.mubr.bf16.gmra.mrb[0].mxu0 %v6088
    %v6124 = vpop.f32.mrb[0].mxu0
    %v6125 = vadd.f32 %v643, %v6124
    %v6126 = vpop.f32.mrb[0].mxu0
    %v6127 = vpop.f32.mrb[0].mxu0
    %v6128 = vpop.f32.mrb[0].mxu0
    %6129 = vdwg.mxu0
    %v6131 = vsel %vm734, %v5652, 0
    %6133 = vmatprep.subr.bf16.mxu0 0
    %6134 = vmatpush1.bf16.msra.mxu0 %v2513
    %6135 = vmatprep.subr.bf16.mxu0 0
    %6136 = vmatpush1.bf16.msra.mxu0 %v2514
    %6137 = vmatprep.subr.bf16.mxu0 0
    %6138 = vmatpush1.bf16.msra.mxu0 0
    %6139 = vmatprep.subr.bf16.mxu0 0
    %6140 = vmatpush1.bf16.msra.mxu0 0
    %6141 = vmatprep.subr.bf16.mxu0 0
    %6142 = vmatpush1.bf16.msra.mxu0 0
    %6143 = vmatprep.subr.bf16.mxu0 0
    %6144 = vmatpush1.bf16.msra.mxu0 0
    %6145 = vmatprep.subr.bf16.mxu0 0
    %6146 = vmatpush1.bf16.msra.mxu0 0
    %6147 = vmatprep.subr.bf16.mxu0 0
    %6148 = vmatpush1.bf16.msra.mxu0 0
    %6149 = vmatprep.subr.bf16.mxu0 0
    %6150 = vmatpush1.bf16.msra.mxu0 0
    %6151 = vmatprep.subr.bf16.mxu0 0
    %6152 = vmatpush1.bf16.msra.mxu0 0
    %6153 = vmatprep.subr.bf16.mxu0 0
    %6154 = vmatpush1.bf16.msra.mxu0 0
    %6155 = vmatprep.subr.bf16.mxu0 0
    %6156 = vmatpush1.bf16.msra.mxu0 0
    %6157 = vmatprep.subr.bf16.mxu0 0
    %6158 = vmatpush1.bf16.msra.mxu0 0
    %6159 = vmatprep.subr.bf16.mxu0 0
    %6160 = vmatpush1.bf16.msra.mxu0 0
    %6161 = vmatprep.subr.bf16.mxu0 0
    %6162 = vmatpush1.bf16.msra.mxu0 0
    %6163 = vmatprep.subr.bf16.mxu0 0
    %6164 = vmatpush1.bf16.msra.mxu0 0
    %6165 = vmatprep.mubr.bf16.mxu0 0
    %6166 = vmatmul.mubr.bf16.gmra.mrb[0].mxu0 %v6131
    %v6167 = vpop.f32.mrb[0].mxu0
    %v6168 = vadd.f32 %v643, %v6167
    %v6169 = vpop.f32.mrb[0].mxu0
    %v6170 = vpop.f32.mrb[0].mxu0
    %v6171 = vpop.f32.mrb[0].mxu0
    %6172 = vdwg.mxu0
    %v6174 = vsel %vm734, %v5653, 0
    %6176 = vmatprep.subr.bf16.mxu0 0
    %6177 = vmatpush1.bf16.msra.mxu0 %v2568
    %6178 = vmatprep.subr.bf16.mxu0 0
    %6179 = vmatpush1.bf16.msra.mxu0 %v2569
    %6180 = vmatprep.subr.bf16.mxu0 0
    %6181 = vmatpush1.bf16.msra.mxu0 0
    %6182 = vmatprep.subr.bf16.mxu0 0
    %6183 = vmatpush1.bf16.msra.mxu0 0
    %6184 = vmatprep.subr.bf16.mxu0 0
    %6185 = vmatpush1.bf16.msra.mxu0 0
    %6186 = vmatprep.subr.bf16.mxu0 0
    %6187 = vmatpush1.bf16.msra.mxu0 0
    %6188 = vmatprep.subr.bf16.mxu0 0
    %6189 = vmatpush1.bf16.msra.mxu0 0
    %6190 = vmatprep.subr.bf16.mxu0 0
    %6191 = vmatpush1.bf16.msra.mxu0 0
    %6192 = vmatprep.subr.bf16.mxu0 0
    %6193 = vmatpush1.bf16.msra.mxu0 0
    %6194 = vmatprep.subr.bf16.mxu0 0
    %6195 = vmatpush1.bf16.msra.mxu0 0
    %6196 = vmatprep.subr.bf16.mxu0 0
    %6197 = vmatpush1.bf16.msra.mxu0 0
    %6198 = vmatprep.subr.bf16.mxu0 0
    %6199 = vmatpush1.bf16.msra.mxu0 0
    %6200 = vmatprep.subr.bf16.mxu0 0
    %6201 = vmatpush1.bf16.msra.mxu0 0
    %6202 = vmatprep.subr.bf16.mxu0 0
    %6203 = vmatpush1.bf16.msra.mxu0 0
    %6204 = vmatprep.subr.bf16.mxu0 0
    %6205 = vmatpush1.bf16.msra.mxu0 0
    %6206 = vmatprep.subr.bf16.mxu0 0
    %6207 = vmatpush1.bf16.msra.mxu0 0
    %6208 = vmatprep.mubr.bf16.mxu0 0
    %6209 = vmatmul.mubr.bf16.gmra.mrb[0].mxu0 %v6174
    %v6210 = vpop.f32.mrb[0].mxu0
    %v6211 = vadd.f32 %v643, %v6210
    %v6212 = vpop.f32.mrb[0].mxu0
    %v6213 = vpop.f32.mrb[0].mxu0
    %v6214 = vpop.f32.mrb[0].mxu0
    %6215 = vdwg.mxu0
    %v6217 = vsel %vm734, %v5654, 0
    %6219 = vmatprep.subr.bf16.mxu0 0
    %6220 = vmatpush1.bf16.msra.mxu0 %v2623
    %6221 = vmatprep.subr.bf16.mxu0 0
    %6222 = vmatpush1.bf16.msra.mxu0 %v2624
    %6223 = vmatprep.subr.bf16.mxu0 0
    %6224 = vmatpush1.bf16.msra.mxu0 0
    %6225 = vmatprep.subr.bf16.mxu0 0
    %6226 = vmatpush1.bf16.msra.mxu0 0
    %6227 = vmatprep.subr.bf16.mxu0 0
    %6228 = vmatpush1.bf16.msra.mxu0 0
    %6229 = vmatprep.subr.bf16.mxu0 0
    %6230 = vmatpush1.bf16.msra.mxu0 0
    %6231 = vmatprep.subr.bf16.mxu0 0
    %6232 = vmatpush1.bf16.msra.mxu0 0
    %6233 = vmatprep.subr.bf16.mxu0 0
    %6234 = vmatpush1.bf16.msra.mxu0 0
    %6235 = vmatprep.subr.bf16.mxu0 0
    %6236 = vmatpush1.bf16.msra.mxu0 0
    %6237 = vmatprep.subr.bf16.mxu0 0
    %6238 = vmatpush1.bf16.msra.mxu0 0
    %6239 = vmatprep.subr.bf16.mxu0 0
    %6240 = vmatpush1.bf16.msra.mxu0 0
    %6241 = vmatprep.subr.bf16.mxu0 0
    %6242 = vmatpush1.bf16.msra.mxu0 0
    %6243 = vmatprep.subr.bf16.mxu0 0
    %6244 = vmatpush1.bf16.msra.mxu0 0
    %6245 = vmatprep.subr.bf16.mxu0 0
    %6246 = vmatpush1.bf16.msra.mxu0 0
    %6247 = vmatprep.subr.bf16.mxu0 0
    %6248 = vmatpush1.bf16.msra.mxu0 0
    %6249 = vmatprep.subr.bf16.mxu0 0
    %6250 = vmatpush1.bf16.msra.mxu0 0
    %6251 = vmatprep.mubr.bf16.mxu0 0
    %6252 = vmatmul.mubr.bf16.gmra.mrb[0].mxu0 %v6217
    %v6253 = vpop.f32.mrb[0].mxu0
    %v6254 = vadd.f32 %v643, %v6253
    %v6255 = vpop.f32.mrb[0].mxu0
    %v6256 = vpop.f32.mrb[0].mxu0
    %v6257 = vpop.f32.mrb[0].mxu0
    %6258 = vdwg.mxu0
    %v6260 = vsel %vm734, %v5655, 0
    %6262 = vmatprep.subr.bf16.mxu0 0
    %6263 = vmatpush1.bf16.msra.mxu0 %v2678
    %6264 = vmatprep.subr.bf16.mxu0 0
    %6265 = vmatpush1.bf16.msra.mxu0 %v2679
    %6266 = vmatprep.subr.bf16.mxu0 0
    %6267 = vmatpush1.bf16.msra.mxu0 0
    %6268 = vmatprep.subr.bf16.mxu0 0
    %6269 = vmatpush1.bf16.msra.mxu0 0
    %6270 = vmatprep.subr.bf16.mxu0 0
    %6271 = vmatpush1.bf16.msra.mxu0 0
    %6272 = vmatprep.subr.bf16.mxu0 0
    %6273 = vmatpush1.bf16.msra.mxu0 0
    %6274 = vmatprep.subr.bf16.mxu0 0
    %6275 = vmatpush1.bf16.msra.mxu0 0
    %6276 = vmatprep.subr.bf16.mxu0 0
    %6277 = vmatpush1.bf16.msra.mxu0 0
    %6278 = vmatprep.subr.bf16.mxu0 0
    %6279 = vmatpush1.bf16.msra.mxu0 0
    %6280 = vmatprep.subr.bf16.mxu0 0
    %6281 = vmatpush1.bf16.msra.mxu0 0
    %6282 = vmatprep.subr.bf16.mxu0 0
    %6283 = vmatpush1.bf16.msra.mxu0 0
    %6284 = vmatprep.subr.bf16.mxu0 0
    %6285 = vmatpush1.bf16.msra.mxu0 0
    %6286 = vmatprep.subr.bf16.mxu0 0
    %6287 = vmatpush1.bf16.msra.mxu0 0
    %6288 = vmatprep.subr.bf16.mxu0 0
    %6289 = vmatpush1.bf16.msra.mxu0 0
    %6290 = vmatprep.subr.bf16.mxu0 0
    %6291 = vmatpush1.bf16.msra.mxu0 0
    %6292 = vmatprep.subr.bf16.mxu0 0
    %6293 = vmatpush1.bf16.msra.mxu0 0
    %6294 = vmatprep.mubr.bf16.mxu0 0
    %6295 = vmatmul.mubr.bf16.gmra.mrb[0].mxu0 %v6260
    %v6296 = vpop.f32.mrb[0].mxu0
    %v6297 = vadd.f32 %v643, %v6296
    %v6298 = vpop.f32.mrb[0].mxu0
    %v6299 = vpop.f32.mrb[0].mxu0
    %v6300 = vpop.f32.mrb[0].mxu0
    %6301 = vdwg.mxu0
    %v6303 = vsel %vm734, %v5656, 0
    %6305 = vmatprep.subr.bf16.mxu0 0
    %6306 = vmatpush1.bf16.msra.mxu0 %v2733
    %6307 = vmatprep.subr.bf16.mxu0 0
    %6308 = vmatpush1.bf16.msra.mxu0 %v2734
    %6309 = vmatprep.subr.bf16.mxu0 0
    %6310 = vmatpush1.bf16.msra.mxu0 0
    %6311 = vmatprep.subr.bf16.mxu0 0
    %6312 = vmatpush1.bf16.msra.mxu0 0
    %6313 = vmatprep.subr.bf16.mxu0 0
    %6314 = vmatpush1.bf16.msra.mxu0 0
    %6315 = vmatprep.subr.bf16.mxu0 0
    %6316 = vmatpush1.bf16.msra.mxu0 0
    %6317 = vmatprep.subr.bf16.mxu0 0
    %6318 = vmatpush1.bf16.msra.mxu0 0
    %6319 = vmatprep.subr.bf16.mxu0 0
    %6320 = vmatpush1.bf16.msra.mxu0 0
    %6321 = vmatprep.subr.bf16.mxu0 0
    %6322 = vmatpush1.bf16.msra.mxu0 0
    %6323 = vmatprep.subr.bf16.mxu0 0
    %6324 = vmatpush1.bf16.msra.mxu0 0
    %6325 = vmatprep.subr.bf16.mxu0 0
    %6326 = vmatpush1.bf16.msra.mxu0 0
    %6327 = vmatprep.subr.bf16.mxu0 0
    %6328 = vmatpush1.bf16.msra.mxu0 0
    %6329 = vmatprep.subr.bf16.mxu0 0
    %6330 = vmatpush1.bf16.msra.mxu0 0
    %6331 = vmatprep.subr.bf16.mxu0 0
    %6332 = vmatpush1.bf16.msra.mxu0 0
    %6333 = vmatprep.subr.bf16.mxu0 0
    %6334 = vmatpush1.bf16.msra.mxu0 0
    %6335 = vmatprep.subr.bf16.mxu0 0
    %6336 = vmatpush1.bf16.msra.mxu0 0
    %6337 = vmatprep.mubr.bf16.mxu0 0
    %6338 = vmatmul.mubr.bf16.gmra.mrb[0].mxu0 %v6303
    %v6339 = vpop.f32.mrb[0].mxu0
    %v6340 = vadd.f32 %v643, %v6339
    %v6341 = vpop.f32.mrb[0].mxu0
    %v6342 = vpop.f32.mrb[0].mxu0
    %v6343 = vpop.f32.mrb[0].mxu0
    %6344 = vdwg.mxu0
    %6345 = vmax.xlane.f32.xlu0 %v5695
    %v6346 = vpop.xlane.xlu0 %6345
    %6347 = vmax.xlane.f32.xlu0 %v5738
    %v6348 = vpop.xlane.xlu0 %6347
    %6349 = vmax.xlane.f32.xlu0 %v5781
    %v6350 = vpop.xlane.xlu0 %6349
    %6351 = vmax.xlane.f32.xlu0 %v5824
    %v6352 = vpop.xlane.xlu0 %6351
    %6353 = vmax.xlane.f32.xlu0 %v5867
    %v6354 = vpop.xlane.xlu0 %6353
    %6355 = vmax.xlane.f32.xlu0 %v5910
    %v6356 = vpop.xlane.xlu0 %6355
    %6357 = vmax.xlane.f32.xlu0 %v5953
    %v6358 = vpop.xlane.xlu0 %6357
    %6359 = vmax.xlane.f32.xlu0 %v5996
    %v6360 = vpop.xlane.xlu0 %6359
    %6361 = vmax.xlane.f32.xlu0 %v6039
    %v6362 = vpop.xlane.xlu0 %6361
    %6363 = vmax.xlane.f32.xlu0 %v6082
    %v6364 = vpop.xlane.xlu0 %6363
    %6365 = vmax.xlane.f32.xlu0 %v6125
    %v6366 = vpop.xlane.xlu0 %6365
    %6367 = vmax.xlane.f32.xlu0 %v6168
    %v6368 = vpop.xlane.xlu0 %6367
    %6369 = vmax.xlane.f32.xlu0 %v6211
    %v6370 = vpop.xlane.xlu0 %6369
    %6371 = vmax.xlane.f32.xlu0 %v6254
    %v6372 = vpop.xlane.xlu0 %6371
    %6373 = vmax.xlane.f32.xlu0 %v6297
    %v6374 = vpop.xlane.xlu0 %6373
    %6375 = vmax.xlane.f32.xlu0 %v6340
    %v6376 = vpop.xlane.xlu0 %6375
    %v6377 = vsub.f32 %v5695, %v6346
    %v6378 = vsub.f32 %v5738, %v6348
    %v6379 = vsub.f32 %v5781, %v6350
    %v6380 = vsub.f32 %v5824, %v6352
    %v6381 = vsub.f32 %v5867, %v6354
    %v6382 = vsub.f32 %v5910, %v6356
    %v6383 = vsub.f32 %v5953, %v6358
    %v6384 = vsub.f32 %v5996, %v6360
    %v6385 = vsub.f32 %v6039, %v6362
    %v6386 = vsub.f32 %v6082, %v6364
    %v6387 = vsub.f32 %v6125, %v6366
    %v6388 = vsub.f32 %v6168, %v6368
    %v6389 = vsub.f32 %v6211, %v6370
    %v6390 = vsub.f32 %v6254, %v6372
    %v6391 = vsub.f32 %v6297, %v6374
    %v6392 = vsub.f32 %v6340, %v6376
    %v6393 = vmul.f32 %v6377, 1.442695
    %v6394 = vpow.pop %v6393
    %v6395 = vmul.f32 %v6378, 1.442695
    %v6396 = vpow.pop %v6395
    %v6397 = vmul.f32 %v6379, 1.442695
    %v6398 = vpow.pop %v6397
    %v6399 = vmul.f32 %v6380, 1.442695
    %v6400 = vpow.pop %v6399
    %v6401 = vmul.f32 %v6381, 1.442695
    %v6402 = vpow.pop %v6401
    %v6403 = vmul.f32 %v6382, 1.442695
    %v6404 = vpow.pop %v6403
    %v6405 = vmul.f32 %v6383, 1.442695
    %v6406 = vpow.pop %v6405
    %v6407 = vmul.f32 %v6384, 1.442695
    %v6408 = vpow.pop %v6407
    %v6409 = vmul.f32 %v6385, 1.442695
    %v6410 = vpow.pop %v6409
    %v6411 = vmul.f32 %v6386, 1.442695
    %v6412 = vpow.pop %v6411
    %v6413 = vmul.f32 %v6387, 1.442695
    %v6414 = vpow.pop %v6413
    %v6415 = vmul.f32 %v6388, 1.442695
    %v6416 = vpow.pop %v6415
    %v6417 = vmul.f32 %v6389, 1.442695
    %v6418 = vpow.pop %v6417
    %v6419 = vmul.f32 %v6390, 1.442695
    %v6420 = vpow.pop %v6419
    %v6421 = vmul.f32 %v6391, 1.442695
    %v6422 = vpow.pop %v6421
    %v6423 = vmul.f32 %v6392, 1.442695
    %v6424 = vpow.pop %v6423
    %6425 = vadd.xlane.f32.xlu0 %v6394
    %v6426 = vpop.xlane.xlu0 %6425
    %6427 = vadd.xlane.f32.xlu0 %v6396
    %v6428 = vpop.xlane.xlu0 %6427
    %6429 = vadd.xlane.f32.xlu0 %v6398
    %v6430 = vpop.xlane.xlu0 %6429
    %6431 = vadd.xlane.f32.xlu0 %v6400
    %v6432 = vpop.xlane.xlu0 %6431
    %6433 = vadd.xlane.f32.xlu0 %v6402
    %v6434 = vpop.xlane.xlu0 %6433
    %6435 = vadd.xlane.f32.xlu0 %v6404
    %v6436 = vpop.xlane.xlu0 %6435
    %6437 = vadd.xlane.f32.xlu0 %v6406
    %v6438 = vpop.xlane.xlu0 %6437
    %6439 = vadd.xlane.f32.xlu0 %v6408
    %v6440 = vpop.xlane.xlu0 %6439
    %6441 = vadd.xlane.f32.xlu0 %v6410
    %v6442 = vpop.xlane.xlu0 %6441
    %6443 = vadd.xlane.f32.xlu0 %v6412
    %v6444 = vpop.xlane.xlu0 %6443
    %6445 = vadd.xlane.f32.xlu0 %v6414
    %v6446 = vpop.xlane.xlu0 %6445
    %6447 = vadd.xlane.f32.xlu0 %v6416
    %v6448 = vpop.xlane.xlu0 %6447
    %6449 = vadd.xlane.f32.xlu0 %v6418
    %v6450 = vpop.xlane.xlu0 %6449
    %6451 = vadd.xlane.f32.xlu0 %v6420
    %v6452 = vpop.xlane.xlu0 %6451
    %6453 = vadd.xlane.f32.xlu0 %v6422
    %v6454 = vpop.xlane.xlu0 %6453
    %6455 = vadd.xlane.f32.xlu0 %v6424
    %v6456 = vpop.xlane.xlu0 %6455
    %v6457 = vrcp.pop %v6426
    %v6458 = vrcp.pop %v6428
    %v6459 = vrcp.pop %v6430
    %v6460 = vrcp.pop %v6432
    %v6461 = vrcp.pop %v6434
    %v6462 = vrcp.pop %v6436
    %v6463 = vrcp.pop %v6438
    %v6464 = vrcp.pop %v6440
    %v6465 = vrcp.pop %v6442
    %v6466 = vrcp.pop %v6444
    %v6467 = vrcp.pop %v6446
    %v6468 = vrcp.pop %v6448
    %v6469 = vrcp.pop %v6450
    %v6470 = vrcp.pop %v6452
    %v6471 = vrcp.pop %v6454
    %v6472 = vrcp.pop %v6456
    %v6473 = vmul.f32 %v6394, %v6457
    %v6474 = vmul.f32 %v6396, %v6458
    %v6475 = vmul.f32 %v6398, %v6459
    %v6476 = vmul.f32 %v6400, %v6460
    %v6477 = vmul.f32 %v6402, %v6461
    %v6478 = vmul.f32 %v6404, %v6462
    %v6479 = vmul.f32 %v6406, %v6463
    %v6480 = vmul.f32 %v6408, %v6464
    %v6481 = vmul.f32 %v6410, %v6465
    %v6482 = vmul.f32 %v6412, %v6466
    %v6483 = vmul.f32 %v6414, %v6467
    %v6484 = vmul.f32 %v6416, %v6468
    %v6485 = vmul.f32 %v6418, %v6469
    %v6486 = vmul.f32 %v6420, %v6470
    %v6487 = vmul.f32 %v6422, %v6471
    %v6488 = vmul.f32 %v6424, %v6472
    %v6489 = vpack.c.bf16 %v6473, %v6473
    %v6490 = vpack.c.bf16 %v6474, %v6474
    %v6491 = vpack.c.bf16 %v6475, %v6475
    %v6492 = vpack.c.bf16 %v6476, %v6476
    %v6493 = vpack.c.bf16 %v6477, %v6477
    %v6494 = vpack.c.bf16 %v6478, %v6478
    %v6495 = vpack.c.bf16 %v6479, %v6479
    %v6496 = vpack.c.bf16 %v6480, %v6480
    %v6497 = vpack.c.bf16 %v6481, %v6481
    %v6498 = vpack.c.bf16 %v6482, %v6482
    %v6499 = vpack.c.bf16 %v6483, %v6483
    %v6500 = vpack.c.bf16 %v6484, %v6484
    %v6501 = vpack.c.bf16 %v6485, %v6485
    %v6502 = vpack.c.bf16 %v6486, %v6486
    %v6503 = vpack.c.bf16 %v6487, %v6487
    %v6504 = vpack.c.bf16 %v6488, %v6488
    %6505 = vmatprep.subr.bf16.mxu0 0
    %6506 = vmatpush1.bf16.msra.mxu0 %v2972
    %6507 = vmatprep.subr.bf16.mxu0 0
    %6508 = vmatpush1.bf16.msra.mxu0 %v2973
    %6509 = vmatprep.subr.bf16.mxu0 0
    %6510 = vmatpush1.bf16.msra.mxu0 %v2974
    %6511 = vmatprep.subr.bf16.mxu0 0
    %6512 = vmatpush1.bf16.msra.mxu0 %v2975
    %6513 = vmatprep.subr.bf16.mxu0 0
    %6514 = vmatpush1.bf16.msra.mxu0 %v2976
    %6515 = vmatprep.subr.bf16.mxu0 0
    %6516 = vmatpush1.bf16.msra.mxu0 %v2977
    %6517 = vmatprep.subr.bf16.mxu0 0
    %6518 = vmatpush1.bf16.msra.mxu0 %v2978
    %6519 = vmatprep.subr.bf16.mxu0 0
    %6520 = vmatpush1.bf16.msra.mxu0 %v2979
    %6521 = vmatprep.subr.bf16.mxu0 0
    %6522 = vmatpush1.bf16.msra.mxu0 0
    %6523 = vmatprep.subr.bf16.mxu0 0
    %6524 = vmatpush1.bf16.msra.mxu0 0
    %6525 = vmatprep.subr.bf16.mxu0 0
    %6526 = vmatpush1.bf16.msra.mxu0 0
    %6527 = vmatprep.subr.bf16.mxu0 0
    %6528 = vmatpush1.bf16.msra.mxu0 0
    %6529 = vmatprep.subr.bf16.mxu0 0
    %6530 = vmatpush1.bf16.msra.mxu0 0
    %6531 = vmatprep.subr.bf16.mxu0 0
    %6532 = vmatpush1.bf16.msra.mxu0 0
    %6533 = vmatprep.subr.bf16.mxu0 0
    %6534 = vmatpush1.bf16.msra.mxu0 0
    %6535 = vmatprep.subr.bf16.mxu0 0
    %6536 = vmatpush1.bf16.msra.mxu0 0
    %6537 = vmatprep.mubr.bf16.mxu0 0
    %6538 = vmatmul.mubr.bf16.gmra.mrb[0].mxu0 %v6489
    %v6539 = vpop.f32.mrb[0].mxu0
    %v6540 = vadd.f32 0.0, %v6539
    %v6541 = vpop.f32.mrb[0].mxu0
    %v6542 = vpop.f32.mrb[0].mxu0
    %v6543 = vpop.f32.mrb[0].mxu0
    %6544 = vdwg.mxu0
    %6545 = vmatprep.subr.bf16.mxu0 0
    %6546 = vmatpush1.bf16.msra.mxu0 %v3060
    %6547 = vmatprep.subr.bf16.mxu0 0
    %6548 = vmatpush1.bf16.msra.mxu0 %v3061
    %6549 = vmatprep.subr.bf16.mxu0 0
    %6550 = vmatpush1.bf16.msra.mxu0 %v3062
    %6551 = vmatprep.subr.bf16.mxu0 0
    %6552 = vmatpush1.bf16.msra.mxu0 %v3063
    %6553 = vmatprep.subr.bf16.mxu0 0
    %6554 = vmatpush1.bf16.msra.mxu0 %v3064
    %6555 = vmatprep.subr.bf16.mxu0 0
    %6556 = vmatpush1.bf16.msra.mxu0 %v3065
    %6557 = vmatprep.subr.bf16.mxu0 0
    %6558 = vmatpush1.bf16.msra.mxu0 %v3066
    %6559 = vmatprep.subr.bf16.mxu0 0
    %6560 = vmatpush1.bf16.msra.mxu0 %v3067
    %6561 = vmatprep.subr.bf16.mxu0 0
    %6562 = vmatpush1.bf16.msra.mxu0 0
    %6563 = vmatprep.subr.bf16.mxu0 0
    %6564 = vmatpush1.bf16.msra.mxu0 0
    %6565 = vmatprep.subr.bf16.mxu0 0
    %6566 = vmatpush1.bf16.msra.mxu0 0
    %6567 = vmatprep.subr.bf16.mxu0 0
    %6568 = vmatpush1.bf16.msra.mxu0 0
    %6569 = vmatprep.subr.bf16.mxu0 0
    %6570 = vmatpush1.bf16.msra.mxu0 0
    %6571 = vmatprep.subr.bf16.mxu0 0
    %6572 = vmatpush1.bf16.msra.mxu0 0
    %6573 = vmatprep.subr.bf16.mxu0 0
    %6574 = vmatpush1.bf16.msra.mxu0 0
    %6575 = vmatprep.subr.bf16.mxu0 0
    %6576 = vmatpush1.bf16.msra.mxu0 0
    %6577 = vmatprep.mubr.bf16.mxu0 0
    %6578 = vmatmul.mubr.bf16.gmra.mrb[0].mxu0 %v6490
    %v6579 = vpop.f32.mrb[0].mxu0
    %v6580 = vadd.f32 0.0, %v6579
    %v6581 = vpop.f32.mrb[0].mxu0
    %v6582 = vpop.f32.mrb[0].mxu0
    %v6583 = vpop.f32.mrb[0].mxu0
    %6584 = vdwg.mxu0
    %6585 = vmatprep.subr.bf16.mxu0 0
    %6586 = vmatpush1.bf16.msra.mxu0 %v3148
    %6587 = vmatprep.subr.bf16.mxu0 0
    %6588 = vmatpush1.bf16.msra.mxu0 %v3149
    %6589 = vmatprep.subr.bf16.mxu0 0
    %6590 = vmatpush1.bf16.msra.mxu0 %v3150
    %6591 = vmatprep.subr.bf16.mxu0 0
    %6592 = vmatpush1.bf16.msra.mxu0 %v3151
    %6593 = vmatprep.subr.bf16.mxu0 0
    %6594 = vmatpush1.bf16.msra.mxu0 %v3152
    %6595 = vmatprep.subr.bf16.mxu0 0
    %6596 = vmatpush1.bf16.msra.mxu0 %v3153
    %6597 = vmatprep.subr.bf16.mxu0 0
    %6598 = vmatpush1.bf16.msra.mxu0 %v3154
    %6599 = vmatprep.subr.bf16.mxu0 0
    %6600 = vmatpush1.bf16.msra.mxu0 %v3155
    %6601 = vmatprep.subr.bf16.mxu0 0
    %6602 = vmatpush1.bf16.msra.mxu0 0
    %6603 = vmatprep.subr.bf16.mxu0 0
    %6604 = vmatpush1.bf16.msra.mxu0 0
    %6605 = vmatprep.subr.bf16.mxu0 0
    %6606 = vmatpush1.bf16.msra.mxu0 0
    %6607 = vmatprep.subr.bf16.mxu0 0
    %6608 = vmatpush1.bf16.msra.mxu0 0
    %6609 = vmatprep.subr.bf16.mxu0 0
    %6610 = vmatpush1.bf16.msra.mxu0 0
    %6611 = vmatprep.subr.bf16.mxu0 0
    %6612 = vmatpush1.bf16.msra.mxu0 0
    %6613 = vmatprep.subr.bf16.mxu0 0
    %6614 = vmatpush1.bf16.msra.mxu0 0
    %6615 = vmatprep.subr.bf16.mxu0 0
    %6616 = vmatpush1.bf16.msra.mxu0 0
    %6617 = vmatprep.mubr.bf16.mxu0 0
    %6618 = vmatmul.mubr.bf16.gmra.mrb[0].mxu0 %v6491
    %v6619 = vpop.f32.mrb[0].mxu0
    %v6620 = vadd.f32 0.0, %v6619
    %v6621 = vpop.f32.mrb[0].mxu0
    %v6622 = vpop.f32.mrb[0].mxu0
    %v6623 = vpop.f32.mrb[0].mxu0
    %6624 = vdwg.mxu0
    %6625 = vmatprep.subr.bf16.mxu0 0
    %6626 = vmatpush1.bf16.msra.mxu0 %v3236
    %6627 = vmatprep.subr.bf16.mxu0 0
    %6628 = vmatpush1.bf16.msra.mxu0 %v3237
    %6629 = vmatprep.subr.bf16.mxu0 0
    %6630 = vmatpush1.bf16.msra.mxu0 %v3238
    %6631 = vmatprep.subr.bf16.mxu0 0
    %6632 = vmatpush1.bf16.msra.mxu0 %v3239
    %6633 = vmatprep.subr.bf16.mxu0 0
    %6634 = vmatpush1.bf16.msra.mxu0 %v3240
    %6635 = vmatprep.subr.bf16.mxu0 0
    %6636 = vmatpush1.bf16.msra.mxu0 %v3241
    %6637 = vmatprep.subr.bf16.mxu0 0
    %6638 = vmatpush1.bf16.msra.mxu0 %v3242
    %6639 = vmatprep.subr.bf16.mxu0 0
    %6640 = vmatpush1.bf16.msra.mxu0 %v3243
    %6641 = vmatprep.subr.bf16.mxu0 0
    %6642 = vmatpush1.bf16.msra.mxu0 0
    %6643 = vmatprep.subr.bf16.mxu0 0
    %6644 = vmatpush1.bf16.msra.mxu0 0
    %6645 = vmatprep.subr.bf16.mxu0 0
    %6646 = vmatpush1.bf16.msra.mxu0 0
    %6647 = vmatprep.subr.bf16.mxu0 0
    %6648 = vmatpush1.bf16.msra.mxu0 0
    %6649 = vmatprep.subr.bf16.mxu0 0
    %6650 = vmatpush1.bf16.msra.mxu0 0
    %6651 = vmatprep.subr.bf16.mxu0 0
    %6652 = vmatpush1.bf16.msra.mxu0 0
    %6653 = vmatprep.subr.bf16.mxu0 0
    %6654 = vmatpush1.bf16.msra.mxu0 0
    %6655 = vmatprep.subr.bf16.mxu0 0
    %6656 = vmatpush1.bf16.msra.mxu0 0
    %6657 = vmatprep.mubr.bf16.mxu0 0
    %6658 = vmatmul.mubr.bf16.gmra.mrb[0].mxu0 %v6492
    %v6659 = vpop.f32.mrb[0].mxu0
    %v6660 = vadd.f32 0.0, %v6659
    %v6661 = vpop.f32.mrb[0].mxu0
    %v6662 = vpop.f32.mrb[0].mxu0
    %v6663 = vpop.f32.mrb[0].mxu0
    %6664 = vdwg.mxu0
    %6665 = vmatprep.subr.bf16.mxu0 0
    %6666 = vmatpush1.bf16.msra.mxu0 %v3324
    %6667 = vmatprep.subr.bf16.mxu0 0
    %6668 = vmatpush1.bf16.msra.mxu0 %v3325
    %6669 = vmatprep.subr.bf16.mxu0 0
    %6670 = vmatpush1.bf16.msra.mxu0 %v3326
    %6671 = vmatprep.subr.bf16.mxu0 0
    %6672 = vmatpush1.bf16.msra.mxu0 %v3327
    %6673 = vmatprep.subr.bf16.mxu0 0
    %6674 = vmatpush1.bf16.msra.mxu0 %v3328
    %6675 = vmatprep.subr.bf16.mxu0 0
    %6676 = vmatpush1.bf16.msra.mxu0 %v3329
    %6677 = vmatprep.subr.bf16.mxu0 0
    %6678 = vmatpush1.bf16.msra.mxu0 %v3330
    %6679 = vmatprep.subr.bf16.mxu0 0
    %6680 = vmatpush1.bf16.msra.mxu0 %v3331
    %6681 = vmatprep.subr.bf16.mxu0 0
    %6682 = vmatpush1.bf16.msra.mxu0 0
    %6683 = vmatprep.subr.bf16.mxu0 0
    %6684 = vmatpush1.bf16.msra.mxu0 0
    %6685 = vmatprep.subr.bf16.mxu0 0
    %6686 = vmatpush1.bf16.msra.mxu0 0
    %6687 = vmatprep.subr.bf16.mxu0 0
    %6688 = vmatpush1.bf16.msra.mxu0 0
    %6689 = vmatprep.subr.bf16.mxu0 0
    %6690 = vmatpush1.bf16.msra.mxu0 0
    %6691 = vmatprep.subr.bf16.mxu0 0
    %6692 = vmatpush1.bf16.msra.mxu0 0
    %6693 = vmatprep.subr.bf16.mxu0 0
    %6694 = vmatpush1.bf16.msra.mxu0 0
    %6695 = vmatprep.subr.bf16.mxu0 0
    %6696 = vmatpush1.bf16.msra.mxu0 0
    %6697 = vmatprep.mubr.bf16.mxu0 0
    %6698 = vmatmul.mubr.bf16.gmra.mrb[0].mxu0 %v6493
    %v6699 = vpop.f32.mrb[0].mxu0
    %v6700 = vadd.f32 0.0, %v6699
    %v6701 = vpop.f32.mrb[0].mxu0
    %v6702 = vpop.f32.mrb[0].mxu0
    %v6703 = vpop.f32.mrb[0].mxu0
    %6704 = vdwg.mxu0
    %6705 = vmatprep.subr.bf16.mxu0 0
    %6706 = vmatpush1.bf16.msra.mxu0 %v3412
    %6707 = vmatprep.subr.bf16.mxu0 0
    %6708 = vmatpush1.bf16.msra.mxu0 %v3413
    %6709 = vmatprep.subr.bf16.mxu0 0
    %6710 = vmatpush1.bf16.msra.mxu0 %v3414
    %6711 = vmatprep.subr.bf16.mxu0 0
    %6712 = vmatpush1.bf16.msra.mxu0 %v3415
    %6713 = vmatprep.subr.bf16.mxu0 0
    %6714 = vmatpush1.bf16.msra.mxu0 %v3416
    %6715 = vmatprep.subr.bf16.mxu0 0
    %6716 = vmatpush1.bf16.msra.mxu0 %v3417
    %6717 = vmatprep.subr.bf16.mxu0 0
    %6718 = vmatpush1.bf16.msra.mxu0 %v3418
    %6719 = vmatprep.subr.bf16.mxu0 0
    %6720 = vmatpush1.bf16.msra.mxu0 %v3419
    %6721 = vmatprep.subr.bf16.mxu0 0
    %6722 = vmatpush1.bf16.msra.mxu0 0
    %6723 = vmatprep.subr.bf16.mxu0 0
    %6724 = vmatpush1.bf16.msra.mxu0 0
    %6725 = vmatprep.subr.bf16.mxu0 0
    %6726 = vmatpush1.bf16.msra.mxu0 0
    %6727 = vmatprep.subr.bf16.mxu0 0
    %6728 = vmatpush1.bf16.msra.mxu0 0
    %6729 = vmatprep.subr.bf16.mxu0 0
    %6730 = vmatpush1.bf16.msra.mxu0 0
    %6731 = vmatprep.subr.bf16.mxu0 0
    %6732 = vmatpush1.bf16.msra.mxu0 0
    %6733 = vmatprep.subr.bf16.mxu0 0
    %6734 = vmatpush1.bf16.msra.mxu0 0
    %6735 = vmatprep.subr.bf16.mxu0 0
    %6736 = vmatpush1.bf16.msra.mxu0 0
    %6737 = vmatprep.mubr.bf16.mxu0 0
    %6738 = vmatmul.mubr.bf16.gmra.mrb[0].mxu0 %v6494
    %v6739 = vpop.f32.mrb[0].mxu0
    %v6740 = vadd.f32 0.0, %v6739
    %v6741 = vpop.f32.mrb[0].mxu0
    %v6742 = vpop.f32.mrb[0].mxu0
    %v6743 = vpop.f32.mrb[0].mxu0
    %6744 = vdwg.mxu0
    %6745 = vmatprep.subr.bf16.mxu0 0
    %6746 = vmatpush1.bf16.msra.mxu0 %v3500
    %6747 = vmatprep.subr.bf16.mxu0 0
    %6748 = vmatpush1.bf16.msra.mxu0 %v3501
    %6749 = vmatprep.subr.bf16.mxu0 0
    %6750 = vmatpush1.bf16.msra.mxu0 %v3502
    %6751 = vmatprep.subr.bf16.mxu0 0
    %6752 = vmatpush1.bf16.msra.mxu0 %v3503
    %6753 = vmatprep.subr.bf16.mxu0 0
    %6754 = vmatpush1.bf16.msra.mxu0 %v3504
    %6755 = vmatprep.subr.bf16.mxu0 0
    %6756 = vmatpush1.bf16.msra.mxu0 %v3505
    %6757 = vmatprep.subr.bf16.mxu0 0
    %6758 = vmatpush1.bf16.msra.mxu0 %v3506
    %6759 = vmatprep.subr.bf16.mxu0 0
    %6760 = vmatpush1.bf16.msra.mxu0 %v3507
    %6761 = vmatprep.subr.bf16.mxu0 0
    %6762 = vmatpush1.bf16.msra.mxu0 0
    %6763 = vmatprep.subr.bf16.mxu0 0
    %6764 = vmatpush1.bf16.msra.mxu0 0
    %6765 = vmatprep.subr.bf16.mxu0 0
    %6766 = vmatpush1.bf16.msra.mxu0 0
    %6767 = vmatprep.subr.bf16.mxu0 0
    %6768 = vmatpush1.bf16.msra.mxu0 0
    %6769 = vmatprep.subr.bf16.mxu0 0
    %6770 = vmatpush1.bf16.msra.mxu0 0
    %6771 = vmatprep.subr.bf16.mxu0 0
    %6772 = vmatpush1.bf16.msra.mxu0 0
    %6773 = vmatprep.subr.bf16.mxu0 0
    %6774 = vmatpush1.bf16.msra.mxu0 0
    %6775 = vmatprep.subr.bf16.mxu0 0
    %6776 = vmatpush1.bf16.msra.mxu0 0
    %6777 = vmatprep.mubr.bf16.mxu0 0
    %6778 = vmatmul.mubr.bf16.gmra.mrb[0].mxu0 %v6495
    %v6779 = vpop.f32.mrb[0].mxu0
    %v6780 = vadd.f32 0.0, %v6779
    %v6781 = vpop.f32.mrb[0].mxu0
    %v6782 = vpop.f32.mrb[0].mxu0
    %v6783 = vpop.f32.mrb[0].mxu0
    %6784 = vdwg.mxu0
    %6785 = vmatprep.subr.bf16.mxu0 0
    %6786 = vmatpush1.bf16.msra.mxu0 %v3588
    %6787 = vmatprep.subr.bf16.mxu0 0
    %6788 = vmatpush1.bf16.msra.mxu0 %v3589
    %6789 = vmatprep.subr.bf16.mxu0 0
    %6790 = vmatpush1.bf16.msra.mxu0 %v3590
    %6791 = vmatprep.subr.bf16.mxu0 0
    %6792 = vmatpush1.bf16.msra.mxu0 %v3591
    %6793 = vmatprep.subr.bf16.mxu0 0
    %6794 = vmatpush1.bf16.msra.mxu0 %v3592
    %6795 = vmatprep.subr.bf16.mxu0 0
    %6796 = vmatpush1.bf16.msra.mxu0 %v3593
    %6797 = vmatprep.subr.bf16.mxu0 0
    %6798 = vmatpush1.bf16.msra.mxu0 %v3594
    %6799 = vmatprep.subr.bf16.mxu0 0
    %6800 = vmatpush1.bf16.msra.mxu0 %v3595
    %6801 = vmatprep.subr.bf16.mxu0 0
    %6802 = vmatpush1.bf16.msra.mxu0 0
    %6803 = vmatprep.subr.bf16.mxu0 0
    %6804 = vmatpush1.bf16.msra.mxu0 0
    %6805 = vmatprep.subr.bf16.mxu0 0
    %6806 = vmatpush1.bf16.msra.mxu0 0
    %6807 = vmatprep.subr.bf16.mxu0 0
    %6808 = vmatpush1.bf16.msra.mxu0 0
    %6809 = vmatprep.subr.bf16.mxu0 0
    %6810 = vmatpush1.bf16.msra.mxu0 0
    %6811 = vmatprep.subr.bf16.mxu0 0
    %6812 = vmatpush1.bf16.msra.mxu0 0
    %6813 = vmatprep.subr.bf16.mxu0 0
    %6814 = vmatpush1.bf16.msra.mxu0 0
    %6815 = vmatprep.subr.bf16.mxu0 0
    %6816 = vmatpush1.bf16.msra.mxu0 0
    %6817 = vmatprep.mubr.bf16.mxu0 0
    %6818 = vmatmul.mubr.bf16.gmra.mrb[0].mxu0 %v6496
    %v6819 = vpop.f32.mrb[0].mxu0
    %v6820 = vadd.f32 0.0, %v6819
    %v6821 = vpop.f32.mrb[0].mxu0
    %v6822 = vpop.f32.mrb[0].mxu0
    %v6823 = vpop.f32.mrb[0].mxu0
    %6824 = vdwg.mxu0
    %6825 = vmatprep.subr.bf16.mxu0 0
    %6826 = vmatpush1.bf16.msra.mxu0 %v3676
    %6827 = vmatprep.subr.bf16.mxu0 0
    %6828 = vmatpush1.bf16.msra.mxu0 %v3677
    %6829 = vmatprep.subr.bf16.mxu0 0
    %6830 = vmatpush1.bf16.msra.mxu0 %v3678
    %6831 = vmatprep.subr.bf16.mxu0 0
    %6832 = vmatpush1.bf16.msra.mxu0 %v3679
    %6833 = vmatprep.subr.bf16.mxu0 0
    %6834 = vmatpush1.bf16.msra.mxu0 %v3680
    %6835 = vmatprep.subr.bf16.mxu0 0
    %6836 = vmatpush1.bf16.msra.mxu0 %v3681
    %6837 = vmatprep.subr.bf16.mxu0 0
    %6838 = vmatpush1.bf16.msra.mxu0 %v3682
    %6839 = vmatprep.subr.bf16.mxu0 0
    %6840 = vmatpush1.bf16.msra.mxu0 %v3683
    %6841 = vmatprep.subr.bf16.mxu0 0
    %6842 = vmatpush1.bf16.msra.mxu0 0
    %6843 = vmatprep.subr.bf16.mxu0 0
    %6844 = vmatpush1.bf16.msra.mxu0 0
    %6845 = vmatprep.subr.bf16.mxu0 0
    %6846 = vmatpush1.bf16.msra.mxu0 0
    %6847 = vmatprep.subr.bf16.mxu0 0
    %6848 = vmatpush1.bf16.msra.mxu0 0
    %6849 = vmatprep.subr.bf16.mxu0 0
    %6850 = vmatpush1.bf16.msra.mxu0 0
    %6851 = vmatprep.subr.bf16.mxu0 0
    %6852 = vmatpush1.bf16.msra.mxu0 0
    %6853 = vmatprep.subr.bf16.mxu0 0
    %6854 = vmatpush1.bf16.msra.mxu0 0
    %6855 = vmatprep.subr.bf16.mxu0 0
    %6856 = vmatpush1.bf16.msra.mxu0 0
    %6857 = vmatprep.mubr.bf16.mxu0 0
    %6858 = vmatmul.mubr.bf16.gmra.mrb[0].mxu0 %v6497
    %v6859 = vpop.f32.mrb[0].mxu0
    %v6860 = vadd.f32 0.0, %v6859
    %v6861 = vpop.f32.mrb[0].mxu0
    %v6862 = vpop.f32.mrb[0].mxu0
    %v6863 = vpop.f32.mrb[0].mxu0
    %6864 = vdwg.mxu0
    %6865 = vmatprep.subr.bf16.mxu0 0
    %6866 = vmatpush1.bf16.msra.mxu0 %v3764
    %6867 = vmatprep.subr.bf16.mxu0 0
    %6868 = vmatpush1.bf16.msra.mxu0 %v3765
    %6869 = vmatprep.subr.bf16.mxu0 0
    %6870 = vmatpush1.bf16.msra.mxu0 %v3766
    %6871 = vmatprep.subr.bf16.mxu0 0
    %6872 = vmatpush1.bf16.msra.mxu0 %v3767
    %6873 = vmatprep.subr.bf16.mxu0 0
    %6874 = vmatpush1.bf16.msra.mxu0 %v3768
    %6875 = vmatprep.subr.bf16.mxu0 0
    %6876 = vmatpush1.bf16.msra.mxu0 %v3769
    %6877 = vmatprep.subr.bf16.mxu0 0
    %6878 = vmatpush1.bf16.msra.mxu0 %v3770
    %6879 = vmatprep.subr.bf16.mxu0 0
    %6880 = vmatpush1.bf16.msra.mxu0 %v3771
    %6881 = vmatprep.subr.bf16.mxu0 0
    %6882 = vmatpush1.bf16.msra.mxu0 0
    %6883 = vmatprep.subr.bf16.mxu0 0
    %6884 = vmatpush1.bf16.msra.mxu0 0
    %6885 = vmatprep.subr.bf16.mxu0 0
    %6886 = vmatpush1.bf16.msra.mxu0 0
    %6887 = vmatprep.subr.bf16.mxu0 0
    %6888 = vmatpush1.bf16.msra.mxu0 0
    %6889 = vmatprep.subr.bf16.mxu0 0
    %6890 = vmatpush1.bf16.msra.mxu0 0
    %6891 = vmatprep.subr.bf16.mxu0 0
    %6892 = vmatpush1.bf16.msra.mxu0 0
    %6893 = vmatprep.subr.bf16.mxu0 0
    %6894 = vmatpush1.bf16.msra.mxu0 0
    %6895 = vmatprep.subr.bf16.mxu0 0
    %6896 = vmatpush1.bf16.msra.mxu0 0
    %6897 = vmatprep.mubr.bf16.mxu0 0
    %6898 = vmatmul.mubr.bf16.gmra.mrb[0].mxu0 %v6498
    %v6899 = vpop.f32.mrb[0].mxu0
    %v6900 = vadd.f32 0.0, %v6899
    %v6901 = vpop.f32.mrb[0].mxu0
    %v6902 = vpop.f32.mrb[0].mxu0
    %v6903 = vpop.f32.mrb[0].mxu0
    %6904 = vdwg.mxu0
    %6905 = vmatprep.subr.bf16.mxu0 0
    %6906 = vmatpush1.bf16.msra.mxu0 %v3852
    %6907 = vmatprep.subr.bf16.mxu0 0
    %6908 = vmatpush1.bf16.msra.mxu0 %v3853
    %6909 = vmatprep.subr.bf16.mxu0 0
    %6910 = vmatpush1.bf16.msra.mxu0 %v3854
    %6911 = vmatprep.subr.bf16.mxu0 0
    %6912 = vmatpush1.bf16.msra.mxu0 %v3855
    %6913 = vmatprep.subr.bf16.mxu0 0
    %6914 = vmatpush1.bf16.msra.mxu0 %v3856
    %6915 = vmatprep.subr.bf16.mxu0 0
    %6916 = vmatpush1.bf16.msra.mxu0 %v3857
    %6917 = vmatprep.subr.bf16.mxu0 0
    %6918 = vmatpush1.bf16.msra.mxu0 %v3858
    %6919 = vmatprep.subr.bf16.mxu0 0
    %6920 = vmatpush1.bf16.msra.mxu0 %v3859
    %6921 = vmatprep.subr.bf16.mxu0 0
    %6922 = vmatpush1.bf16.msra.mxu0 0
    %6923 = vmatprep.subr.bf16.mxu0 0
    %6924 = vmatpush1.bf16.msra.mxu0 0
    %6925 = vmatprep.subr.bf16.mxu0 0
    %6926 = vmatpush1.bf16.msra.mxu0 0
    %6927 = vmatprep.subr.bf16.mxu0 0
    %6928 = vmatpush1.bf16.msra.mxu0 0
    %6929 = vmatprep.subr.bf16.mxu0 0
    %6930 = vmatpush1.bf16.msra.mxu0 0
    %6931 = vmatprep.subr.bf16.mxu0 0
    %6932 = vmatpush1.bf16.msra.mxu0 0
    %6933 = vmatprep.subr.bf16.mxu0 0
    %6934 = vmatpush1.bf16.msra.mxu0 0
    %6935 = vmatprep.subr.bf16.mxu0 0
    %6936 = vmatpush1.bf16.msra.mxu0 0
    %6937 = vmatprep.mubr.bf16.mxu0 0
    %6938 = vmatmul.mubr.bf16.gmra.mrb[0].mxu0 %v6499
    %v6939 = vpop.f32.mrb[0].mxu0
    %v6940 = vadd.f32 0.0, %v6939
    %v6941 = vpop.f32.mrb[0].mxu0
    %v6942 = vpop.f32.mrb[0].mxu0
    %v6943 = vpop.f32.mrb[0].mxu0
    %6944 = vdwg.mxu0
    %6945 = vmatprep.subr.bf16.mxu0 0
    %6946 = vmatpush1.bf16.msra.mxu0 %v3940
    %6947 = vmatprep.subr.bf16.mxu0 0
    %6948 = vmatpush1.bf16.msra.mxu0 %v3941
    %6949 = vmatprep.subr.bf16.mxu0 0
    %6950 = vmatpush1.bf16.msra.mxu0 %v3942
    %6951 = vmatprep.subr.bf16.mxu0 0
    %6952 = vmatpush1.bf16.msra.mxu0 %v3943
    %6953 = vmatprep.subr.bf16.mxu0 0
    %6954 = vmatpush1.bf16.msra.mxu0 %v3944
    %6955 = vmatprep.subr.bf16.mxu0 0
    %6956 = vmatpush1.bf16.msra.mxu0 %v3945
    %6957 = vmatprep.subr.bf16.mxu0 0
    %6958 = vmatpush1.bf16.msra.mxu0 %v3946
    %6959 = vmatprep.subr.bf16.mxu0 0
    %6960 = vmatpush1.bf16.msra.mxu0 %v3947
    %6961 = vmatprep.subr.bf16.mxu0 0
    %6962 = vmatpush1.bf16.msra.mxu0 0
    %6963 = vmatprep.subr.bf16.mxu0 0
    %6964 = vmatpush1.bf16.msra.mxu0 0
    %6965 = vmatprep.subr.bf16.mxu0 0
    %6966 = vmatpush1.bf16.msra.mxu0 0
    %6967 = vmatprep.subr.bf16.mxu0 0
    %6968 = vmatpush1.bf16.msra.mxu0 0
    %6969 = vmatprep.subr.bf16.mxu0 0
    %6970 = vmatpush1.bf16.msra.mxu0 0
    %6971 = vmatprep.subr.bf16.mxu0 0
    %6972 = vmatpush1.bf16.msra.mxu0 0
    %6973 = vmatprep.subr.bf16.mxu0 0
    %6974 = vmatpush1.bf16.msra.mxu0 0
    %6975 = vmatprep.subr.bf16.mxu0 0
    %6976 = vmatpush1.bf16.msra.mxu0 0
    %6977 = vmatprep.mubr.bf16.mxu0 0
    %6978 = vmatmul.mubr.bf16.gmra.mrb[0].mxu0 %v6500
    %v6979 = vpop.f32.mrb[0].mxu0
    %v6980 = vadd.f32 0.0, %v6979
    %v6981 = vpop.f32.mrb[0].mxu0
    %v6982 = vpop.f32.mrb[0].mxu0
    %v6983 = vpop.f32.mrb[0].mxu0
    %6984 = vdwg.mxu0
    %6985 = vmatprep.subr.bf16.mxu0 0
    %6986 = vmatpush1.bf16.msra.mxu0 %v4028
    %6987 = vmatprep.subr.bf16.mxu0 0
    %6988 = vmatpush1.bf16.msra.mxu0 %v4029
    %6989 = vmatprep.subr.bf16.mxu0 0
    %6990 = vmatpush1.bf16.msra.mxu0 %v4030
    %6991 = vmatprep.subr.bf16.mxu0 0
    %6992 = vmatpush1.bf16.msra.mxu0 %v4031
    %6993 = vmatprep.subr.bf16.mxu0 0
    %6994 = vmatpush1.bf16.msra.mxu0 %v4032
    %6995 = vmatprep.subr.bf16.mxu0 0
    %6996 = vmatpush1.bf16.msra.mxu0 %v4033
    %6997 = vmatprep.subr.bf16.mxu0 0
    %6998 = vmatpush1.bf16.msra.mxu0 %v4034
    %6999 = vmatprep.subr.bf16.mxu0 0
    %7000 = vmatpush1.bf16.msra.mxu0 %v4035
    %7001 = vmatprep.subr.bf16.mxu0 0
    %7002 = vmatpush1.bf16.msra.mxu0 0
    %7003 = vmatprep.subr.bf16.mxu0 0
    %7004 = vmatpush1.bf16.msra.mxu0 0
    %7005 = vmatprep.subr.bf16.mxu0 0
    %7006 = vmatpush1.bf16.msra.mxu0 0
    %7007 = vmatprep.subr.bf16.mxu0 0
    %7008 = vmatpush1.bf16.msra.mxu0 0
    %7009 = vmatprep.subr.bf16.mxu0 0
    %7010 = vmatpush1.bf16.msra.mxu0 0
    %7011 = vmatprep.subr.bf16.mxu0 0
    %7012 = vmatpush1.bf16.msra.mxu0 0
    %7013 = vmatprep.subr.bf16.mxu0 0
    %7014 = vmatpush1.bf16.msra.mxu0 0
    %7015 = vmatprep.subr.bf16.mxu0 0
    %7016 = vmatpush1.bf16.msra.mxu0 0
    %7017 = vmatprep.mubr.bf16.mxu0 0
    %7018 = vmatmul.mubr.bf16.gmra.mrb[0].mxu0 %v6501
    %v7019 = vpop.f32.mrb[0].mxu0
    %v7020 = vadd.f32 0.0, %v7019
    %v7021 = vpop.f32.mrb[0].mxu0
    %v7022 = vpop.f32.mrb[0].mxu0
    %v7023 = vpop.f32.mrb[0].mxu0
    %7024 = vdwg.mxu0
    %7025 = vmatprep.subr.bf16.mxu0 0
    %7026 = vmatpush1.bf16.msra.mxu0 %v4116
    %7027 = vmatprep.subr.bf16.mxu0 0
    %7028 = vmatpush1.bf16.msra.mxu0 %v4117
    %7029 = vmatprep.subr.bf16.mxu0 0
    %7030 = vmatpush1.bf16.msra.mxu0 %v4118
    %7031 = vmatprep.subr.bf16.mxu0 0
    %7032 = vmatpush1.bf16.msra.mxu0 %v4119
    %7033 = vmatprep.subr.bf16.mxu0 0
    %7034 = vmatpush1.bf16.msra.mxu0 %v4120
    %7035 = vmatprep.subr.bf16.mxu0 0
    %7036 = vmatpush1.bf16.msra.mxu0 %v4121
    %7037 = vmatprep.subr.bf16.mxu0 0
    %7038 = vmatpush1.bf16.msra.mxu0 %v4122
    %7039 = vmatprep.subr.bf16.mxu0 0
    %7040 = vmatpush1.bf16.msra.mxu0 %v4123
    %7041 = vmatprep.subr.bf16.mxu0 0
    %7042 = vmatpush1.bf16.msra.mxu0 0
    %7043 = vmatprep.subr.bf16.mxu0 0
    %7044 = vmatpush1.bf16.msra.mxu0 0
    %7045 = vmatprep.subr.bf16.mxu0 0
    %7046 = vmatpush1.bf16.msra.mxu0 0
    %7047 = vmatprep.subr.bf16.mxu0 0
    %7048 = vmatpush1.bf16.msra.mxu0 0
    %7049 = vmatprep.subr.bf16.mxu0 0
    %7050 = vmatpush1.bf16.msra.mxu0 0
    %7051 = vmatprep.subr.bf16.mxu0 0
    %7052 = vmatpush1.bf16.msra.mxu0 0
    %7053 = vmatprep.subr.bf16.mxu0 0
    %7054 = vmatpush1.bf16.msra.mxu0 0
    %7055 = vmatprep.subr.bf16.mxu0 0
    %7056 = vmatpush1.bf16.msra.mxu0 0
    %7057 = vmatprep.mubr.bf16.mxu0 0
    %7058 = vmatmul.mubr.bf16.gmra.mrb[0].mxu0 %v6502
    %v7059 = vpop.f32.mrb[0].mxu0
    %v7060 = vadd.f32 0.0, %v7059
    %v7061 = vpop.f32.mrb[0].mxu0
    %v7062 = vpop.f32.mrb[0].mxu0
    %v7063 = vpop.f32.mrb[0].mxu0
    %7064 = vdwg.mxu0
    %7065 = vmatprep.subr.bf16.mxu0 0
    %7066 = vmatpush1.bf16.msra.mxu0 %v4204
    %7067 = vmatprep.subr.bf16.mxu0 0
    %7068 = vmatpush1.bf16.msra.mxu0 %v4205
    %7069 = vmatprep.subr.bf16.mxu0 0
    %7070 = vmatpush1.bf16.msra.mxu0 %v4206
    %7071 = vmatprep.subr.bf16.mxu0 0
    %7072 = vmatpush1.bf16.msra.mxu0 %v4207
    %7073 = vmatprep.subr.bf16.mxu0 0
    %7074 = vmatpush1.bf16.msra.mxu0 %v4208
    %7075 = vmatprep.subr.bf16.mxu0 0
    %7076 = vmatpush1.bf16.msra.mxu0 %v4209
    %7077 = vmatprep.subr.bf16.mxu0 0
    %7078 = vmatpush1.bf16.msra.mxu0 %v4210
    %7079 = vmatprep.subr.bf16.mxu0 0
    %7080 = vmatpush1.bf16.msra.mxu0 %v4211
    %7081 = vmatprep.subr.bf16.mxu0 0
    %7082 = vmatpush1.bf16.msra.mxu0 0
    %7083 = vmatprep.subr.bf16.mxu0 0
    %7084 = vmatpush1.bf16.msra.mxu0 0
    %7085 = vmatprep.subr.bf16.mxu0 0
    %7086 = vmatpush1.bf16.msra.mxu0 0
    %7087 = vmatprep.subr.bf16.mxu0 0
    %7088 = vmatpush1.bf16.msra.mxu0 0
    %7089 = vmatprep.subr.bf16.mxu0 0
    %7090 = vmatpush1.bf16.msra.mxu0 0
    %7091 = vmatprep.subr.bf16.mxu0 0
    %7092 = vmatpush1.bf16.msra.mxu0 0
    %7093 = vmatprep.subr.bf16.mxu0 0
    %7094 = vmatpush1.bf16.msra.mxu0 0
    %7095 = vmatprep.subr.bf16.mxu0 0
    %7096 = vmatpush1.bf16.msra.mxu0 0
    %7097 = vmatprep.mubr.bf16.mxu0 0
    %7098 = vmatmul.mubr.bf16.gmra.mrb[0].mxu0 %v6503
    %v7099 = vpop.f32.mrb[0].mxu0
    %v7100 = vadd.f32 0.0, %v7099
    %v7101 = vpop.f32.mrb[0].mxu0
    %v7102 = vpop.f32.mrb[0].mxu0
    %v7103 = vpop.f32.mrb[0].mxu0
    %7104 = vdwg.mxu0
    %7105 = vmatprep.subr.bf16.mxu0 0
    %7106 = vmatpush1.bf16.msra.mxu0 %v4292
    %7107 = vmatprep.subr.bf16.mxu0 0
    %7108 = vmatpush1.bf16.msra.mxu0 %v4293
    %7109 = vmatprep.subr.bf16.mxu0 0
    %7110 = vmatpush1.bf16.msra.mxu0 %v4294
    %7111 = vmatprep.subr.bf16.mxu0 0
    %7112 = vmatpush1.bf16.msra.mxu0 %v4295
    %7113 = vmatprep.subr.bf16.mxu0 0
    %7114 = vmatpush1.bf16.msra.mxu0 %v4296
    %7115 = vmatprep.subr.bf16.mxu0 0
    %7116 = vmatpush1.bf16.msra.mxu0 %v4297
    %7117 = vmatprep.subr.bf16.mxu0 0
    %7118 = vmatpush1.bf16.msra.mxu0 %v4298
    %7119 = vmatprep.subr.bf16.mxu0 0
    %7120 = vmatpush1.bf16.msra.mxu0 %v4299
    %7121 = vmatprep.subr.bf16.mxu0 0
    %7122 = vmatpush1.bf16.msra.mxu0 0
    %7123 = vmatprep.subr.bf16.mxu0 0
    %7124 = vmatpush1.bf16.msra.mxu0 0
    %7125 = vmatprep.subr.bf16.mxu0 0
    %7126 = vmatpush1.bf16.msra.mxu0 0
    %7127 = vmatprep.subr.bf16.mxu0 0
    %7128 = vmatpush1.bf16.msra.mxu0 0
    %7129 = vmatprep.subr.bf16.mxu0 0
    %7130 = vmatpush1.bf16.msra.mxu0 0
    %7131 = vmatprep.subr.bf16.mxu0 0
    %7132 = vmatpush1.bf16.msra.mxu0 0
    %7133 = vmatprep.subr.bf16.mxu0 0
    %7134 = vmatpush1.bf16.msra.mxu0 0
    %7135 = vmatprep.subr.bf16.mxu0 0
    %7136 = vmatpush1.bf16.msra.mxu0 0
    %7137 = vmatprep.mubr.bf16.mxu0 0
    %7138 = vmatmul.mubr.bf16.gmra.mrb[0].mxu0 %v6504
    %v7139 = vpop.f32.mrb[0].mxu0
    %v7140 = vadd.f32 0.0, %v7139
    %v7141 = vpop.f32.mrb[0].mxu0
    %v7142 = vpop.f32.mrb[0].mxu0
    %v7143 = vpop.f32.mrb[0].mxu0
    %7144 = vdwg.mxu0
    %v7145 = vadd.f32 %v5464, %v6540
    %v7146 = vadd.f32 %v5465, %v6580
    %v7147 = vadd.f32 %v5466, %v6620
    %v7148 = vadd.f32 %v5467, %v6660
    %v7149 = vadd.f32 %v5468, %v6700
    %v7150 = vadd.f32 %v5469, %v6740
    %v7151 = vadd.f32 %v5470, %v6780
    %v7152 = vadd.f32 %v5471, %v6820
    %v7153 = vadd.f32 %v5472, %v6860
    %v7154 = vadd.f32 %v5473, %v6900
    %v7155 = vadd.f32 %v5474, %v6940
    %v7156 = vadd.f32 %v5475, %v6980
    %v7157 = vadd.f32 %v5476, %v7020
    %v7158 = vadd.f32 %v5477, %v7060
    %v7159 = vadd.f32 %v5478, %v7100
    %v7160 = vadd.f32 %v5479, %v7140
    %v7161 = vmul.f32 %v7145, 0.70710677
    %v7162 = vmul.f32 %v7146, 0.70710677
    %v7163 = vmul.f32 %v7147, 0.70710677
    %v7164 = vmul.f32 %v7148, 0.70710677
    %v7165 = vmul.f32 %v7149, 0.70710677
    %v7166 = vmul.f32 %v7150, 0.70710677
    %v7167 = vmul.f32 %v7151, 0.70710677
    %v7168 = vmul.f32 %v7152, 0.70710677
    %v7169 = vmul.f32 %v7153, 0.70710677
    %v7170 = vmul.f32 %v7154, 0.70710677
    %v7171 = vmul.f32 %v7155, 0.70710677
    %v7172 = vmul.f32 %v7156, 0.70710677
    %v7173 = vmul.f32 %v7157, 0.70710677
    %v7174 = vmul.f32 %v7158, 0.70710677
    %v7175 = vmul.f32 %v7159, 0.70710677
    %v7176 = vmul.f32 %v7160, 0.70710677
    %v7177 = vadd.f32 %v7161, %v4396
    %v7178 = vadd.f32 %v7162, %v4397
    %v7179 = vadd.f32 %v7163, %v4398
    %v7180 = vadd.f32 %v7164, %v4399
    %v7181 = vadd.f32 %v7165, %v4400
    %v7182 = vadd.f32 %v7166, %v4401
    %v7183 = vadd.f32 %v7167, %v4402
    %v7184 = vadd.f32 %v7168, %v4403
    %v7185 = vadd.f32 %v7169, %v4404
    %v7186 = vadd.f32 %v7170, %v4405
    %v7187 = vadd.f32 %v7171, %v4406
    %v7188 = vadd.f32 %v7172, %v4407
    %v7189 = vadd.f32 %v7173, %v4408
    %v7190 = vadd.f32 %v7174, %v4409
    %v7191 = vadd.f32 %v7175, %v4410
    %v7192 = vadd.f32 %v7176, %v4411
    %v7193 = vmul.f32 %v7177, 0.70710677
    %v7194 = vmul.f32 %v7178, 0.70710677
    %v7195 = vmul.f32 %v7179, 0.70710677
    %v7196 = vmul.f32 %v7180, 0.70710677
    %v7197 = vmul.f32 %v7181, 0.70710677
    %v7198 = vmul.f32 %v7182, 0.70710677
    %v7199 = vmul.f32 %v7183, 0.70710677
    %v7200 = vmul.f32 %v7184, 0.70710677
    %v7201 = vmul.f32 %v7185, 0.70710677
    %v7202 = vmul.f32 %v7186, 0.70710677
    %v7203 = vmul.f32 %v7187, 0.70710677
    %v7204 = vmul.f32 %v7188, 0.70710677
    %v7205 = vmul.f32 %v7189, 0.70710677
    %v7206 = vmul.f32 %v7190, 0.70710677
    %v7207 = vmul.f32 %v7191, 0.70710677
    %v7208 = vmul.f32 %v7192, 0.70710677
    %v7209 = vpack.c.bf16 %v7194, %v7193
    %v7210 = vpack.c.bf16 %v7196, %v7195
    %v7211 = vpack.c.bf16 %v7198, %v7197
    %v7212 = vpack.c.bf16 %v7200, %v7199
    %v7213 = vpack.c.bf16 %v7202, %v7201
    %v7214 = vpack.c.bf16 %v7204, %v7203
    %v7215 = vpack.c.bf16 %v7206, %v7205
    %v7216 = vpack.c.bf16 %v7208, %v7207
    %v7217 = vld [vmem:[%s9] sm:$0xf]
    %v7218 = vld [vmem:[%s9 + $0x4] sm:$0xf]
    %v7219 = vld [vmem:[%s9 + $0x8] sm:$0xf]
    %v7220 = vld [vmem:[%s9 + $0xc] sm:$0xf]
    %v7221 = vld [vmem:[%s10] sm:$0x1]
    %v7223 = vlaneseq
    %v7224 = vshrl.u32 %v7223, 7
    %v7225 = vsub.s32 0, %v7224
    %v7226 = vrot.slane %v7221, %v7225
    %v7232 = vunpack.c.l.b16 %v7217
    %v7233 = vunpack.c.l.b16 %v7218
    %v7234 = vunpack.c.l.b16 %v7219
    %v7235 = vunpack.c.l.b16 %v7220
    %v7236 = vpack.c.b16 %v7233, %v7232
    %v7237 = vpack.c.b16 %v7235, %v7234
    %v7241 = vsel %vm734, %v7209, 0
    %v7244 = vsel %vm734, %v7210, 0
    %v7247 = vsel %vm734, %v7211, 0
    %v7250 = vsel %vm734, %v7212, 0
    %v7253 = vsel %vm734, %v7213, 0
    %v7256 = vsel %vm734, %v7214, 0
    %v7259 = vsel %vm734, %v7215, 0
    %v7262 = vsel %vm734, %v7216, 0
    %7264 = vmatprep.subr.bf16.mxu0 0
    %7265 = vmatpush1.bf16.msra.mxu0 %v7236
    %7266 = vmatprep.subr.bf16.mxu0 0
    %7267 = vmatpush1.bf16.msra.mxu0 %v7237
    %7268 = vmatprep.subr.bf16.mxu0 0
    %7269 = vmatpush1.bf16.msra.mxu0 0
    %7270 = vmatprep.subr.bf16.mxu0 0
    %7271 = vmatpush1.bf16.msra.mxu0 0
    %7272 = vmatprep.subr.bf16.mxu0 0
    %7273 = vmatpush1.bf16.msra.mxu0 0
    %7274 = vmatprep.subr.bf16.mxu0 0
    %7275 = vmatpush1.bf16.msra.mxu0 0
    %7276 = vmatprep.subr.bf16.mxu0 0
    %7277 = vmatpush1.bf16.msra.mxu0 0
    %7278 = vmatprep.subr.bf16.mxu0 0
    %7279 = vmatpush1.bf16.msra.mxu0 0
    %7280 = vmatprep.subr.bf16.mxu0 0
    %7281 = vmatpush1.bf16.msra.mxu0 0
    %7282 = vmatprep.subr.bf16.mxu0 0
    %7283 = vmatpush1.bf16.msra.mxu0 0
    %7284 = vmatprep.subr.bf16.mxu0 0
    %7285 = vmatpush1.bf16.msra.mxu0 0
    %7286 = vmatprep.subr.bf16.mxu0 0
    %7287 = vmatpush1.bf16.msra.mxu0 0
    %7288 = vmatprep.subr.bf16.mxu0 0
    %7289 = vmatpush1.bf16.msra.mxu0 0
    %7290 = vmatprep.subr.bf16.mxu0 0
    %7291 = vmatpush1.bf16.msra.mxu0 0
    %7292 = vmatprep.subr.bf16.mxu0 0
    %7293 = vmatpush1.bf16.msra.mxu0 0
    %7294 = vmatprep.subr.bf16.mxu0 0
    %7295 = vmatpush1.bf16.msra.mxu0 0
    %7296 = vmatprep.mubr.bf16.mxu0 0
    %7297 = vmatmul.mubr.bf16.gmra.mrb[0].mxu0 %v7241
    %v7298 = vpop.f32.mrb[0].mxu0
    %v7299 = vadd.f32 %v7226, %v7298
    %v7300 = vpop.f32.mrb[0].mxu0
    %v7301 = vpop.f32.mrb[0].mxu0
    %v7302 = vadd.f32 %v7226, %v7301
    %v7303 = vpop.f32.mrb[0].mxu0
    %7304 = vmatprep.mubr.bf16.mxu0 0
    %7305 = vmatmul.mubr.bf16.gmra.mrb[0].mxu0 %v7244
    %v7306 = vpop.f32.mrb[0].mxu0
    %v7307 = vadd.f32 %v7226, %v7306
    %v7308 = vpop.f32.mrb[0].mxu0
    %v7309 = vpop.f32.mrb[0].mxu0
    %v7310 = vadd.f32 %v7226, %v7309
    %v7311 = vpop.f32.mrb[0].mxu0
    %7312 = vmatprep.mubr.bf16.mxu0 0
    %7313 = vmatmul.mubr.bf16.gmra.mrb[0].mxu0 %v7247
    %v7314 = vpop.f32.mrb[0].mxu0
    %v7315 = vadd.f32 %v7226, %v7314
    %v7316 = vpop.f32.mrb[0].mxu0
    %v7317 = vpop.f32.mrb[0].mxu0
    %v7318 = vadd.f32 %v7226, %v7317
    %v7319 = vpop.f32.mrb[0].mxu0
    %7320 = vmatprep.mubr.bf16.mxu0 0
    %7321 = vmatmul.mubr.bf16.gmra.mrb[0].mxu0 %v7250
    %v7322 = vpop.f32.mrb[0].mxu0
    %v7323 = vadd.f32 %v7226, %v7322
    %v7324 = vpop.f32.mrb[0].mxu0
    %v7325 = vpop.f32.mrb[0].mxu0
    %v7326 = vadd.f32 %v7226, %v7325
    %v7327 = vpop.f32.mrb[0].mxu0
    %7328 = vmatprep.mubr.bf16.mxu0 0
    %7329 = vmatmul.mubr.bf16.gmra.mrb[0].mxu0 %v7253
    %v7330 = vpop.f32.mrb[0].mxu0
    %v7331 = vadd.f32 %v7226, %v7330
    %v7332 = vpop.f32.mrb[0].mxu0
    %v7333 = vpop.f32.mrb[0].mxu0
    %v7334 = vadd.f32 %v7226, %v7333
    %v7335 = vpop.f32.mrb[0].mxu0
    %7336 = vmatprep.mubr.bf16.mxu0 0
    %7337 = vmatmul.mubr.bf16.gmra.mrb[0].mxu0 %v7256
    %v7338 = vpop.f32.mrb[0].mxu0
    %v7339 = vadd.f32 %v7226, %v7338
    %v7340 = vpop.f32.mrb[0].mxu0
    %v7341 = vpop.f32.mrb[0].mxu0
    %v7342 = vadd.f32 %v7226, %v7341
    %v7343 = vpop.f32.mrb[0].mxu0
    %7344 = vmatprep.mubr.bf16.mxu0 0
    %7345 = vmatmul.mubr.bf16.gmra.mrb[0].mxu0 %v7259
    %v7346 = vpop.f32.mrb[0].mxu0
    %v7347 = vadd.f32 %v7226, %v7346
    %v7348 = vpop.f32.mrb[0].mxu0
    %v7349 = vpop.f32.mrb[0].mxu0
    %v7350 = vadd.f32 %v7226, %v7349
    %v7351 = vpop.f32.mrb[0].mxu0
    %7352 = vmatprep.mubr.bf16.mxu0 0
    %7353 = vmatmul.mubr.bf16.gmra.mrb[0].mxu0 %v7262
    %v7354 = vpop.f32.mrb[0].mxu0
    %v7355 = vadd.f32 %v7226, %v7354
    %v7356 = vpop.f32.mrb[0].mxu0
    %v7357 = vpop.f32.mrb[0].mxu0
    %v7358 = vadd.f32 %v7226, %v7357
    %v7359 = vpop.f32.mrb[0].mxu0
    %7360 = vdwg.mxu0
    %7361 = vst [vmem:[#allocation2] sm:$0xff] %v7299
    %7362 = vst [vmem:[#allocation2 + $0x8] sm:$0xff] %v7302
    %7363 = vst [vmem:[#allocation2 + $0x10] sm:$0xff] %v7307
    %7364 = vst [vmem:[#allocation2 + $0x18] sm:$0xff] %v7310
    %7365 = vst [vmem:[#allocation2 + $0x20] sm:$0xff] %v7315
    %7366 = vst [vmem:[#allocation2 + $0x28] sm:$0xff] %v7318
    %7367 = vst [vmem:[#allocation2 + $0x30] sm:$0xff] %v7323
    %7368 = vst [vmem:[#allocation2 + $0x38] sm:$0xff] %v7326
    %7369 = vst [vmem:[#allocation2 + $0x40] sm:$0xff] %v7331
    %7370 = vst [vmem:[#allocation2 + $0x48] sm:$0xff] %v7334
    %7371 = vst [vmem:[#allocation2 + $0x50] sm:$0xff] %v7339
    %7372 = vst [vmem:[#allocation2 + $0x58] sm:$0xff] %v7342
    %7373 = vst [vmem:[#allocation2 + $0x60] sm:$0xff] %v7347
    %7374 = vst [vmem:[#allocation2 + $0x68] sm:$0xff] %v7350
    %7375 = vst [vmem:[#allocation2 + $0x70] sm:$0xff] %v7355
    %7376 = vst [vmem:[#allocation2 + $0x78] sm:$0xff] %v7358
    %7377 = vst [vmem:[#allocation4] sm:$0xff] %v6473
    %7378 = vst [vmem:[#allocation4 + $0x8] sm:$0xff] %v6474
    %7379 = vst [vmem:[#allocation4 + $0x10] sm:$0xff] %v6475
    %7380 = vst [vmem:[#allocation4 + $0x18] sm:$0xff] %v6476
    %7381 = vst [vmem:[#allocation4 + $0x20] sm:$0xff] %v6477
    %7382 = vst [vmem:[#allocation4 + $0x28] sm:$0xff] %v6478
    %7383 = vst [vmem:[#allocation4 + $0x30] sm:$0xff] %v6479
    %7384 = vst [vmem:[#allocation4 + $0x38] sm:$0xff] %v6480
    %7385 = vst [vmem:[#allocation4 + $0x40] sm:$0xff] %v6481
    %7386 = vst [vmem:[#allocation4 + $0x48] sm:$0xff] %v6482
    %7387 = vst [vmem:[#allocation4 + $0x50] sm:$0xff] %v6483
    %7388 = vst [vmem:[#allocation4 + $0x58] sm:$0xff] %v6484
    %7389 = vst [vmem:[#allocation4 + $0x60] sm:$0xff] %v6485
    %7390 = vst [vmem:[#allocation4 + $0x68] sm:$0xff] %v6486
    %7391 = vst [vmem:[#allocation4 + $0x70] sm:$0xff] %v6487
    %7392 = vst [vmem:[#allocation4 + $0x78] sm:$0xff] %v6488
    // Predicated region
    $region46: #{tpu_custom_call.1} parent=1 // pred_check
      _
    $region47: #{tpu_custom_call.1} parent=1 // pred_check_branch
      %7394 = sbr.rel (0) target = $region49
    $region48: #{tpu_custom_call.1} parent=1 // pred_region
      %s7396 = ssub.s32 2048, 2048
      %7397 = vsyncadd [#allocation3], %s7396
      %s7398 = sshll.u32 [#allocation2], 4
      %s7399 = int_to_ptr.vmem [resolvable:$true] %s7398
      %7404 = dma.vmem_to_hbm [thread:$0]  %s7399, 2048, %s11, [#allocation3], 128, 128, 8
    $region49: #{tpu_custom_call.1} parent=1 // pred_fallthru
      _
    // Predicated region
    $region50: #{tpu_custom_call.1} parent=1 // pred_check
      _
    $region51: #{tpu_custom_call.1} parent=1 // pred_check_branch
      %7406 = sbr.rel (0) target = $region53
    $region52: #{tpu_custom_call.1} parent=1 // pred_region
      %s7408 = ssub.s32 2048, 2048
      %7409 = vsyncadd [#allocation5], %s7408
      %s7410 = sshll.u32 [#allocation4], 4
      %s7411 = int_to_ptr.vmem [resolvable:$true] %s7410
      %7416 = dma.vmem_to_hbm [thread:$0]  %s7411, 2048, %s12, [#allocation5], 128, 128, 8
    $region53: #{tpu_custom_call.1} parent=1 // pred_fallthru
      _
    // Predicated region
    $region54: #{tpu_custom_call.1} parent=1 // pred_check
      _
    $region55: #{tpu_custom_call.1} parent=1 // pred_check_branch
      %7418 = sbr.rel (0) target = $region57
    $region56: #{tpu_custom_call.1} parent=1 // pred_region
      %7419 = dma.done [#allocation3], 2048
    $region57: #{tpu_custom_call.1} parent=1 // pred_fallthru
      _
    // Predicated region
    $region58: #{tpu_custom_call.1} parent=1 // pred_check
      _
    $region59: #{tpu_custom_call.1} parent=1 // pred_check_branch
      %7421 = sbr.rel (0) target = $region61
    $region60: #{tpu_custom_call.1} parent=1 // pred_region
      %7422 = dma.done [#allocation5], 2048
    $region61: #{tpu_custom_call.1} parent=1 // pred_fallthru
      _
    %7423 = vsyncpa [#allocation3], 1
    %7424 = vsyncpa [#allocation5], 1

</llo_original>
